<compile_context>
chip_gen: v6e
topology: v6e:2x2x1
jax: 0.10.0
libtpu: 0.0.40
codegen_flags: <defaults>
</compile_context>

<pallas_src>
import functools
import math

import jax
import jax.numpy as jnp
from jax import lax
from jax.experimental import pallas as pl
from jax.experimental.pallas import tpu as pltpu


def _round_up(x, m):
    return (x + m - 1) // m * m


# ------------------------------ fused kernel body ------------------------------
def _fused_disc_kernel(x_ref, mask_ref, w1_ref, b1_ref, w2_ref, b2_ref, wf_ref, bf_ref,
                       o_ref, patch_ref, *, kh, kw, wc, mc, tb, tail):
    """One batch tile: conv1 (VPU) -> leaky -> conv2 (MXU) -> leaky -> FC -> sigmoid."""
    t_cols = x_ref.shape[1]                      # tb * mc  (lane-dense, multiple of 128)
    cout1 = w1_ref.shape[0]                      # 8
    cin2 = cout1
    shifts = [i * wc + j for i in range(kh) for j in range(kw)]

    # ---- conv1: kh*kw broadcast-scalar VPU FMAs over lane-shifted flat windows ----
    xw = jnp.concatenate(
        [x_ref[...], jnp.zeros((1, tail), jnp.float32)], axis=1)    # (1, T+tail)
    w1 = w1_ref[...]                                                # (Cout1, kh*kw)
    acc1 = jnp.zeros((cout1, t_cols), jnp.float32)
    for t, s in enumerate(shifts):
        acc1 = acc1 + w1[:, t:t + 1] * xw[:, s:s + t_cols]
    h1 = acc1 + b1_ref[...]
    h1 = jnp.where(h1 >= 0, h1, 0.2 * h1)
    h1 = h1 * mask_ref[...]        # zero the canvas ring + flatten garbage -> conv2 padding

    # ---- conv2: build (kh*kw*Cin2, T) patches in VMEM scratch, one MXU matmul ----
    h1w = jnp.concatenate(
        [h1, jnp.zeros((cin2, tail), jnp.float32)], axis=1)         # (Cin2, T+tail)
    for t, s in enumerate(shifts):
        patch_ref[t * cin2:(t + 1) * cin2, :] = (
            h1w[:, s:s + t_cols].astype(patch_ref.dtype))
    h2 = jnp.dot(w2_ref[...], patch_ref[...],
                 preferred_element_type=jnp.float32)                # (Cout2, T), f32 acc
    h2 = h2 + b2_ref[...]
    h2 = jnp.where(h2 >= 0, h2, 0.2 * h2)

    # ---- flatten + Linear(->1) + sigmoid: per-sample multiply-reduce against canvas-FC ----
    wfc = wf_ref[...]              # (Cout2, Mc); zeros at ring/garbage canvas positions
    sums = []
    for b in range(tb):            # Mc is a multiple of 128 -> aligned, copy-free slices
        blk = h2[:, b * mc:(b + 1) * mc] * wfc
        s_b = jnp.sum(blk, axis=1, keepdims=True)   # lane (XLU) reduction  -> (Cout2, 1)
        s_b = jnp.sum(s_b, axis=0, keepdims=True)   # sublane reduction     -> (1, 1)
        sums.append(s_b)
    z = jnp.concatenate(sums, axis=0) + bf_ref[...]                 # (tb, 1)
    # tiny (tb, 1) epilogue; exact sigmoid kept so the f32 path validates at 1e-4.
    o_ref[...] = 1.0 / (1.0 + jnp.exp(-z))


# --------------------------------- wrapper -------------------------------------
@functools.partial(jax.jit, static_argnames=("mxu_dtype", "tile_b"))
def cnn_discriminator_forward(params, x, *, mxu_dtype=jnp.bfloat16, tile_b=8):
    """x: (B, H, W) or (B, 1, H, W), like the PyTorch module. Returns (B, 1) float32."""
    if x.ndim == 4:
        x = x[:, 0]                                       # (B, 1, H, W) -> (B, H, W)
    b_dim, h, w = x.shape
    w1, b1 = params["w1"], params["b1"]
    w2, b2 = params["w2"], params["b2"]
    wf, bf = params["wf"], params["bf"]
    cout1, cin1, kh, kw = w1.shape
    cout2 = w2.shape[0]
    pad = 1
    ho1, wo1 = h + 2 * pad - kh + 1, w + 2 * pad - kw + 1   # conv1 spatial output (27, 27)
    ho2, wo2 = ho1 + 2 * pad - kh + 1, wo1 + 2 * pad - kw + 1  # conv2 output (26, 26)

    # Per-sample canvas, flattened row-major.  Mc is a multiple of 128 so the per-sample
    # FC slices and all tile boundaries are lane-aligned.
    wc = _round_up(w + 2 * pad + 1, 32)
    hc = _round_up(h + 2 * pad + 1, 128 // math.gcd(wc, 128))
    mc = hc * wc
    tail = _round_up((kh - 1) * wc + kw, 128)               # zero tail covering max shift

    tb = tile_b
    b_pad = _round_up(max(b_dim, tb), tb)
    t_cols = tb * mc

    # ---- tiny XLA-side prep (input-sized / weight-sized only) ----
    # TODO(synk): the canvas embedding of x is a small XLA pad/reshape over the raw input;
    # it could be pulled into the kernel with a manual DMA but is negligible at these sizes.
    x_canvas = jnp.zeros((b_pad, hc, wc), jnp.float32)
    x_canvas = x_canvas.at[:b_dim, 1 + pad:1 + pad + h, 1 + pad:1 + pad + w].set(
        x.astype(jnp.float32))
    x_flat = x_canvas.reshape(1, b_pad * mc)

    # conv1 validity mask for one batch tile (valid conv1 outputs sit at canvas (1..ho1, 1..wo1))
    m = jnp.zeros((hc, wc), jnp.float32)
    m = m.at[1:1 + ho1, 1:1 + wo1].set(1.0)
    mask_tile = jnp.tile(m.reshape(1, mc), (1, tb))          # (1, T)

    w1m = w1.reshape(cout1, cin1 * kh * kw).astype(jnp.float32)      # Cin1 == 1
    b1c = b1.reshape(cout1, 1).astype(jnp.float32)
    # K order (i, j, ci) to match the in-kernel patch stacking order.
    w2m = jnp.transpose(w2, (0, 2, 3, 1)).reshape(cout2, kh * kw * cout1).astype(mxu_dtype)
    b2c = b2.reshape(cout2, 1).astype(jnp.float32)
    # Scatter the flatten->Linear weights onto the canvas (torch flatten order c, ho2, wo2);
    # garbage/ring canvas positions get zero weight.
    wf3 = wf.reshape(cout2, ho2, wo2).astype(jnp.float32)
    wfc = jnp.zeros((cout2, hc, wc), jnp.float32).at[:, :ho2, :wo2].set(wf3)
    wfc = wfc.reshape(cout2, mc)
    bfc = bf.reshape(1, 1).astype(jnp.float32)

    kernel = functools.partial(_fused_disc_kernel, kh=kh, kw=kw, wc=wc, mc=mc,
                               tb=tb, tail=tail)
    itemsize = jnp.dtype(mxu_dtype).itemsize
    cost = pl.CostEstimate(
        flops=2 * b_pad * mc * (cout1 * cin1 * kh * kw + cout2 * cout1 * kh * kw + cout2),
        transcendentals=b_pad,
        bytes_accessed=(b_pad * mc * 4 + t_cols * 4 + cout2 * mc * 4
                        + cout2 * cout1 * kh * kw * itemsize + b_pad * 4),
    )
    out = pl.pallas_call(
        kernel,
        out_shape=jax.ShapeDtypeStruct((b_pad, 1), jnp.float32),
        grid=(b_pad // tb,),
        in_specs=[
            pl.BlockSpec((1, t_cols), lambda i: (0, i)),               # x canvas tile
            pl.BlockSpec((1, t_cols), lambda i: (0, 0)),               # conv1 mask (resident)
            pl.BlockSpec((cout1, cin1 * kh * kw), lambda i: (0, 0)),   # w1
            pl.BlockSpec((cout1, 1), lambda i: (0, 0)),                # b1
            pl.BlockSpec((cout2, kh * kw * cout1), lambda i: (0, 0)),  # w2 (K=128)
            pl.BlockSpec((cout2, 1), lambda i: (0, 0)),                # b2
            pl.BlockSpec((cout2, mc), lambda i: (0, 0)),               # FC weights on canvas
            pl.BlockSpec((1, 1), lambda i: (0, 0)),                    # FC bias
        ],
        out_specs=pl.BlockSpec((tb, 1), lambda i: (i, 0)),
        scratch_shapes=[pltpu.VMEM((kh * kw * cout1, t_cols), mxu_dtype)],  # conv2 patches
        compiler_params=pltpu.CompilerParams(
            dimension_semantics=("parallel",),      # megacore-shardable on v7x
            vmem_limit_bytes=48 * 1024 * 1024,
        ),
        cost_estimate=cost,
    )(x_flat, mask_tile, w1m, b1c, w2m, b2c, wfc, bfc)
    return out[:b_dim]


# ---------------------------- pure-JAX reference --------------------------------
def reference_forward(params, x):
    if x.ndim == 3:
        x = x[:, None, :, :]
    prec = lax.Precision.HIGHEST

    def conv(x, w, b):
        y = lax.conv_general_dilated(
            x, w, (1, 1), [(1, 1), (1, 1)],
            dimension_numbers=("NCHW", "OIHW", "NCHW"), precision=prec)
        return y + b[None, :, None, None]

    h = conv(x, params["w1"], params["b1"])
    h = jnp.where(h >= 0, h, 0.2 * h)
    h = conv(h, params["w2"], params["b2"])
    h = jnp.where(h >= 0, h, 0.2 * h)
    flat = h.reshape(h.shape[0], -1)
    out = jnp.dot(flat, params["wf"].T, precision=prec) + params["bf"]
    return 1.0 / (1.0 + jnp.exp(-out))


if __name__ == "__main__":
    def make_params(img_size, key):
        ks = jax.random.split(key, 6)
        fc_in = 16 * (img_size - 2) * (img_size - 2)
        return {
            "w1": jax.random.normal(ks[0], (8, 1, 4, 4), jnp.float32) * 0.1,
            "b1": jax.random.normal(ks[1], (8,), jnp.float32) * 0.1,
            "w2": jax.random.normal(ks[2], (16, 8, 4, 4), jnp.float32) * 0.05,
            "b2": jax.random.normal(ks[3], (16,), jnp.float32) * 0.05,
            "wf": jax.random.normal(ks[4], (1, fc_in), jnp.float32) * 0.02,
            "bf": jax.random.normal(ks[5], (1,), jnp.float32) * 0.02,
        }

    key = jax.random.PRNGKey(0)

    # Small config (img 16, batch 3): strict f32 check + bf16 perf-path check.
    k_p, k_x, key = jax.random.split(key, 3)
    params16 = make_params(16, k_p)
    x16 = jax.random.normal(k_x, (3, 16, 16), jnp.float32)
    ref16 = reference_forward(params16, x16)

    out_f32 = jax.block_until_ready(
        cnn_discriminator_forward(params16, x16, mxu_dtype=jnp.float32))
    assert out_f32.shape == (3, 1), out_f32.shape
    assert jnp.allclose(out_f32, ref16, rtol=1e-4, atol=1e-4), (out_f32, ref16)

    out_bf16 = jax.block_until_ready(cnn_discriminator_forward(params16, x16))
    assert out_bf16.shape == (3, 1), out_bf16.shape
    assert jnp.allclose(out_bf16, ref16, rtol=2e-2, atol=2e-2), (out_bf16, ref16)

    # Module-default size (img 28), batch 2, f32 validation path.
    k_p, k_x = jax.random.split(key, 2)
    params28 = make_params(28, k_p)
    x28 = jax.random.normal(k_x, (2, 28, 28), jnp.float32)
    ref28 = reference_forward(params28, x28)
    out28 = jax.block_until_ready(
        cnn_discriminator_forward(params28, x28, mxu_dtype=jnp.float32))
    assert out28.shape == (2, 1), out28.shape
    assert jnp.allclose(out28, ref28, rtol=1e-4, atol=1e-4), (out28, ref28)

    print("KERNEL_OK")
</pallas_src>

<mosaic_0001>
module attributes {stable_mosaic.version = 11 : i64} {
  func.func @_fused_disc_kernel(%arg0: i32, %arg1: memref<1x5120xf32, #tpu.memory_space<vmem>>, %arg2: memref<1x5120xf32, #tpu.memory_space<vmem>>, %arg3: memref<8x16xf32, #tpu.memory_space<vmem>>, %arg4: memref<8x1xf32, #tpu.memory_space<vmem>>, %arg5: memref<16x128xf32, #tpu.memory_space<vmem>>, %arg6: memref<16x1xf32, #tpu.memory_space<vmem>>, %arg7: memref<16x640xf32, #tpu.memory_space<vmem>>, %arg8: memref<1x1xf32, #tpu.memory_space<vmem>>, %arg9: memref<8x1xf32, #tpu.memory_space<vmem>>, %arg10: memref<128x5120xf32, #tpu.memory_space<vmem>>) attributes {dimension_semantics = [#tpu.dimension_semantics<parallel>], iteration_bounds = array<i64: 1>, scalar_prefetch = 0 : i64, scratch_operands = 1 : i64, tpu.core_type = #tpu.core_type<tc>, window_params = [{transform_indices = @transform_0, window_bounds = array<i64: 1, 5120>}, {pipeline_mode = #tpu.pipeline_mode<synchronous>, transform_indices = @transform_1, window_bounds = array<i64: 1, 5120>}, {pipeline_mode = #tpu.pipeline_mode<synchronous>, transform_indices = @transform_2, window_bounds = array<i64: 8, 16>}, {pipeline_mode = #tpu.pipeline_mode<synchronous>, transform_indices = @transform_3, window_bounds = array<i64: 8, 1>}, {pipeline_mode = #tpu.pipeline_mode<synchronous>, transform_indices = @transform_4, window_bounds = array<i64: 16, 128>}, {pipeline_mode = #tpu.pipeline_mode<synchronous>, transform_indices = @transform_5, window_bounds = array<i64: 16, 1>}, {pipeline_mode = #tpu.pipeline_mode<synchronous>, transform_indices = @transform_6, window_bounds = array<i64: 16, 640>}, {pipeline_mode = #tpu.pipeline_mode<synchronous>, transform_indices = @transform_7, window_bounds = array<i64: 1, 1>}, {transform_indices = @transform_8, window_bounds = array<i64: 8, 1>}]} {
    %c0 = arith.constant 0 : index
    %c0_0 = arith.constant 0 : index
    %0 = vector.load %arg1[%c0, %c0_0] : memref<1x5120xf32, #tpu.memory_space<vmem>>, vector<1x5120xf32>
    %cst = arith.constant 0.000000e+00 : f32
    %1 = vector.broadcast %cst : f32 to vector<1x128xf32>
    %2 = tpu.concatenate %0, %1 in 1 : vector<1x5120xf32>, vector<1x128xf32> -> vector<1x5248xf32>
    %c0_1 = arith.constant 0 : index
    %c0_2 = arith.constant 0 : index
    %3 = vector.load %arg3[%c0_1, %c0_2] : memref<8x16xf32, #tpu.memory_space<vmem>>, vector<8x16xf32>
    %cst_3 = arith.constant 0.000000e+00 : f32
    %4 = vector.broadcast %cst_3 : f32 to vector<8x5120xf32>
    %5 = vector.extract_strided_slice %3 {offsets = [0, 0], sizes = [8, 1], strides = [1, 1]} : vector<8x16xf32> to vector<8x1xf32>
    %6 = vector.extract_strided_slice %2 {offsets = [0, 0], sizes = [1, 5120], strides = [1, 1]} : vector<1x5248xf32> to vector<1x5120xf32>
    %7 = vector.broadcast %5 : vector<8x1xf32> to vector<8x5120xf32>
    %8 = vector.broadcast %6 : vector<1x5120xf32> to vector<8x5120xf32>
    %9 = arith.mulf %7, %8 : vector<8x5120xf32>
    %10 = arith.addf %4, %9 : vector<8x5120xf32>
    %11 = vector.extract_strided_slice %3 {offsets = [0, 1], sizes = [8, 1], strides = [1, 1]} : vector<8x16xf32> to vector<8x1xf32>
    %12 = vector.extract_strided_slice %2 {offsets = [0, 1], sizes = [1, 5120], strides = [1, 1]} : vector<1x5248xf32> to vector<1x5120xf32>
    %13 = vector.broadcast %11 : vector<8x1xf32> to vector<8x5120xf32>
    %14 = vector.broadcast %12 : vector<1x5120xf32> to vector<8x5120xf32>
    %15 = arith.mulf %13, %14 : vector<8x5120xf32>
    %16 = arith.addf %10, %15 : vector<8x5120xf32>
    %17 = vector.extract_strided_slice %3 {offsets = [0, 2], sizes = [8, 1], strides = [1, 1]} : vector<8x16xf32> to vector<8x1xf32>
    %18 = vector.extract_strided_slice %2 {offsets = [0, 2], sizes = [1, 5120], strides = [1, 1]} : vector<1x5248xf32> to vector<1x5120xf32>
    %19 = vector.broadcast %17 : vector<8x1xf32> to vector<8x5120xf32>
    %20 = vector.broadcast %18 : vector<1x5120xf32> to vector<8x5120xf32>
    %21 = arith.mulf %19, %20 : vector<8x5120xf32>
    %22 = arith.addf %16, %21 : vector<8x5120xf32>
    %23 = vector.extract_strided_slice %3 {offsets = [0, 3], sizes = [8, 1], strides = [1, 1]} : vector<8x16xf32> to vector<8x1xf32>
    %24 = vector.extract_strided_slice %2 {offsets = [0, 3], sizes = [1, 5120], strides = [1, 1]} : vector<1x5248xf32> to vector<1x5120xf32>
    %25 = vector.broadcast %23 : vector<8x1xf32> to vector<8x5120xf32>
    %26 = vector.broadcast %24 : vector<1x5120xf32> to vector<8x5120xf32>
    %27 = arith.mulf %25, %26 : vector<8x5120xf32>
    %28 = arith.addf %22, %27 : vector<8x5120xf32>
    %29 = vector.extract_strided_slice %3 {offsets = [0, 4], sizes = [8, 1], strides = [1, 1]} : vector<8x16xf32> to vector<8x1xf32>
    %30 = vector.extract_strided_slice %2 {offsets = [0, 32], sizes = [1, 5120], strides = [1, 1]} : vector<1x5248xf32> to vector<1x5120xf32>
    %31 = vector.broadcast %29 : vector<8x1xf32> to vector<8x5120xf32>
    %32 = vector.broadcast %30 : vector<1x5120xf32> to vector<8x5120xf32>
    %33 = arith.mulf %31, %32 : vector<8x5120xf32>
    %34 = arith.addf %28, %33 : vector<8x5120xf32>
    %35 = vector.extract_strided_slice %3 {offsets = [0, 5], sizes = [8, 1], strides = [1, 1]} : vector<8x16xf32> to vector<8x1xf32>
    %36 = vector.extract_strided_slice %2 {offsets = [0, 33], sizes = [1, 5120], strides = [1, 1]} : vector<1x5248xf32> to vector<1x5120xf32>
    %37 = vector.broadcast %35 : vector<8x1xf32> to vector<8x5120xf32>
    %38 = vector.broadcast %36 : vector<1x5120xf32> to vector<8x5120xf32>
    %39 = arith.mulf %37, %38 : vector<8x5120xf32>
    %40 = arith.addf %34, %39 : vector<8x5120xf32>
    %41 = vector.extract_strided_slice %3 {offsets = [0, 6], sizes = [8, 1], strides = [1, 1]} : vector<8x16xf32> to vector<8x1xf32>
    %42 = vector.extract_strided_slice %2 {offsets = [0, 34], sizes = [1, 5120], strides = [1, 1]} : vector<1x5248xf32> to vector<1x5120xf32>
    %43 = vector.broadcast %41 : vector<8x1xf32> to vector<8x5120xf32>
    %44 = vector.broadcast %42 : vector<1x5120xf32> to vector<8x5120xf32>
    %45 = arith.mulf %43, %44 : vector<8x5120xf32>
    %46 = arith.addf %40, %45 : vector<8x5120xf32>
    %47 = vector.extract_strided_slice %3 {offsets = [0, 7], sizes = [8, 1], strides = [1, 1]} : vector<8x16xf32> to vector<8x1xf32>
    %48 = vector.extract_strided_slice %2 {offsets = [0, 35], sizes = [1, 5120], strides = [1, 1]} : vector<1x5248xf32> to vector<1x5120xf32>
    %49 = vector.broadcast %47 : vector<8x1xf32> to vector<8x5120xf32>
    %50 = vector.broadcast %48 : vector<1x5120xf32> to vector<8x5120xf32>
    %51 = arith.mulf %49, %50 : vector<8x5120xf32>
    %52 = arith.addf %46, %51 : vector<8x5120xf32>
    %53 = vector.extract_strided_slice %3 {offsets = [0, 8], sizes = [8, 1], strides = [1, 1]} : vector<8x16xf32> to vector<8x1xf32>
    %54 = vector.extract_strided_slice %2 {offsets = [0, 64], sizes = [1, 5120], strides = [1, 1]} : vector<1x5248xf32> to vector<1x5120xf32>
    %55 = vector.broadcast %53 : vector<8x1xf32> to vector<8x5120xf32>
    %56 = vector.broadcast %54 : vector<1x5120xf32> to vector<8x5120xf32>
    %57 = arith.mulf %55, %56 : vector<8x5120xf32>
    %58 = arith.addf %52, %57 : vector<8x5120xf32>
    %59 = vector.extract_strided_slice %3 {offsets = [0, 9], sizes = [8, 1], strides = [1, 1]} : vector<8x16xf32> to vector<8x1xf32>
    %60 = vector.extract_strided_slice %2 {offsets = [0, 65], sizes = [1, 5120], strides = [1, 1]} : vector<1x5248xf32> to vector<1x5120xf32>
    %61 = vector.broadcast %59 : vector<8x1xf32> to vector<8x5120xf32>
    %62 = vector.broadcast %60 : vector<1x5120xf32> to vector<8x5120xf32>
    %63 = arith.mulf %61, %62 : vector<8x5120xf32>
    %64 = arith.addf %58, %63 : vector<8x5120xf32>
    %65 = vector.extract_strided_slice %3 {offsets = [0, 10], sizes = [8, 1], strides = [1, 1]} : vector<8x16xf32> to vector<8x1xf32>
    %66 = vector.extract_strided_slice %2 {offsets = [0, 66], sizes = [1, 5120], strides = [1, 1]} : vector<1x5248xf32> to vector<1x5120xf32>
    %67 = vector.broadcast %65 : vector<8x1xf32> to vector<8x5120xf32>
    %68 = vector.broadcast %66 : vector<1x5120xf32> to vector<8x5120xf32>
    %69 = arith.mulf %67, %68 : vector<8x5120xf32>
    %70 = arith.addf %64, %69 : vector<8x5120xf32>
    %71 = vector.extract_strided_slice %3 {offsets = [0, 11], sizes = [8, 1], strides = [1, 1]} : vector<8x16xf32> to vector<8x1xf32>
    %72 = vector.extract_strided_slice %2 {offsets = [0, 67], sizes = [1, 5120], strides = [1, 1]} : vector<1x5248xf32> to vector<1x5120xf32>
    %73 = vector.broadcast %71 : vector<8x1xf32> to vector<8x5120xf32>
    %74 = vector.broadcast %72 : vector<1x5120xf32> to vector<8x5120xf32>
    %75 = arith.mulf %73, %74 : vector<8x5120xf32>
    %76 = arith.addf %70, %75 : vector<8x5120xf32>
    %77 = vector.extract_strided_slice %3 {offsets = [0, 12], sizes = [8, 1], strides = [1, 1]} : vector<8x16xf32> to vector<8x1xf32>
    %78 = vector.extract_strided_slice %2 {offsets = [0, 96], sizes = [1, 5120], strides = [1, 1]} : vector<1x5248xf32> to vector<1x5120xf32>
    %79 = vector.broadcast %77 : vector<8x1xf32> to vector<8x5120xf32>
    %80 = vector.broadcast %78 : vector<1x5120xf32> to vector<8x5120xf32>
    %81 = arith.mulf %79, %80 : vector<8x5120xf32>
    %82 = arith.addf %76, %81 : vector<8x5120xf32>
    %83 = vector.extract_strided_slice %3 {offsets = [0, 13], sizes = [8, 1], strides = [1, 1]} : vector<8x16xf32> to vector<8x1xf32>
    %84 = vector.extract_strided_slice %2 {offsets = [0, 97], sizes = [1, 5120], strides = [1, 1]} : vector<1x5248xf32> to vector<1x5120xf32>
    %85 = vector.broadcast %83 : vector<8x1xf32> to vector<8x5120xf32>
    %86 = vector.broadcast %84 : vector<1x5120xf32> to vector<8x5120xf32>
    %87 = arith.mulf %85, %86 : vector<8x5120xf32>
    %88 = arith.addf %82, %87 : vector<8x5120xf32>
    %89 = vector.extract_strided_slice %3 {offsets = [0, 14], sizes = [8, 1], strides = [1, 1]} : vector<8x16xf32> to vector<8x1xf32>
    %90 = vector.extract_strided_slice %2 {offsets = [0, 98], sizes = [1, 5120], strides = [1, 1]} : vector<1x5248xf32> to vector<1x5120xf32>
    %91 = vector.broadcast %89 : vector<8x1xf32> to vector<8x5120xf32>
    %92 = vector.broadcast %90 : vector<1x5120xf32> to vector<8x5120xf32>
    %93 = arith.mulf %91, %92 : vector<8x5120xf32>
    %94 = arith.addf %88, %93 : vector<8x5120xf32>
    %95 = vector.extract_strided_slice %3 {offsets = [0, 15], sizes = [8, 1], strides = [1, 1]} : vector<8x16xf32> to vector<8x1xf32>
    %96 = vector.extract_strided_slice %2 {offsets = [0, 99], sizes = [1, 5120], strides = [1, 1]} : vector<1x5248xf32> to vector<1x5120xf32>
    %97 = vector.broadcast %95 : vector<8x1xf32> to vector<8x5120xf32>
    %98 = vector.broadcast %96 : vector<1x5120xf32> to vector<8x5120xf32>
    %99 = arith.mulf %97, %98 : vector<8x5120xf32>
    %100 = arith.addf %94, %99 : vector<8x5120xf32>
    %c0_4 = arith.constant 0 : index
    %c0_5 = arith.constant 0 : index
    %101 = vector.load %arg4[%c0_4, %c0_5] : memref<8x1xf32, #tpu.memory_space<vmem>>, vector<8x1xf32>
    %102 = vector.broadcast %101 : vector<8x1xf32> to vector<8x5120xf32>
    %103 = arith.addf %100, %102 : vector<8x5120xf32>
    %cst_6 = arith.constant 0.000000e+00 : f32
    %104 = vector.broadcast %cst_6 : f32 to vector<8x5120xf32>
    %105 = arith.cmpf oge, %103, %104 : vector<8x5120xf32>
    %cst_7 = arith.constant 2.000000e-01 : f32
    %106 = vector.broadcast %cst_7 : f32 to vector<8x5120xf32>
    %107 = arith.mulf %106, %103 : vector<8x5120xf32>
    %108 = arith.select %105, %103, %107 : vector<8x5120xi1>, vector<8x5120xf32>
    %c0_8 = arith.constant 0 : index
    %c0_9 = arith.constant 0 : index
    %109 = vector.load %arg2[%c0_8, %c0_9] : memref<1x5120xf32, #tpu.memory_space<vmem>>, vector<1x5120xf32>
    %110 = vector.broadcast %109 : vector<1x5120xf32> to vector<8x5120xf32>
    %111 = arith.mulf %108, %110 : vector<8x5120xf32>
    %cst_10 = arith.constant 0.000000e+00 : f32
    %112 = vector.broadcast %cst_10 : f32 to vector<8x128xf32>
    %113 = tpu.concatenate %111, %112 in 1 : vector<8x5120xf32>, vector<8x128xf32> -> vector<8x5248xf32>
    %114 = vector.extract_strided_slice %113 {offsets = [0, 0], sizes = [8, 5120], strides = [1, 1]} : vector<8x5248xf32> to vector<8x5120xf32>
    %c0_11 = arith.constant 0 : index
    %c0_12 = arith.constant 0 : index
    %115 = vector.load %arg10[%c0_11, %c0_12] : memref<128x5120xf32, #tpu.memory_space<vmem>>, vector<8x5120xf32>
    tpu.vector_store %arg10[%c0_11, %c0_12], %114 {strides = array<i32>} : memref<128x5120xf32, #tpu.memory_space<vmem>>, vector<8x5120xf32>,
    %116 = vector.extract_strided_slice %113 {offsets = [0, 1], sizes = [8, 5120], strides = [1, 1]} : vector<8x5248xf32> to vector<8x5120xf32>
    %c8 = arith.constant 8 : index
    %c0_13 = arith.constant 0 : index
    %117 = vector.load %arg10[%c8, %c0_13] : memref<128x5120xf32, #tpu.memory_space<vmem>>, vector<8x5120xf32>
    tpu.vector_store %arg10[%c8, %c0_13], %116 {strides = array<i32>} : memref<128x5120xf32, #tpu.memory_space<vmem>>, vector<8x5120xf32>,
    %118 = vector.extract_strided_slice %113 {offsets = [0, 2], sizes = [8, 5120], strides = [1, 1]} : vector<8x5248xf32> to vector<8x5120xf32>
    %c16 = arith.constant 16 : index
    %c0_14 = arith.constant 0 : index
    %119 = vector.load %arg10[%c16, %c0_14] : memref<128x5120xf32, #tpu.memory_space<vmem>>, vector<8x5120xf32>
    tpu.vector_store %arg10[%c16, %c0_14], %118 {strides = array<i32>} : memref<128x5120xf32, #tpu.memory_space<vmem>>, vector<8x5120xf32>,
    %120 = vector.extract_strided_slice %113 {offsets = [0, 3], sizes = [8, 5120], strides = [1, 1]} : vector<8x5248xf32> to vector<8x5120xf32>
    %c24 = arith.constant 24 : index
    %c0_15 = arith.constant 0 : index
    %121 = vector.load %arg10[%c24, %c0_15] : memref<128x5120xf32, #tpu.memory_space<vmem>>, vector<8x5120xf32>
    tpu.vector_store %arg10[%c24, %c0_15], %120 {strides = array<i32>} : memref<128x5120xf32, #tpu.memory_space<vmem>>, vector<8x5120xf32>,
    %122 = vector.extract_strided_slice %113 {offsets = [0, 32], sizes = [8, 5120], strides = [1, 1]} : vector<8x5248xf32> to vector<8x5120xf32>
    %c32 = arith.constant 32 : index
    %c0_16 = arith.constant 0 : index
    %123 = vector.load %arg10[%c32, %c0_16] : memref<128x5120xf32, #tpu.memory_space<vmem>>, vector<8x5120xf32>
    tpu.vector_store %arg10[%c32, %c0_16], %122 {strides = array<i32>} : memref<128x5120xf32, #tpu.memory_space<vmem>>, vector<8x5120xf32>,
    %124 = vector.extract_strided_slice %113 {offsets = [0, 33], sizes = [8, 5120], strides = [1, 1]} : vector<8x5248xf32> to vector<8x5120xf32>
    %c40 = arith.constant 40 : index
    %c0_17 = arith.constant 0 : index
    %125 = vector.load %arg10[%c40, %c0_17] : memref<128x5120xf32, #tpu.memory_space<vmem>>, vector<8x5120xf32>
    tpu.vector_store %arg10[%c40, %c0_17], %124 {strides = array<i32>} : memref<128x5120xf32, #tpu.memory_space<vmem>>, vector<8x5120xf32>,
    %126 = vector.extract_strided_slice %113 {offsets = [0, 34], sizes = [8, 5120], strides = [1, 1]} : vector<8x5248xf32> to vector<8x5120xf32>
    %c48 = arith.constant 48 : index
    %c0_18 = arith.constant 0 : index
    %127 = vector.load %arg10[%c48, %c0_18] : memref<128x5120xf32, #tpu.memory_space<vmem>>, vector<8x5120xf32>
    tpu.vector_store %arg10[%c48, %c0_18], %126 {strides = array<i32>} : memref<128x5120xf32, #tpu.memory_space<vmem>>, vector<8x5120xf32>,
    %128 = vector.extract_strided_slice %113 {offsets = [0, 35], sizes = [8, 5120], strides = [1, 1]} : vector<8x5248xf32> to vector<8x5120xf32>
    %c56 = arith.constant 56 : index
    %c0_19 = arith.constant 0 : index
    %129 = vector.load %arg10[%c56, %c0_19] : memref<128x5120xf32, #tpu.memory_space<vmem>>, vector<8x5120xf32>
    tpu.vector_store %arg10[%c56, %c0_19], %128 {strides = array<i32>} : memref<128x5120xf32, #tpu.memory_space<vmem>>, vector<8x5120xf32>,
    %130 = vector.extract_strided_slice %113 {offsets = [0, 64], sizes = [8, 5120], strides = [1, 1]} : vector<8x5248xf32> to vector<8x5120xf32>
    %c64 = arith.constant 64 : index
    %c0_20 = arith.constant 0 : index
    %131 = vector.load %arg10[%c64, %c0_20] : memref<128x5120xf32, #tpu.memory_space<vmem>>, vector<8x5120xf32>
    tpu.vector_store %arg10[%c64, %c0_20], %130 {strides = array<i32>} : memref<128x5120xf32, #tpu.memory_space<vmem>>, vector<8x5120xf32>,
    %132 = vector.extract_strided_slice %113 {offsets = [0, 65], sizes = [8, 5120], strides = [1, 1]} : vector<8x5248xf32> to vector<8x5120xf32>
    %c72 = arith.constant 72 : index
    %c0_21 = arith.constant 0 : index
    %133 = vector.load %arg10[%c72, %c0_21] : memref<128x5120xf32, #tpu.memory_space<vmem>>, vector<8x5120xf32>
    tpu.vector_store %arg10[%c72, %c0_21], %132 {strides = array<i32>} : memref<128x5120xf32, #tpu.memory_space<vmem>>, vector<8x5120xf32>,
    %134 = vector.extract_strided_slice %113 {offsets = [0, 66], sizes = [8, 5120], strides = [1, 1]} : vector<8x5248xf32> to vector<8x5120xf32>
    %c80 = arith.constant 80 : index
    %c0_22 = arith.constant 0 : index
    %135 = vector.load %arg10[%c80, %c0_22] : memref<128x5120xf32, #tpu.memory_space<vmem>>, vector<8x5120xf32>
    tpu.vector_store %arg10[%c80, %c0_22], %134 {strides = array<i32>} : memref<128x5120xf32, #tpu.memory_space<vmem>>, vector<8x5120xf32>,
    %136 = vector.extract_strided_slice %113 {offsets = [0, 67], sizes = [8, 5120], strides = [1, 1]} : vector<8x5248xf32> to vector<8x5120xf32>
    %c88 = arith.constant 88 : index
    %c0_23 = arith.constant 0 : index
    %137 = vector.load %arg10[%c88, %c0_23] : memref<128x5120xf32, #tpu.memory_space<vmem>>, vector<8x5120xf32>
    tpu.vector_store %arg10[%c88, %c0_23], %136 {strides = array<i32>} : memref<128x5120xf32, #tpu.memory_space<vmem>>, vector<8x5120xf32>,
    %138 = vector.extract_strided_slice %113 {offsets = [0, 96], sizes = [8, 5120], strides = [1, 1]} : vector<8x5248xf32> to vector<8x5120xf32>
    %c96 = arith.constant 96 : index
    %c0_24 = arith.constant 0 : index
    %139 = vector.load %arg10[%c96, %c0_24] : memref<128x5120xf32, #tpu.memory_space<vmem>>, vector<8x5120xf32>
    tpu.vector_store %arg10[%c96, %c0_24], %138 {strides = array<i32>} : memref<128x5120xf32, #tpu.memory_space<vmem>>, vector<8x5120xf32>,
    %140 = vector.extract_strided_slice %113 {offsets = [0, 97], sizes = [8, 5120], strides = [1, 1]} : vector<8x5248xf32> to vector<8x5120xf32>
    %c104 = arith.constant 104 : index
    %c0_25 = arith.constant 0 : index
    %141 = vector.load %arg10[%c104, %c0_25] : memref<128x5120xf32, #tpu.memory_space<vmem>>, vector<8x5120xf32>
    tpu.vector_store %arg10[%c104, %c0_25], %140 {strides = array<i32>} : memref<128x5120xf32, #tpu.memory_space<vmem>>, vector<8x5120xf32>,
    %142 = vector.extract_strided_slice %113 {offsets = [0, 98], sizes = [8, 5120], strides = [1, 1]} : vector<8x5248xf32> to vector<8x5120xf32>
    %c112 = arith.constant 112 : index
    %c0_26 = arith.constant 0 : index
    %143 = vector.load %arg10[%c112, %c0_26] : memref<128x5120xf32, #tpu.memory_space<vmem>>, vector<8x5120xf32>
    tpu.vector_store %arg10[%c112, %c0_26], %142 {strides = array<i32>} : memref<128x5120xf32, #tpu.memory_space<vmem>>, vector<8x5120xf32>,
    %144 = vector.extract_strided_slice %113 {offsets = [0, 99], sizes = [8, 5120], strides = [1, 1]} : vector<8x5248xf32> to vector<8x5120xf32>
    %c120 = arith.constant 120 : index
    %c0_27 = arith.constant 0 : index
    %145 = vector.load %arg10[%c120, %c0_27] : memref<128x5120xf32, #tpu.memory_space<vmem>>, vector<8x5120xf32>
    tpu.vector_store %arg10[%c120, %c0_27], %144 {strides = array<i32>} : memref<128x5120xf32, #tpu.memory_space<vmem>>, vector<8x5120xf32>,
    %c0_28 = arith.constant 0 : index
    %c0_29 = arith.constant 0 : index
    %146 = vector.load %arg5[%c0_28, %c0_29] : memref<16x128xf32, #tpu.memory_space<vmem>>, vector<16x128xf32>
    %c0_30 = arith.constant 0 : index
    %c0_31 = arith.constant 0 : index
    %147 = vector.load %arg10[%c0_30, %c0_31] : memref<128x5120xf32, #tpu.memory_space<vmem>>, vector<128x5120xf32>
    %cst_32 = arith.constant dense<0.000000e+00> : vector<16x5120xf32>
    %148 = tpu.matmul %146, %147, %cst_32 {dimension_numbers = #tpu.dot_dimension_numbers<[1], [0], [0], [1], [0, 0, 1, 1], [], []>} : vector<16x128xf32>, vector<128x5120xf32>, vector<16x5120xf32> -> vector<16x5120xf32>
    %c0_33 = arith.constant 0 : index
    %c0_34 = arith.constant 0 : index
    %149 = vector.load %arg6[%c0_33, %c0_34] : memref<16x1xf32, #tpu.memory_space<vmem>>, vector<16x1xf32>
    %150 = vector.broadcast %149 : vector<16x1xf32> to vector<16x5120xf32>
    %151 = arith.addf %148, %150 : vector<16x5120xf32>
    %cst_35 = arith.constant 0.000000e+00 : f32
    %152 = vector.broadcast %cst_35 : f32 to vector<16x5120xf32>
    %153 = arith.cmpf oge, %151, %152 : vector<16x5120xf32>
    %cst_36 = arith.constant 2.000000e-01 : f32
    %154 = vector.broadcast %cst_36 : f32 to vector<16x5120xf32>
    %155 = arith.mulf %154, %151 : vector<16x5120xf32>
    %156 = arith.select %153, %151, %155 : vector<16x5120xi1>, vector<16x5120xf32>
    %c0_37 = arith.constant 0 : index
    %c0_38 = arith.constant 0 : index
    %157 = vector.load %arg7[%c0_37, %c0_38] : memref<16x640xf32, #tpu.memory_space<vmem>>, vector<16x640xf32>
    %158 = vector.extract_strided_slice %156 {offsets = [0, 0], sizes = [16, 640], strides = [1, 1]} : vector<16x5120xf32> to vector<16x640xf32>
    %159 = arith.mulf %158, %157 : vector<16x640xf32>
    %cst_39 = arith.constant dense<0.000000e+00> : vector<16xf32>
    %160 = vector.multi_reduction <add>, %159, %cst_39 [1] : vector<16x640xf32> to vector<16xf32>
    %161 = vector.shape_cast %160 : vector<16xf32> to vector<16x1xf32>
    %cst_40 = arith.constant dense<0.000000e+00> : vector<1xf32>
    %162 = vector.multi_reduction <add>, %161, %cst_40 [0] : vector<16x1xf32> to vector<1xf32>
    %163 = vector.shape_cast %162 : vector<1xf32> to vector<1x1xf32>
    %164 = vector.extract_strided_slice %156 {offsets = [0, 640], sizes = [16, 640], strides = [1, 1]} : vector<16x5120xf32> to vector<16x640xf32>
    %165 = arith.mulf %164, %157 : vector<16x640xf32>
    %cst_41 = arith.constant dense<0.000000e+00> : vector<16xf32>
    %166 = vector.multi_reduction <add>, %165, %cst_41 [1] : vector<16x640xf32> to vector<16xf32>
    %167 = vector.shape_cast %166 : vector<16xf32> to vector<16x1xf32>
    %cst_42 = arith.constant dense<0.000000e+00> : vector<1xf32>
    %168 = vector.multi_reduction <add>, %167, %cst_42 [0] : vector<16x1xf32> to vector<1xf32>
    %169 = vector.shape_cast %168 : vector<1xf32> to vector<1x1xf32>
    %170 = vector.extract_strided_slice %156 {offsets = [0, 1280], sizes = [16, 640], strides = [1, 1]} : vector<16x5120xf32> to vector<16x640xf32>
    %171 = arith.mulf %170, %157 : vector<16x640xf32>
    %cst_43 = arith.constant dense<0.000000e+00> : vector<16xf32>
    %172 = vector.multi_reduction <add>, %171, %cst_43 [1] : vector<16x640xf32> to vector<16xf32>
    %173 = vector.shape_cast %172 : vector<16xf32> to vector<16x1xf32>
    %cst_44 = arith.constant dense<0.000000e+00> : vector<1xf32>
    %174 = vector.multi_reduction <add>, %173, %cst_44 [0] : vector<16x1xf32> to vector<1xf32>
    %175 = vector.shape_cast %174 : vector<1xf32> to vector<1x1xf32>
    %176 = vector.extract_strided_slice %156 {offsets = [0, 1920], sizes = [16, 640], strides = [1, 1]} : vector<16x5120xf32> to vector<16x640xf32>
    %177 = arith.mulf %176, %157 : vector<16x640xf32>
    %cst_45 = arith.constant dense<0.000000e+00> : vector<16xf32>
    %178 = vector.multi_reduction <add>, %177, %cst_45 [1] : vector<16x640xf32> to vector<16xf32>
    %179 = vector.shape_cast %178 : vector<16xf32> to vector<16x1xf32>
    %cst_46 = arith.constant dense<0.000000e+00> : vector<1xf32>
    %180 = vector.multi_reduction <add>, %179, %cst_46 [0] : vector<16x1xf32> to vector<1xf32>
    %181 = vector.shape_cast %180 : vector<1xf32> to vector<1x1xf32>
    %182 = vector.extract_strided_slice %156 {offsets = [0, 2560], sizes = [16, 640], strides = [1, 1]} : vector<16x5120xf32> to vector<16x640xf32>
    %183 = arith.mulf %182, %157 : vector<16x640xf32>
    %cst_47 = arith.constant dense<0.000000e+00> : vector<16xf32>
    %184 = vector.multi_reduction <add>, %183, %cst_47 [1] : vector<16x640xf32> to vector<16xf32>
    %185 = vector.shape_cast %184 : vector<16xf32> to vector<16x1xf32>
    %cst_48 = arith.constant dense<0.000000e+00> : vector<1xf32>
    %186 = vector.multi_reduction <add>, %185, %cst_48 [0] : vector<16x1xf32> to vector<1xf32>
    %187 = vector.shape_cast %186 : vector<1xf32> to vector<1x1xf32>
    %188 = vector.extract_strided_slice %156 {offsets = [0, 3200], sizes = [16, 640], strides = [1, 1]} : vector<16x5120xf32> to vector<16x640xf32>
    %189 = arith.mulf %188, %157 : vector<16x640xf32>
    %cst_49 = arith.constant dense<0.000000e+00> : vector<16xf32>
    %190 = vector.multi_reduction <add>, %189, %cst_49 [1] : vector<16x640xf32> to vector<16xf32>
    %191 = vector.shape_cast %190 : vector<16xf32> to vector<16x1xf32>
    %cst_50 = arith.constant dense<0.000000e+00> : vector<1xf32>
    %192 = vector.multi_reduction <add>, %191, %cst_50 [0] : vector<16x1xf32> to vector<1xf32>
    %193 = vector.shape_cast %192 : vector<1xf32> to vector<1x1xf32>
    %194 = vector.extract_strided_slice %156 {offsets = [0, 3840], sizes = [16, 640], strides = [1, 1]} : vector<16x5120xf32> to vector<16x640xf32>
    %195 = arith.mulf %194, %157 : vector<16x640xf32>
    %cst_51 = arith.constant dense<0.000000e+00> : vector<16xf32>
    %196 = vector.multi_reduction <add>, %195, %cst_51 [1] : vector<16x640xf32> to vector<16xf32>
    %197 = vector.shape_cast %196 : vector<16xf32> to vector<16x1xf32>
    %cst_52 = arith.constant dense<0.000000e+00> : vector<1xf32>
    %198 = vector.multi_reduction <add>, %197, %cst_52 [0] : vector<16x1xf32> to vector<1xf32>
    %199 = vector.shape_cast %198 : vector<1xf32> to vector<1x1xf32>
    %200 = vector.extract_strided_slice %156 {offsets = [0, 4480], sizes = [16, 640], strides = [1, 1]} : vector<16x5120xf32> to vector<16x640xf32>
    %201 = arith.mulf %200, %157 : vector<16x640xf32>
    %cst_53 = arith.constant dense<0.000000e+00> : vector<16xf32>
    %202 = vector.multi_reduction <add>, %201, %cst_53 [1] : vector<16x640xf32> to vector<16xf32>
    %203 = vector.shape_cast %202 : vector<16xf32> to vector<16x1xf32>
    %cst_54 = arith.constant dense<0.000000e+00> : vector<1xf32>
    %204 = vector.multi_reduction <add>, %203, %cst_54 [0] : vector<16x1xf32> to vector<1xf32>
    %205 = vector.shape_cast %204 : vector<1xf32> to vector<1x1xf32>
    %206 = tpu.concatenate %163, %169, %175, %181, %187, %193, %199, %205 in 0 : vector<1x1xf32>, vector<1x1xf32>, vector<1x1xf32>, vector<1x1xf32>, vector<1x1xf32>, vector<1x1xf32>, vector<1x1xf32>, vector<1x1xf32> -> vector<8x1xf32>
    %c0_55 = arith.constant 0 : index
    %c0_56 = arith.constant 0 : index
    %207 = vector.load %arg8[%c0_55, %c0_56] : memref<1x1xf32, #tpu.memory_space<vmem>>, vector<1x1xf32>
    %208 = vector.broadcast %207 : vector<1x1xf32> to vector<8x1xf32>
    %209 = arith.addf %206, %208 : vector<8x1xf32>
    %cst_57 = arith.constant 0.000000e+00 : f32
    %210 = vector.broadcast %cst_57 : f32 to vector<8x1xf32>
    %211 = arith.subf %210, %209 : vector<8x1xf32>
    %212 = math.exp %211 : vector<8x1xf32>
    %cst_58 = arith.constant 1.000000e+00 : f32
    %213 = vector.broadcast %cst_58 : f32 to vector<8x1xf32>
    %214 = arith.addf %213, %212 : vector<8x1xf32>
    %cst_59 = arith.constant 1.000000e+00 : f32
    %215 = vector.broadcast %cst_59 : f32 to vector<8x1xf32>
    %216 = arith.divf %215, %214 : vector<8x1xf32>
    %c0_60 = arith.constant 0 : index
    %c0_61 = arith.constant 0 : index
    %217 = vector.load %arg9[%c0_60, %c0_61] : memref<8x1xf32, #tpu.memory_space<vmem>>, vector<8x1xf32>
    tpu.vector_store %arg9[%c0_60, %c0_61], %216 {strides = array<i32>} : memref<8x1xf32, #tpu.memory_space<vmem>>, vector<8x1xf32>,
    return
  }
  func.func @transform_0(%arg0: i32) -> (i32, i32) {
    %c0_i32 = arith.constant 0 : i32
    %c0_i32_0 = arith.constant 0 : i32
    return %c0_i32, %arg0 : i32, i32
  }
  func.func @transform_1(%arg0: i32) -> (i32, i32) {
    %c0_i32 = arith.constant 0 : i32
    %c0_i32_0 = arith.constant 0 : i32
    %c0_i32_1 = arith.constant 0 : i32
    return %c0_i32, %c0_i32_0 : i32, i32
  }
  func.func @transform_2(%arg0: i32) -> (i32, i32) {
    %c0_i32 = arith.constant 0 : i32
    %c0_i32_0 = arith.constant 0 : i32
    %c0_i32_1 = arith.constant 0 : i32
    return %c0_i32, %c0_i32_0 : i32, i32
  }
  func.func @transform_3(%arg0: i32) -> (i32, i32) {
    %c0_i32 = arith.constant 0 : i32
    %c0_i32_0 = arith.constant 0 : i32
    %c0_i32_1 = arith.constant 0 : i32
    return %c0_i32, %c0_i32_0 : i32, i32
  }
  func.func @transform_4(%arg0: i32) -> (i32, i32) {
    %c0_i32 = arith.constant 0 : i32
    %c0_i32_0 = arith.constant 0 : i32
    %c0_i32_1 = arith.constant 0 : i32
    return %c0_i32, %c0_i32_0 : i32, i32
  }
  func.func @transform_5(%arg0: i32) -> (i32, i32) {
    %c0_i32 = arith.constant 0 : i32
    %c0_i32_0 = arith.constant 0 : i32
    %c0_i32_1 = arith.constant 0 : i32
    return %c0_i32, %c0_i32_0 : i32, i32
  }
  func.func @transform_6(%arg0: i32) -> (i32, i32) {
    %c0_i32 = arith.constant 0 : i32
    %c0_i32_0 = arith.constant 0 : i32
    %c0_i32_1 = arith.constant 0 : i32
    return %c0_i32, %c0_i32_0 : i32, i32
  }
  func.func @transform_7(%arg0: i32) -> (i32, i32) {
    %c0_i32 = arith.constant 0 : i32
    %c0_i32_0 = arith.constant 0 : i32
    %c0_i32_1 = arith.constant 0 : i32
    return %c0_i32, %c0_i32_0 : i32, i32
  }
  func.func @transform_8(%arg0: i32) -> (i32, i32) {
    %c0_i32 = arith.constant 0 : i32
    %c0_i32_0 = arith.constant 0 : i32
    return %arg0, %c0_i32 : i32, i32
  }
}

</mosaic_0001>

<llo_original>
// kernel: cnn_discriminator_forward.1
$region0: #{cnn_discriminator_forward.1}
  #allocation0 [shape = 'u32[]', space=smem, size = 0x4, offset = 0x4, fixed_abs, tag = 'smem constant byte address 0x4 - core index']
  #allocation1 [shape = 'u32[144,128]{1,0:T(1,128)}', space=vmem, size = 0x12000, scoped, tag = 'internal scratch']
  #allocation2 [shape = 'f32[128,5120]{1,0:T(8,128)}', space=vmem, size = 0x280000, scoped, tag = 'scratch operand']
  #allocation3 [shape = 'f32[1,1]{1,0:T(1,128)S(1)}', space=vmem, size = 0x200, scoped, tag = 'scoped memory for cnn_discriminator_forward.1']
  %s0 = inlined_call_operand.vmem [shape: f32[1,5120], index: 0, kind: input, shape index: {}]
  %s1 = inlined_call_operand.vmem [shape: f32[1,5120], index: 1, kind: input, shape index: {}]
  %s2 = inlined_call_operand.vmem [shape: f32[8,16], index: 2, kind: input, shape index: {}]
  %s3 = inlined_call_operand.vmem [shape: f32[8,1], index: 3, kind: input, shape index: {}]
  %s4 = inlined_call_operand.vmem [shape: f32[16,128], index: 4, kind: input, shape index: {}]
  %s5 = inlined_call_operand.vmem [shape: f32[16,1], index: 5, kind: input, shape index: {}]
  %s6 = inlined_call_operand.vmem [shape: f32[16,640], index: 6, kind: input, shape index: {}]
  %s7 = inlined_call_operand.<no memory space> [shape: f32[1,1], index: 7, kind: input, shape index: {}]
  %s8 = inlined_call_operand.vmem [shape: f32[8,1], index: 8, kind: output, shape index: {}]
  %s9 = sld [smem:[#allocation0]]
  $region42: #{cnn_discriminator_forward.1} parent=0
    _
  %s11 = ssub.s32 1, %s9
  %s12 = scalar_select 0, %s11, %s9
  %v13 = vstv %s7
  %14 = vst [vmem:[#allocation3] sm:$0x1] %v13
  // Predicated region
  $region2: #{cnn_discriminator_forward.1} parent=0 // pred_check
    _
  $region3: #{cnn_discriminator_forward.1} parent=0 // pred_check_branch
    %16 = sbr.rel (0) target = $region5
  $region4: #{cnn_discriminator_forward.1} parent=0 // pred_region
    _
  $region5: #{cnn_discriminator_forward.1} parent=0 // pred_fallthru
    _
  // Predicated region
  $region6: #{cnn_discriminator_forward.1} parent=0 // pred_check
    _
  $region7: #{cnn_discriminator_forward.1} parent=0 // pred_check_branch
    %18 = sbr.rel (0) target = $region9
  $region8: #{cnn_discriminator_forward.1} parent=0 // pred_region
    _
  $region9: #{cnn_discriminator_forward.1} parent=0 // pred_fallthru
    _
  // Predicated region
  $region10: #{cnn_discriminator_forward.1} parent=0 // pred_check
    _
  $region11: #{cnn_discriminator_forward.1} parent=0 // pred_check_branch
    %20 = sbr.rel (0) target = $region13
  $region12: #{cnn_discriminator_forward.1} parent=0 // pred_region
    _
  $region13: #{cnn_discriminator_forward.1} parent=0 // pred_fallthru
    _
  // Predicated region
  $region14: #{cnn_discriminator_forward.1} parent=0 // pred_check
    _
  $region15: #{cnn_discriminator_forward.1} parent=0 // pred_check_branch
    %22 = sbr.rel (0) target = $region17
  $region16: #{cnn_discriminator_forward.1} parent=0 // pred_region
    _
  $region17: #{cnn_discriminator_forward.1} parent=0 // pred_fallthru
    _
  // Predicated region
  $region18: #{cnn_discriminator_forward.1} parent=0 // pred_check
    _
  $region19: #{cnn_discriminator_forward.1} parent=0 // pred_check_branch
    %24 = sbr.rel (0) target = $region21
  $region20: #{cnn_discriminator_forward.1} parent=0 // pred_region
    _
  $region21: #{cnn_discriminator_forward.1} parent=0 // pred_fallthru
    _
  // Predicated region
  $region22: #{cnn_discriminator_forward.1} parent=0 // pred_check
    _
  $region23: #{cnn_discriminator_forward.1} parent=0 // pred_check_branch
    %26 = sbr.rel (0) target = $region25
  $region24: #{cnn_discriminator_forward.1} parent=0 // pred_region
    _
  $region25: #{cnn_discriminator_forward.1} parent=0 // pred_fallthru
    _
  // Predicated region
  $region26: #{cnn_discriminator_forward.1} parent=0 // pred_check
    _
  $region27: #{cnn_discriminator_forward.1} parent=0 // pred_check_branch
    %28 = sbr.rel (0) target = $region29
  $region28: #{cnn_discriminator_forward.1} parent=0 // pred_region
    _
  $region29: #{cnn_discriminator_forward.1} parent=0 // pred_fallthru
    _
  // Predicated region
  $region30: #{cnn_discriminator_forward.1} parent=0 // pred_check
    _
  $region31: #{cnn_discriminator_forward.1} parent=0 // pred_check_branch
    %30 = sbr.rel (0) target = $region33
  $region32: #{cnn_discriminator_forward.1} parent=0 // pred_region
    _
  $region33: #{cnn_discriminator_forward.1} parent=0 // pred_fallthru
    _
  %v31 = vld [vmem:[%s0] sm:$0xff]
  %v32 = vld [vmem:[%s0 + $0x8] sm:$0xff]
  %v33 = vld [vmem:[%s0 + $0x10] sm:$0xff]
  %v34 = vld [vmem:[%s0 + $0x18] sm:$0xff]
  %v35 = vld [vmem:[%s0 + $0x20] sm:$0xff]
  %v41 = vlaneseq
  %v42 = vshrl.u32 %v41, 7
  %v43 = vsub.s32 0, %v42
  %v44 = vrot.slane %v31, %v43
  %v45 = vlaneseq
  %v46 = vshrl.u32 %v45, 7
  %v47 = vsub.s32 1, %v46
  %v48 = vrot.slane %v31, %v47
  %v49 = vlaneseq
  %v50 = vshrl.u32 %v49, 7
  %v51 = vsub.s32 2, %v50
  %v52 = vrot.slane %v31, %v51
  %v53 = vlaneseq
  %v54 = vshrl.u32 %v53, 7
  %v55 = vsub.s32 3, %v54
  %v56 = vrot.slane %v31, %v55
  %v57 = vlaneseq
  %v58 = vshrl.u32 %v57, 7
  %v59 = vsub.s32 4, %v58
  %v60 = vrot.slane %v31, %v59
  %v61 = vlaneseq
  %v62 = vshrl.u32 %v61, 7
  %v63 = vsub.s32 5, %v62
  %v64 = vrot.slane %v31, %v63
  %v65 = vlaneseq
  %v66 = vshrl.u32 %v65, 7
  %v67 = vsub.s32 6, %v66
  %v68 = vrot.slane %v31, %v67
  %v69 = vlaneseq
  %v70 = vshrl.u32 %v69, 7
  %v71 = vsub.s32 7, %v70
  %v72 = vrot.slane %v31, %v71
  %v73 = vlaneseq
  %v74 = vshrl.u32 %v73, 7
  %v75 = vsub.s32 0, %v74
  %v76 = vrot.slane %v32, %v75
  %v77 = vlaneseq
  %v78 = vshrl.u32 %v77, 7
  %v79 = vsub.s32 1, %v78
  %v80 = vrot.slane %v32, %v79
  %v81 = vlaneseq
  %v82 = vshrl.u32 %v81, 7
  %v83 = vsub.s32 2, %v82
  %v84 = vrot.slane %v32, %v83
  %v85 = vlaneseq
  %v86 = vshrl.u32 %v85, 7
  %v87 = vsub.s32 3, %v86
  %v88 = vrot.slane %v32, %v87
  %v89 = vlaneseq
  %v90 = vshrl.u32 %v89, 7
  %v91 = vsub.s32 4, %v90
  %v92 = vrot.slane %v32, %v91
  %v93 = vlaneseq
  %v94 = vshrl.u32 %v93, 7
  %v95 = vsub.s32 5, %v94
  %v96 = vrot.slane %v32, %v95
  %v97 = vlaneseq
  %v98 = vshrl.u32 %v97, 7
  %v99 = vsub.s32 6, %v98
  %v100 = vrot.slane %v32, %v99
  %v101 = vlaneseq
  %v102 = vshrl.u32 %v101, 7
  %v103 = vsub.s32 7, %v102
  %v104 = vrot.slane %v32, %v103
  %v105 = vlaneseq
  %v106 = vshrl.u32 %v105, 7
  %v107 = vsub.s32 0, %v106
  %v108 = vrot.slane %v33, %v107
  %v109 = vlaneseq
  %v110 = vshrl.u32 %v109, 7
  %v111 = vsub.s32 1, %v110
  %v112 = vrot.slane %v33, %v111
  %v113 = vlaneseq
  %v114 = vshrl.u32 %v113, 7
  %v115 = vsub.s32 2, %v114
  %v116 = vrot.slane %v33, %v115
  %v117 = vlaneseq
  %v118 = vshrl.u32 %v117, 7
  %v119 = vsub.s32 3, %v118
  %v120 = vrot.slane %v33, %v119
  %v121 = vlaneseq
  %v122 = vshrl.u32 %v121, 7
  %v123 = vsub.s32 4, %v122
  %v124 = vrot.slane %v33, %v123
  %v125 = vlaneseq
  %v126 = vshrl.u32 %v125, 7
  %v127 = vsub.s32 5, %v126
  %v128 = vrot.slane %v33, %v127
  %v129 = vlaneseq
  %v130 = vshrl.u32 %v129, 7
  %v131 = vsub.s32 6, %v130
  %v132 = vrot.slane %v33, %v131
  %v133 = vlaneseq
  %v134 = vshrl.u32 %v133, 7
  %v135 = vsub.s32 7, %v134
  %v136 = vrot.slane %v33, %v135
  %v137 = vlaneseq
  %v138 = vshrl.u32 %v137, 7
  %v139 = vsub.s32 0, %v138
  %v140 = vrot.slane %v34, %v139
  %v141 = vlaneseq
  %v142 = vshrl.u32 %v141, 7
  %v143 = vsub.s32 1, %v142
  %v144 = vrot.slane %v34, %v143
  %v145 = vlaneseq
  %v146 = vshrl.u32 %v145, 7
  %v147 = vsub.s32 2, %v146
  %v148 = vrot.slane %v34, %v147
  %v149 = vlaneseq
  %v150 = vshrl.u32 %v149, 7
  %v151 = vsub.s32 3, %v150
  %v152 = vrot.slane %v34, %v151
  %v153 = vlaneseq
  %v154 = vshrl.u32 %v153, 7
  %v155 = vsub.s32 4, %v154
  %v156 = vrot.slane %v34, %v155
  %v157 = vlaneseq
  %v158 = vshrl.u32 %v157, 7
  %v159 = vsub.s32 5, %v158
  %v160 = vrot.slane %v34, %v159
  %v161 = vlaneseq
  %v162 = vshrl.u32 %v161, 7
  %v163 = vsub.s32 6, %v162
  %v164 = vrot.slane %v34, %v163
  %v165 = vlaneseq
  %v166 = vshrl.u32 %v165, 7
  %v167 = vsub.s32 7, %v166
  %v168 = vrot.slane %v34, %v167
  %v169 = vlaneseq
  %v170 = vshrl.u32 %v169, 7
  %v171 = vsub.s32 0, %v170
  %v172 = vrot.slane %v35, %v171
  %v173 = vlaneseq
  %v174 = vshrl.u32 %v173, 7
  %v175 = vsub.s32 1, %v174
  %v176 = vrot.slane %v35, %v175
  %v177 = vlaneseq
  %v178 = vshrl.u32 %v177, 7
  %v179 = vsub.s32 2, %v178
  %v180 = vrot.slane %v35, %v179
  %v181 = vlaneseq
  %v182 = vshrl.u32 %v181, 7
  %v183 = vsub.s32 3, %v182
  %v184 = vrot.slane %v35, %v183
  %v185 = vlaneseq
  %v186 = vshrl.u32 %v185, 7
  %v187 = vsub.s32 4, %v186
  %v188 = vrot.slane %v35, %v187
  %v189 = vlaneseq
  %v190 = vshrl.u32 %v189, 7
  %v191 = vsub.s32 5, %v190
  %v192 = vrot.slane %v35, %v191
  %v193 = vlaneseq
  %v194 = vshrl.u32 %v193, 7
  %v195 = vsub.s32 6, %v194
  %v196 = vrot.slane %v35, %v195
  %v197 = vlaneseq
  %v198 = vshrl.u32 %v197, 7
  %v199 = vsub.s32 7, %v198
  %v200 = vrot.slane %v35, %v199
  %v241 = vld [vmem:[%s2] sm:$0xff]
  %243 = vset.pattern.permute.xlu0 0
  %244 = vperm.xlu0 %243, %v241
  %v245 = vpop.permute.xlu0 %244
  %v247 = vlaneseq
  %v248 = vshrl.u32 %v247, 7
  %v249 = vsub.s32 0, %v248
  %v250 = vrot.slane %v44, %v249
  %v251 = vlaneseq
  %v252 = vshrl.u32 %v251, 7
  %v253 = vsub.s32 0, %v252
  %v254 = vrot.slane %v48, %v253
  %v255 = vlaneseq
  %v256 = vshrl.u32 %v255, 7
  %v257 = vsub.s32 0, %v256
  %v258 = vrot.slane %v52, %v257
  %v259 = vlaneseq
  %v260 = vshrl.u32 %v259, 7
  %v261 = vsub.s32 0, %v260
  %v262 = vrot.slane %v56, %v261
  %v263 = vlaneseq
  %v264 = vshrl.u32 %v263, 7
  %v265 = vsub.s32 0, %v264
  %v266 = vrot.slane %v60, %v265
  %v267 = vlaneseq
  %v268 = vshrl.u32 %v267, 7
  %v269 = vsub.s32 0, %v268
  %v270 = vrot.slane %v64, %v269
  %v271 = vlaneseq
  %v272 = vshrl.u32 %v271, 7
  %v273 = vsub.s32 0, %v272
  %v274 = vrot.slane %v68, %v273
  %v275 = vlaneseq
  %v276 = vshrl.u32 %v275, 7
  %v277 = vsub.s32 0, %v276
  %v278 = vrot.slane %v72, %v277
  %v279 = vlaneseq
  %v280 = vshrl.u32 %v279, 7
  %v281 = vsub.s32 0, %v280
  %v282 = vrot.slane %v76, %v281
  %v283 = vlaneseq
  %v284 = vshrl.u32 %v283, 7
  %v285 = vsub.s32 0, %v284
  %v286 = vrot.slane %v80, %v285
  %v287 = vlaneseq
  %v288 = vshrl.u32 %v287, 7
  %v289 = vsub.s32 0, %v288
  %v290 = vrot.slane %v84, %v289
  %v291 = vlaneseq
  %v292 = vshrl.u32 %v291, 7
  %v293 = vsub.s32 0, %v292
  %v294 = vrot.slane %v88, %v293
  %v295 = vlaneseq
  %v296 = vshrl.u32 %v295, 7
  %v297 = vsub.s32 0, %v296
  %v298 = vrot.slane %v92, %v297
  %v299 = vlaneseq
  %v300 = vshrl.u32 %v299, 7
  %v301 = vsub.s32 0, %v300
  %v302 = vrot.slane %v96, %v301
  %v303 = vlaneseq
  %v304 = vshrl.u32 %v303, 7
  %v305 = vsub.s32 0, %v304
  %v306 = vrot.slane %v100, %v305
  %v307 = vlaneseq
  %v308 = vshrl.u32 %v307, 7
  %v309 = vsub.s32 0, %v308
  %v310 = vrot.slane %v104, %v309
  %v311 = vlaneseq
  %v312 = vshrl.u32 %v311, 7
  %v313 = vsub.s32 0, %v312
  %v314 = vrot.slane %v108, %v313
  %v315 = vlaneseq
  %v316 = vshrl.u32 %v315, 7
  %v317 = vsub.s32 0, %v316
  %v318 = vrot.slane %v112, %v317
  %v319 = vlaneseq
  %v320 = vshrl.u32 %v319, 7
  %v321 = vsub.s32 0, %v320
  %v322 = vrot.slane %v116, %v321
  %v323 = vlaneseq
  %v324 = vshrl.u32 %v323, 7
  %v325 = vsub.s32 0, %v324
  %v326 = vrot.slane %v120, %v325
  %v327 = vlaneseq
  %v328 = vshrl.u32 %v327, 7
  %v329 = vsub.s32 0, %v328
  %v330 = vrot.slane %v124, %v329
  %v331 = vlaneseq
  %v332 = vshrl.u32 %v331, 7
  %v333 = vsub.s32 0, %v332
  %v334 = vrot.slane %v128, %v333
  %v335 = vlaneseq
  %v336 = vshrl.u32 %v335, 7
  %v337 = vsub.s32 0, %v336
  %v338 = vrot.slane %v132, %v337
  %v339 = vlaneseq
  %v340 = vshrl.u32 %v339, 7
  %v341 = vsub.s32 0, %v340
  %v342 = vrot.slane %v136, %v341
  %v343 = vlaneseq
  %v344 = vshrl.u32 %v343, 7
  %v345 = vsub.s32 0, %v344
  %v346 = vrot.slane %v140, %v345
  %v347 = vlaneseq
  %v348 = vshrl.u32 %v347, 7
  %v349 = vsub.s32 0, %v348
  %v350 = vrot.slane %v144, %v349
  %v351 = vlaneseq
  %v352 = vshrl.u32 %v351, 7
  %v353 = vsub.s32 0, %v352
  %v354 = vrot.slane %v148, %v353
  %v355 = vlaneseq
  %v356 = vshrl.u32 %v355, 7
  %v357 = vsub.s32 0, %v356
  %v358 = vrot.slane %v152, %v357
  %v359 = vlaneseq
  %v360 = vshrl.u32 %v359, 7
  %v361 = vsub.s32 0, %v360
  %v362 = vrot.slane %v156, %v361
  %v363 = vlaneseq
  %v364 = vshrl.u32 %v363, 7
  %v365 = vsub.s32 0, %v364
  %v366 = vrot.slane %v160, %v365
  %v367 = vlaneseq
  %v368 = vshrl.u32 %v367, 7
  %v369 = vsub.s32 0, %v368
  %v370 = vrot.slane %v164, %v369
  %v371 = vlaneseq
  %v372 = vshrl.u32 %v371, 7
  %v373 = vsub.s32 0, %v372
  %v374 = vrot.slane %v168, %v373
  %v375 = vlaneseq
  %v376 = vshrl.u32 %v375, 7
  %v377 = vsub.s32 0, %v376
  %v378 = vrot.slane %v172, %v377
  %v379 = vlaneseq
  %v380 = vshrl.u32 %v379, 7
  %v381 = vsub.s32 0, %v380
  %v382 = vrot.slane %v176, %v381
  %v383 = vlaneseq
  %v384 = vshrl.u32 %v383, 7
  %v385 = vsub.s32 0, %v384
  %v386 = vrot.slane %v180, %v385
  %v387 = vlaneseq
  %v388 = vshrl.u32 %v387, 7
  %v389 = vsub.s32 0, %v388
  %v390 = vrot.slane %v184, %v389
  %v391 = vlaneseq
  %v392 = vshrl.u32 %v391, 7
  %v393 = vsub.s32 0, %v392
  %v394 = vrot.slane %v188, %v393
  %v395 = vlaneseq
  %v396 = vshrl.u32 %v395, 7
  %v397 = vsub.s32 0, %v396
  %v398 = vrot.slane %v192, %v397
  %v399 = vlaneseq
  %v400 = vshrl.u32 %v399, 7
  %v401 = vsub.s32 0, %v400
  %v402 = vrot.slane %v196, %v401
  %v403 = vlaneseq
  %v404 = vshrl.u32 %v403, 7
  %v405 = vsub.s32 0, %v404
  %v406 = vrot.slane %v200, %v405
  %v407 = vmul.f32 %v245, %v250
  %v408 = vmul.f32 %v245, %v254
  %v409 = vmul.f32 %v245, %v258
  %v410 = vmul.f32 %v245, %v262
  %v411 = vmul.f32 %v245, %v266
  %v412 = vmul.f32 %v245, %v270
  %v413 = vmul.f32 %v245, %v274
  %v414 = vmul.f32 %v245, %v278
  %v415 = vmul.f32 %v245, %v282
  %v416 = vmul.f32 %v245, %v286
  %v417 = vmul.f32 %v245, %v290
  %v418 = vmul.f32 %v245, %v294
  %v419 = vmul.f32 %v245, %v298
  %v420 = vmul.f32 %v245, %v302
  %v421 = vmul.f32 %v245, %v306
  %v422 = vmul.f32 %v245, %v310
  %v423 = vmul.f32 %v245, %v314
  %v424 = vmul.f32 %v245, %v318
  %v425 = vmul.f32 %v245, %v322
  %v426 = vmul.f32 %v245, %v326
  %v427 = vmul.f32 %v245, %v330
  %v428 = vmul.f32 %v245, %v334
  %v429 = vmul.f32 %v245, %v338
  %v430 = vmul.f32 %v245, %v342
  %v431 = vmul.f32 %v245, %v346
  %v432 = vmul.f32 %v245, %v350
  %v433 = vmul.f32 %v245, %v354
  %v434 = vmul.f32 %v245, %v358
  %v435 = vmul.f32 %v245, %v362
  %v436 = vmul.f32 %v245, %v366
  %v437 = vmul.f32 %v245, %v370
  %v438 = vmul.f32 %v245, %v374
  %v439 = vmul.f32 %v245, %v378
  %v440 = vmul.f32 %v245, %v382
  %v441 = vmul.f32 %v245, %v386
  %v442 = vmul.f32 %v245, %v390
  %v443 = vmul.f32 %v245, %v394
  %v444 = vmul.f32 %v245, %v398
  %v445 = vmul.f32 %v245, %v402
  %v446 = vmul.f32 %v245, %v406
  %v447 = vadd.f32 %v407, 0.0
  %v448 = vadd.f32 %v408, 0.0
  %v449 = vadd.f32 %v409, 0.0
  %v450 = vadd.f32 %v410, 0.0
  %v451 = vadd.f32 %v411, 0.0
  %v452 = vadd.f32 %v412, 0.0
  %v453 = vadd.f32 %v413, 0.0
  %v454 = vadd.f32 %v414, 0.0
  %v455 = vadd.f32 %v415, 0.0
  %v456 = vadd.f32 %v416, 0.0
  %v457 = vadd.f32 %v417, 0.0
  %v458 = vadd.f32 %v418, 0.0
  %v459 = vadd.f32 %v419, 0.0
  %v460 = vadd.f32 %v420, 0.0
  %v461 = vadd.f32 %v421, 0.0
  %v462 = vadd.f32 %v422, 0.0
  %v463 = vadd.f32 %v423, 0.0
  %v464 = vadd.f32 %v424, 0.0
  %v465 = vadd.f32 %v425, 0.0
  %v466 = vadd.f32 %v426, 0.0
  %v467 = vadd.f32 %v427, 0.0
  %v468 = vadd.f32 %v428, 0.0
  %v469 = vadd.f32 %v429, 0.0
  %v470 = vadd.f32 %v430, 0.0
  %v471 = vadd.f32 %v431, 0.0
  %v472 = vadd.f32 %v432, 0.0
  %v473 = vadd.f32 %v433, 0.0
  %v474 = vadd.f32 %v434, 0.0
  %v475 = vadd.f32 %v435, 0.0
  %v476 = vadd.f32 %v436, 0.0
  %v477 = vadd.f32 %v437, 0.0
  %v478 = vadd.f32 %v438, 0.0
  %v479 = vadd.f32 %v439, 0.0
  %v480 = vadd.f32 %v440, 0.0
  %v481 = vadd.f32 %v441, 0.0
  %v482 = vadd.f32 %v442, 0.0
  %v483 = vadd.f32 %v443, 0.0
  %v484 = vadd.f32 %v444, 0.0
  %v485 = vadd.f32 %v445, 0.0
  %v486 = vadd.f32 %v446, 0.0
  %487 = vset.pattern.permute.xlu0 1
  %488 = vperm.xlu0 %487, %v241
  %v489 = vpop.permute.xlu0 %488
  %v491 = vlaneseq
  %v492 = vshrl.u32 %v491, 7
  %v493 = vsub.s32 0, %v492
  %v494 = vmul.f32 %v489, %v250
  %v495 = vmul.f32 %v489, %v254
  %v496 = vmul.f32 %v489, %v258
  %v497 = vmul.f32 %v489, %v262
  %v498 = vmul.f32 %v489, %v266
  %v499 = vmul.f32 %v489, %v270
  %v500 = vmul.f32 %v489, %v274
  %v501 = vmul.f32 %v489, %v278
  %v502 = vmul.f32 %v489, %v282
  %v503 = vmul.f32 %v489, %v286
  %v504 = vmul.f32 %v489, %v290
  %v505 = vmul.f32 %v489, %v294
  %v506 = vmul.f32 %v489, %v298
  %v507 = vmul.f32 %v489, %v302
  %v508 = vmul.f32 %v489, %v306
  %v509 = vmul.f32 %v489, %v310
  %v510 = vmul.f32 %v489, %v314
  %v511 = vmul.f32 %v489, %v318
  %v512 = vmul.f32 %v489, %v322
  %v513 = vmul.f32 %v489, %v326
  %v514 = vmul.f32 %v489, %v330
  %v515 = vmul.f32 %v489, %v334
  %v516 = vmul.f32 %v489, %v338
  %v517 = vmul.f32 %v489, %v342
  %v518 = vmul.f32 %v489, %v346
  %v519 = vmul.f32 %v489, %v350
  %v520 = vmul.f32 %v489, %v354
  %v521 = vmul.f32 %v489, %v358
  %v522 = vmul.f32 %v489, %v362
  %v523 = vmul.f32 %v489, %v366
  %v524 = vmul.f32 %v489, %v370
  %v525 = vmul.f32 %v489, %v374
  %v526 = vmul.f32 %v489, %v378
  %v527 = vmul.f32 %v489, %v382
  %v528 = vmul.f32 %v489, %v386
  %v529 = vmul.f32 %v489, %v390
  %v530 = vmul.f32 %v489, %v394
  %v531 = vmul.f32 %v489, %v398
  %v532 = vmul.f32 %v489, %v402
  %v533 = vmul.f32 %v489, %v406
  %v534 = vmul.f32 %v489, 0.0
  %576 = vrot.lane.b32.xlu0 %v494, 127
  %v577 = vpop.permute.xlu0 %576
  %578 = vrot.lane.b32.xlu0 %v495, 127
  %v579 = vpop.permute.xlu0 %578
  %580 = vrot.lane.b32.xlu0 %v496, 127
  %v581 = vpop.permute.xlu0 %580
  %582 = vrot.lane.b32.xlu0 %v497, 127
  %v583 = vpop.permute.xlu0 %582
  %584 = vrot.lane.b32.xlu0 %v498, 127
  %v585 = vpop.permute.xlu0 %584
  %586 = vrot.lane.b32.xlu0 %v499, 127
  %v587 = vpop.permute.xlu0 %586
  %588 = vrot.lane.b32.xlu0 %v500, 127
  %v589 = vpop.permute.xlu0 %588
  %590 = vrot.lane.b32.xlu0 %v501, 127
  %v591 = vpop.permute.xlu0 %590
  %592 = vrot.lane.b32.xlu0 %v502, 127
  %v593 = vpop.permute.xlu0 %592
  %594 = vrot.lane.b32.xlu0 %v503, 127
  %v595 = vpop.permute.xlu0 %594
  %596 = vrot.lane.b32.xlu0 %v504, 127
  %v597 = vpop.permute.xlu0 %596
  %598 = vrot.lane.b32.xlu0 %v505, 127
  %v599 = vpop.permute.xlu0 %598
  %600 = vrot.lane.b32.xlu0 %v506, 127
  %v601 = vpop.permute.xlu0 %600
  %602 = vrot.lane.b32.xlu0 %v507, 127
  %v603 = vpop.permute.xlu0 %602
  %604 = vrot.lane.b32.xlu0 %v508, 127
  %v605 = vpop.permute.xlu0 %604
  %606 = vrot.lane.b32.xlu0 %v509, 127
  %v607 = vpop.permute.xlu0 %606
  %608 = vrot.lane.b32.xlu0 %v510, 127
  %v609 = vpop.permute.xlu0 %608
  %610 = vrot.lane.b32.xlu0 %v511, 127
  %v611 = vpop.permute.xlu0 %610
  %612 = vrot.lane.b32.xlu0 %v512, 127
  %v613 = vpop.permute.xlu0 %612
  %614 = vrot.lane.b32.xlu0 %v513, 127
  %v615 = vpop.permute.xlu0 %614
  %616 = vrot.lane.b32.xlu0 %v514, 127
  %v617 = vpop.permute.xlu0 %616
  %618 = vrot.lane.b32.xlu0 %v515, 127
  %v619 = vpop.permute.xlu0 %618
  %620 = vrot.lane.b32.xlu0 %v516, 127
  %v621 = vpop.permute.xlu0 %620
  %622 = vrot.lane.b32.xlu0 %v517, 127
  %v623 = vpop.permute.xlu0 %622
  %624 = vrot.lane.b32.xlu0 %v518, 127
  %v625 = vpop.permute.xlu0 %624
  %626 = vrot.lane.b32.xlu0 %v519, 127
  %v627 = vpop.permute.xlu0 %626
  %628 = vrot.lane.b32.xlu0 %v520, 127
  %v629 = vpop.permute.xlu0 %628
  %630 = vrot.lane.b32.xlu0 %v521, 127
  %v631 = vpop.permute.xlu0 %630
  %632 = vrot.lane.b32.xlu0 %v522, 127
  %v633 = vpop.permute.xlu0 %632
  %634 = vrot.lane.b32.xlu0 %v523, 127
  %v635 = vpop.permute.xlu0 %634
  %636 = vrot.lane.b32.xlu0 %v524, 127
  %v637 = vpop.permute.xlu0 %636
  %638 = vrot.lane.b32.xlu0 %v525, 127
  %v639 = vpop.permute.xlu0 %638
  %640 = vrot.lane.b32.xlu0 %v526, 127
  %v641 = vpop.permute.xlu0 %640
  %642 = vrot.lane.b32.xlu0 %v527, 127
  %v643 = vpop.permute.xlu0 %642
  %644 = vrot.lane.b32.xlu0 %v528, 127
  %v645 = vpop.permute.xlu0 %644
  %646 = vrot.lane.b32.xlu0 %v529, 127
  %v647 = vpop.permute.xlu0 %646
  %648 = vrot.lane.b32.xlu0 %v530, 127
  %v649 = vpop.permute.xlu0 %648
  %650 = vrot.lane.b32.xlu0 %v531, 127
  %v651 = vpop.permute.xlu0 %650
  %652 = vrot.lane.b32.xlu0 %v532, 127
  %v653 = vpop.permute.xlu0 %652
  %654 = vrot.lane.b32.xlu0 %v533, 127
  %v655 = vpop.permute.xlu0 %654
  %656 = vrot.lane.b32.xlu0 %v534, 127
  %v657 = vpop.permute.xlu0 %656
  %vm658 = vcmask 1039360
  %v659 = vsel %vm658, %v577, %v579
  %v660 = vsel %vm658, %v579, %v581
  %v661 = vsel %vm658, %v581, %v583
  %v662 = vsel %vm658, %v583, %v585
  %v663 = vsel %vm658, %v585, %v587
  %v664 = vsel %vm658, %v587, %v589
  %v665 = vsel %vm658, %v589, %v591
  %v666 = vsel %vm658, %v591, %v593
  %v667 = vsel %vm658, %v593, %v595
  %v668 = vsel %vm658, %v595, %v597
  %v669 = vsel %vm658, %v597, %v599
  %v670 = vsel %vm658, %v599, %v601
  %v671 = vsel %vm658, %v601, %v603
  %v672 = vsel %vm658, %v603, %v605
  %v673 = vsel %vm658, %v605, %v607
  %v674 = vsel %vm658, %v607, %v609
  %v675 = vsel %vm658, %v609, %v611
  %v676 = vsel %vm658, %v611, %v613
  %v677 = vsel %vm658, %v613, %v615
  %v678 = vsel %vm658, %v615, %v617
  %v679 = vsel %vm658, %v617, %v619
  %v680 = vsel %vm658, %v619, %v621
  %v681 = vsel %vm658, %v621, %v623
  %v682 = vsel %vm658, %v623, %v625
  %v683 = vsel %vm658, %v625, %v627
  %v684 = vsel %vm658, %v627, %v629
  %v685 = vsel %vm658, %v629, %v631
  %v686 = vsel %vm658, %v631, %v633
  %v687 = vsel %vm658, %v633, %v635
  %v688 = vsel %vm658, %v635, %v637
  %v689 = vsel %vm658, %v637, %v639
  %v690 = vsel %vm658, %v639, %v641
  %v691 = vsel %vm658, %v641, %v643
  %v692 = vsel %vm658, %v643, %v645
  %v693 = vsel %vm658, %v645, %v647
  %v694 = vsel %vm658, %v647, %v649
  %v695 = vsel %vm658, %v649, %v651
  %v696 = vsel %vm658, %v651, %v653
  %v697 = vsel %vm658, %v653, %v655
  %v698 = vsel %vm658, %v655, %v657
  %v739 = vadd.f32 %v447, %v659
  %v740 = vadd.f32 %v448, %v660
  %v741 = vadd.f32 %v449, %v661
  %v742 = vadd.f32 %v450, %v662
  %v743 = vadd.f32 %v451, %v663
  %v744 = vadd.f32 %v452, %v664
  %v745 = vadd.f32 %v453, %v665
  %v746 = vadd.f32 %v454, %v666
  %v747 = vadd.f32 %v455, %v667
  %v748 = vadd.f32 %v456, %v668
  %v749 = vadd.f32 %v457, %v669
  %v750 = vadd.f32 %v458, %v670
  %v751 = vadd.f32 %v459, %v671
  %v752 = vadd.f32 %v460, %v672
  %v753 = vadd.f32 %v461, %v673
  %v754 = vadd.f32 %v462, %v674
  %v755 = vadd.f32 %v463, %v675
  %v756 = vadd.f32 %v464, %v676
  %v757 = vadd.f32 %v465, %v677
  %v758 = vadd.f32 %v466, %v678
  %v759 = vadd.f32 %v467, %v679
  %v760 = vadd.f32 %v468, %v680
  %v761 = vadd.f32 %v469, %v681
  %v762 = vadd.f32 %v470, %v682
  %v763 = vadd.f32 %v471, %v683
  %v764 = vadd.f32 %v472, %v684
  %v765 = vadd.f32 %v473, %v685
  %v766 = vadd.f32 %v474, %v686
  %v767 = vadd.f32 %v475, %v687
  %v768 = vadd.f32 %v476, %v688
  %v769 = vadd.f32 %v477, %v689
  %v770 = vadd.f32 %v478, %v690
  %v771 = vadd.f32 %v479, %v691
  %v772 = vadd.f32 %v480, %v692
  %v773 = vadd.f32 %v481, %v693
  %v774 = vadd.f32 %v482, %v694
  %v775 = vadd.f32 %v483, %v695
  %v776 = vadd.f32 %v484, %v696
  %v777 = vadd.f32 %v485, %v697
  %v778 = vadd.f32 %v486, %v698
  %779 = vset.pattern.permute.xlu0 2
  %780 = vperm.xlu0 %779, %v241
  %v781 = vpop.permute.xlu0 %780
  %v783 = vmul.f32 %v781, %v250
  %v784 = vmul.f32 %v781, %v254
  %v785 = vmul.f32 %v781, %v258
  %v786 = vmul.f32 %v781, %v262
  %v787 = vmul.f32 %v781, %v266
  %v788 = vmul.f32 %v781, %v270
  %v789 = vmul.f32 %v781, %v274
  %v790 = vmul.f32 %v781, %v278
  %v791 = vmul.f32 %v781, %v282
  %v792 = vmul.f32 %v781, %v286
  %v793 = vmul.f32 %v781, %v290
  %v794 = vmul.f32 %v781, %v294
  %v795 = vmul.f32 %v781, %v298
  %v796 = vmul.f32 %v781, %v302
  %v797 = vmul.f32 %v781, %v306
  %v798 = vmul.f32 %v781, %v310
  %v799 = vmul.f32 %v781, %v314
  %v800 = vmul.f32 %v781, %v318
  %v801 = vmul.f32 %v781, %v322
  %v802 = vmul.f32 %v781, %v326
  %v803 = vmul.f32 %v781, %v330
  %v804 = vmul.f32 %v781, %v334
  %v805 = vmul.f32 %v781, %v338
  %v806 = vmul.f32 %v781, %v342
  %v807 = vmul.f32 %v781, %v346
  %v808 = vmul.f32 %v781, %v350
  %v809 = vmul.f32 %v781, %v354
  %v810 = vmul.f32 %v781, %v358
  %v811 = vmul.f32 %v781, %v362
  %v812 = vmul.f32 %v781, %v366
  %v813 = vmul.f32 %v781, %v370
  %v814 = vmul.f32 %v781, %v374
  %v815 = vmul.f32 %v781, %v378
  %v816 = vmul.f32 %v781, %v382
  %v817 = vmul.f32 %v781, %v386
  %v818 = vmul.f32 %v781, %v390
  %v819 = vmul.f32 %v781, %v394
  %v820 = vmul.f32 %v781, %v398
  %v821 = vmul.f32 %v781, %v402
  %v822 = vmul.f32 %v781, %v406
  %v823 = vmul.f32 %v781, 0.0
  %865 = vrot.lane.b32.xlu0 %v783, 126
  %v866 = vpop.permute.xlu0 %865
  %867 = vrot.lane.b32.xlu0 %v784, 126
  %v868 = vpop.permute.xlu0 %867
  %869 = vrot.lane.b32.xlu0 %v785, 126
  %v870 = vpop.permute.xlu0 %869
  %871 = vrot.lane.b32.xlu0 %v786, 126
  %v872 = vpop.permute.xlu0 %871
  %873 = vrot.lane.b32.xlu0 %v787, 126
  %v874 = vpop.permute.xlu0 %873
  %875 = vrot.lane.b32.xlu0 %v788, 126
  %v876 = vpop.permute.xlu0 %875
  %877 = vrot.lane.b32.xlu0 %v789, 126
  %v878 = vpop.permute.xlu0 %877
  %879 = vrot.lane.b32.xlu0 %v790, 126
  %v880 = vpop.permute.xlu0 %879
  %881 = vrot.lane.b32.xlu0 %v791, 126
  %v882 = vpop.permute.xlu0 %881
  %883 = vrot.lane.b32.xlu0 %v792, 126
  %v884 = vpop.permute.xlu0 %883
  %885 = vrot.lane.b32.xlu0 %v793, 126
  %v886 = vpop.permute.xlu0 %885
  %887 = vrot.lane.b32.xlu0 %v794, 126
  %v888 = vpop.permute.xlu0 %887
  %889 = vrot.lane.b32.xlu0 %v795, 126
  %v890 = vpop.permute.xlu0 %889
  %891 = vrot.lane.b32.xlu0 %v796, 126
  %v892 = vpop.permute.xlu0 %891
  %893 = vrot.lane.b32.xlu0 %v797, 126
  %v894 = vpop.permute.xlu0 %893
  %895 = vrot.lane.b32.xlu0 %v798, 126
  %v896 = vpop.permute.xlu0 %895
  %897 = vrot.lane.b32.xlu0 %v799, 126
  %v898 = vpop.permute.xlu0 %897
  %899 = vrot.lane.b32.xlu0 %v800, 126
  %v900 = vpop.permute.xlu0 %899
  %901 = vrot.lane.b32.xlu0 %v801, 126
  %v902 = vpop.permute.xlu0 %901
  %903 = vrot.lane.b32.xlu0 %v802, 126
  %v904 = vpop.permute.xlu0 %903
  %905 = vrot.lane.b32.xlu0 %v803, 126
  %v906 = vpop.permute.xlu0 %905
  %907 = vrot.lane.b32.xlu0 %v804, 126
  %v908 = vpop.permute.xlu0 %907
  %909 = vrot.lane.b32.xlu0 %v805, 126
  %v910 = vpop.permute.xlu0 %909
  %911 = vrot.lane.b32.xlu0 %v806, 126
  %v912 = vpop.permute.xlu0 %911
  %913 = vrot.lane.b32.xlu0 %v807, 126
  %v914 = vpop.permute.xlu0 %913
  %915 = vrot.lane.b32.xlu0 %v808, 126
  %v916 = vpop.permute.xlu0 %915
  %917 = vrot.lane.b32.xlu0 %v809, 126
  %v918 = vpop.permute.xlu0 %917
  %919 = vrot.lane.b32.xlu0 %v810, 126
  %v920 = vpop.permute.xlu0 %919
  %921 = vrot.lane.b32.xlu0 %v811, 126
  %v922 = vpop.permute.xlu0 %921
  %923 = vrot.lane.b32.xlu0 %v812, 126
  %v924 = vpop.permute.xlu0 %923
  %925 = vrot.lane.b32.xlu0 %v813, 126
  %v926 = vpop.permute.xlu0 %925
  %927 = vrot.lane.b32.xlu0 %v814, 126
  %v928 = vpop.permute.xlu0 %927
  %929 = vrot.lane.b32.xlu0 %v815, 126
  %v930 = vpop.permute.xlu0 %929
  %931 = vrot.lane.b32.xlu0 %v816, 126
  %v932 = vpop.permute.xlu0 %931
  %933 = vrot.lane.b32.xlu0 %v817, 126
  %v934 = vpop.permute.xlu0 %933
  %935 = vrot.lane.b32.xlu0 %v818, 126
  %v936 = vpop.permute.xlu0 %935
  %937 = vrot.lane.b32.xlu0 %v819, 126
  %v938 = vpop.permute.xlu0 %937
  %939 = vrot.lane.b32.xlu0 %v820, 126
  %v940 = vpop.permute.xlu0 %939
  %941 = vrot.lane.b32.xlu0 %v821, 126
  %v942 = vpop.permute.xlu0 %941
  %943 = vrot.lane.b32.xlu0 %v822, 126
  %v944 = vpop.permute.xlu0 %943
  %945 = vrot.lane.b32.xlu0 %v823, 126
  %v946 = vpop.permute.xlu0 %945
  %vm947 = vcmask 1031168
  %v948 = vsel %vm947, %v866, %v868
  %v949 = vsel %vm947, %v868, %v870
  %v950 = vsel %vm947, %v870, %v872
  %v951 = vsel %vm947, %v872, %v874
  %v952 = vsel %vm947, %v874, %v876
  %v953 = vsel %vm947, %v876, %v878
  %v954 = vsel %vm947, %v878, %v880
  %v955 = vsel %vm947, %v880, %v882
  %v956 = vsel %vm947, %v882, %v884
  %v957 = vsel %vm947, %v884, %v886
  %v958 = vsel %vm947, %v886, %v888
  %v959 = vsel %vm947, %v888, %v890
  %v960 = vsel %vm947, %v890, %v892
  %v961 = vsel %vm947, %v892, %v894
  %v962 = vsel %vm947, %v894, %v896
  %v963 = vsel %vm947, %v896, %v898
  %v964 = vsel %vm947, %v898, %v900
  %v965 = vsel %vm947, %v900, %v902
  %v966 = vsel %vm947, %v902, %v904
  %v967 = vsel %vm947, %v904, %v906
  %v968 = vsel %vm947, %v906, %v908
  %v969 = vsel %vm947, %v908, %v910
  %v970 = vsel %vm947, %v910, %v912
  %v971 = vsel %vm947, %v912, %v914
  %v972 = vsel %vm947, %v914, %v916
  %v973 = vsel %vm947, %v916, %v918
  %v974 = vsel %vm947, %v918, %v920
  %v975 = vsel %vm947, %v920, %v922
  %v976 = vsel %vm947, %v922, %v924
  %v977 = vsel %vm947, %v924, %v926
  %v978 = vsel %vm947, %v926, %v928
  %v979 = vsel %vm947, %v928, %v930
  %v980 = vsel %vm947, %v930, %v932
  %v981 = vsel %vm947, %v932, %v934
  %v982 = vsel %vm947, %v934, %v936
  %v983 = vsel %vm947, %v936, %v938
  %v984 = vsel %vm947, %v938, %v940
  %v985 = vsel %vm947, %v940, %v942
  %v986 = vsel %vm947, %v942, %v944
  %v987 = vsel %vm947, %v944, %v946
  %v1028 = vadd.f32 %v739, %v948
  %v1029 = vadd.f32 %v740, %v949
  %v1030 = vadd.f32 %v741, %v950
  %v1031 = vadd.f32 %v742, %v951
  %v1032 = vadd.f32 %v743, %v952
  %v1033 = vadd.f32 %v744, %v953
  %v1034 = vadd.f32 %v745, %v954
  %v1035 = vadd.f32 %v746, %v955
  %v1036 = vadd.f32 %v747, %v956
  %v1037 = vadd.f32 %v748, %v957
  %v1038 = vadd.f32 %v749, %v958
  %v1039 = vadd.f32 %v750, %v959
  %v1040 = vadd.f32 %v751, %v960
  %v1041 = vadd.f32 %v752, %v961
  %v1042 = vadd.f32 %v753, %v962
  %v1043 = vadd.f32 %v754, %v963
  %v1044 = vadd.f32 %v755, %v964
  %v1045 = vadd.f32 %v756, %v965
  %v1046 = vadd.f32 %v757, %v966
  %v1047 = vadd.f32 %v758, %v967
  %v1048 = vadd.f32 %v759, %v968
  %v1049 = vadd.f32 %v760, %v969
  %v1050 = vadd.f32 %v761, %v970
  %v1051 = vadd.f32 %v762, %v971
  %v1052 = vadd.f32 %v763, %v972
  %v1053 = vadd.f32 %v764, %v973
  %v1054 = vadd.f32 %v765, %v974
  %v1055 = vadd.f32 %v766, %v975
  %v1056 = vadd.f32 %v767, %v976
  %v1057 = vadd.f32 %v768, %v977
  %v1058 = vadd.f32 %v769, %v978
  %v1059 = vadd.f32 %v770, %v979
  %v1060 = vadd.f32 %v771, %v980
  %v1061 = vadd.f32 %v772, %v981
  %v1062 = vadd.f32 %v773, %v982
  %v1063 = vadd.f32 %v774, %v983
  %v1064 = vadd.f32 %v775, %v984
  %v1065 = vadd.f32 %v776, %v985
  %v1066 = vadd.f32 %v777, %v986
  %v1067 = vadd.f32 %v778, %v987
  %1068 = vset.pattern.permute.xlu0 3
  %1069 = vperm.xlu0 %1068, %v241
  %v1070 = vpop.permute.xlu0 %1069
  %v1072 = vmul.f32 %v1070, %v250
  %v1073 = vmul.f32 %v1070, %v254
  %v1074 = vmul.f32 %v1070, %v258
  %v1075 = vmul.f32 %v1070, %v262
  %v1076 = vmul.f32 %v1070, %v266
  %v1077 = vmul.f32 %v1070, %v270
  %v1078 = vmul.f32 %v1070, %v274
  %v1079 = vmul.f32 %v1070, %v278
  %v1080 = vmul.f32 %v1070, %v282
  %v1081 = vmul.f32 %v1070, %v286
  %v1082 = vmul.f32 %v1070, %v290
  %v1083 = vmul.f32 %v1070, %v294
  %v1084 = vmul.f32 %v1070, %v298
  %v1085 = vmul.f32 %v1070, %v302
  %v1086 = vmul.f32 %v1070, %v306
  %v1087 = vmul.f32 %v1070, %v310
  %v1088 = vmul.f32 %v1070, %v314
  %v1089 = vmul.f32 %v1070, %v318
  %v1090 = vmul.f32 %v1070, %v322
  %v1091 = vmul.f32 %v1070, %v326
  %v1092 = vmul.f32 %v1070, %v330
  %v1093 = vmul.f32 %v1070, %v334
  %v1094 = vmul.f32 %v1070, %v338
  %v1095 = vmul.f32 %v1070, %v342
  %v1096 = vmul.f32 %v1070, %v346
  %v1097 = vmul.f32 %v1070, %v350
  %v1098 = vmul.f32 %v1070, %v354
  %v1099 = vmul.f32 %v1070, %v358
  %v1100 = vmul.f32 %v1070, %v362
  %v1101 = vmul.f32 %v1070, %v366
  %v1102 = vmul.f32 %v1070, %v370
  %v1103 = vmul.f32 %v1070, %v374
  %v1104 = vmul.f32 %v1070, %v378
  %v1105 = vmul.f32 %v1070, %v382
  %v1106 = vmul.f32 %v1070, %v386
  %v1107 = vmul.f32 %v1070, %v390
  %v1108 = vmul.f32 %v1070, %v394
  %v1109 = vmul.f32 %v1070, %v398
  %v1110 = vmul.f32 %v1070, %v402
  %v1111 = vmul.f32 %v1070, %v406
  %v1112 = vmul.f32 %v1070, 0.0
  %1154 = vrot.lane.b32.xlu0 %v1072, 125
  %v1155 = vpop.permute.xlu0 %1154
  %1156 = vrot.lane.b32.xlu0 %v1073, 125
  %v1157 = vpop.permute.xlu0 %1156
  %1158 = vrot.lane.b32.xlu0 %v1074, 125
  %v1159 = vpop.permute.xlu0 %1158
  %1160 = vrot.lane.b32.xlu0 %v1075, 125
  %v1161 = vpop.permute.xlu0 %1160
  %1162 = vrot.lane.b32.xlu0 %v1076, 125
  %v1163 = vpop.permute.xlu0 %1162
  %1164 = vrot.lane.b32.xlu0 %v1077, 125
  %v1165 = vpop.permute.xlu0 %1164
  %1166 = vrot.lane.b32.xlu0 %v1078, 125
  %v1167 = vpop.permute.xlu0 %1166
  %1168 = vrot.lane.b32.xlu0 %v1079, 125
  %v1169 = vpop.permute.xlu0 %1168
  %1170 = vrot.lane.b32.xlu0 %v1080, 125
  %v1171 = vpop.permute.xlu0 %1170
  %1172 = vrot.lane.b32.xlu0 %v1081, 125
  %v1173 = vpop.permute.xlu0 %1172
  %1174 = vrot.lane.b32.xlu0 %v1082, 125
  %v1175 = vpop.permute.xlu0 %1174
  %1176 = vrot.lane.b32.xlu0 %v1083, 125
  %v1177 = vpop.permute.xlu0 %1176
  %1178 = vrot.lane.b32.xlu0 %v1084, 125
  %v1179 = vpop.permute.xlu0 %1178
  %1180 = vrot.lane.b32.xlu0 %v1085, 125
  %v1181 = vpop.permute.xlu0 %1180
  %1182 = vrot.lane.b32.xlu0 %v1086, 125
  %v1183 = vpop.permute.xlu0 %1182
  %1184 = vrot.lane.b32.xlu0 %v1087, 125
  %v1185 = vpop.permute.xlu0 %1184
  %1186 = vrot.lane.b32.xlu0 %v1088, 125
  %v1187 = vpop.permute.xlu0 %1186
  %1188 = vrot.lane.b32.xlu0 %v1089, 125
  %v1189 = vpop.permute.xlu0 %1188
  %1190 = vrot.lane.b32.xlu0 %v1090, 125
  %v1191 = vpop.permute.xlu0 %1190
  %1192 = vrot.lane.b32.xlu0 %v1091, 125
  %v1193 = vpop.permute.xlu0 %1192
  %1194 = vrot.lane.b32.xlu0 %v1092, 125
  %v1195 = vpop.permute.xlu0 %1194
  %1196 = vrot.lane.b32.xlu0 %v1093, 125
  %v1197 = vpop.permute.xlu0 %1196
  %1198 = vrot.lane.b32.xlu0 %v1094, 125
  %v1199 = vpop.permute.xlu0 %1198
  %1200 = vrot.lane.b32.xlu0 %v1095, 125
  %v1201 = vpop.permute.xlu0 %1200
  %1202 = vrot.lane.b32.xlu0 %v1096, 125
  %v1203 = vpop.permute.xlu0 %1202
  %1204 = vrot.lane.b32.xlu0 %v1097, 125
  %v1205 = vpop.permute.xlu0 %1204
  %1206 = vrot.lane.b32.xlu0 %v1098, 125
  %v1207 = vpop.permute.xlu0 %1206
  %1208 = vrot.lane.b32.xlu0 %v1099, 125
  %v1209 = vpop.permute.xlu0 %1208
  %1210 = vrot.lane.b32.xlu0 %v1100, 125
  %v1211 = vpop.permute.xlu0 %1210
  %1212 = vrot.lane.b32.xlu0 %v1101, 125
  %v1213 = vpop.permute.xlu0 %1212
  %1214 = vrot.lane.b32.xlu0 %v1102, 125
  %v1215 = vpop.permute.xlu0 %1214
  %1216 = vrot.lane.b32.xlu0 %v1103, 125
  %v1217 = vpop.permute.xlu0 %1216
  %1218 = vrot.lane.b32.xlu0 %v1104, 125
  %v1219 = vpop.permute.xlu0 %1218
  %1220 = vrot.lane.b32.xlu0 %v1105, 125
  %v1221 = vpop.permute.xlu0 %1220
  %1222 = vrot.lane.b32.xlu0 %v1106, 125
  %v1223 = vpop.permute.xlu0 %1222
  %1224 = vrot.lane.b32.xlu0 %v1107, 125
  %v1225 = vpop.permute.xlu0 %1224
  %1226 = vrot.lane.b32.xlu0 %v1108, 125
  %v1227 = vpop.permute.xlu0 %1226
  %1228 = vrot.lane.b32.xlu0 %v1109, 125
  %v1229 = vpop.permute.xlu0 %1228
  %1230 = vrot.lane.b32.xlu0 %v1110, 125
  %v1231 = vpop.permute.xlu0 %1230
  %1232 = vrot.lane.b32.xlu0 %v1111, 125
  %v1233 = vpop.permute.xlu0 %1232
  %1234 = vrot.lane.b32.xlu0 %v1112, 125
  %v1235 = vpop.permute.xlu0 %1234
  %vm1236 = vcmask 1022976
  %v1237 = vsel %vm1236, %v1155, %v1157
  %v1238 = vsel %vm1236, %v1157, %v1159
  %v1239 = vsel %vm1236, %v1159, %v1161
  %v1240 = vsel %vm1236, %v1161, %v1163
  %v1241 = vsel %vm1236, %v1163, %v1165
  %v1242 = vsel %vm1236, %v1165, %v1167
  %v1243 = vsel %vm1236, %v1167, %v1169
  %v1244 = vsel %vm1236, %v1169, %v1171
  %v1245 = vsel %vm1236, %v1171, %v1173
  %v1246 = vsel %vm1236, %v1173, %v1175
  %v1247 = vsel %vm1236, %v1175, %v1177
  %v1248 = vsel %vm1236, %v1177, %v1179
  %v1249 = vsel %vm1236, %v1179, %v1181
  %v1250 = vsel %vm1236, %v1181, %v1183
  %v1251 = vsel %vm1236, %v1183, %v1185
  %v1252 = vsel %vm1236, %v1185, %v1187
  %v1253 = vsel %vm1236, %v1187, %v1189
  %v1254 = vsel %vm1236, %v1189, %v1191
  %v1255 = vsel %vm1236, %v1191, %v1193
  %v1256 = vsel %vm1236, %v1193, %v1195
  %v1257 = vsel %vm1236, %v1195, %v1197
  %v1258 = vsel %vm1236, %v1197, %v1199
  %v1259 = vsel %vm1236, %v1199, %v1201
  %v1260 = vsel %vm1236, %v1201, %v1203
  %v1261 = vsel %vm1236, %v1203, %v1205
  %v1262 = vsel %vm1236, %v1205, %v1207
  %v1263 = vsel %vm1236, %v1207, %v1209
  %v1264 = vsel %vm1236, %v1209, %v1211
  %v1265 = vsel %vm1236, %v1211, %v1213
  %v1266 = vsel %vm1236, %v1213, %v1215
  %v1267 = vsel %vm1236, %v1215, %v1217
  %v1268 = vsel %vm1236, %v1217, %v1219
  %v1269 = vsel %vm1236, %v1219, %v1221
  %v1270 = vsel %vm1236, %v1221, %v1223
  %v1271 = vsel %vm1236, %v1223, %v1225
  %v1272 = vsel %vm1236, %v1225, %v1227
  %v1273 = vsel %vm1236, %v1227, %v1229
  %v1274 = vsel %vm1236, %v1229, %v1231
  %v1275 = vsel %vm1236, %v1231, %v1233
  %v1276 = vsel %vm1236, %v1233, %v1235
  %v1317 = vadd.f32 %v1028, %v1237
  %v1318 = vadd.f32 %v1029, %v1238
  %v1319 = vadd.f32 %v1030, %v1239
  %v1320 = vadd.f32 %v1031, %v1240
  %v1321 = vadd.f32 %v1032, %v1241
  %v1322 = vadd.f32 %v1033, %v1242
  %v1323 = vadd.f32 %v1034, %v1243
  %v1324 = vadd.f32 %v1035, %v1244
  %v1325 = vadd.f32 %v1036, %v1245
  %v1326 = vadd.f32 %v1037, %v1246
  %v1327 = vadd.f32 %v1038, %v1247
  %v1328 = vadd.f32 %v1039, %v1248
  %v1329 = vadd.f32 %v1040, %v1249
  %v1330 = vadd.f32 %v1041, %v1250
  %v1331 = vadd.f32 %v1042, %v1251
  %v1332 = vadd.f32 %v1043, %v1252
  %v1333 = vadd.f32 %v1044, %v1253
  %v1334 = vadd.f32 %v1045, %v1254
  %v1335 = vadd.f32 %v1046, %v1255
  %v1336 = vadd.f32 %v1047, %v1256
  %v1337 = vadd.f32 %v1048, %v1257
  %v1338 = vadd.f32 %v1049, %v1258
  %v1339 = vadd.f32 %v1050, %v1259
  %v1340 = vadd.f32 %v1051, %v1260
  %v1341 = vadd.f32 %v1052, %v1261
  %v1342 = vadd.f32 %v1053, %v1262
  %v1343 = vadd.f32 %v1054, %v1263
  %v1344 = vadd.f32 %v1055, %v1264
  %v1345 = vadd.f32 %v1056, %v1265
  %v1346 = vadd.f32 %v1057, %v1266
  %v1347 = vadd.f32 %v1058, %v1267
  %v1348 = vadd.f32 %v1059, %v1268
  %v1349 = vadd.f32 %v1060, %v1269
  %v1350 = vadd.f32 %v1061, %v1270
  %v1351 = vadd.f32 %v1062, %v1271
  %v1352 = vadd.f32 %v1063, %v1272
  %v1353 = vadd.f32 %v1064, %v1273
  %v1354 = vadd.f32 %v1065, %v1274
  %v1355 = vadd.f32 %v1066, %v1275
  %v1356 = vadd.f32 %v1067, %v1276
  %1357 = vset.pattern.permute.xlu0 4
  %1358 = vperm.xlu0 %1357, %v241
  %v1359 = vpop.permute.xlu0 %1358
  %v1361 = vmul.f32 %v1359, %v250
  %v1362 = vmul.f32 %v1359, %v254
  %v1363 = vmul.f32 %v1359, %v258
  %v1364 = vmul.f32 %v1359, %v262
  %v1365 = vmul.f32 %v1359, %v266
  %v1366 = vmul.f32 %v1359, %v270
  %v1367 = vmul.f32 %v1359, %v274
  %v1368 = vmul.f32 %v1359, %v278
  %v1369 = vmul.f32 %v1359, %v282
  %v1370 = vmul.f32 %v1359, %v286
  %v1371 = vmul.f32 %v1359, %v290
  %v1372 = vmul.f32 %v1359, %v294
  %v1373 = vmul.f32 %v1359, %v298
  %v1374 = vmul.f32 %v1359, %v302
  %v1375 = vmul.f32 %v1359, %v306
  %v1376 = vmul.f32 %v1359, %v310
  %v1377 = vmul.f32 %v1359, %v314
  %v1378 = vmul.f32 %v1359, %v318
  %v1379 = vmul.f32 %v1359, %v322
  %v1380 = vmul.f32 %v1359, %v326
  %v1381 = vmul.f32 %v1359, %v330
  %v1382 = vmul.f32 %v1359, %v334
  %v1383 = vmul.f32 %v1359, %v338
  %v1384 = vmul.f32 %v1359, %v342
  %v1385 = vmul.f32 %v1359, %v346
  %v1386 = vmul.f32 %v1359, %v350
  %v1387 = vmul.f32 %v1359, %v354
  %v1388 = vmul.f32 %v1359, %v358
  %v1389 = vmul.f32 %v1359, %v362
  %v1390 = vmul.f32 %v1359, %v366
  %v1391 = vmul.f32 %v1359, %v370
  %v1392 = vmul.f32 %v1359, %v374
  %v1393 = vmul.f32 %v1359, %v378
  %v1394 = vmul.f32 %v1359, %v382
  %v1395 = vmul.f32 %v1359, %v386
  %v1396 = vmul.f32 %v1359, %v390
  %v1397 = vmul.f32 %v1359, %v394
  %v1398 = vmul.f32 %v1359, %v398
  %v1399 = vmul.f32 %v1359, %v402
  %v1400 = vmul.f32 %v1359, %v406
  %v1401 = vmul.f32 %v1359, 0.0
  %1443 = vrot.lane.b32.xlu0 %v1361, 96
  %v1444 = vpop.permute.xlu0 %1443
  %1445 = vrot.lane.b32.xlu0 %v1362, 96
  %v1446 = vpop.permute.xlu0 %1445
  %1447 = vrot.lane.b32.xlu0 %v1363, 96
  %v1448 = vpop.permute.xlu0 %1447
  %1449 = vrot.lane.b32.xlu0 %v1364, 96
  %v1450 = vpop.permute.xlu0 %1449
  %1451 = vrot.lane.b32.xlu0 %v1365, 96
  %v1452 = vpop.permute.xlu0 %1451
  %1453 = vrot.lane.b32.xlu0 %v1366, 96
  %v1454 = vpop.permute.xlu0 %1453
  %1455 = vrot.lane.b32.xlu0 %v1367, 96
  %v1456 = vpop.permute.xlu0 %1455
  %1457 = vrot.lane.b32.xlu0 %v1368, 96
  %v1458 = vpop.permute.xlu0 %1457
  %1459 = vrot.lane.b32.xlu0 %v1369, 96
  %v1460 = vpop.permute.xlu0 %1459
  %1461 = vrot.lane.b32.xlu0 %v1370, 96
  %v1462 = vpop.permute.xlu0 %1461
  %1463 = vrot.lane.b32.xlu0 %v1371, 96
  %v1464 = vpop.permute.xlu0 %1463
  %1465 = vrot.lane.b32.xlu0 %v1372, 96
  %v1466 = vpop.permute.xlu0 %1465
  %1467 = vrot.lane.b32.xlu0 %v1373, 96
  %v1468 = vpop.permute.xlu0 %1467
  %1469 = vrot.lane.b32.xlu0 %v1374, 96
  %v1470 = vpop.permute.xlu0 %1469
  %1471 = vrot.lane.b32.xlu0 %v1375, 96
  %v1472 = vpop.permute.xlu0 %1471
  %1473 = vrot.lane.b32.xlu0 %v1376, 96
  %v1474 = vpop.permute.xlu0 %1473
  %1475 = vrot.lane.b32.xlu0 %v1377, 96
  %v1476 = vpop.permute.xlu0 %1475
  %1477 = vrot.lane.b32.xlu0 %v1378, 96
  %v1478 = vpop.permute.xlu0 %1477
  %1479 = vrot.lane.b32.xlu0 %v1379, 96
  %v1480 = vpop.permute.xlu0 %1479
  %1481 = vrot.lane.b32.xlu0 %v1380, 96
  %v1482 = vpop.permute.xlu0 %1481
  %1483 = vrot.lane.b32.xlu0 %v1381, 96
  %v1484 = vpop.permute.xlu0 %1483
  %1485 = vrot.lane.b32.xlu0 %v1382, 96
  %v1486 = vpop.permute.xlu0 %1485
  %1487 = vrot.lane.b32.xlu0 %v1383, 96
  %v1488 = vpop.permute.xlu0 %1487
  %1489 = vrot.lane.b32.xlu0 %v1384, 96
  %v1490 = vpop.permute.xlu0 %1489
  %1491 = vrot.lane.b32.xlu0 %v1385, 96
  %v1492 = vpop.permute.xlu0 %1491
  %1493 = vrot.lane.b32.xlu0 %v1386, 96
  %v1494 = vpop.permute.xlu0 %1493
  %1495 = vrot.lane.b32.xlu0 %v1387, 96
  %v1496 = vpop.permute.xlu0 %1495
  %1497 = vrot.lane.b32.xlu0 %v1388, 96
  %v1498 = vpop.permute.xlu0 %1497
  %1499 = vrot.lane.b32.xlu0 %v1389, 96
  %v1500 = vpop.permute.xlu0 %1499
  %1501 = vrot.lane.b32.xlu0 %v1390, 96
  %v1502 = vpop.permute.xlu0 %1501
  %1503 = vrot.lane.b32.xlu0 %v1391, 96
  %v1504 = vpop.permute.xlu0 %1503
  %1505 = vrot.lane.b32.xlu0 %v1392, 96
  %v1506 = vpop.permute.xlu0 %1505
  %1507 = vrot.lane.b32.xlu0 %v1393, 96
  %v1508 = vpop.permute.xlu0 %1507
  %1509 = vrot.lane.b32.xlu0 %v1394, 96
  %v1510 = vpop.permute.xlu0 %1509
  %1511 = vrot.lane.b32.xlu0 %v1395, 96
  %v1512 = vpop.permute.xlu0 %1511
  %1513 = vrot.lane.b32.xlu0 %v1396, 96
  %v1514 = vpop.permute.xlu0 %1513
  %1515 = vrot.lane.b32.xlu0 %v1397, 96
  %v1516 = vpop.permute.xlu0 %1515
  %1517 = vrot.lane.b32.xlu0 %v1398, 96
  %v1518 = vpop.permute.xlu0 %1517
  %1519 = vrot.lane.b32.xlu0 %v1399, 96
  %v1520 = vpop.permute.xlu0 %1519
  %1521 = vrot.lane.b32.xlu0 %v1400, 96
  %v1522 = vpop.permute.xlu0 %1521
  %1523 = vrot.lane.b32.xlu0 %v1401, 96
  %v1524 = vpop.permute.xlu0 %1523
  %vm1525 = vcmask 785408
  %v1526 = vsel %vm1525, %v1444, %v1446
  %v1527 = vsel %vm1525, %v1446, %v1448
  %v1528 = vsel %vm1525, %v1448, %v1450
  %v1529 = vsel %vm1525, %v1450, %v1452
  %v1530 = vsel %vm1525, %v1452, %v1454
  %v1531 = vsel %vm1525, %v1454, %v1456
  %v1532 = vsel %vm1525, %v1456, %v1458
  %v1533 = vsel %vm1525, %v1458, %v1460
  %v1534 = vsel %vm1525, %v1460, %v1462
  %v1535 = vsel %vm1525, %v1462, %v1464
  %v1536 = vsel %vm1525, %v1464, %v1466
  %v1537 = vsel %vm1525, %v1466, %v1468
  %v1538 = vsel %vm1525, %v1468, %v1470
  %v1539 = vsel %vm1525, %v1470, %v1472
  %v1540 = vsel %vm1525, %v1472, %v1474
  %v1541 = vsel %vm1525, %v1474, %v1476
  %v1542 = vsel %vm1525, %v1476, %v1478
  %v1543 = vsel %vm1525, %v1478, %v1480
  %v1544 = vsel %vm1525, %v1480, %v1482
  %v1545 = vsel %vm1525, %v1482, %v1484
  %v1546 = vsel %vm1525, %v1484, %v1486
  %v1547 = vsel %vm1525, %v1486, %v1488
  %v1548 = vsel %vm1525, %v1488, %v1490
  %v1549 = vsel %vm1525, %v1490, %v1492
  %v1550 = vsel %vm1525, %v1492, %v1494
  %v1551 = vsel %vm1525, %v1494, %v1496
  %v1552 = vsel %vm1525, %v1496, %v1498
  %v1553 = vsel %vm1525, %v1498, %v1500
  %v1554 = vsel %vm1525, %v1500, %v1502
  %v1555 = vsel %vm1525, %v1502, %v1504
  %v1556 = vsel %vm1525, %v1504, %v1506
  %v1557 = vsel %vm1525, %v1506, %v1508
  %v1558 = vsel %vm1525, %v1508, %v1510
  %v1559 = vsel %vm1525, %v1510, %v1512
  %v1560 = vsel %vm1525, %v1512, %v1514
  %v1561 = vsel %vm1525, %v1514, %v1516
  %v1562 = vsel %vm1525, %v1516, %v1518
  %v1563 = vsel %vm1525, %v1518, %v1520
  %v1564 = vsel %vm1525, %v1520, %v1522
  %v1565 = vsel %vm1525, %v1522, %v1524
  %v1606 = vadd.f32 %v1317, %v1526
  %v1607 = vadd.f32 %v1318, %v1527
  %v1608 = vadd.f32 %v1319, %v1528
  %v1609 = vadd.f32 %v1320, %v1529
  %v1610 = vadd.f32 %v1321, %v1530
  %v1611 = vadd.f32 %v1322, %v1531
  %v1612 = vadd.f32 %v1323, %v1532
  %v1613 = vadd.f32 %v1324, %v1533
  %v1614 = vadd.f32 %v1325, %v1534
  %v1615 = vadd.f32 %v1326, %v1535
  %v1616 = vadd.f32 %v1327, %v1536
  %v1617 = vadd.f32 %v1328, %v1537
  %v1618 = vadd.f32 %v1329, %v1538
  %v1619 = vadd.f32 %v1330, %v1539
  %v1620 = vadd.f32 %v1331, %v1540
  %v1621 = vadd.f32 %v1332, %v1541
  %v1622 = vadd.f32 %v1333, %v1542
  %v1623 = vadd.f32 %v1334, %v1543
  %v1624 = vadd.f32 %v1335, %v1544
  %v1625 = vadd.f32 %v1336, %v1545
  %v1626 = vadd.f32 %v1337, %v1546
  %v1627 = vadd.f32 %v1338, %v1547
  %v1628 = vadd.f32 %v1339, %v1548
  %v1629 = vadd.f32 %v1340, %v1549
  %v1630 = vadd.f32 %v1341, %v1550
  %v1631 = vadd.f32 %v1342, %v1551
  %v1632 = vadd.f32 %v1343, %v1552
  %v1633 = vadd.f32 %v1344, %v1553
  %v1634 = vadd.f32 %v1345, %v1554
  %v1635 = vadd.f32 %v1346, %v1555
  %v1636 = vadd.f32 %v1347, %v1556
  %v1637 = vadd.f32 %v1348, %v1557
  %v1638 = vadd.f32 %v1349, %v1558
  %v1639 = vadd.f32 %v1350, %v1559
  %v1640 = vadd.f32 %v1351, %v1560
  %v1641 = vadd.f32 %v1352, %v1561
  %v1642 = vadd.f32 %v1353, %v1562
  %v1643 = vadd.f32 %v1354, %v1563
  %v1644 = vadd.f32 %v1355, %v1564
  %v1645 = vadd.f32 %v1356, %v1565
  %1646 = vset.pattern.permute.xlu0 5
  %1647 = vperm.xlu0 %1646, %v241
  %v1648 = vpop.permute.xlu0 %1647
  %v1650 = vmul.f32 %v1648, %v250
  %v1651 = vmul.f32 %v1648, %v254
  %v1652 = vmul.f32 %v1648, %v258
  %v1653 = vmul.f32 %v1648, %v262
  %v1654 = vmul.f32 %v1648, %v266
  %v1655 = vmul.f32 %v1648, %v270
  %v1656 = vmul.f32 %v1648, %v274
  %v1657 = vmul.f32 %v1648, %v278
  %v1658 = vmul.f32 %v1648, %v282
  %v1659 = vmul.f32 %v1648, %v286
  %v1660 = vmul.f32 %v1648, %v290
  %v1661 = vmul.f32 %v1648, %v294
  %v1662 = vmul.f32 %v1648, %v298
  %v1663 = vmul.f32 %v1648, %v302
  %v1664 = vmul.f32 %v1648, %v306
  %v1665 = vmul.f32 %v1648, %v310
  %v1666 = vmul.f32 %v1648, %v314
  %v1667 = vmul.f32 %v1648, %v318
  %v1668 = vmul.f32 %v1648, %v322
  %v1669 = vmul.f32 %v1648, %v326
  %v1670 = vmul.f32 %v1648, %v330
  %v1671 = vmul.f32 %v1648, %v334
  %v1672 = vmul.f32 %v1648, %v338
  %v1673 = vmul.f32 %v1648, %v342
  %v1674 = vmul.f32 %v1648, %v346
  %v1675 = vmul.f32 %v1648, %v350
  %v1676 = vmul.f32 %v1648, %v354
  %v1677 = vmul.f32 %v1648, %v358
  %v1678 = vmul.f32 %v1648, %v362
  %v1679 = vmul.f32 %v1648, %v366
  %v1680 = vmul.f32 %v1648, %v370
  %v1681 = vmul.f32 %v1648, %v374
  %v1682 = vmul.f32 %v1648, %v378
  %v1683 = vmul.f32 %v1648, %v382
  %v1684 = vmul.f32 %v1648, %v386
  %v1685 = vmul.f32 %v1648, %v390
  %v1686 = vmul.f32 %v1648, %v394
  %v1687 = vmul.f32 %v1648, %v398
  %v1688 = vmul.f32 %v1648, %v402
  %v1689 = vmul.f32 %v1648, %v406
  %v1690 = vmul.f32 %v1648, 0.0
  %1732 = vrot.lane.b32.xlu0 %v1650, 95
  %v1733 = vpop.permute.xlu0 %1732
  %1734 = vrot.lane.b32.xlu0 %v1651, 95
  %v1735 = vpop.permute.xlu0 %1734
  %1736 = vrot.lane.b32.xlu0 %v1652, 95
  %v1737 = vpop.permute.xlu0 %1736
  %1738 = vrot.lane.b32.xlu0 %v1653, 95
  %v1739 = vpop.permute.xlu0 %1738
  %1740 = vrot.lane.b32.xlu0 %v1654, 95
  %v1741 = vpop.permute.xlu0 %1740
  %1742 = vrot.lane.b32.xlu0 %v1655, 95
  %v1743 = vpop.permute.xlu0 %1742
  %1744 = vrot.lane.b32.xlu0 %v1656, 95
  %v1745 = vpop.permute.xlu0 %1744
  %1746 = vrot.lane.b32.xlu0 %v1657, 95
  %v1747 = vpop.permute.xlu0 %1746
  %1748 = vrot.lane.b32.xlu0 %v1658, 95
  %v1749 = vpop.permute.xlu0 %1748
  %1750 = vrot.lane.b32.xlu0 %v1659, 95
  %v1751 = vpop.permute.xlu0 %1750
  %1752 = vrot.lane.b32.xlu0 %v1660, 95
  %v1753 = vpop.permute.xlu0 %1752
  %1754 = vrot.lane.b32.xlu0 %v1661, 95
  %v1755 = vpop.permute.xlu0 %1754
  %1756 = vrot.lane.b32.xlu0 %v1662, 95
  %v1757 = vpop.permute.xlu0 %1756
  %1758 = vrot.lane.b32.xlu0 %v1663, 95
  %v1759 = vpop.permute.xlu0 %1758
  %1760 = vrot.lane.b32.xlu0 %v1664, 95
  %v1761 = vpop.permute.xlu0 %1760
  %1762 = vrot.lane.b32.xlu0 %v1665, 95
  %v1763 = vpop.permute.xlu0 %1762
  %1764 = vrot.lane.b32.xlu0 %v1666, 95
  %v1765 = vpop.permute.xlu0 %1764
  %1766 = vrot.lane.b32.xlu0 %v1667, 95
  %v1767 = vpop.permute.xlu0 %1766
  %1768 = vrot.lane.b32.xlu0 %v1668, 95
  %v1769 = vpop.permute.xlu0 %1768
  %1770 = vrot.lane.b32.xlu0 %v1669, 95
  %v1771 = vpop.permute.xlu0 %1770
  %1772 = vrot.lane.b32.xlu0 %v1670, 95
  %v1773 = vpop.permute.xlu0 %1772
  %1774 = vrot.lane.b32.xlu0 %v1671, 95
  %v1775 = vpop.permute.xlu0 %1774
  %1776 = vrot.lane.b32.xlu0 %v1672, 95
  %v1777 = vpop.permute.xlu0 %1776
  %1778 = vrot.lane.b32.xlu0 %v1673, 95
  %v1779 = vpop.permute.xlu0 %1778
  %1780 = vrot.lane.b32.xlu0 %v1674, 95
  %v1781 = vpop.permute.xlu0 %1780
  %1782 = vrot.lane.b32.xlu0 %v1675, 95
  %v1783 = vpop.permute.xlu0 %1782
  %1784 = vrot.lane.b32.xlu0 %v1676, 95
  %v1785 = vpop.permute.xlu0 %1784
  %1786 = vrot.lane.b32.xlu0 %v1677, 95
  %v1787 = vpop.permute.xlu0 %1786
  %1788 = vrot.lane.b32.xlu0 %v1678, 95
  %v1789 = vpop.permute.xlu0 %1788
  %1790 = vrot.lane.b32.xlu0 %v1679, 95
  %v1791 = vpop.permute.xlu0 %1790
  %1792 = vrot.lane.b32.xlu0 %v1680, 95
  %v1793 = vpop.permute.xlu0 %1792
  %1794 = vrot.lane.b32.xlu0 %v1681, 95
  %v1795 = vpop.permute.xlu0 %1794
  %1796 = vrot.lane.b32.xlu0 %v1682, 95
  %v1797 = vpop.permute.xlu0 %1796
  %1798 = vrot.lane.b32.xlu0 %v1683, 95
  %v1799 = vpop.permute.xlu0 %1798
  %1800 = vrot.lane.b32.xlu0 %v1684, 95
  %v1801 = vpop.permute.xlu0 %1800
  %1802 = vrot.lane.b32.xlu0 %v1685, 95
  %v1803 = vpop.permute.xlu0 %1802
  %1804 = vrot.lane.b32.xlu0 %v1686, 95
  %v1805 = vpop.permute.xlu0 %1804
  %1806 = vrot.lane.b32.xlu0 %v1687, 95
  %v1807 = vpop.permute.xlu0 %1806
  %1808 = vrot.lane.b32.xlu0 %v1688, 95
  %v1809 = vpop.permute.xlu0 %1808
  %1810 = vrot.lane.b32.xlu0 %v1689, 95
  %v1811 = vpop.permute.xlu0 %1810
  %1812 = vrot.lane.b32.xlu0 %v1690, 95
  %v1813 = vpop.permute.xlu0 %1812
  %vm1814 = vcmask 777216
  %v1815 = vsel %vm1814, %v1733, %v1735
  %v1816 = vsel %vm1814, %v1735, %v1737
  %v1817 = vsel %vm1814, %v1737, %v1739
  %v1818 = vsel %vm1814, %v1739, %v1741
  %v1819 = vsel %vm1814, %v1741, %v1743
  %v1820 = vsel %vm1814, %v1743, %v1745
  %v1821 = vsel %vm1814, %v1745, %v1747
  %v1822 = vsel %vm1814, %v1747, %v1749
  %v1823 = vsel %vm1814, %v1749, %v1751
  %v1824 = vsel %vm1814, %v1751, %v1753
  %v1825 = vsel %vm1814, %v1753, %v1755
  %v1826 = vsel %vm1814, %v1755, %v1757
  %v1827 = vsel %vm1814, %v1757, %v1759
  %v1828 = vsel %vm1814, %v1759, %v1761
  %v1829 = vsel %vm1814, %v1761, %v1763
  %v1830 = vsel %vm1814, %v1763, %v1765
  %v1831 = vsel %vm1814, %v1765, %v1767
  %v1832 = vsel %vm1814, %v1767, %v1769
  %v1833 = vsel %vm1814, %v1769, %v1771
  %v1834 = vsel %vm1814, %v1771, %v1773
  %v1835 = vsel %vm1814, %v1773, %v1775
  %v1836 = vsel %vm1814, %v1775, %v1777
  %v1837 = vsel %vm1814, %v1777, %v1779
  %v1838 = vsel %vm1814, %v1779, %v1781
  %v1839 = vsel %vm1814, %v1781, %v1783
  %v1840 = vsel %vm1814, %v1783, %v1785
  %v1841 = vsel %vm1814, %v1785, %v1787
  %v1842 = vsel %vm1814, %v1787, %v1789
  %v1843 = vsel %vm1814, %v1789, %v1791
  %v1844 = vsel %vm1814, %v1791, %v1793
  %v1845 = vsel %vm1814, %v1793, %v1795
  %v1846 = vsel %vm1814, %v1795, %v1797
  %v1847 = vsel %vm1814, %v1797, %v1799
  %v1848 = vsel %vm1814, %v1799, %v1801
  %v1849 = vsel %vm1814, %v1801, %v1803
  %v1850 = vsel %vm1814, %v1803, %v1805
  %v1851 = vsel %vm1814, %v1805, %v1807
  %v1852 = vsel %vm1814, %v1807, %v1809
  %v1853 = vsel %vm1814, %v1809, %v1811
  %v1854 = vsel %vm1814, %v1811, %v1813
  %v1895 = vadd.f32 %v1606, %v1815
  %v1896 = vadd.f32 %v1607, %v1816
  %v1897 = vadd.f32 %v1608, %v1817
  %v1898 = vadd.f32 %v1609, %v1818
  %v1899 = vadd.f32 %v1610, %v1819
  %v1900 = vadd.f32 %v1611, %v1820
  %v1901 = vadd.f32 %v1612, %v1821
  %v1902 = vadd.f32 %v1613, %v1822
  %v1903 = vadd.f32 %v1614, %v1823
  %v1904 = vadd.f32 %v1615, %v1824
  %v1905 = vadd.f32 %v1616, %v1825
  %v1906 = vadd.f32 %v1617, %v1826
  %v1907 = vadd.f32 %v1618, %v1827
  %v1908 = vadd.f32 %v1619, %v1828
  %v1909 = vadd.f32 %v1620, %v1829
  %v1910 = vadd.f32 %v1621, %v1830
  %v1911 = vadd.f32 %v1622, %v1831
  %v1912 = vadd.f32 %v1623, %v1832
  %v1913 = vadd.f32 %v1624, %v1833
  %v1914 = vadd.f32 %v1625, %v1834
  %v1915 = vadd.f32 %v1626, %v1835
  %v1916 = vadd.f32 %v1627, %v1836
  %v1917 = vadd.f32 %v1628, %v1837
  %v1918 = vadd.f32 %v1629, %v1838
  %v1919 = vadd.f32 %v1630, %v1839
  %v1920 = vadd.f32 %v1631, %v1840
  %v1921 = vadd.f32 %v1632, %v1841
  %v1922 = vadd.f32 %v1633, %v1842
  %v1923 = vadd.f32 %v1634, %v1843
  %v1924 = vadd.f32 %v1635, %v1844
  %v1925 = vadd.f32 %v1636, %v1845
  %v1926 = vadd.f32 %v1637, %v1846
  %v1927 = vadd.f32 %v1638, %v1847
  %v1928 = vadd.f32 %v1639, %v1848
  %v1929 = vadd.f32 %v1640, %v1849
  %v1930 = vadd.f32 %v1641, %v1850
  %v1931 = vadd.f32 %v1642, %v1851
  %v1932 = vadd.f32 %v1643, %v1852
  %v1933 = vadd.f32 %v1644, %v1853
  %v1934 = vadd.f32 %v1645, %v1854
  %1935 = vset.pattern.permute.xlu0 6
  %1936 = vperm.xlu0 %1935, %v241
  %v1937 = vpop.permute.xlu0 %1936
  %v1939 = vmul.f32 %v1937, %v250
  %v1940 = vmul.f32 %v1937, %v254
  %v1941 = vmul.f32 %v1937, %v258
  %v1942 = vmul.f32 %v1937, %v262
  %v1943 = vmul.f32 %v1937, %v266
  %v1944 = vmul.f32 %v1937, %v270
  %v1945 = vmul.f32 %v1937, %v274
  %v1946 = vmul.f32 %v1937, %v278
  %v1947 = vmul.f32 %v1937, %v282
  %v1948 = vmul.f32 %v1937, %v286
  %v1949 = vmul.f32 %v1937, %v290
  %v1950 = vmul.f32 %v1937, %v294
  %v1951 = vmul.f32 %v1937, %v298
  %v1952 = vmul.f32 %v1937, %v302
  %v1953 = vmul.f32 %v1937, %v306
  %v1954 = vmul.f32 %v1937, %v310
  %v1955 = vmul.f32 %v1937, %v314
  %v1956 = vmul.f32 %v1937, %v318
  %v1957 = vmul.f32 %v1937, %v322
  %v1958 = vmul.f32 %v1937, %v326
  %v1959 = vmul.f32 %v1937, %v330
  %v1960 = vmul.f32 %v1937, %v334
  %v1961 = vmul.f32 %v1937, %v338
  %v1962 = vmul.f32 %v1937, %v342
  %v1963 = vmul.f32 %v1937, %v346
  %v1964 = vmul.f32 %v1937, %v350
  %v1965 = vmul.f32 %v1937, %v354
  %v1966 = vmul.f32 %v1937, %v358
  %v1967 = vmul.f32 %v1937, %v362
  %v1968 = vmul.f32 %v1937, %v366
  %v1969 = vmul.f32 %v1937, %v370
  %v1970 = vmul.f32 %v1937, %v374
  %v1971 = vmul.f32 %v1937, %v378
  %v1972 = vmul.f32 %v1937, %v382
  %v1973 = vmul.f32 %v1937, %v386
  %v1974 = vmul.f32 %v1937, %v390
  %v1975 = vmul.f32 %v1937, %v394
  %v1976 = vmul.f32 %v1937, %v398
  %v1977 = vmul.f32 %v1937, %v402
  %v1978 = vmul.f32 %v1937, %v406
  %v1979 = vmul.f32 %v1937, 0.0
  %2021 = vrot.lane.b32.xlu0 %v1939, 94
  %v2022 = vpop.permute.xlu0 %2021
  %2023 = vrot.lane.b32.xlu0 %v1940, 94
  %v2024 = vpop.permute.xlu0 %2023
  %2025 = vrot.lane.b32.xlu0 %v1941, 94
  %v2026 = vpop.permute.xlu0 %2025
  %2027 = vrot.lane.b32.xlu0 %v1942, 94
  %v2028 = vpop.permute.xlu0 %2027
  %2029 = vrot.lane.b32.xlu0 %v1943, 94
  %v2030 = vpop.permute.xlu0 %2029
  %2031 = vrot.lane.b32.xlu0 %v1944, 94
  %v2032 = vpop.permute.xlu0 %2031
  %2033 = vrot.lane.b32.xlu0 %v1945, 94
  %v2034 = vpop.permute.xlu0 %2033
  %2035 = vrot.lane.b32.xlu0 %v1946, 94
  %v2036 = vpop.permute.xlu0 %2035
  %2037 = vrot.lane.b32.xlu0 %v1947, 94
  %v2038 = vpop.permute.xlu0 %2037
  %2039 = vrot.lane.b32.xlu0 %v1948, 94
  %v2040 = vpop.permute.xlu0 %2039
  %2041 = vrot.lane.b32.xlu0 %v1949, 94
  %v2042 = vpop.permute.xlu0 %2041
  %2043 = vrot.lane.b32.xlu0 %v1950, 94
  %v2044 = vpop.permute.xlu0 %2043
  %2045 = vrot.lane.b32.xlu0 %v1951, 94
  %v2046 = vpop.permute.xlu0 %2045
  %2047 = vrot.lane.b32.xlu0 %v1952, 94
  %v2048 = vpop.permute.xlu0 %2047
  %2049 = vrot.lane.b32.xlu0 %v1953, 94
  %v2050 = vpop.permute.xlu0 %2049
  %2051 = vrot.lane.b32.xlu0 %v1954, 94
  %v2052 = vpop.permute.xlu0 %2051
  %2053 = vrot.lane.b32.xlu0 %v1955, 94
  %v2054 = vpop.permute.xlu0 %2053
  %2055 = vrot.lane.b32.xlu0 %v1956, 94
  %v2056 = vpop.permute.xlu0 %2055
  %2057 = vrot.lane.b32.xlu0 %v1957, 94
  %v2058 = vpop.permute.xlu0 %2057
  %2059 = vrot.lane.b32.xlu0 %v1958, 94
  %v2060 = vpop.permute.xlu0 %2059
  %2061 = vrot.lane.b32.xlu0 %v1959, 94
  %v2062 = vpop.permute.xlu0 %2061
  %2063 = vrot.lane.b32.xlu0 %v1960, 94
  %v2064 = vpop.permute.xlu0 %2063
  %2065 = vrot.lane.b32.xlu0 %v1961, 94
  %v2066 = vpop.permute.xlu0 %2065
  %2067 = vrot.lane.b32.xlu0 %v1962, 94
  %v2068 = vpop.permute.xlu0 %2067
  %2069 = vrot.lane.b32.xlu0 %v1963, 94
  %v2070 = vpop.permute.xlu0 %2069
  %2071 = vrot.lane.b32.xlu0 %v1964, 94
  %v2072 = vpop.permute.xlu0 %2071
  %2073 = vrot.lane.b32.xlu0 %v1965, 94
  %v2074 = vpop.permute.xlu0 %2073
  %2075 = vrot.lane.b32.xlu0 %v1966, 94
  %v2076 = vpop.permute.xlu0 %2075
  %2077 = vrot.lane.b32.xlu0 %v1967, 94
  %v2078 = vpop.permute.xlu0 %2077
  %2079 = vrot.lane.b32.xlu0 %v1968, 94
  %v2080 = vpop.permute.xlu0 %2079
  %2081 = vrot.lane.b32.xlu0 %v1969, 94
  %v2082 = vpop.permute.xlu0 %2081
  %2083 = vrot.lane.b32.xlu0 %v1970, 94
  %v2084 = vpop.permute.xlu0 %2083
  %2085 = vrot.lane.b32.xlu0 %v1971, 94
  %v2086 = vpop.permute.xlu0 %2085
  %2087 = vrot.lane.b32.xlu0 %v1972, 94
  %v2088 = vpop.permute.xlu0 %2087
  %2089 = vrot.lane.b32.xlu0 %v1973, 94
  %v2090 = vpop.permute.xlu0 %2089
  %2091 = vrot.lane.b32.xlu0 %v1974, 94
  %v2092 = vpop.permute.xlu0 %2091
  %2093 = vrot.lane.b32.xlu0 %v1975, 94
  %v2094 = vpop.permute.xlu0 %2093
  %2095 = vrot.lane.b32.xlu0 %v1976, 94
  %v2096 = vpop.permute.xlu0 %2095
  %2097 = vrot.lane.b32.xlu0 %v1977, 94
  %v2098 = vpop.permute.xlu0 %2097
  %2099 = vrot.lane.b32.xlu0 %v1978, 94
  %v2100 = vpop.permute.xlu0 %2099
  %2101 = vrot.lane.b32.xlu0 %v1979, 94
  %v2102 = vpop.permute.xlu0 %2101
  %vm2103 = vcmask 769024
  %v2104 = vsel %vm2103, %v2022, %v2024
  %v2105 = vsel %vm2103, %v2024, %v2026
  %v2106 = vsel %vm2103, %v2026, %v2028
  %v2107 = vsel %vm2103, %v2028, %v2030
  %v2108 = vsel %vm2103, %v2030, %v2032
  %v2109 = vsel %vm2103, %v2032, %v2034
  %v2110 = vsel %vm2103, %v2034, %v2036
  %v2111 = vsel %vm2103, %v2036, %v2038
  %v2112 = vsel %vm2103, %v2038, %v2040
  %v2113 = vsel %vm2103, %v2040, %v2042
  %v2114 = vsel %vm2103, %v2042, %v2044
  %v2115 = vsel %vm2103, %v2044, %v2046
  %v2116 = vsel %vm2103, %v2046, %v2048
  %v2117 = vsel %vm2103, %v2048, %v2050
  %v2118 = vsel %vm2103, %v2050, %v2052
  %v2119 = vsel %vm2103, %v2052, %v2054
  %v2120 = vsel %vm2103, %v2054, %v2056
  %v2121 = vsel %vm2103, %v2056, %v2058
  %v2122 = vsel %vm2103, %v2058, %v2060
  %v2123 = vsel %vm2103, %v2060, %v2062
  %v2124 = vsel %vm2103, %v2062, %v2064
  %v2125 = vsel %vm2103, %v2064, %v2066
  %v2126 = vsel %vm2103, %v2066, %v2068
  %v2127 = vsel %vm2103, %v2068, %v2070
  %v2128 = vsel %vm2103, %v2070, %v2072
  %v2129 = vsel %vm2103, %v2072, %v2074
  %v2130 = vsel %vm2103, %v2074, %v2076
  %v2131 = vsel %vm2103, %v2076, %v2078
  %v2132 = vsel %vm2103, %v2078, %v2080
  %v2133 = vsel %vm2103, %v2080, %v2082
  %v2134 = vsel %vm2103, %v2082, %v2084
  %v2135 = vsel %vm2103, %v2084, %v2086
  %v2136 = vsel %vm2103, %v2086, %v2088
  %v2137 = vsel %vm2103, %v2088, %v2090
  %v2138 = vsel %vm2103, %v2090, %v2092
  %v2139 = vsel %vm2103, %v2092, %v2094
  %v2140 = vsel %vm2103, %v2094, %v2096
  %v2141 = vsel %vm2103, %v2096, %v2098
  %v2142 = vsel %vm2103, %v2098, %v2100
  %v2143 = vsel %vm2103, %v2100, %v2102
  %v2184 = vadd.f32 %v1895, %v2104
  %v2185 = vadd.f32 %v1896, %v2105
  %v2186 = vadd.f32 %v1897, %v2106
  %v2187 = vadd.f32 %v1898, %v2107
  %v2188 = vadd.f32 %v1899, %v2108
  %v2189 = vadd.f32 %v1900, %v2109
  %v2190 = vadd.f32 %v1901, %v2110
  %v2191 = vadd.f32 %v1902, %v2111
  %v2192 = vadd.f32 %v1903, %v2112
  %v2193 = vadd.f32 %v1904, %v2113
  %v2194 = vadd.f32 %v1905, %v2114
  %v2195 = vadd.f32 %v1906, %v2115
  %v2196 = vadd.f32 %v1907, %v2116
  %v2197 = vadd.f32 %v1908, %v2117
  %v2198 = vadd.f32 %v1909, %v2118
  %v2199 = vadd.f32 %v1910, %v2119
  %v2200 = vadd.f32 %v1911, %v2120
  %v2201 = vadd.f32 %v1912, %v2121
  %v2202 = vadd.f32 %v1913, %v2122
  %v2203 = vadd.f32 %v1914, %v2123
  %v2204 = vadd.f32 %v1915, %v2124
  %v2205 = vadd.f32 %v1916, %v2125
  %v2206 = vadd.f32 %v1917, %v2126
  %v2207 = vadd.f32 %v1918, %v2127
  %v2208 = vadd.f32 %v1919, %v2128
  %v2209 = vadd.f32 %v1920, %v2129
  %v2210 = vadd.f32 %v1921, %v2130
  %v2211 = vadd.f32 %v1922, %v2131
  %v2212 = vadd.f32 %v1923, %v2132
  %v2213 = vadd.f32 %v1924, %v2133
  %v2214 = vadd.f32 %v1925, %v2134
  %v2215 = vadd.f32 %v1926, %v2135
  %v2216 = vadd.f32 %v1927, %v2136
  %v2217 = vadd.f32 %v1928, %v2137
  %v2218 = vadd.f32 %v1929, %v2138
  %v2219 = vadd.f32 %v1930, %v2139
  %v2220 = vadd.f32 %v1931, %v2140
  %v2221 = vadd.f32 %v1932, %v2141
  %v2222 = vadd.f32 %v1933, %v2142
  %v2223 = vadd.f32 %v1934, %v2143
  %2224 = vset.pattern.permute.xlu0 7
  %2225 = vperm.xlu0 %2224, %v241
  %v2226 = vpop.permute.xlu0 %2225
  %v2228 = vmul.f32 %v2226, %v250
  %v2229 = vmul.f32 %v2226, %v254
  %v2230 = vmul.f32 %v2226, %v258
  %v2231 = vmul.f32 %v2226, %v262
  %v2232 = vmul.f32 %v2226, %v266
  %v2233 = vmul.f32 %v2226, %v270
  %v2234 = vmul.f32 %v2226, %v274
  %v2235 = vmul.f32 %v2226, %v278
  %v2236 = vmul.f32 %v2226, %v282
  %v2237 = vmul.f32 %v2226, %v286
  %v2238 = vmul.f32 %v2226, %v290
  %v2239 = vmul.f32 %v2226, %v294
  %v2240 = vmul.f32 %v2226, %v298
  %v2241 = vmul.f32 %v2226, %v302
  %v2242 = vmul.f32 %v2226, %v306
  %v2243 = vmul.f32 %v2226, %v310
  %v2244 = vmul.f32 %v2226, %v314
  %v2245 = vmul.f32 %v2226, %v318
  %v2246 = vmul.f32 %v2226, %v322
  %v2247 = vmul.f32 %v2226, %v326
  %v2248 = vmul.f32 %v2226, %v330
  %v2249 = vmul.f32 %v2226, %v334
  %v2250 = vmul.f32 %v2226, %v338
  %v2251 = vmul.f32 %v2226, %v342
  %v2252 = vmul.f32 %v2226, %v346
  %v2253 = vmul.f32 %v2226, %v350
  %v2254 = vmul.f32 %v2226, %v354
  %v2255 = vmul.f32 %v2226, %v358
  %v2256 = vmul.f32 %v2226, %v362
  %v2257 = vmul.f32 %v2226, %v366
  %v2258 = vmul.f32 %v2226, %v370
  %v2259 = vmul.f32 %v2226, %v374
  %v2260 = vmul.f32 %v2226, %v378
  %v2261 = vmul.f32 %v2226, %v382
  %v2262 = vmul.f32 %v2226, %v386
  %v2263 = vmul.f32 %v2226, %v390
  %v2264 = vmul.f32 %v2226, %v394
  %v2265 = vmul.f32 %v2226, %v398
  %v2266 = vmul.f32 %v2226, %v402
  %v2267 = vmul.f32 %v2226, %v406
  %v2268 = vmul.f32 %v2226, 0.0
  %2310 = vrot.lane.b32.xlu0 %v2228, 93
  %v2311 = vpop.permute.xlu0 %2310
  %2312 = vrot.lane.b32.xlu0 %v2229, 93
  %v2313 = vpop.permute.xlu0 %2312
  %2314 = vrot.lane.b32.xlu0 %v2230, 93
  %v2315 = vpop.permute.xlu0 %2314
  %2316 = vrot.lane.b32.xlu0 %v2231, 93
  %v2317 = vpop.permute.xlu0 %2316
  %2318 = vrot.lane.b32.xlu0 %v2232, 93
  %v2319 = vpop.permute.xlu0 %2318
  %2320 = vrot.lane.b32.xlu0 %v2233, 93
  %v2321 = vpop.permute.xlu0 %2320
  %2322 = vrot.lane.b32.xlu0 %v2234, 93
  %v2323 = vpop.permute.xlu0 %2322
  %2324 = vrot.lane.b32.xlu0 %v2235, 93
  %v2325 = vpop.permute.xlu0 %2324
  %2326 = vrot.lane.b32.xlu0 %v2236, 93
  %v2327 = vpop.permute.xlu0 %2326
  %2328 = vrot.lane.b32.xlu0 %v2237, 93
  %v2329 = vpop.permute.xlu0 %2328
  %2330 = vrot.lane.b32.xlu0 %v2238, 93
  %v2331 = vpop.permute.xlu0 %2330
  %2332 = vrot.lane.b32.xlu0 %v2239, 93
  %v2333 = vpop.permute.xlu0 %2332
  %2334 = vrot.lane.b32.xlu0 %v2240, 93
  %v2335 = vpop.permute.xlu0 %2334
  %2336 = vrot.lane.b32.xlu0 %v2241, 93
  %v2337 = vpop.permute.xlu0 %2336
  %2338 = vrot.lane.b32.xlu0 %v2242, 93
  %v2339 = vpop.permute.xlu0 %2338
  %2340 = vrot.lane.b32.xlu0 %v2243, 93
  %v2341 = vpop.permute.xlu0 %2340
  %2342 = vrot.lane.b32.xlu0 %v2244, 93
  %v2343 = vpop.permute.xlu0 %2342
  %2344 = vrot.lane.b32.xlu0 %v2245, 93
  %v2345 = vpop.permute.xlu0 %2344
  %2346 = vrot.lane.b32.xlu0 %v2246, 93
  %v2347 = vpop.permute.xlu0 %2346
  %2348 = vrot.lane.b32.xlu0 %v2247, 93
  %v2349 = vpop.permute.xlu0 %2348
  %2350 = vrot.lane.b32.xlu0 %v2248, 93
  %v2351 = vpop.permute.xlu0 %2350
  %2352 = vrot.lane.b32.xlu0 %v2249, 93
  %v2353 = vpop.permute.xlu0 %2352
  %2354 = vrot.lane.b32.xlu0 %v2250, 93
  %v2355 = vpop.permute.xlu0 %2354
  %2356 = vrot.lane.b32.xlu0 %v2251, 93
  %v2357 = vpop.permute.xlu0 %2356
  %2358 = vrot.lane.b32.xlu0 %v2252, 93
  %v2359 = vpop.permute.xlu0 %2358
  %2360 = vrot.lane.b32.xlu0 %v2253, 93
  %v2361 = vpop.permute.xlu0 %2360
  %2362 = vrot.lane.b32.xlu0 %v2254, 93
  %v2363 = vpop.permute.xlu0 %2362
  %2364 = vrot.lane.b32.xlu0 %v2255, 93
  %v2365 = vpop.permute.xlu0 %2364
  %2366 = vrot.lane.b32.xlu0 %v2256, 93
  %v2367 = vpop.permute.xlu0 %2366
  %2368 = vrot.lane.b32.xlu0 %v2257, 93
  %v2369 = vpop.permute.xlu0 %2368
  %2370 = vrot.lane.b32.xlu0 %v2258, 93
  %v2371 = vpop.permute.xlu0 %2370
  %2372 = vrot.lane.b32.xlu0 %v2259, 93
  %v2373 = vpop.permute.xlu0 %2372
  %2374 = vrot.lane.b32.xlu0 %v2260, 93
  %v2375 = vpop.permute.xlu0 %2374
  %2376 = vrot.lane.b32.xlu0 %v2261, 93
  %v2377 = vpop.permute.xlu0 %2376
  %2378 = vrot.lane.b32.xlu0 %v2262, 93
  %v2379 = vpop.permute.xlu0 %2378
  %2380 = vrot.lane.b32.xlu0 %v2263, 93
  %v2381 = vpop.permute.xlu0 %2380
  %2382 = vrot.lane.b32.xlu0 %v2264, 93
  %v2383 = vpop.permute.xlu0 %2382
  %2384 = vrot.lane.b32.xlu0 %v2265, 93
  %v2385 = vpop.permute.xlu0 %2384
  %2386 = vrot.lane.b32.xlu0 %v2266, 93
  %v2387 = vpop.permute.xlu0 %2386
  %2388 = vrot.lane.b32.xlu0 %v2267, 93
  %v2389 = vpop.permute.xlu0 %2388
  %2390 = vrot.lane.b32.xlu0 %v2268, 93
  %v2391 = vpop.permute.xlu0 %2390
  %vm2392 = vcmask 760832
  %v2393 = vsel %vm2392, %v2311, %v2313
  %v2394 = vsel %vm2392, %v2313, %v2315
  %v2395 = vsel %vm2392, %v2315, %v2317
  %v2396 = vsel %vm2392, %v2317, %v2319
  %v2397 = vsel %vm2392, %v2319, %v2321
  %v2398 = vsel %vm2392, %v2321, %v2323
  %v2399 = vsel %vm2392, %v2323, %v2325
  %v2400 = vsel %vm2392, %v2325, %v2327
  %v2401 = vsel %vm2392, %v2327, %v2329
  %v2402 = vsel %vm2392, %v2329, %v2331
  %v2403 = vsel %vm2392, %v2331, %v2333
  %v2404 = vsel %vm2392, %v2333, %v2335
  %v2405 = vsel %vm2392, %v2335, %v2337
  %v2406 = vsel %vm2392, %v2337, %v2339
  %v2407 = vsel %vm2392, %v2339, %v2341
  %v2408 = vsel %vm2392, %v2341, %v2343
  %v2409 = vsel %vm2392, %v2343, %v2345
  %v2410 = vsel %vm2392, %v2345, %v2347
  %v2411 = vsel %vm2392, %v2347, %v2349
  %v2412 = vsel %vm2392, %v2349, %v2351
  %v2413 = vsel %vm2392, %v2351, %v2353
  %v2414 = vsel %vm2392, %v2353, %v2355
  %v2415 = vsel %vm2392, %v2355, %v2357
  %v2416 = vsel %vm2392, %v2357, %v2359
  %v2417 = vsel %vm2392, %v2359, %v2361
  %v2418 = vsel %vm2392, %v2361, %v2363
  %v2419 = vsel %vm2392, %v2363, %v2365
  %v2420 = vsel %vm2392, %v2365, %v2367
  %v2421 = vsel %vm2392, %v2367, %v2369
  %v2422 = vsel %vm2392, %v2369, %v2371
  %v2423 = vsel %vm2392, %v2371, %v2373
  %v2424 = vsel %vm2392, %v2373, %v2375
  %v2425 = vsel %vm2392, %v2375, %v2377
  %v2426 = vsel %vm2392, %v2377, %v2379
  %v2427 = vsel %vm2392, %v2379, %v2381
  %v2428 = vsel %vm2392, %v2381, %v2383
  %v2429 = vsel %vm2392, %v2383, %v2385
  %v2430 = vsel %vm2392, %v2385, %v2387
  %v2431 = vsel %vm2392, %v2387, %v2389
  %v2432 = vsel %vm2392, %v2389, %v2391
  %v2473 = vadd.f32 %v2184, %v2393
  %v2474 = vadd.f32 %v2185, %v2394
  %v2475 = vadd.f32 %v2186, %v2395
  %v2476 = vadd.f32 %v2187, %v2396
  %v2477 = vadd.f32 %v2188, %v2397
  %v2478 = vadd.f32 %v2189, %v2398
  %v2479 = vadd.f32 %v2190, %v2399
  %v2480 = vadd.f32 %v2191, %v2400
  %v2481 = vadd.f32 %v2192, %v2401
  %v2482 = vadd.f32 %v2193, %v2402
  %v2483 = vadd.f32 %v2194, %v2403
  %v2484 = vadd.f32 %v2195, %v2404
  %v2485 = vadd.f32 %v2196, %v2405
  %v2486 = vadd.f32 %v2197, %v2406
  %v2487 = vadd.f32 %v2198, %v2407
  %v2488 = vadd.f32 %v2199, %v2408
  %v2489 = vadd.f32 %v2200, %v2409
  %v2490 = vadd.f32 %v2201, %v2410
  %v2491 = vadd.f32 %v2202, %v2411
  %v2492 = vadd.f32 %v2203, %v2412
  %v2493 = vadd.f32 %v2204, %v2413
  %v2494 = vadd.f32 %v2205, %v2414
  %v2495 = vadd.f32 %v2206, %v2415
  %v2496 = vadd.f32 %v2207, %v2416
  %v2497 = vadd.f32 %v2208, %v2417
  %v2498 = vadd.f32 %v2209, %v2418
  %v2499 = vadd.f32 %v2210, %v2419
  %v2500 = vadd.f32 %v2211, %v2420
  %v2501 = vadd.f32 %v2212, %v2421
  %v2502 = vadd.f32 %v2213, %v2422
  %v2503 = vadd.f32 %v2214, %v2423
  %v2504 = vadd.f32 %v2215, %v2424
  %v2505 = vadd.f32 %v2216, %v2425
  %v2506 = vadd.f32 %v2217, %v2426
  %v2507 = vadd.f32 %v2218, %v2427
  %v2508 = vadd.f32 %v2219, %v2428
  %v2509 = vadd.f32 %v2220, %v2429
  %v2510 = vadd.f32 %v2221, %v2430
  %v2511 = vadd.f32 %v2222, %v2431
  %v2512 = vadd.f32 %v2223, %v2432
  %2513 = vset.pattern.permute.xlu0 8
  %2514 = vperm.xlu0 %2513, %v241
  %v2515 = vpop.permute.xlu0 %2514
  %v2517 = vmul.f32 %v2515, %v250
  %v2518 = vmul.f32 %v2515, %v254
  %v2519 = vmul.f32 %v2515, %v258
  %v2520 = vmul.f32 %v2515, %v262
  %v2521 = vmul.f32 %v2515, %v266
  %v2522 = vmul.f32 %v2515, %v270
  %v2523 = vmul.f32 %v2515, %v274
  %v2524 = vmul.f32 %v2515, %v278
  %v2525 = vmul.f32 %v2515, %v282
  %v2526 = vmul.f32 %v2515, %v286
  %v2527 = vmul.f32 %v2515, %v290
  %v2528 = vmul.f32 %v2515, %v294
  %v2529 = vmul.f32 %v2515, %v298
  %v2530 = vmul.f32 %v2515, %v302
  %v2531 = vmul.f32 %v2515, %v306
  %v2532 = vmul.f32 %v2515, %v310
  %v2533 = vmul.f32 %v2515, %v314
  %v2534 = vmul.f32 %v2515, %v318
  %v2535 = vmul.f32 %v2515, %v322
  %v2536 = vmul.f32 %v2515, %v326
  %v2537 = vmul.f32 %v2515, %v330
  %v2538 = vmul.f32 %v2515, %v334
  %v2539 = vmul.f32 %v2515, %v338
  %v2540 = vmul.f32 %v2515, %v342
  %v2541 = vmul.f32 %v2515, %v346
  %v2542 = vmul.f32 %v2515, %v350
  %v2543 = vmul.f32 %v2515, %v354
  %v2544 = vmul.f32 %v2515, %v358
  %v2545 = vmul.f32 %v2515, %v362
  %v2546 = vmul.f32 %v2515, %v366
  %v2547 = vmul.f32 %v2515, %v370
  %v2548 = vmul.f32 %v2515, %v374
  %v2549 = vmul.f32 %v2515, %v378
  %v2550 = vmul.f32 %v2515, %v382
  %v2551 = vmul.f32 %v2515, %v386
  %v2552 = vmul.f32 %v2515, %v390
  %v2553 = vmul.f32 %v2515, %v394
  %v2554 = vmul.f32 %v2515, %v398
  %v2555 = vmul.f32 %v2515, %v402
  %v2556 = vmul.f32 %v2515, %v406
  %v2557 = vmul.f32 %v2515, 0.0
  %2599 = vrot.lane.b32.xlu0 %v2517, 64
  %v2600 = vpop.permute.xlu0 %2599
  %2601 = vrot.lane.b32.xlu0 %v2518, 64
  %v2602 = vpop.permute.xlu0 %2601
  %2603 = vrot.lane.b32.xlu0 %v2519, 64
  %v2604 = vpop.permute.xlu0 %2603
  %2605 = vrot.lane.b32.xlu0 %v2520, 64
  %v2606 = vpop.permute.xlu0 %2605
  %2607 = vrot.lane.b32.xlu0 %v2521, 64
  %v2608 = vpop.permute.xlu0 %2607
  %2609 = vrot.lane.b32.xlu0 %v2522, 64
  %v2610 = vpop.permute.xlu0 %2609
  %2611 = vrot.lane.b32.xlu0 %v2523, 64
  %v2612 = vpop.permute.xlu0 %2611
  %2613 = vrot.lane.b32.xlu0 %v2524, 64
  %v2614 = vpop.permute.xlu0 %2613
  %2615 = vrot.lane.b32.xlu0 %v2525, 64
  %v2616 = vpop.permute.xlu0 %2615
  %2617 = vrot.lane.b32.xlu0 %v2526, 64
  %v2618 = vpop.permute.xlu0 %2617
  %2619 = vrot.lane.b32.xlu0 %v2527, 64
  %v2620 = vpop.permute.xlu0 %2619
  %2621 = vrot.lane.b32.xlu0 %v2528, 64
  %v2622 = vpop.permute.xlu0 %2621
  %2623 = vrot.lane.b32.xlu0 %v2529, 64
  %v2624 = vpop.permute.xlu0 %2623
  %2625 = vrot.lane.b32.xlu0 %v2530, 64
  %v2626 = vpop.permute.xlu0 %2625
  %2627 = vrot.lane.b32.xlu0 %v2531, 64
  %v2628 = vpop.permute.xlu0 %2627
  %2629 = vrot.lane.b32.xlu0 %v2532, 64
  %v2630 = vpop.permute.xlu0 %2629
  %2631 = vrot.lane.b32.xlu0 %v2533, 64
  %v2632 = vpop.permute.xlu0 %2631
  %2633 = vrot.lane.b32.xlu0 %v2534, 64
  %v2634 = vpop.permute.xlu0 %2633
  %2635 = vrot.lane.b32.xlu0 %v2535, 64
  %v2636 = vpop.permute.xlu0 %2635
  %2637 = vrot.lane.b32.xlu0 %v2536, 64
  %v2638 = vpop.permute.xlu0 %2637
  %2639 = vrot.lane.b32.xlu0 %v2537, 64
  %v2640 = vpop.permute.xlu0 %2639
  %2641 = vrot.lane.b32.xlu0 %v2538, 64
  %v2642 = vpop.permute.xlu0 %2641
  %2643 = vrot.lane.b32.xlu0 %v2539, 64
  %v2644 = vpop.permute.xlu0 %2643
  %2645 = vrot.lane.b32.xlu0 %v2540, 64
  %v2646 = vpop.permute.xlu0 %2645
  %2647 = vrot.lane.b32.xlu0 %v2541, 64
  %v2648 = vpop.permute.xlu0 %2647
  %2649 = vrot.lane.b32.xlu0 %v2542, 64
  %v2650 = vpop.permute.xlu0 %2649
  %2651 = vrot.lane.b32.xlu0 %v2543, 64
  %v2652 = vpop.permute.xlu0 %2651
  %2653 = vrot.lane.b32.xlu0 %v2544, 64
  %v2654 = vpop.permute.xlu0 %2653
  %2655 = vrot.lane.b32.xlu0 %v2545, 64
  %v2656 = vpop.permute.xlu0 %2655
  %2657 = vrot.lane.b32.xlu0 %v2546, 64
  %v2658 = vpop.permute.xlu0 %2657
  %2659 = vrot.lane.b32.xlu0 %v2547, 64
  %v2660 = vpop.permute.xlu0 %2659
  %2661 = vrot.lane.b32.xlu0 %v2548, 64
  %v2662 = vpop.permute.xlu0 %2661
  %2663 = vrot.lane.b32.xlu0 %v2549, 64
  %v2664 = vpop.permute.xlu0 %2663
  %2665 = vrot.lane.b32.xlu0 %v2550, 64
  %v2666 = vpop.permute.xlu0 %2665
  %2667 = vrot.lane.b32.xlu0 %v2551, 64
  %v2668 = vpop.permute.xlu0 %2667
  %2669 = vrot.lane.b32.xlu0 %v2552, 64
  %v2670 = vpop.permute.xlu0 %2669
  %2671 = vrot.lane.b32.xlu0 %v2553, 64
  %v2672 = vpop.permute.xlu0 %2671
  %2673 = vrot.lane.b32.xlu0 %v2554, 64
  %v2674 = vpop.permute.xlu0 %2673
  %2675 = vrot.lane.b32.xlu0 %v2555, 64
  %v2676 = vpop.permute.xlu0 %2675
  %2677 = vrot.lane.b32.xlu0 %v2556, 64
  %v2678 = vpop.permute.xlu0 %2677
  %2679 = vrot.lane.b32.xlu0 %v2557, 64
  %v2680 = vpop.permute.xlu0 %2679
  %vm2681 = vcmask 523264
  %v2682 = vsel %vm2681, %v2600, %v2602
  %v2683 = vsel %vm2681, %v2602, %v2604
  %v2684 = vsel %vm2681, %v2604, %v2606
  %v2685 = vsel %vm2681, %v2606, %v2608
  %v2686 = vsel %vm2681, %v2608, %v2610
  %v2687 = vsel %vm2681, %v2610, %v2612
  %v2688 = vsel %vm2681, %v2612, %v2614
  %v2689 = vsel %vm2681, %v2614, %v2616
  %v2690 = vsel %vm2681, %v2616, %v2618
  %v2691 = vsel %vm2681, %v2618, %v2620
  %v2692 = vsel %vm2681, %v2620, %v2622
  %v2693 = vsel %vm2681, %v2622, %v2624
  %v2694 = vsel %vm2681, %v2624, %v2626
  %v2695 = vsel %vm2681, %v2626, %v2628
  %v2696 = vsel %vm2681, %v2628, %v2630
  %v2697 = vsel %vm2681, %v2630, %v2632
  %v2698 = vsel %vm2681, %v2632, %v2634
  %v2699 = vsel %vm2681, %v2634, %v2636
  %v2700 = vsel %vm2681, %v2636, %v2638
  %v2701 = vsel %vm2681, %v2638, %v2640
  %v2702 = vsel %vm2681, %v2640, %v2642
  %v2703 = vsel %vm2681, %v2642, %v2644
  %v2704 = vsel %vm2681, %v2644, %v2646
  %v2705 = vsel %vm2681, %v2646, %v2648
  %v2706 = vsel %vm2681, %v2648, %v2650
  %v2707 = vsel %vm2681, %v2650, %v2652
  %v2708 = vsel %vm2681, %v2652, %v2654
  %v2709 = vsel %vm2681, %v2654, %v2656
  %v2710 = vsel %vm2681, %v2656, %v2658
  %v2711 = vsel %vm2681, %v2658, %v2660
  %v2712 = vsel %vm2681, %v2660, %v2662
  %v2713 = vsel %vm2681, %v2662, %v2664
  %v2714 = vsel %vm2681, %v2664, %v2666
  %v2715 = vsel %vm2681, %v2666, %v2668
  %v2716 = vsel %vm2681, %v2668, %v2670
  %v2717 = vsel %vm2681, %v2670, %v2672
  %v2718 = vsel %vm2681, %v2672, %v2674
  %v2719 = vsel %vm2681, %v2674, %v2676
  %v2720 = vsel %vm2681, %v2676, %v2678
  %v2721 = vsel %vm2681, %v2678, %v2680
  %v2762 = vadd.f32 %v2473, %v2682
  %v2763 = vadd.f32 %v2474, %v2683
  %v2764 = vadd.f32 %v2475, %v2684
  %v2765 = vadd.f32 %v2476, %v2685
  %v2766 = vadd.f32 %v2477, %v2686
  %v2767 = vadd.f32 %v2478, %v2687
  %v2768 = vadd.f32 %v2479, %v2688
  %v2769 = vadd.f32 %v2480, %v2689
  %v2770 = vadd.f32 %v2481, %v2690
  %v2771 = vadd.f32 %v2482, %v2691
  %v2772 = vadd.f32 %v2483, %v2692
  %v2773 = vadd.f32 %v2484, %v2693
  %v2774 = vadd.f32 %v2485, %v2694
  %v2775 = vadd.f32 %v2486, %v2695
  %v2776 = vadd.f32 %v2487, %v2696
  %v2777 = vadd.f32 %v2488, %v2697
  %v2778 = vadd.f32 %v2489, %v2698
  %v2779 = vadd.f32 %v2490, %v2699
  %v2780 = vadd.f32 %v2491, %v2700
  %v2781 = vadd.f32 %v2492, %v2701
  %v2782 = vadd.f32 %v2493, %v2702
  %v2783 = vadd.f32 %v2494, %v2703
  %v2784 = vadd.f32 %v2495, %v2704
  %v2785 = vadd.f32 %v2496, %v2705
  %v2786 = vadd.f32 %v2497, %v2706
  %v2787 = vadd.f32 %v2498, %v2707
  %v2788 = vadd.f32 %v2499, %v2708
  %v2789 = vadd.f32 %v2500, %v2709
  %v2790 = vadd.f32 %v2501, %v2710
  %v2791 = vadd.f32 %v2502, %v2711
  %v2792 = vadd.f32 %v2503, %v2712
  %v2793 = vadd.f32 %v2504, %v2713
  %v2794 = vadd.f32 %v2505, %v2714
  %v2795 = vadd.f32 %v2506, %v2715
  %v2796 = vadd.f32 %v2507, %v2716
  %v2797 = vadd.f32 %v2508, %v2717
  %v2798 = vadd.f32 %v2509, %v2718
  %v2799 = vadd.f32 %v2510, %v2719
  %v2800 = vadd.f32 %v2511, %v2720
  %v2801 = vadd.f32 %v2512, %v2721
  %2802 = vset.pattern.permute.xlu0 9
  %2803 = vperm.xlu0 %2802, %v241
  %v2804 = vpop.permute.xlu0 %2803
  %v2806 = vmul.f32 %v2804, %v250
  %v2807 = vmul.f32 %v2804, %v254
  %v2808 = vmul.f32 %v2804, %v258
  %v2809 = vmul.f32 %v2804, %v262
  %v2810 = vmul.f32 %v2804, %v266
  %v2811 = vmul.f32 %v2804, %v270
  %v2812 = vmul.f32 %v2804, %v274
  %v2813 = vmul.f32 %v2804, %v278
  %v2814 = vmul.f32 %v2804, %v282
  %v2815 = vmul.f32 %v2804, %v286
  %v2816 = vmul.f32 %v2804, %v290
  %v2817 = vmul.f32 %v2804, %v294
  %v2818 = vmul.f32 %v2804, %v298
  %v2819 = vmul.f32 %v2804, %v302
  %v2820 = vmul.f32 %v2804, %v306
  %v2821 = vmul.f32 %v2804, %v310
  %v2822 = vmul.f32 %v2804, %v314
  %v2823 = vmul.f32 %v2804, %v318
  %v2824 = vmul.f32 %v2804, %v322
  %v2825 = vmul.f32 %v2804, %v326
  %v2826 = vmul.f32 %v2804, %v330
  %v2827 = vmul.f32 %v2804, %v334
  %v2828 = vmul.f32 %v2804, %v338
  %v2829 = vmul.f32 %v2804, %v342
  %v2830 = vmul.f32 %v2804, %v346
  %v2831 = vmul.f32 %v2804, %v350
  %v2832 = vmul.f32 %v2804, %v354
  %v2833 = vmul.f32 %v2804, %v358
  %v2834 = vmul.f32 %v2804, %v362
  %v2835 = vmul.f32 %v2804, %v366
  %v2836 = vmul.f32 %v2804, %v370
  %v2837 = vmul.f32 %v2804, %v374
  %v2838 = vmul.f32 %v2804, %v378
  %v2839 = vmul.f32 %v2804, %v382
  %v2840 = vmul.f32 %v2804, %v386
  %v2841 = vmul.f32 %v2804, %v390
  %v2842 = vmul.f32 %v2804, %v394
  %v2843 = vmul.f32 %v2804, %v398
  %v2844 = vmul.f32 %v2804, %v402
  %v2845 = vmul.f32 %v2804, %v406
  %v2846 = vmul.f32 %v2804, 0.0
  %2888 = vrot.lane.b32.xlu0 %v2806, 63
  %v2889 = vpop.permute.xlu0 %2888
  %2890 = vrot.lane.b32.xlu0 %v2807, 63
  %v2891 = vpop.permute.xlu0 %2890
  %2892 = vrot.lane.b32.xlu0 %v2808, 63
  %v2893 = vpop.permute.xlu0 %2892
  %2894 = vrot.lane.b32.xlu0 %v2809, 63
  %v2895 = vpop.permute.xlu0 %2894
  %2896 = vrot.lane.b32.xlu0 %v2810, 63
  %v2897 = vpop.permute.xlu0 %2896
  %2898 = vrot.lane.b32.xlu0 %v2811, 63
  %v2899 = vpop.permute.xlu0 %2898
  %2900 = vrot.lane.b32.xlu0 %v2812, 63
  %v2901 = vpop.permute.xlu0 %2900
  %2902 = vrot.lane.b32.xlu0 %v2813, 63
  %v2903 = vpop.permute.xlu0 %2902
  %2904 = vrot.lane.b32.xlu0 %v2814, 63
  %v2905 = vpop.permute.xlu0 %2904
  %2906 = vrot.lane.b32.xlu0 %v2815, 63
  %v2907 = vpop.permute.xlu0 %2906
  %2908 = vrot.lane.b32.xlu0 %v2816, 63
  %v2909 = vpop.permute.xlu0 %2908
  %2910 = vrot.lane.b32.xlu0 %v2817, 63
  %v2911 = vpop.permute.xlu0 %2910
  %2912 = vrot.lane.b32.xlu0 %v2818, 63
  %v2913 = vpop.permute.xlu0 %2912
  %2914 = vrot.lane.b32.xlu0 %v2819, 63
  %v2915 = vpop.permute.xlu0 %2914
  %2916 = vrot.lane.b32.xlu0 %v2820, 63
  %v2917 = vpop.permute.xlu0 %2916
  %2918 = vrot.lane.b32.xlu0 %v2821, 63
  %v2919 = vpop.permute.xlu0 %2918
  %2920 = vrot.lane.b32.xlu0 %v2822, 63
  %v2921 = vpop.permute.xlu0 %2920
  %2922 = vrot.lane.b32.xlu0 %v2823, 63
  %v2923 = vpop.permute.xlu0 %2922
  %2924 = vrot.lane.b32.xlu0 %v2824, 63
  %v2925 = vpop.permute.xlu0 %2924
  %2926 = vrot.lane.b32.xlu0 %v2825, 63
  %v2927 = vpop.permute.xlu0 %2926
  %2928 = vrot.lane.b32.xlu0 %v2826, 63
  %v2929 = vpop.permute.xlu0 %2928
  %2930 = vrot.lane.b32.xlu0 %v2827, 63
  %v2931 = vpop.permute.xlu0 %2930
  %2932 = vrot.lane.b32.xlu0 %v2828, 63
  %v2933 = vpop.permute.xlu0 %2932
  %2934 = vrot.lane.b32.xlu0 %v2829, 63
  %v2935 = vpop.permute.xlu0 %2934
  %2936 = vrot.lane.b32.xlu0 %v2830, 63
  %v2937 = vpop.permute.xlu0 %2936
  %2938 = vrot.lane.b32.xlu0 %v2831, 63
  %v2939 = vpop.permute.xlu0 %2938
  %2940 = vrot.lane.b32.xlu0 %v2832, 63
  %v2941 = vpop.permute.xlu0 %2940
  %2942 = vrot.lane.b32.xlu0 %v2833, 63
  %v2943 = vpop.permute.xlu0 %2942
  %2944 = vrot.lane.b32.xlu0 %v2834, 63
  %v2945 = vpop.permute.xlu0 %2944
  %2946 = vrot.lane.b32.xlu0 %v2835, 63
  %v2947 = vpop.permute.xlu0 %2946
  %2948 = vrot.lane.b32.xlu0 %v2836, 63
  %v2949 = vpop.permute.xlu0 %2948
  %2950 = vrot.lane.b32.xlu0 %v2837, 63
  %v2951 = vpop.permute.xlu0 %2950
  %2952 = vrot.lane.b32.xlu0 %v2838, 63
  %v2953 = vpop.permute.xlu0 %2952
  %2954 = vrot.lane.b32.xlu0 %v2839, 63
  %v2955 = vpop.permute.xlu0 %2954
  %2956 = vrot.lane.b32.xlu0 %v2840, 63
  %v2957 = vpop.permute.xlu0 %2956
  %2958 = vrot.lane.b32.xlu0 %v2841, 63
  %v2959 = vpop.permute.xlu0 %2958
  %2960 = vrot.lane.b32.xlu0 %v2842, 63
  %v2961 = vpop.permute.xlu0 %2960
  %2962 = vrot.lane.b32.xlu0 %v2843, 63
  %v2963 = vpop.permute.xlu0 %2962
  %2964 = vrot.lane.b32.xlu0 %v2844, 63
  %v2965 = vpop.permute.xlu0 %2964
  %2966 = vrot.lane.b32.xlu0 %v2845, 63
  %v2967 = vpop.permute.xlu0 %2966
  %2968 = vrot.lane.b32.xlu0 %v2846, 63
  %v2969 = vpop.permute.xlu0 %2968
  %vm2970 = vcmask 515072
  %v2971 = vsel %vm2970, %v2889, %v2891
  %v2972 = vsel %vm2970, %v2891, %v2893
  %v2973 = vsel %vm2970, %v2893, %v2895
  %v2974 = vsel %vm2970, %v2895, %v2897
  %v2975 = vsel %vm2970, %v2897, %v2899
  %v2976 = vsel %vm2970, %v2899, %v2901
  %v2977 = vsel %vm2970, %v2901, %v2903
  %v2978 = vsel %vm2970, %v2903, %v2905
  %v2979 = vsel %vm2970, %v2905, %v2907
  %v2980 = vsel %vm2970, %v2907, %v2909
  %v2981 = vsel %vm2970, %v2909, %v2911
  %v2982 = vsel %vm2970, %v2911, %v2913
  %v2983 = vsel %vm2970, %v2913, %v2915
  %v2984 = vsel %vm2970, %v2915, %v2917
  %v2985 = vsel %vm2970, %v2917, %v2919
  %v2986 = vsel %vm2970, %v2919, %v2921
  %v2987 = vsel %vm2970, %v2921, %v2923
  %v2988 = vsel %vm2970, %v2923, %v2925
  %v2989 = vsel %vm2970, %v2925, %v2927
  %v2990 = vsel %vm2970, %v2927, %v2929
  %v2991 = vsel %vm2970, %v2929, %v2931
  %v2992 = vsel %vm2970, %v2931, %v2933
  %v2993 = vsel %vm2970, %v2933, %v2935
  %v2994 = vsel %vm2970, %v2935, %v2937
  %v2995 = vsel %vm2970, %v2937, %v2939
  %v2996 = vsel %vm2970, %v2939, %v2941
  %v2997 = vsel %vm2970, %v2941, %v2943
  %v2998 = vsel %vm2970, %v2943, %v2945
  %v2999 = vsel %vm2970, %v2945, %v2947
  %v3000 = vsel %vm2970, %v2947, %v2949
  %v3001 = vsel %vm2970, %v2949, %v2951
  %v3002 = vsel %vm2970, %v2951, %v2953
  %v3003 = vsel %vm2970, %v2953, %v2955
  %v3004 = vsel %vm2970, %v2955, %v2957
  %v3005 = vsel %vm2970, %v2957, %v2959
  %v3006 = vsel %vm2970, %v2959, %v2961
  %v3007 = vsel %vm2970, %v2961, %v2963
  %v3008 = vsel %vm2970, %v2963, %v2965
  %v3009 = vsel %vm2970, %v2965, %v2967
  %v3010 = vsel %vm2970, %v2967, %v2969
  %v3051 = vadd.f32 %v2762, %v2971
  %v3052 = vadd.f32 %v2763, %v2972
  %v3053 = vadd.f32 %v2764, %v2973
  %v3054 = vadd.f32 %v2765, %v2974
  %v3055 = vadd.f32 %v2766, %v2975
  %v3056 = vadd.f32 %v2767, %v2976
  %v3057 = vadd.f32 %v2768, %v2977
  %v3058 = vadd.f32 %v2769, %v2978
  %v3059 = vadd.f32 %v2770, %v2979
  %v3060 = vadd.f32 %v2771, %v2980
  %v3061 = vadd.f32 %v2772, %v2981
  %v3062 = vadd.f32 %v2773, %v2982
  %v3063 = vadd.f32 %v2774, %v2983
  %v3064 = vadd.f32 %v2775, %v2984
  %v3065 = vadd.f32 %v2776, %v2985
  %v3066 = vadd.f32 %v2777, %v2986
  %v3067 = vadd.f32 %v2778, %v2987
  %v3068 = vadd.f32 %v2779, %v2988
  %v3069 = vadd.f32 %v2780, %v2989
  %v3070 = vadd.f32 %v2781, %v2990
  %v3071 = vadd.f32 %v2782, %v2991
  %v3072 = vadd.f32 %v2783, %v2992
  %v3073 = vadd.f32 %v2784, %v2993
  %v3074 = vadd.f32 %v2785, %v2994
  %v3075 = vadd.f32 %v2786, %v2995
  %v3076 = vadd.f32 %v2787, %v2996
  %v3077 = vadd.f32 %v2788, %v2997
  %v3078 = vadd.f32 %v2789, %v2998
  %v3079 = vadd.f32 %v2790, %v2999
  %v3080 = vadd.f32 %v2791, %v3000
  %v3081 = vadd.f32 %v2792, %v3001
  %v3082 = vadd.f32 %v2793, %v3002
  %v3083 = vadd.f32 %v2794, %v3003
  %v3084 = vadd.f32 %v2795, %v3004
  %v3085 = vadd.f32 %v2796, %v3005
  %v3086 = vadd.f32 %v2797, %v3006
  %v3087 = vadd.f32 %v2798, %v3007
  %v3088 = vadd.f32 %v2799, %v3008
  %v3089 = vadd.f32 %v2800, %v3009
  %v3090 = vadd.f32 %v2801, %v3010
  %3091 = vset.pattern.permute.xlu0 10
  %3092 = vperm.xlu0 %3091, %v241
  %v3093 = vpop.permute.xlu0 %3092
  %v3095 = vmul.f32 %v3093, %v250
  %v3096 = vmul.f32 %v3093, %v254
  %v3097 = vmul.f32 %v3093, %v258
  %v3098 = vmul.f32 %v3093, %v262
  %v3099 = vmul.f32 %v3093, %v266
  %v3100 = vmul.f32 %v3093, %v270
  %v3101 = vmul.f32 %v3093, %v274
  %v3102 = vmul.f32 %v3093, %v278
  %v3103 = vmul.f32 %v3093, %v282
  %v3104 = vmul.f32 %v3093, %v286
  %v3105 = vmul.f32 %v3093, %v290
  %v3106 = vmul.f32 %v3093, %v294
  %v3107 = vmul.f32 %v3093, %v298
  %v3108 = vmul.f32 %v3093, %v302
  %v3109 = vmul.f32 %v3093, %v306
  %v3110 = vmul.f32 %v3093, %v310
  %v3111 = vmul.f32 %v3093, %v314
  %v3112 = vmul.f32 %v3093, %v318
  %v3113 = vmul.f32 %v3093, %v322
  %v3114 = vmul.f32 %v3093, %v326
  %v3115 = vmul.f32 %v3093, %v330
  %v3116 = vmul.f32 %v3093, %v334
  %v3117 = vmul.f32 %v3093, %v338
  %v3118 = vmul.f32 %v3093, %v342
  %v3119 = vmul.f32 %v3093, %v346
  %v3120 = vmul.f32 %v3093, %v350
  %v3121 = vmul.f32 %v3093, %v354
  %v3122 = vmul.f32 %v3093, %v358
  %v3123 = vmul.f32 %v3093, %v362
  %v3124 = vmul.f32 %v3093, %v366
  %v3125 = vmul.f32 %v3093, %v370
  %v3126 = vmul.f32 %v3093, %v374
  %v3127 = vmul.f32 %v3093, %v378
  %v3128 = vmul.f32 %v3093, %v382
  %v3129 = vmul.f32 %v3093, %v386
  %v3130 = vmul.f32 %v3093, %v390
  %v3131 = vmul.f32 %v3093, %v394
  %v3132 = vmul.f32 %v3093, %v398
  %v3133 = vmul.f32 %v3093, %v402
  %v3134 = vmul.f32 %v3093, %v406
  %v3135 = vmul.f32 %v3093, 0.0
  %3177 = vrot.lane.b32.xlu0 %v3095, 62
  %v3178 = vpop.permute.xlu0 %3177
  %3179 = vrot.lane.b32.xlu0 %v3096, 62
  %v3180 = vpop.permute.xlu0 %3179
  %3181 = vrot.lane.b32.xlu0 %v3097, 62
  %v3182 = vpop.permute.xlu0 %3181
  %3183 = vrot.lane.b32.xlu0 %v3098, 62
  %v3184 = vpop.permute.xlu0 %3183
  %3185 = vrot.lane.b32.xlu0 %v3099, 62
  %v3186 = vpop.permute.xlu0 %3185
  %3187 = vrot.lane.b32.xlu0 %v3100, 62
  %v3188 = vpop.permute.xlu0 %3187
  %3189 = vrot.lane.b32.xlu0 %v3101, 62
  %v3190 = vpop.permute.xlu0 %3189
  %3191 = vrot.lane.b32.xlu0 %v3102, 62
  %v3192 = vpop.permute.xlu0 %3191
  %3193 = vrot.lane.b32.xlu0 %v3103, 62
  %v3194 = vpop.permute.xlu0 %3193
  %3195 = vrot.lane.b32.xlu0 %v3104, 62
  %v3196 = vpop.permute.xlu0 %3195
  %3197 = vrot.lane.b32.xlu0 %v3105, 62
  %v3198 = vpop.permute.xlu0 %3197
  %3199 = vrot.lane.b32.xlu0 %v3106, 62
  %v3200 = vpop.permute.xlu0 %3199
  %3201 = vrot.lane.b32.xlu0 %v3107, 62
  %v3202 = vpop.permute.xlu0 %3201
  %3203 = vrot.lane.b32.xlu0 %v3108, 62
  %v3204 = vpop.permute.xlu0 %3203
  %3205 = vrot.lane.b32.xlu0 %v3109, 62
  %v3206 = vpop.permute.xlu0 %3205
  %3207 = vrot.lane.b32.xlu0 %v3110, 62
  %v3208 = vpop.permute.xlu0 %3207
  %3209 = vrot.lane.b32.xlu0 %v3111, 62
  %v3210 = vpop.permute.xlu0 %3209
  %3211 = vrot.lane.b32.xlu0 %v3112, 62
  %v3212 = vpop.permute.xlu0 %3211
  %3213 = vrot.lane.b32.xlu0 %v3113, 62
  %v3214 = vpop.permute.xlu0 %3213
  %3215 = vrot.lane.b32.xlu0 %v3114, 62
  %v3216 = vpop.permute.xlu0 %3215
  %3217 = vrot.lane.b32.xlu0 %v3115, 62
  %v3218 = vpop.permute.xlu0 %3217
  %3219 = vrot.lane.b32.xlu0 %v3116, 62
  %v3220 = vpop.permute.xlu0 %3219
  %3221 = vrot.lane.b32.xlu0 %v3117, 62
  %v3222 = vpop.permute.xlu0 %3221
  %3223 = vrot.lane.b32.xlu0 %v3118, 62
  %v3224 = vpop.permute.xlu0 %3223
  %3225 = vrot.lane.b32.xlu0 %v3119, 62
  %v3226 = vpop.permute.xlu0 %3225
  %3227 = vrot.lane.b32.xlu0 %v3120, 62
  %v3228 = vpop.permute.xlu0 %3227
  %3229 = vrot.lane.b32.xlu0 %v3121, 62
  %v3230 = vpop.permute.xlu0 %3229
  %3231 = vrot.lane.b32.xlu0 %v3122, 62
  %v3232 = vpop.permute.xlu0 %3231
  %3233 = vrot.lane.b32.xlu0 %v3123, 62
  %v3234 = vpop.permute.xlu0 %3233
  %3235 = vrot.lane.b32.xlu0 %v3124, 62
  %v3236 = vpop.permute.xlu0 %3235
  %3237 = vrot.lane.b32.xlu0 %v3125, 62
  %v3238 = vpop.permute.xlu0 %3237
  %3239 = vrot.lane.b32.xlu0 %v3126, 62
  %v3240 = vpop.permute.xlu0 %3239
  %3241 = vrot.lane.b32.xlu0 %v3127, 62
  %v3242 = vpop.permute.xlu0 %3241
  %3243 = vrot.lane.b32.xlu0 %v3128, 62
  %v3244 = vpop.permute.xlu0 %3243
  %3245 = vrot.lane.b32.xlu0 %v3129, 62
  %v3246 = vpop.permute.xlu0 %3245
  %3247 = vrot.lane.b32.xlu0 %v3130, 62
  %v3248 = vpop.permute.xlu0 %3247
  %3249 = vrot.lane.b32.xlu0 %v3131, 62
  %v3250 = vpop.permute.xlu0 %3249
  %3251 = vrot.lane.b32.xlu0 %v3132, 62
  %v3252 = vpop.permute.xlu0 %3251
  %3253 = vrot.lane.b32.xlu0 %v3133, 62
  %v3254 = vpop.permute.xlu0 %3253
  %3255 = vrot.lane.b32.xlu0 %v3134, 62
  %v3256 = vpop.permute.xlu0 %3255
  %3257 = vrot.lane.b32.xlu0 %v3135, 62
  %v3258 = vpop.permute.xlu0 %3257
  %vm3259 = vcmask 506880
  %v3260 = vsel %vm3259, %v3178, %v3180
  %v3261 = vsel %vm3259, %v3180, %v3182
  %v3262 = vsel %vm3259, %v3182, %v3184
  %v3263 = vsel %vm3259, %v3184, %v3186
  %v3264 = vsel %vm3259, %v3186, %v3188
  %v3265 = vsel %vm3259, %v3188, %v3190
  %v3266 = vsel %vm3259, %v3190, %v3192
  %v3267 = vsel %vm3259, %v3192, %v3194
  %v3268 = vsel %vm3259, %v3194, %v3196
  %v3269 = vsel %vm3259, %v3196, %v3198
  %v3270 = vsel %vm3259, %v3198, %v3200
  %v3271 = vsel %vm3259, %v3200, %v3202
  %v3272 = vsel %vm3259, %v3202, %v3204
  %v3273 = vsel %vm3259, %v3204, %v3206
  %v3274 = vsel %vm3259, %v3206, %v3208
  %v3275 = vsel %vm3259, %v3208, %v3210
  %v3276 = vsel %vm3259, %v3210, %v3212
  %v3277 = vsel %vm3259, %v3212, %v3214
  %v3278 = vsel %vm3259, %v3214, %v3216
  %v3279 = vsel %vm3259, %v3216, %v3218
  %v3280 = vsel %vm3259, %v3218, %v3220
  %v3281 = vsel %vm3259, %v3220, %v3222
  %v3282 = vsel %vm3259, %v3222, %v3224
  %v3283 = vsel %vm3259, %v3224, %v3226
  %v3284 = vsel %vm3259, %v3226, %v3228
  %v3285 = vsel %vm3259, %v3228, %v3230
  %v3286 = vsel %vm3259, %v3230, %v3232
  %v3287 = vsel %vm3259, %v3232, %v3234
  %v3288 = vsel %vm3259, %v3234, %v3236
  %v3289 = vsel %vm3259, %v3236, %v3238
  %v3290 = vsel %vm3259, %v3238, %v3240
  %v3291 = vsel %vm3259, %v3240, %v3242
  %v3292 = vsel %vm3259, %v3242, %v3244
  %v3293 = vsel %vm3259, %v3244, %v3246
  %v3294 = vsel %vm3259, %v3246, %v3248
  %v3295 = vsel %vm3259, %v3248, %v3250
  %v3296 = vsel %vm3259, %v3250, %v3252
  %v3297 = vsel %vm3259, %v3252, %v3254
  %v3298 = vsel %vm3259, %v3254, %v3256
  %v3299 = vsel %vm3259, %v3256, %v3258
  %v3340 = vadd.f32 %v3051, %v3260
  %v3341 = vadd.f32 %v3052, %v3261
  %v3342 = vadd.f32 %v3053, %v3262
  %v3343 = vadd.f32 %v3054, %v3263
  %v3344 = vadd.f32 %v3055, %v3264
  %v3345 = vadd.f32 %v3056, %v3265
  %v3346 = vadd.f32 %v3057, %v3266
  %v3347 = vadd.f32 %v3058, %v3267
  %v3348 = vadd.f32 %v3059, %v3268
  %v3349 = vadd.f32 %v3060, %v3269
  %v3350 = vadd.f32 %v3061, %v3270
  %v3351 = vadd.f32 %v3062, %v3271
  %v3352 = vadd.f32 %v3063, %v3272
  %v3353 = vadd.f32 %v3064, %v3273
  %v3354 = vadd.f32 %v3065, %v3274
  %v3355 = vadd.f32 %v3066, %v3275
  %v3356 = vadd.f32 %v3067, %v3276
  %v3357 = vadd.f32 %v3068, %v3277
  %v3358 = vadd.f32 %v3069, %v3278
  %v3359 = vadd.f32 %v3070, %v3279
  %v3360 = vadd.f32 %v3071, %v3280
  %v3361 = vadd.f32 %v3072, %v3281
  %v3362 = vadd.f32 %v3073, %v3282
  %v3363 = vadd.f32 %v3074, %v3283
  %v3364 = vadd.f32 %v3075, %v3284
  %v3365 = vadd.f32 %v3076, %v3285
  %v3366 = vadd.f32 %v3077, %v3286
  %v3367 = vadd.f32 %v3078, %v3287
  %v3368 = vadd.f32 %v3079, %v3288
  %v3369 = vadd.f32 %v3080, %v3289
  %v3370 = vadd.f32 %v3081, %v3290
  %v3371 = vadd.f32 %v3082, %v3291
  %v3372 = vadd.f32 %v3083, %v3292
  %v3373 = vadd.f32 %v3084, %v3293
  %v3374 = vadd.f32 %v3085, %v3294
  %v3375 = vadd.f32 %v3086, %v3295
  %v3376 = vadd.f32 %v3087, %v3296
  %v3377 = vadd.f32 %v3088, %v3297
  %v3378 = vadd.f32 %v3089, %v3298
  %v3379 = vadd.f32 %v3090, %v3299
  %3380 = vset.pattern.permute.xlu0 11
  %3381 = vperm.xlu0 %3380, %v241
  %v3382 = vpop.permute.xlu0 %3381
  %v3384 = vmul.f32 %v3382, %v250
  %v3385 = vmul.f32 %v3382, %v254
  %v3386 = vmul.f32 %v3382, %v258
  %v3387 = vmul.f32 %v3382, %v262
  %v3388 = vmul.f32 %v3382, %v266
  %v3389 = vmul.f32 %v3382, %v270
  %v3390 = vmul.f32 %v3382, %v274
  %v3391 = vmul.f32 %v3382, %v278
  %v3392 = vmul.f32 %v3382, %v282
  %v3393 = vmul.f32 %v3382, %v286
  %v3394 = vmul.f32 %v3382, %v290
  %v3395 = vmul.f32 %v3382, %v294
  %v3396 = vmul.f32 %v3382, %v298
  %v3397 = vmul.f32 %v3382, %v302
  %v3398 = vmul.f32 %v3382, %v306
  %v3399 = vmul.f32 %v3382, %v310
  %v3400 = vmul.f32 %v3382, %v314
  %v3401 = vmul.f32 %v3382, %v318
  %v3402 = vmul.f32 %v3382, %v322
  %v3403 = vmul.f32 %v3382, %v326
  %v3404 = vmul.f32 %v3382, %v330
  %v3405 = vmul.f32 %v3382, %v334
  %v3406 = vmul.f32 %v3382, %v338
  %v3407 = vmul.f32 %v3382, %v342
  %v3408 = vmul.f32 %v3382, %v346
  %v3409 = vmul.f32 %v3382, %v350
  %v3410 = vmul.f32 %v3382, %v354
  %v3411 = vmul.f32 %v3382, %v358
  %v3412 = vmul.f32 %v3382, %v362
  %v3413 = vmul.f32 %v3382, %v366
  %v3414 = vmul.f32 %v3382, %v370
  %v3415 = vmul.f32 %v3382, %v374
  %v3416 = vmul.f32 %v3382, %v378
  %v3417 = vmul.f32 %v3382, %v382
  %v3418 = vmul.f32 %v3382, %v386
  %v3419 = vmul.f32 %v3382, %v390
  %v3420 = vmul.f32 %v3382, %v394
  %v3421 = vmul.f32 %v3382, %v398
  %v3422 = vmul.f32 %v3382, %v402
  %v3423 = vmul.f32 %v3382, %v406
  %v3424 = vmul.f32 %v3382, 0.0
  %3466 = vrot.lane.b32.xlu0 %v3384, 61
  %v3467 = vpop.permute.xlu0 %3466
  %3468 = vrot.lane.b32.xlu0 %v3385, 61
  %v3469 = vpop.permute.xlu0 %3468
  %3470 = vrot.lane.b32.xlu0 %v3386, 61
  %v3471 = vpop.permute.xlu0 %3470
  %3472 = vrot.lane.b32.xlu0 %v3387, 61
  %v3473 = vpop.permute.xlu0 %3472
  %3474 = vrot.lane.b32.xlu0 %v3388, 61
  %v3475 = vpop.permute.xlu0 %3474
  %3476 = vrot.lane.b32.xlu0 %v3389, 61
  %v3477 = vpop.permute.xlu0 %3476
  %3478 = vrot.lane.b32.xlu0 %v3390, 61
  %v3479 = vpop.permute.xlu0 %3478
  %3480 = vrot.lane.b32.xlu0 %v3391, 61
  %v3481 = vpop.permute.xlu0 %3480
  %3482 = vrot.lane.b32.xlu0 %v3392, 61
  %v3483 = vpop.permute.xlu0 %3482
  %3484 = vrot.lane.b32.xlu0 %v3393, 61
  %v3485 = vpop.permute.xlu0 %3484
  %3486 = vrot.lane.b32.xlu0 %v3394, 61
  %v3487 = vpop.permute.xlu0 %3486
  %3488 = vrot.lane.b32.xlu0 %v3395, 61
  %v3489 = vpop.permute.xlu0 %3488
  %3490 = vrot.lane.b32.xlu0 %v3396, 61
  %v3491 = vpop.permute.xlu0 %3490
  %3492 = vrot.lane.b32.xlu0 %v3397, 61
  %v3493 = vpop.permute.xlu0 %3492
  %3494 = vrot.lane.b32.xlu0 %v3398, 61
  %v3495 = vpop.permute.xlu0 %3494
  %3496 = vrot.lane.b32.xlu0 %v3399, 61
  %v3497 = vpop.permute.xlu0 %3496
  %3498 = vrot.lane.b32.xlu0 %v3400, 61
  %v3499 = vpop.permute.xlu0 %3498
  %3500 = vrot.lane.b32.xlu0 %v3401, 61
  %v3501 = vpop.permute.xlu0 %3500
  %3502 = vrot.lane.b32.xlu0 %v3402, 61
  %v3503 = vpop.permute.xlu0 %3502
  %3504 = vrot.lane.b32.xlu0 %v3403, 61
  %v3505 = vpop.permute.xlu0 %3504
  %3506 = vrot.lane.b32.xlu0 %v3404, 61
  %v3507 = vpop.permute.xlu0 %3506
  %3508 = vrot.lane.b32.xlu0 %v3405, 61
  %v3509 = vpop.permute.xlu0 %3508
  %3510 = vrot.lane.b32.xlu0 %v3406, 61
  %v3511 = vpop.permute.xlu0 %3510
  %3512 = vrot.lane.b32.xlu0 %v3407, 61
  %v3513 = vpop.permute.xlu0 %3512
  %3514 = vrot.lane.b32.xlu0 %v3408, 61
  %v3515 = vpop.permute.xlu0 %3514
  %3516 = vrot.lane.b32.xlu0 %v3409, 61
  %v3517 = vpop.permute.xlu0 %3516
  %3518 = vrot.lane.b32.xlu0 %v3410, 61
  %v3519 = vpop.permute.xlu0 %3518
  %3520 = vrot.lane.b32.xlu0 %v3411, 61
  %v3521 = vpop.permute.xlu0 %3520
  %3522 = vrot.lane.b32.xlu0 %v3412, 61
  %v3523 = vpop.permute.xlu0 %3522
  %3524 = vrot.lane.b32.xlu0 %v3413, 61
  %v3525 = vpop.permute.xlu0 %3524
  %3526 = vrot.lane.b32.xlu0 %v3414, 61
  %v3527 = vpop.permute.xlu0 %3526
  %3528 = vrot.lane.b32.xlu0 %v3415, 61
  %v3529 = vpop.permute.xlu0 %3528
  %3530 = vrot.lane.b32.xlu0 %v3416, 61
  %v3531 = vpop.permute.xlu0 %3530
  %3532 = vrot.lane.b32.xlu0 %v3417, 61
  %v3533 = vpop.permute.xlu0 %3532
  %3534 = vrot.lane.b32.xlu0 %v3418, 61
  %v3535 = vpop.permute.xlu0 %3534
  %3536 = vrot.lane.b32.xlu0 %v3419, 61
  %v3537 = vpop.permute.xlu0 %3536
  %3538 = vrot.lane.b32.xlu0 %v3420, 61
  %v3539 = vpop.permute.xlu0 %3538
  %3540 = vrot.lane.b32.xlu0 %v3421, 61
  %v3541 = vpop.permute.xlu0 %3540
  %3542 = vrot.lane.b32.xlu0 %v3422, 61
  %v3543 = vpop.permute.xlu0 %3542
  %3544 = vrot.lane.b32.xlu0 %v3423, 61
  %v3545 = vpop.permute.xlu0 %3544
  %3546 = vrot.lane.b32.xlu0 %v3424, 61
  %v3547 = vpop.permute.xlu0 %3546
  %vm3548 = vcmask 498688
  %v3549 = vsel %vm3548, %v3467, %v3469
  %v3550 = vsel %vm3548, %v3469, %v3471
  %v3551 = vsel %vm3548, %v3471, %v3473
  %v3552 = vsel %vm3548, %v3473, %v3475
  %v3553 = vsel %vm3548, %v3475, %v3477
  %v3554 = vsel %vm3548, %v3477, %v3479
  %v3555 = vsel %vm3548, %v3479, %v3481
  %v3556 = vsel %vm3548, %v3481, %v3483
  %v3557 = vsel %vm3548, %v3483, %v3485
  %v3558 = vsel %vm3548, %v3485, %v3487
  %v3559 = vsel %vm3548, %v3487, %v3489
  %v3560 = vsel %vm3548, %v3489, %v3491
  %v3561 = vsel %vm3548, %v3491, %v3493
  %v3562 = vsel %vm3548, %v3493, %v3495
  %v3563 = vsel %vm3548, %v3495, %v3497
  %v3564 = vsel %vm3548, %v3497, %v3499
  %v3565 = vsel %vm3548, %v3499, %v3501
  %v3566 = vsel %vm3548, %v3501, %v3503
  %v3567 = vsel %vm3548, %v3503, %v3505
  %v3568 = vsel %vm3548, %v3505, %v3507
  %v3569 = vsel %vm3548, %v3507, %v3509
  %v3570 = vsel %vm3548, %v3509, %v3511
  %v3571 = vsel %vm3548, %v3511, %v3513
  %v3572 = vsel %vm3548, %v3513, %v3515
  %v3573 = vsel %vm3548, %v3515, %v3517
  %v3574 = vsel %vm3548, %v3517, %v3519
  %v3575 = vsel %vm3548, %v3519, %v3521
  %v3576 = vsel %vm3548, %v3521, %v3523
  %v3577 = vsel %vm3548, %v3523, %v3525
  %v3578 = vsel %vm3548, %v3525, %v3527
  %v3579 = vsel %vm3548, %v3527, %v3529
  %v3580 = vsel %vm3548, %v3529, %v3531
  %v3581 = vsel %vm3548, %v3531, %v3533
  %v3582 = vsel %vm3548, %v3533, %v3535
  %v3583 = vsel %vm3548, %v3535, %v3537
  %v3584 = vsel %vm3548, %v3537, %v3539
  %v3585 = vsel %vm3548, %v3539, %v3541
  %v3586 = vsel %vm3548, %v3541, %v3543
  %v3587 = vsel %vm3548, %v3543, %v3545
  %v3588 = vsel %vm3548, %v3545, %v3547
  %v3629 = vadd.f32 %v3340, %v3549
  %v3630 = vadd.f32 %v3341, %v3550
  %v3631 = vadd.f32 %v3342, %v3551
  %v3632 = vadd.f32 %v3343, %v3552
  %v3633 = vadd.f32 %v3344, %v3553
  %v3634 = vadd.f32 %v3345, %v3554
  %v3635 = vadd.f32 %v3346, %v3555
  %v3636 = vadd.f32 %v3347, %v3556
  %v3637 = vadd.f32 %v3348, %v3557
  %v3638 = vadd.f32 %v3349, %v3558
  %v3639 = vadd.f32 %v3350, %v3559
  %v3640 = vadd.f32 %v3351, %v3560
  %v3641 = vadd.f32 %v3352, %v3561
  %v3642 = vadd.f32 %v3353, %v3562
  %v3643 = vadd.f32 %v3354, %v3563
  %v3644 = vadd.f32 %v3355, %v3564
  %v3645 = vadd.f32 %v3356, %v3565
  %v3646 = vadd.f32 %v3357, %v3566
  %v3647 = vadd.f32 %v3358, %v3567
  %v3648 = vadd.f32 %v3359, %v3568
  %v3649 = vadd.f32 %v3360, %v3569
  %v3650 = vadd.f32 %v3361, %v3570
  %v3651 = vadd.f32 %v3362, %v3571
  %v3652 = vadd.f32 %v3363, %v3572
  %v3653 = vadd.f32 %v3364, %v3573
  %v3654 = vadd.f32 %v3365, %v3574
  %v3655 = vadd.f32 %v3366, %v3575
  %v3656 = vadd.f32 %v3367, %v3576
  %v3657 = vadd.f32 %v3368, %v3577
  %v3658 = vadd.f32 %v3369, %v3578
  %v3659 = vadd.f32 %v3370, %v3579
  %v3660 = vadd.f32 %v3371, %v3580
  %v3661 = vadd.f32 %v3372, %v3581
  %v3662 = vadd.f32 %v3373, %v3582
  %v3663 = vadd.f32 %v3374, %v3583
  %v3664 = vadd.f32 %v3375, %v3584
  %v3665 = vadd.f32 %v3376, %v3585
  %v3666 = vadd.f32 %v3377, %v3586
  %v3667 = vadd.f32 %v3378, %v3587
  %v3668 = vadd.f32 %v3379, %v3588
  %3669 = vset.pattern.permute.xlu0 12
  %3670 = vperm.xlu0 %3669, %v241
  %v3671 = vpop.permute.xlu0 %3670
  %v3673 = vmul.f32 %v3671, %v250
  %v3674 = vmul.f32 %v3671, %v254
  %v3675 = vmul.f32 %v3671, %v258
  %v3676 = vmul.f32 %v3671, %v262
  %v3677 = vmul.f32 %v3671, %v266
  %v3678 = vmul.f32 %v3671, %v270
  %v3679 = vmul.f32 %v3671, %v274
  %v3680 = vmul.f32 %v3671, %v278
  %v3681 = vmul.f32 %v3671, %v282
  %v3682 = vmul.f32 %v3671, %v286
  %v3683 = vmul.f32 %v3671, %v290
  %v3684 = vmul.f32 %v3671, %v294
  %v3685 = vmul.f32 %v3671, %v298
  %v3686 = vmul.f32 %v3671, %v302
  %v3687 = vmul.f32 %v3671, %v306
  %v3688 = vmul.f32 %v3671, %v310
  %v3689 = vmul.f32 %v3671, %v314
  %v3690 = vmul.f32 %v3671, %v318
  %v3691 = vmul.f32 %v3671, %v322
  %v3692 = vmul.f32 %v3671, %v326
  %v3693 = vmul.f32 %v3671, %v330
  %v3694 = vmul.f32 %v3671, %v334
  %v3695 = vmul.f32 %v3671, %v338
  %v3696 = vmul.f32 %v3671, %v342
  %v3697 = vmul.f32 %v3671, %v346
  %v3698 = vmul.f32 %v3671, %v350
  %v3699 = vmul.f32 %v3671, %v354
  %v3700 = vmul.f32 %v3671, %v358
  %v3701 = vmul.f32 %v3671, %v362
  %v3702 = vmul.f32 %v3671, %v366
  %v3703 = vmul.f32 %v3671, %v370
  %v3704 = vmul.f32 %v3671, %v374
  %v3705 = vmul.f32 %v3671, %v378
  %v3706 = vmul.f32 %v3671, %v382
  %v3707 = vmul.f32 %v3671, %v386
  %v3708 = vmul.f32 %v3671, %v390
  %v3709 = vmul.f32 %v3671, %v394
  %v3710 = vmul.f32 %v3671, %v398
  %v3711 = vmul.f32 %v3671, %v402
  %v3712 = vmul.f32 %v3671, %v406
  %v3713 = vmul.f32 %v3671, 0.0
  %3755 = vrot.lane.b32.xlu0 %v3673, 32
  %v3756 = vpop.permute.xlu0 %3755
  %3757 = vrot.lane.b32.xlu0 %v3674, 32
  %v3758 = vpop.permute.xlu0 %3757
  %3759 = vrot.lane.b32.xlu0 %v3675, 32
  %v3760 = vpop.permute.xlu0 %3759
  %3761 = vrot.lane.b32.xlu0 %v3676, 32
  %v3762 = vpop.permute.xlu0 %3761
  %3763 = vrot.lane.b32.xlu0 %v3677, 32
  %v3764 = vpop.permute.xlu0 %3763
  %3765 = vrot.lane.b32.xlu0 %v3678, 32
  %v3766 = vpop.permute.xlu0 %3765
  %3767 = vrot.lane.b32.xlu0 %v3679, 32
  %v3768 = vpop.permute.xlu0 %3767
  %3769 = vrot.lane.b32.xlu0 %v3680, 32
  %v3770 = vpop.permute.xlu0 %3769
  %3771 = vrot.lane.b32.xlu0 %v3681, 32
  %v3772 = vpop.permute.xlu0 %3771
  %3773 = vrot.lane.b32.xlu0 %v3682, 32
  %v3774 = vpop.permute.xlu0 %3773
  %3775 = vrot.lane.b32.xlu0 %v3683, 32
  %v3776 = vpop.permute.xlu0 %3775
  %3777 = vrot.lane.b32.xlu0 %v3684, 32
  %v3778 = vpop.permute.xlu0 %3777
  %3779 = vrot.lane.b32.xlu0 %v3685, 32
  %v3780 = vpop.permute.xlu0 %3779
  %3781 = vrot.lane.b32.xlu0 %v3686, 32
  %v3782 = vpop.permute.xlu0 %3781
  %3783 = vrot.lane.b32.xlu0 %v3687, 32
  %v3784 = vpop.permute.xlu0 %3783
  %3785 = vrot.lane.b32.xlu0 %v3688, 32
  %v3786 = vpop.permute.xlu0 %3785
  %3787 = vrot.lane.b32.xlu0 %v3689, 32
  %v3788 = vpop.permute.xlu0 %3787
  %3789 = vrot.lane.b32.xlu0 %v3690, 32
  %v3790 = vpop.permute.xlu0 %3789
  %3791 = vrot.lane.b32.xlu0 %v3691, 32
  %v3792 = vpop.permute.xlu0 %3791
  %3793 = vrot.lane.b32.xlu0 %v3692, 32
  %v3794 = vpop.permute.xlu0 %3793
  %3795 = vrot.lane.b32.xlu0 %v3693, 32
  %v3796 = vpop.permute.xlu0 %3795
  %3797 = vrot.lane.b32.xlu0 %v3694, 32
  %v3798 = vpop.permute.xlu0 %3797
  %3799 = vrot.lane.b32.xlu0 %v3695, 32
  %v3800 = vpop.permute.xlu0 %3799
  %3801 = vrot.lane.b32.xlu0 %v3696, 32
  %v3802 = vpop.permute.xlu0 %3801
  %3803 = vrot.lane.b32.xlu0 %v3697, 32
  %v3804 = vpop.permute.xlu0 %3803
  %3805 = vrot.lane.b32.xlu0 %v3698, 32
  %v3806 = vpop.permute.xlu0 %3805
  %3807 = vrot.lane.b32.xlu0 %v3699, 32
  %v3808 = vpop.permute.xlu0 %3807
  %3809 = vrot.lane.b32.xlu0 %v3700, 32
  %v3810 = vpop.permute.xlu0 %3809
  %3811 = vrot.lane.b32.xlu0 %v3701, 32
  %v3812 = vpop.permute.xlu0 %3811
  %3813 = vrot.lane.b32.xlu0 %v3702, 32
  %v3814 = vpop.permute.xlu0 %3813
  %3815 = vrot.lane.b32.xlu0 %v3703, 32
  %v3816 = vpop.permute.xlu0 %3815
  %3817 = vrot.lane.b32.xlu0 %v3704, 32
  %v3818 = vpop.permute.xlu0 %3817
  %3819 = vrot.lane.b32.xlu0 %v3705, 32
  %v3820 = vpop.permute.xlu0 %3819
  %3821 = vrot.lane.b32.xlu0 %v3706, 32
  %v3822 = vpop.permute.xlu0 %3821
  %3823 = vrot.lane.b32.xlu0 %v3707, 32
  %v3824 = vpop.permute.xlu0 %3823
  %3825 = vrot.lane.b32.xlu0 %v3708, 32
  %v3826 = vpop.permute.xlu0 %3825
  %3827 = vrot.lane.b32.xlu0 %v3709, 32
  %v3828 = vpop.permute.xlu0 %3827
  %3829 = vrot.lane.b32.xlu0 %v3710, 32
  %v3830 = vpop.permute.xlu0 %3829
  %3831 = vrot.lane.b32.xlu0 %v3711, 32
  %v3832 = vpop.permute.xlu0 %3831
  %3833 = vrot.lane.b32.xlu0 %v3712, 32
  %v3834 = vpop.permute.xlu0 %3833
  %3835 = vrot.lane.b32.xlu0 %v3713, 32
  %v3836 = vpop.permute.xlu0 %3835
  %vm3837 = vcmask 261120
  %v3838 = vsel %vm3837, %v3756, %v3758
  %v3839 = vsel %vm3837, %v3758, %v3760
  %v3840 = vsel %vm3837, %v3760, %v3762
  %v3841 = vsel %vm3837, %v3762, %v3764
  %v3842 = vsel %vm3837, %v3764, %v3766
  %v3843 = vsel %vm3837, %v3766, %v3768
  %v3844 = vsel %vm3837, %v3768, %v3770
  %v3845 = vsel %vm3837, %v3770, %v3772
  %v3846 = vsel %vm3837, %v3772, %v3774
  %v3847 = vsel %vm3837, %v3774, %v3776
  %v3848 = vsel %vm3837, %v3776, %v3778
  %v3849 = vsel %vm3837, %v3778, %v3780
  %v3850 = vsel %vm3837, %v3780, %v3782
  %v3851 = vsel %vm3837, %v3782, %v3784
  %v3852 = vsel %vm3837, %v3784, %v3786
  %v3853 = vsel %vm3837, %v3786, %v3788
  %v3854 = vsel %vm3837, %v3788, %v3790
  %v3855 = vsel %vm3837, %v3790, %v3792
  %v3856 = vsel %vm3837, %v3792, %v3794
  %v3857 = vsel %vm3837, %v3794, %v3796
  %v3858 = vsel %vm3837, %v3796, %v3798
  %v3859 = vsel %vm3837, %v3798, %v3800
  %v3860 = vsel %vm3837, %v3800, %v3802
  %v3861 = vsel %vm3837, %v3802, %v3804
  %v3862 = vsel %vm3837, %v3804, %v3806
  %v3863 = vsel %vm3837, %v3806, %v3808
  %v3864 = vsel %vm3837, %v3808, %v3810
  %v3865 = vsel %vm3837, %v3810, %v3812
  %v3866 = vsel %vm3837, %v3812, %v3814
  %v3867 = vsel %vm3837, %v3814, %v3816
  %v3868 = vsel %vm3837, %v3816, %v3818
  %v3869 = vsel %vm3837, %v3818, %v3820
  %v3870 = vsel %vm3837, %v3820, %v3822
  %v3871 = vsel %vm3837, %v3822, %v3824
  %v3872 = vsel %vm3837, %v3824, %v3826
  %v3873 = vsel %vm3837, %v3826, %v3828
  %v3874 = vsel %vm3837, %v3828, %v3830
  %v3875 = vsel %vm3837, %v3830, %v3832
  %v3876 = vsel %vm3837, %v3832, %v3834
  %v3877 = vsel %vm3837, %v3834, %v3836
  %v3918 = vadd.f32 %v3629, %v3838
  %v3919 = vadd.f32 %v3630, %v3839
  %v3920 = vadd.f32 %v3631, %v3840
  %v3921 = vadd.f32 %v3632, %v3841
  %v3922 = vadd.f32 %v3633, %v3842
  %v3923 = vadd.f32 %v3634, %v3843
  %v3924 = vadd.f32 %v3635, %v3844
  %v3925 = vadd.f32 %v3636, %v3845
  %v3926 = vadd.f32 %v3637, %v3846
  %v3927 = vadd.f32 %v3638, %v3847
  %v3928 = vadd.f32 %v3639, %v3848
  %v3929 = vadd.f32 %v3640, %v3849
  %v3930 = vadd.f32 %v3641, %v3850
  %v3931 = vadd.f32 %v3642, %v3851
  %v3932 = vadd.f32 %v3643, %v3852
  %v3933 = vadd.f32 %v3644, %v3853
  %v3934 = vadd.f32 %v3645, %v3854
  %v3935 = vadd.f32 %v3646, %v3855
  %v3936 = vadd.f32 %v3647, %v3856
  %v3937 = vadd.f32 %v3648, %v3857
  %v3938 = vadd.f32 %v3649, %v3858
  %v3939 = vadd.f32 %v3650, %v3859
  %v3940 = vadd.f32 %v3651, %v3860
  %v3941 = vadd.f32 %v3652, %v3861
  %v3942 = vadd.f32 %v3653, %v3862
  %v3943 = vadd.f32 %v3654, %v3863
  %v3944 = vadd.f32 %v3655, %v3864
  %v3945 = vadd.f32 %v3656, %v3865
  %v3946 = vadd.f32 %v3657, %v3866
  %v3947 = vadd.f32 %v3658, %v3867
  %v3948 = vadd.f32 %v3659, %v3868
  %v3949 = vadd.f32 %v3660, %v3869
  %v3950 = vadd.f32 %v3661, %v3870
  %v3951 = vadd.f32 %v3662, %v3871
  %v3952 = vadd.f32 %v3663, %v3872
  %v3953 = vadd.f32 %v3664, %v3873
  %v3954 = vadd.f32 %v3665, %v3874
  %v3955 = vadd.f32 %v3666, %v3875
  %v3956 = vadd.f32 %v3667, %v3876
  %v3957 = vadd.f32 %v3668, %v3877
  %3958 = vset.pattern.permute.xlu0 13
  %3959 = vperm.xlu0 %3958, %v241
  %v3960 = vpop.permute.xlu0 %3959
  %v3962 = vmul.f32 %v3960, %v250
  %v3963 = vmul.f32 %v3960, %v254
  %v3964 = vmul.f32 %v3960, %v258
  %v3965 = vmul.f32 %v3960, %v262
  %v3966 = vmul.f32 %v3960, %v266
  %v3967 = vmul.f32 %v3960, %v270
  %v3968 = vmul.f32 %v3960, %v274
  %v3969 = vmul.f32 %v3960, %v278
  %v3970 = vmul.f32 %v3960, %v282
  %v3971 = vmul.f32 %v3960, %v286
  %v3972 = vmul.f32 %v3960, %v290
  %v3973 = vmul.f32 %v3960, %v294
  %v3974 = vmul.f32 %v3960, %v298
  %v3975 = vmul.f32 %v3960, %v302
  %v3976 = vmul.f32 %v3960, %v306
  %v3977 = vmul.f32 %v3960, %v310
  %v3978 = vmul.f32 %v3960, %v314
  %v3979 = vmul.f32 %v3960, %v318
  %v3980 = vmul.f32 %v3960, %v322
  %v3981 = vmul.f32 %v3960, %v326
  %v3982 = vmul.f32 %v3960, %v330
  %v3983 = vmul.f32 %v3960, %v334
  %v3984 = vmul.f32 %v3960, %v338
  %v3985 = vmul.f32 %v3960, %v342
  %v3986 = vmul.f32 %v3960, %v346
  %v3987 = vmul.f32 %v3960, %v350
  %v3988 = vmul.f32 %v3960, %v354
  %v3989 = vmul.f32 %v3960, %v358
  %v3990 = vmul.f32 %v3960, %v362
  %v3991 = vmul.f32 %v3960, %v366
  %v3992 = vmul.f32 %v3960, %v370
  %v3993 = vmul.f32 %v3960, %v374
  %v3994 = vmul.f32 %v3960, %v378
  %v3995 = vmul.f32 %v3960, %v382
  %v3996 = vmul.f32 %v3960, %v386
  %v3997 = vmul.f32 %v3960, %v390
  %v3998 = vmul.f32 %v3960, %v394
  %v3999 = vmul.f32 %v3960, %v398
  %v4000 = vmul.f32 %v3960, %v402
  %v4001 = vmul.f32 %v3960, %v406
  %v4002 = vmul.f32 %v3960, 0.0
  %4044 = vrot.lane.b32.xlu0 %v3962, 31
  %v4045 = vpop.permute.xlu0 %4044
  %4046 = vrot.lane.b32.xlu0 %v3963, 31
  %v4047 = vpop.permute.xlu0 %4046
  %4048 = vrot.lane.b32.xlu0 %v3964, 31
  %v4049 = vpop.permute.xlu0 %4048
  %4050 = vrot.lane.b32.xlu0 %v3965, 31
  %v4051 = vpop.permute.xlu0 %4050
  %4052 = vrot.lane.b32.xlu0 %v3966, 31
  %v4053 = vpop.permute.xlu0 %4052
  %4054 = vrot.lane.b32.xlu0 %v3967, 31
  %v4055 = vpop.permute.xlu0 %4054
  %4056 = vrot.lane.b32.xlu0 %v3968, 31
  %v4057 = vpop.permute.xlu0 %4056
  %4058 = vrot.lane.b32.xlu0 %v3969, 31
  %v4059 = vpop.permute.xlu0 %4058
  %4060 = vrot.lane.b32.xlu0 %v3970, 31
  %v4061 = vpop.permute.xlu0 %4060
  %4062 = vrot.lane.b32.xlu0 %v3971, 31
  %v4063 = vpop.permute.xlu0 %4062
  %4064 = vrot.lane.b32.xlu0 %v3972, 31
  %v4065 = vpop.permute.xlu0 %4064
  %4066 = vrot.lane.b32.xlu0 %v3973, 31
  %v4067 = vpop.permute.xlu0 %4066
  %4068 = vrot.lane.b32.xlu0 %v3974, 31
  %v4069 = vpop.permute.xlu0 %4068
  %4070 = vrot.lane.b32.xlu0 %v3975, 31
  %v4071 = vpop.permute.xlu0 %4070
  %4072 = vrot.lane.b32.xlu0 %v3976, 31
  %v4073 = vpop.permute.xlu0 %4072
  %4074 = vrot.lane.b32.xlu0 %v3977, 31
  %v4075 = vpop.permute.xlu0 %4074
  %4076 = vrot.lane.b32.xlu0 %v3978, 31
  %v4077 = vpop.permute.xlu0 %4076
  %4078 = vrot.lane.b32.xlu0 %v3979, 31
  %v4079 = vpop.permute.xlu0 %4078
  %4080 = vrot.lane.b32.xlu0 %v3980, 31
  %v4081 = vpop.permute.xlu0 %4080
  %4082 = vrot.lane.b32.xlu0 %v3981, 31
  %v4083 = vpop.permute.xlu0 %4082
  %4084 = vrot.lane.b32.xlu0 %v3982, 31
  %v4085 = vpop.permute.xlu0 %4084
  %4086 = vrot.lane.b32.xlu0 %v3983, 31
  %v4087 = vpop.permute.xlu0 %4086
  %4088 = vrot.lane.b32.xlu0 %v3984, 31
  %v4089 = vpop.permute.xlu0 %4088
  %4090 = vrot.lane.b32.xlu0 %v3985, 31
  %v4091 = vpop.permute.xlu0 %4090
  %4092 = vrot.lane.b32.xlu0 %v3986, 31
  %v4093 = vpop.permute.xlu0 %4092
  %4094 = vrot.lane.b32.xlu0 %v3987, 31
  %v4095 = vpop.permute.xlu0 %4094
  %4096 = vrot.lane.b32.xlu0 %v3988, 31
  %v4097 = vpop.permute.xlu0 %4096
  %4098 = vrot.lane.b32.xlu0 %v3989, 31
  %v4099 = vpop.permute.xlu0 %4098
  %4100 = vrot.lane.b32.xlu0 %v3990, 31
  %v4101 = vpop.permute.xlu0 %4100
  %4102 = vrot.lane.b32.xlu0 %v3991, 31
  %v4103 = vpop.permute.xlu0 %4102
  %4104 = vrot.lane.b32.xlu0 %v3992, 31
  %v4105 = vpop.permute.xlu0 %4104
  %4106 = vrot.lane.b32.xlu0 %v3993, 31
  %v4107 = vpop.permute.xlu0 %4106
  %4108 = vrot.lane.b32.xlu0 %v3994, 31
  %v4109 = vpop.permute.xlu0 %4108
  %4110 = vrot.lane.b32.xlu0 %v3995, 31
  %v4111 = vpop.permute.xlu0 %4110
  %4112 = vrot.lane.b32.xlu0 %v3996, 31
  %v4113 = vpop.permute.xlu0 %4112
  %4114 = vrot.lane.b32.xlu0 %v3997, 31
  %v4115 = vpop.permute.xlu0 %4114
  %4116 = vrot.lane.b32.xlu0 %v3998, 31
  %v4117 = vpop.permute.xlu0 %4116
  %4118 = vrot.lane.b32.xlu0 %v3999, 31
  %v4119 = vpop.permute.xlu0 %4118
  %4120 = vrot.lane.b32.xlu0 %v4000, 31
  %v4121 = vpop.permute.xlu0 %4120
  %4122 = vrot.lane.b32.xlu0 %v4001, 31
  %v4123 = vpop.permute.xlu0 %4122
  %4124 = vrot.lane.b32.xlu0 %v4002, 31
  %v4125 = vpop.permute.xlu0 %4124
  %vm4126 = vcmask 252928
  %v4127 = vsel %vm4126, %v4045, %v4047
  %v4128 = vsel %vm4126, %v4047, %v4049
  %v4129 = vsel %vm4126, %v4049, %v4051
  %v4130 = vsel %vm4126, %v4051, %v4053
  %v4131 = vsel %vm4126, %v4053, %v4055
  %v4132 = vsel %vm4126, %v4055, %v4057
  %v4133 = vsel %vm4126, %v4057, %v4059
  %v4134 = vsel %vm4126, %v4059, %v4061
  %v4135 = vsel %vm4126, %v4061, %v4063
  %v4136 = vsel %vm4126, %v4063, %v4065
  %v4137 = vsel %vm4126, %v4065, %v4067
  %v4138 = vsel %vm4126, %v4067, %v4069
  %v4139 = vsel %vm4126, %v4069, %v4071
  %v4140 = vsel %vm4126, %v4071, %v4073
  %v4141 = vsel %vm4126, %v4073, %v4075
  %v4142 = vsel %vm4126, %v4075, %v4077
  %v4143 = vsel %vm4126, %v4077, %v4079
  %v4144 = vsel %vm4126, %v4079, %v4081
  %v4145 = vsel %vm4126, %v4081, %v4083
  %v4146 = vsel %vm4126, %v4083, %v4085
  %v4147 = vsel %vm4126, %v4085, %v4087
  %v4148 = vsel %vm4126, %v4087, %v4089
  %v4149 = vsel %vm4126, %v4089, %v4091
  %v4150 = vsel %vm4126, %v4091, %v4093
  %v4151 = vsel %vm4126, %v4093, %v4095
  %v4152 = vsel %vm4126, %v4095, %v4097
  %v4153 = vsel %vm4126, %v4097, %v4099
  %v4154 = vsel %vm4126, %v4099, %v4101
  %v4155 = vsel %vm4126, %v4101, %v4103
  %v4156 = vsel %vm4126, %v4103, %v4105
  %v4157 = vsel %vm4126, %v4105, %v4107
  %v4158 = vsel %vm4126, %v4107, %v4109
  %v4159 = vsel %vm4126, %v4109, %v4111
  %v4160 = vsel %vm4126, %v4111, %v4113
  %v4161 = vsel %vm4126, %v4113, %v4115
  %v4162 = vsel %vm4126, %v4115, %v4117
  %v4163 = vsel %vm4126, %v4117, %v4119
  %v4164 = vsel %vm4126, %v4119, %v4121
  %v4165 = vsel %vm4126, %v4121, %v4123
  %v4166 = vsel %vm4126, %v4123, %v4125
  %v4207 = vadd.f32 %v3918, %v4127
  %v4208 = vadd.f32 %v3919, %v4128
  %v4209 = vadd.f32 %v3920, %v4129
  %v4210 = vadd.f32 %v3921, %v4130
  %v4211 = vadd.f32 %v3922, %v4131
  %v4212 = vadd.f32 %v3923, %v4132
  %v4213 = vadd.f32 %v3924, %v4133
  %v4214 = vadd.f32 %v3925, %v4134
  %v4215 = vadd.f32 %v3926, %v4135
  %v4216 = vadd.f32 %v3927, %v4136
  %v4217 = vadd.f32 %v3928, %v4137
  %v4218 = vadd.f32 %v3929, %v4138
  %v4219 = vadd.f32 %v3930, %v4139
  %v4220 = vadd.f32 %v3931, %v4140
  %v4221 = vadd.f32 %v3932, %v4141
  %v4222 = vadd.f32 %v3933, %v4142
  %v4223 = vadd.f32 %v3934, %v4143
  %v4224 = vadd.f32 %v3935, %v4144
  %v4225 = vadd.f32 %v3936, %v4145
  %v4226 = vadd.f32 %v3937, %v4146
  %v4227 = vadd.f32 %v3938, %v4147
  %v4228 = vadd.f32 %v3939, %v4148
  %v4229 = vadd.f32 %v3940, %v4149
  %v4230 = vadd.f32 %v3941, %v4150
  %v4231 = vadd.f32 %v3942, %v4151
  %v4232 = vadd.f32 %v3943, %v4152
  %v4233 = vadd.f32 %v3944, %v4153
  %v4234 = vadd.f32 %v3945, %v4154
  %v4235 = vadd.f32 %v3946, %v4155
  %v4236 = vadd.f32 %v3947, %v4156
  %v4237 = vadd.f32 %v3948, %v4157
  %v4238 = vadd.f32 %v3949, %v4158
  %v4239 = vadd.f32 %v3950, %v4159
  %v4240 = vadd.f32 %v3951, %v4160
  %v4241 = vadd.f32 %v3952, %v4161
  %v4242 = vadd.f32 %v3953, %v4162
  %v4243 = vadd.f32 %v3954, %v4163
  %v4244 = vadd.f32 %v3955, %v4164
  %v4245 = vadd.f32 %v3956, %v4165
  %v4246 = vadd.f32 %v3957, %v4166
  %4247 = vset.pattern.permute.xlu0 14
  %4248 = vperm.xlu0 %4247, %v241
  %v4249 = vpop.permute.xlu0 %4248
  %v4251 = vmul.f32 %v4249, %v250
  %v4252 = vmul.f32 %v4249, %v254
  %v4253 = vmul.f32 %v4249, %v258
  %v4254 = vmul.f32 %v4249, %v262
  %v4255 = vmul.f32 %v4249, %v266
  %v4256 = vmul.f32 %v4249, %v270
  %v4257 = vmul.f32 %v4249, %v274
  %v4258 = vmul.f32 %v4249, %v278
  %v4259 = vmul.f32 %v4249, %v282
  %v4260 = vmul.f32 %v4249, %v286
  %v4261 = vmul.f32 %v4249, %v290
  %v4262 = vmul.f32 %v4249, %v294
  %v4263 = vmul.f32 %v4249, %v298
  %v4264 = vmul.f32 %v4249, %v302
  %v4265 = vmul.f32 %v4249, %v306
  %v4266 = vmul.f32 %v4249, %v310
  %v4267 = vmul.f32 %v4249, %v314
  %v4268 = vmul.f32 %v4249, %v318
  %v4269 = vmul.f32 %v4249, %v322
  %v4270 = vmul.f32 %v4249, %v326
  %v4271 = vmul.f32 %v4249, %v330
  %v4272 = vmul.f32 %v4249, %v334
  %v4273 = vmul.f32 %v4249, %v338
  %v4274 = vmul.f32 %v4249, %v342
  %v4275 = vmul.f32 %v4249, %v346
  %v4276 = vmul.f32 %v4249, %v350
  %v4277 = vmul.f32 %v4249, %v354
  %v4278 = vmul.f32 %v4249, %v358
  %v4279 = vmul.f32 %v4249, %v362
  %v4280 = vmul.f32 %v4249, %v366
  %v4281 = vmul.f32 %v4249, %v370
  %v4282 = vmul.f32 %v4249, %v374
  %v4283 = vmul.f32 %v4249, %v378
  %v4284 = vmul.f32 %v4249, %v382
  %v4285 = vmul.f32 %v4249, %v386
  %v4286 = vmul.f32 %v4249, %v390
  %v4287 = vmul.f32 %v4249, %v394
  %v4288 = vmul.f32 %v4249, %v398
  %v4289 = vmul.f32 %v4249, %v402
  %v4290 = vmul.f32 %v4249, %v406
  %v4291 = vmul.f32 %v4249, 0.0
  %4333 = vrot.lane.b32.xlu0 %v4251, 30
  %v4334 = vpop.permute.xlu0 %4333
  %4335 = vrot.lane.b32.xlu0 %v4252, 30
  %v4336 = vpop.permute.xlu0 %4335
  %4337 = vrot.lane.b32.xlu0 %v4253, 30
  %v4338 = vpop.permute.xlu0 %4337
  %4339 = vrot.lane.b32.xlu0 %v4254, 30
  %v4340 = vpop.permute.xlu0 %4339
  %4341 = vrot.lane.b32.xlu0 %v4255, 30
  %v4342 = vpop.permute.xlu0 %4341
  %4343 = vrot.lane.b32.xlu0 %v4256, 30
  %v4344 = vpop.permute.xlu0 %4343
  %4345 = vrot.lane.b32.xlu0 %v4257, 30
  %v4346 = vpop.permute.xlu0 %4345
  %4347 = vrot.lane.b32.xlu0 %v4258, 30
  %v4348 = vpop.permute.xlu0 %4347
  %4349 = vrot.lane.b32.xlu0 %v4259, 30
  %v4350 = vpop.permute.xlu0 %4349
  %4351 = vrot.lane.b32.xlu0 %v4260, 30
  %v4352 = vpop.permute.xlu0 %4351
  %4353 = vrot.lane.b32.xlu0 %v4261, 30
  %v4354 = vpop.permute.xlu0 %4353
  %4355 = vrot.lane.b32.xlu0 %v4262, 30
  %v4356 = vpop.permute.xlu0 %4355
  %4357 = vrot.lane.b32.xlu0 %v4263, 30
  %v4358 = vpop.permute.xlu0 %4357
  %4359 = vrot.lane.b32.xlu0 %v4264, 30
  %v4360 = vpop.permute.xlu0 %4359
  %4361 = vrot.lane.b32.xlu0 %v4265, 30
  %v4362 = vpop.permute.xlu0 %4361
  %4363 = vrot.lane.b32.xlu0 %v4266, 30
  %v4364 = vpop.permute.xlu0 %4363
  %4365 = vrot.lane.b32.xlu0 %v4267, 30
  %v4366 = vpop.permute.xlu0 %4365
  %4367 = vrot.lane.b32.xlu0 %v4268, 30
  %v4368 = vpop.permute.xlu0 %4367
  %4369 = vrot.lane.b32.xlu0 %v4269, 30
  %v4370 = vpop.permute.xlu0 %4369
  %4371 = vrot.lane.b32.xlu0 %v4270, 30
  %v4372 = vpop.permute.xlu0 %4371
  %4373 = vrot.lane.b32.xlu0 %v4271, 30
  %v4374 = vpop.permute.xlu0 %4373
  %4375 = vrot.lane.b32.xlu0 %v4272, 30
  %v4376 = vpop.permute.xlu0 %4375
  %4377 = vrot.lane.b32.xlu0 %v4273, 30
  %v4378 = vpop.permute.xlu0 %4377
  %4379 = vrot.lane.b32.xlu0 %v4274, 30
  %v4380 = vpop.permute.xlu0 %4379
  %4381 = vrot.lane.b32.xlu0 %v4275, 30
  %v4382 = vpop.permute.xlu0 %4381
  %4383 = vrot.lane.b32.xlu0 %v4276, 30
  %v4384 = vpop.permute.xlu0 %4383
  %4385 = vrot.lane.b32.xlu0 %v4277, 30
  %v4386 = vpop.permute.xlu0 %4385
  %4387 = vrot.lane.b32.xlu0 %v4278, 30
  %v4388 = vpop.permute.xlu0 %4387
  %4389 = vrot.lane.b32.xlu0 %v4279, 30
  %v4390 = vpop.permute.xlu0 %4389
  %4391 = vrot.lane.b32.xlu0 %v4280, 30
  %v4392 = vpop.permute.xlu0 %4391
  %4393 = vrot.lane.b32.xlu0 %v4281, 30
  %v4394 = vpop.permute.xlu0 %4393
  %4395 = vrot.lane.b32.xlu0 %v4282, 30
  %v4396 = vpop.permute.xlu0 %4395
  %4397 = vrot.lane.b32.xlu0 %v4283, 30
  %v4398 = vpop.permute.xlu0 %4397
  %4399 = vrot.lane.b32.xlu0 %v4284, 30
  %v4400 = vpop.permute.xlu0 %4399
  %4401 = vrot.lane.b32.xlu0 %v4285, 30
  %v4402 = vpop.permute.xlu0 %4401
  %4403 = vrot.lane.b32.xlu0 %v4286, 30
  %v4404 = vpop.permute.xlu0 %4403
  %4405 = vrot.lane.b32.xlu0 %v4287, 30
  %v4406 = vpop.permute.xlu0 %4405
  %4407 = vrot.lane.b32.xlu0 %v4288, 30
  %v4408 = vpop.permute.xlu0 %4407
  %4409 = vrot.lane.b32.xlu0 %v4289, 30
  %v4410 = vpop.permute.xlu0 %4409
  %4411 = vrot.lane.b32.xlu0 %v4290, 30
  %v4412 = vpop.permute.xlu0 %4411
  %4413 = vrot.lane.b32.xlu0 %v4291, 30
  %v4414 = vpop.permute.xlu0 %4413
  %vm4415 = vcmask 244736
  %v4416 = vsel %vm4415, %v4334, %v4336
  %v4417 = vsel %vm4415, %v4336, %v4338
  %v4418 = vsel %vm4415, %v4338, %v4340
  %v4419 = vsel %vm4415, %v4340, %v4342
  %v4420 = vsel %vm4415, %v4342, %v4344
  %v4421 = vsel %vm4415, %v4344, %v4346
  %v4422 = vsel %vm4415, %v4346, %v4348
  %v4423 = vsel %vm4415, %v4348, %v4350
  %v4424 = vsel %vm4415, %v4350, %v4352
  %v4425 = vsel %vm4415, %v4352, %v4354
  %v4426 = vsel %vm4415, %v4354, %v4356
  %v4427 = vsel %vm4415, %v4356, %v4358
  %v4428 = vsel %vm4415, %v4358, %v4360
  %v4429 = vsel %vm4415, %v4360, %v4362
  %v4430 = vsel %vm4415, %v4362, %v4364
  %v4431 = vsel %vm4415, %v4364, %v4366
  %v4432 = vsel %vm4415, %v4366, %v4368
  %v4433 = vsel %vm4415, %v4368, %v4370
  %v4434 = vsel %vm4415, %v4370, %v4372
  %v4435 = vsel %vm4415, %v4372, %v4374
  %v4436 = vsel %vm4415, %v4374, %v4376
  %v4437 = vsel %vm4415, %v4376, %v4378
  %v4438 = vsel %vm4415, %v4378, %v4380
  %v4439 = vsel %vm4415, %v4380, %v4382
  %v4440 = vsel %vm4415, %v4382, %v4384
  %v4441 = vsel %vm4415, %v4384, %v4386
  %v4442 = vsel %vm4415, %v4386, %v4388
  %v4443 = vsel %vm4415, %v4388, %v4390
  %v4444 = vsel %vm4415, %v4390, %v4392
  %v4445 = vsel %vm4415, %v4392, %v4394
  %v4446 = vsel %vm4415, %v4394, %v4396
  %v4447 = vsel %vm4415, %v4396, %v4398
  %v4448 = vsel %vm4415, %v4398, %v4400
  %v4449 = vsel %vm4415, %v4400, %v4402
  %v4450 = vsel %vm4415, %v4402, %v4404
  %v4451 = vsel %vm4415, %v4404, %v4406
  %v4452 = vsel %vm4415, %v4406, %v4408
  %v4453 = vsel %vm4415, %v4408, %v4410
  %v4454 = vsel %vm4415, %v4410, %v4412
  %v4455 = vsel %vm4415, %v4412, %v4414
  %v4496 = vadd.f32 %v4207, %v4416
  %v4497 = vadd.f32 %v4208, %v4417
  %v4498 = vadd.f32 %v4209, %v4418
  %v4499 = vadd.f32 %v4210, %v4419
  %v4500 = vadd.f32 %v4211, %v4420
  %v4501 = vadd.f32 %v4212, %v4421
  %v4502 = vadd.f32 %v4213, %v4422
  %v4503 = vadd.f32 %v4214, %v4423
  %v4504 = vadd.f32 %v4215, %v4424
  %v4505 = vadd.f32 %v4216, %v4425
  %v4506 = vadd.f32 %v4217, %v4426
  %v4507 = vadd.f32 %v4218, %v4427
  %v4508 = vadd.f32 %v4219, %v4428
  %v4509 = vadd.f32 %v4220, %v4429
  %v4510 = vadd.f32 %v4221, %v4430
  %v4511 = vadd.f32 %v4222, %v4431
  %v4512 = vadd.f32 %v4223, %v4432
  %v4513 = vadd.f32 %v4224, %v4433
  %v4514 = vadd.f32 %v4225, %v4434
  %v4515 = vadd.f32 %v4226, %v4435
  %v4516 = vadd.f32 %v4227, %v4436
  %v4517 = vadd.f32 %v4228, %v4437
  %v4518 = vadd.f32 %v4229, %v4438
  %v4519 = vadd.f32 %v4230, %v4439
  %v4520 = vadd.f32 %v4231, %v4440
  %v4521 = vadd.f32 %v4232, %v4441
  %v4522 = vadd.f32 %v4233, %v4442
  %v4523 = vadd.f32 %v4234, %v4443
  %v4524 = vadd.f32 %v4235, %v4444
  %v4525 = vadd.f32 %v4236, %v4445
  %v4526 = vadd.f32 %v4237, %v4446
  %v4527 = vadd.f32 %v4238, %v4447
  %v4528 = vadd.f32 %v4239, %v4448
  %v4529 = vadd.f32 %v4240, %v4449
  %v4530 = vadd.f32 %v4241, %v4450
  %v4531 = vadd.f32 %v4242, %v4451
  %v4532 = vadd.f32 %v4243, %v4452
  %v4533 = vadd.f32 %v4244, %v4453
  %v4534 = vadd.f32 %v4245, %v4454
  %v4535 = vadd.f32 %v4246, %v4455
  %4536 = vset.pattern.permute.xlu0 15
  %4537 = vperm.xlu0 %4536, %v241
  %v4538 = vpop.permute.xlu0 %4537
  %v4540 = vmul.f32 %v4538, %v250
  %v4541 = vmul.f32 %v4538, %v254
  %v4542 = vmul.f32 %v4538, %v258
  %v4543 = vmul.f32 %v4538, %v262
  %v4544 = vmul.f32 %v4538, %v266
  %v4545 = vmul.f32 %v4538, %v270
  %v4546 = vmul.f32 %v4538, %v274
  %v4547 = vmul.f32 %v4538, %v278
  %v4548 = vmul.f32 %v4538, %v282
  %v4549 = vmul.f32 %v4538, %v286
  %v4550 = vmul.f32 %v4538, %v290
  %v4551 = vmul.f32 %v4538, %v294
  %v4552 = vmul.f32 %v4538, %v298
  %v4553 = vmul.f32 %v4538, %v302
  %v4554 = vmul.f32 %v4538, %v306
  %v4555 = vmul.f32 %v4538, %v310
  %v4556 = vmul.f32 %v4538, %v314
  %v4557 = vmul.f32 %v4538, %v318
  %v4558 = vmul.f32 %v4538, %v322
  %v4559 = vmul.f32 %v4538, %v326
  %v4560 = vmul.f32 %v4538, %v330
  %v4561 = vmul.f32 %v4538, %v334
  %v4562 = vmul.f32 %v4538, %v338
  %v4563 = vmul.f32 %v4538, %v342
  %v4564 = vmul.f32 %v4538, %v346
  %v4565 = vmul.f32 %v4538, %v350
  %v4566 = vmul.f32 %v4538, %v354
  %v4567 = vmul.f32 %v4538, %v358
  %v4568 = vmul.f32 %v4538, %v362
  %v4569 = vmul.f32 %v4538, %v366
  %v4570 = vmul.f32 %v4538, %v370
  %v4571 = vmul.f32 %v4538, %v374
  %v4572 = vmul.f32 %v4538, %v378
  %v4573 = vmul.f32 %v4538, %v382
  %v4574 = vmul.f32 %v4538, %v386
  %v4575 = vmul.f32 %v4538, %v390
  %v4576 = vmul.f32 %v4538, %v394
  %v4577 = vmul.f32 %v4538, %v398
  %v4578 = vmul.f32 %v4538, %v402
  %v4579 = vmul.f32 %v4538, %v406
  %v4580 = vmul.f32 %v4538, 0.0
  %4622 = vrot.lane.b32.xlu0 %v4540, 29
  %v4623 = vpop.permute.xlu0 %4622
  %4624 = vrot.lane.b32.xlu0 %v4541, 29
  %v4625 = vpop.permute.xlu0 %4624
  %4626 = vrot.lane.b32.xlu0 %v4542, 29
  %v4627 = vpop.permute.xlu0 %4626
  %4628 = vrot.lane.b32.xlu0 %v4543, 29
  %v4629 = vpop.permute.xlu0 %4628
  %4630 = vrot.lane.b32.xlu0 %v4544, 29
  %v4631 = vpop.permute.xlu0 %4630
  %4632 = vrot.lane.b32.xlu0 %v4545, 29
  %v4633 = vpop.permute.xlu0 %4632
  %4634 = vrot.lane.b32.xlu0 %v4546, 29
  %v4635 = vpop.permute.xlu0 %4634
  %4636 = vrot.lane.b32.xlu0 %v4547, 29
  %v4637 = vpop.permute.xlu0 %4636
  %4638 = vrot.lane.b32.xlu0 %v4548, 29
  %v4639 = vpop.permute.xlu0 %4638
  %4640 = vrot.lane.b32.xlu0 %v4549, 29
  %v4641 = vpop.permute.xlu0 %4640
  %4642 = vrot.lane.b32.xlu0 %v4550, 29
  %v4643 = vpop.permute.xlu0 %4642
  %4644 = vrot.lane.b32.xlu0 %v4551, 29
  %v4645 = vpop.permute.xlu0 %4644
  %4646 = vrot.lane.b32.xlu0 %v4552, 29
  %v4647 = vpop.permute.xlu0 %4646
  %4648 = vrot.lane.b32.xlu0 %v4553, 29
  %v4649 = vpop.permute.xlu0 %4648
  %4650 = vrot.lane.b32.xlu0 %v4554, 29
  %v4651 = vpop.permute.xlu0 %4650
  %4652 = vrot.lane.b32.xlu0 %v4555, 29
  %v4653 = vpop.permute.xlu0 %4652
  %4654 = vrot.lane.b32.xlu0 %v4556, 29
  %v4655 = vpop.permute.xlu0 %4654
  %4656 = vrot.lane.b32.xlu0 %v4557, 29
  %v4657 = vpop.permute.xlu0 %4656
  %4658 = vrot.lane.b32.xlu0 %v4558, 29
  %v4659 = vpop.permute.xlu0 %4658
  %4660 = vrot.lane.b32.xlu0 %v4559, 29
  %v4661 = vpop.permute.xlu0 %4660
  %4662 = vrot.lane.b32.xlu0 %v4560, 29
  %v4663 = vpop.permute.xlu0 %4662
  %4664 = vrot.lane.b32.xlu0 %v4561, 29
  %v4665 = vpop.permute.xlu0 %4664
  %4666 = vrot.lane.b32.xlu0 %v4562, 29
  %v4667 = vpop.permute.xlu0 %4666
  %4668 = vrot.lane.b32.xlu0 %v4563, 29
  %v4669 = vpop.permute.xlu0 %4668
  %4670 = vrot.lane.b32.xlu0 %v4564, 29
  %v4671 = vpop.permute.xlu0 %4670
  %4672 = vrot.lane.b32.xlu0 %v4565, 29
  %v4673 = vpop.permute.xlu0 %4672
  %4674 = vrot.lane.b32.xlu0 %v4566, 29
  %v4675 = vpop.permute.xlu0 %4674
  %4676 = vrot.lane.b32.xlu0 %v4567, 29
  %v4677 = vpop.permute.xlu0 %4676
  %4678 = vrot.lane.b32.xlu0 %v4568, 29
  %v4679 = vpop.permute.xlu0 %4678
  %4680 = vrot.lane.b32.xlu0 %v4569, 29
  %v4681 = vpop.permute.xlu0 %4680
  %4682 = vrot.lane.b32.xlu0 %v4570, 29
  %v4683 = vpop.permute.xlu0 %4682
  %4684 = vrot.lane.b32.xlu0 %v4571, 29
  %v4685 = vpop.permute.xlu0 %4684
  %4686 = vrot.lane.b32.xlu0 %v4572, 29
  %v4687 = vpop.permute.xlu0 %4686
  %4688 = vrot.lane.b32.xlu0 %v4573, 29
  %v4689 = vpop.permute.xlu0 %4688
  %4690 = vrot.lane.b32.xlu0 %v4574, 29
  %v4691 = vpop.permute.xlu0 %4690
  %4692 = vrot.lane.b32.xlu0 %v4575, 29
  %v4693 = vpop.permute.xlu0 %4692
  %4694 = vrot.lane.b32.xlu0 %v4576, 29
  %v4695 = vpop.permute.xlu0 %4694
  %4696 = vrot.lane.b32.xlu0 %v4577, 29
  %v4697 = vpop.permute.xlu0 %4696
  %4698 = vrot.lane.b32.xlu0 %v4578, 29
  %v4699 = vpop.permute.xlu0 %4698
  %4700 = vrot.lane.b32.xlu0 %v4579, 29
  %v4701 = vpop.permute.xlu0 %4700
  %4702 = vrot.lane.b32.xlu0 %v4580, 29
  %v4703 = vpop.permute.xlu0 %4702
  %vm4704 = vcmask 236544
  %v4705 = vsel %vm4704, %v4623, %v4625
  %v4706 = vsel %vm4704, %v4625, %v4627
  %v4707 = vsel %vm4704, %v4627, %v4629
  %v4708 = vsel %vm4704, %v4629, %v4631
  %v4709 = vsel %vm4704, %v4631, %v4633
  %v4710 = vsel %vm4704, %v4633, %v4635
  %v4711 = vsel %vm4704, %v4635, %v4637
  %v4712 = vsel %vm4704, %v4637, %v4639
  %v4713 = vsel %vm4704, %v4639, %v4641
  %v4714 = vsel %vm4704, %v4641, %v4643
  %v4715 = vsel %vm4704, %v4643, %v4645
  %v4716 = vsel %vm4704, %v4645, %v4647
  %v4717 = vsel %vm4704, %v4647, %v4649
  %v4718 = vsel %vm4704, %v4649, %v4651
  %v4719 = vsel %vm4704, %v4651, %v4653
  %v4720 = vsel %vm4704, %v4653, %v4655
  %v4721 = vsel %vm4704, %v4655, %v4657
  %v4722 = vsel %vm4704, %v4657, %v4659
  %v4723 = vsel %vm4704, %v4659, %v4661
  %v4724 = vsel %vm4704, %v4661, %v4663
  %v4725 = vsel %vm4704, %v4663, %v4665
  %v4726 = vsel %vm4704, %v4665, %v4667
  %v4727 = vsel %vm4704, %v4667, %v4669
  %v4728 = vsel %vm4704, %v4669, %v4671
  %v4729 = vsel %vm4704, %v4671, %v4673
  %v4730 = vsel %vm4704, %v4673, %v4675
  %v4731 = vsel %vm4704, %v4675, %v4677
  %v4732 = vsel %vm4704, %v4677, %v4679
  %v4733 = vsel %vm4704, %v4679, %v4681
  %v4734 = vsel %vm4704, %v4681, %v4683
  %v4735 = vsel %vm4704, %v4683, %v4685
  %v4736 = vsel %vm4704, %v4685, %v4687
  %v4737 = vsel %vm4704, %v4687, %v4689
  %v4738 = vsel %vm4704, %v4689, %v4691
  %v4739 = vsel %vm4704, %v4691, %v4693
  %v4740 = vsel %vm4704, %v4693, %v4695
  %v4741 = vsel %vm4704, %v4695, %v4697
  %v4742 = vsel %vm4704, %v4697, %v4699
  %v4743 = vsel %vm4704, %v4699, %v4701
  %v4744 = vsel %vm4704, %v4701, %v4703
  %v4785 = vadd.f32 %v4496, %v4705
  %v4786 = vadd.f32 %v4497, %v4706
  %v4787 = vadd.f32 %v4498, %v4707
  %v4788 = vadd.f32 %v4499, %v4708
  %v4789 = vadd.f32 %v4500, %v4709
  %v4790 = vadd.f32 %v4501, %v4710
  %v4791 = vadd.f32 %v4502, %v4711
  %v4792 = vadd.f32 %v4503, %v4712
  %v4793 = vadd.f32 %v4504, %v4713
  %v4794 = vadd.f32 %v4505, %v4714
  %v4795 = vadd.f32 %v4506, %v4715
  %v4796 = vadd.f32 %v4507, %v4716
  %v4797 = vadd.f32 %v4508, %v4717
  %v4798 = vadd.f32 %v4509, %v4718
  %v4799 = vadd.f32 %v4510, %v4719
  %v4800 = vadd.f32 %v4511, %v4720
  %v4801 = vadd.f32 %v4512, %v4721
  %v4802 = vadd.f32 %v4513, %v4722
  %v4803 = vadd.f32 %v4514, %v4723
  %v4804 = vadd.f32 %v4515, %v4724
  %v4805 = vadd.f32 %v4516, %v4725
  %v4806 = vadd.f32 %v4517, %v4726
  %v4807 = vadd.f32 %v4518, %v4727
  %v4808 = vadd.f32 %v4519, %v4728
  %v4809 = vadd.f32 %v4520, %v4729
  %v4810 = vadd.f32 %v4521, %v4730
  %v4811 = vadd.f32 %v4522, %v4731
  %v4812 = vadd.f32 %v4523, %v4732
  %v4813 = vadd.f32 %v4524, %v4733
  %v4814 = vadd.f32 %v4525, %v4734
  %v4815 = vadd.f32 %v4526, %v4735
  %v4816 = vadd.f32 %v4527, %v4736
  %v4817 = vadd.f32 %v4528, %v4737
  %v4818 = vadd.f32 %v4529, %v4738
  %v4819 = vadd.f32 %v4530, %v4739
  %v4820 = vadd.f32 %v4531, %v4740
  %v4821 = vadd.f32 %v4532, %v4741
  %v4822 = vadd.f32 %v4533, %v4742
  %v4823 = vadd.f32 %v4534, %v4743
  %v4824 = vadd.f32 %v4535, %v4744
  %v4825 = vld [vmem:[%s3] sm:$0xff]
  %4827 = vset.pattern.permute.xlu0 0
  %4828 = vperm.xlu0 %4827, %v4825
  %v4829 = vpop.permute.xlu0 %4828
  %v4831 = vadd.f32 %v4785, %v4829
  %v4832 = vadd.f32 %v4786, %v4829
  %v4833 = vadd.f32 %v4787, %v4829
  %v4834 = vadd.f32 %v4788, %v4829
  %v4835 = vadd.f32 %v4789, %v4829
  %v4836 = vadd.f32 %v4790, %v4829
  %v4837 = vadd.f32 %v4791, %v4829
  %v4838 = vadd.f32 %v4792, %v4829
  %v4839 = vadd.f32 %v4793, %v4829
  %v4840 = vadd.f32 %v4794, %v4829
  %v4841 = vadd.f32 %v4795, %v4829
  %v4842 = vadd.f32 %v4796, %v4829
  %v4843 = vadd.f32 %v4797, %v4829
  %v4844 = vadd.f32 %v4798, %v4829
  %v4845 = vadd.f32 %v4799, %v4829
  %v4846 = vadd.f32 %v4800, %v4829
  %v4847 = vadd.f32 %v4801, %v4829
  %v4848 = vadd.f32 %v4802, %v4829
  %v4849 = vadd.f32 %v4803, %v4829
  %v4850 = vadd.f32 %v4804, %v4829
  %v4851 = vadd.f32 %v4805, %v4829
  %v4852 = vadd.f32 %v4806, %v4829
  %v4853 = vadd.f32 %v4807, %v4829
  %v4854 = vadd.f32 %v4808, %v4829
  %v4855 = vadd.f32 %v4809, %v4829
  %v4856 = vadd.f32 %v4810, %v4829
  %v4857 = vadd.f32 %v4811, %v4829
  %v4858 = vadd.f32 %v4812, %v4829
  %v4859 = vadd.f32 %v4813, %v4829
  %v4860 = vadd.f32 %v4814, %v4829
  %v4861 = vadd.f32 %v4815, %v4829
  %v4862 = vadd.f32 %v4816, %v4829
  %v4863 = vadd.f32 %v4817, %v4829
  %v4864 = vadd.f32 %v4818, %v4829
  %v4865 = vadd.f32 %v4819, %v4829
  %v4866 = vadd.f32 %v4820, %v4829
  %v4867 = vadd.f32 %v4821, %v4829
  %v4868 = vadd.f32 %v4822, %v4829
  %v4869 = vadd.f32 %v4823, %v4829
  %v4870 = vadd.f32 %v4824, %v4829
  %vm4871 = vcmp.ge.f32.partialorder %v4831, 0.0
  %vm4872 = vcmp.ge.f32.partialorder %v4832, 0.0
  %vm4873 = vcmp.ge.f32.partialorder %v4833, 0.0
  %vm4874 = vcmp.ge.f32.partialorder %v4834, 0.0
  %vm4875 = vcmp.ge.f32.partialorder %v4835, 0.0
  %vm4876 = vcmp.ge.f32.partialorder %v4836, 0.0
  %vm4877 = vcmp.ge.f32.partialorder %v4837, 0.0
  %vm4878 = vcmp.ge.f32.partialorder %v4838, 0.0
  %vm4879 = vcmp.ge.f32.partialorder %v4839, 0.0
  %vm4880 = vcmp.ge.f32.partialorder %v4840, 0.0
  %vm4881 = vcmp.ge.f32.partialorder %v4841, 0.0
  %vm4882 = vcmp.ge.f32.partialorder %v4842, 0.0
  %vm4883 = vcmp.ge.f32.partialorder %v4843, 0.0
  %vm4884 = vcmp.ge.f32.partialorder %v4844, 0.0
  %vm4885 = vcmp.ge.f32.partialorder %v4845, 0.0
  %vm4886 = vcmp.ge.f32.partialorder %v4846, 0.0
  %vm4887 = vcmp.ge.f32.partialorder %v4847, 0.0
  %vm4888 = vcmp.ge.f32.partialorder %v4848, 0.0
  %vm4889 = vcmp.ge.f32.partialorder %v4849, 0.0
  %vm4890 = vcmp.ge.f32.partialorder %v4850, 0.0
  %vm4891 = vcmp.ge.f32.partialorder %v4851, 0.0
  %vm4892 = vcmp.ge.f32.partialorder %v4852, 0.0
  %vm4893 = vcmp.ge.f32.partialorder %v4853, 0.0
  %vm4894 = vcmp.ge.f32.partialorder %v4854, 0.0
  %vm4895 = vcmp.ge.f32.partialorder %v4855, 0.0
  %vm4896 = vcmp.ge.f32.partialorder %v4856, 0.0
  %vm4897 = vcmp.ge.f32.partialorder %v4857, 0.0
  %vm4898 = vcmp.ge.f32.partialorder %v4858, 0.0
  %vm4899 = vcmp.ge.f32.partialorder %v4859, 0.0
  %vm4900 = vcmp.ge.f32.partialorder %v4860, 0.0
  %vm4901 = vcmp.ge.f32.partialorder %v4861, 0.0
  %vm4902 = vcmp.ge.f32.partialorder %v4862, 0.0
  %vm4903 = vcmp.ge.f32.partialorder %v4863, 0.0
  %vm4904 = vcmp.ge.f32.partialorder %v4864, 0.0
  %vm4905 = vcmp.ge.f32.partialorder %v4865, 0.0
  %vm4906 = vcmp.ge.f32.partialorder %v4866, 0.0
  %vm4907 = vcmp.ge.f32.partialorder %v4867, 0.0
  %vm4908 = vcmp.ge.f32.partialorder %v4868, 0.0
  %vm4909 = vcmp.ge.f32.partialorder %v4869, 0.0
  %vm4910 = vcmp.ge.f32.partialorder %v4870, 0.0
  %v4911 = vmul.f32 %v4831, 0.2
  %v4912 = vmul.f32 %v4832, 0.2
  %v4913 = vmul.f32 %v4833, 0.2
  %v4914 = vmul.f32 %v4834, 0.2
  %v4915 = vmul.f32 %v4835, 0.2
  %v4916 = vmul.f32 %v4836, 0.2
  %v4917 = vmul.f32 %v4837, 0.2
  %v4918 = vmul.f32 %v4838, 0.2
  %v4919 = vmul.f32 %v4839, 0.2
  %v4920 = vmul.f32 %v4840, 0.2
  %v4921 = vmul.f32 %v4841, 0.2
  %v4922 = vmul.f32 %v4842, 0.2
  %v4923 = vmul.f32 %v4843, 0.2
  %v4924 = vmul.f32 %v4844, 0.2
  %v4925 = vmul.f32 %v4845, 0.2
  %v4926 = vmul.f32 %v4846, 0.2
  %v4927 = vmul.f32 %v4847, 0.2
  %v4928 = vmul.f32 %v4848, 0.2
  %v4929 = vmul.f32 %v4849, 0.2
  %v4930 = vmul.f32 %v4850, 0.2
  %v4931 = vmul.f32 %v4851, 0.2
  %v4932 = vmul.f32 %v4852, 0.2
  %v4933 = vmul.f32 %v4853, 0.2
  %v4934 = vmul.f32 %v4854, 0.2
  %v4935 = vmul.f32 %v4855, 0.2
  %v4936 = vmul.f32 %v4856, 0.2
  %v4937 = vmul.f32 %v4857, 0.2
  %v4938 = vmul.f32 %v4858, 0.2
  %v4939 = vmul.f32 %v4859, 0.2
  %v4940 = vmul.f32 %v4860, 0.2
  %v4941 = vmul.f32 %v4861, 0.2
  %v4942 = vmul.f32 %v4862, 0.2
  %v4943 = vmul.f32 %v4863, 0.2
  %v4944 = vmul.f32 %v4864, 0.2
  %v4945 = vmul.f32 %v4865, 0.2
  %v4946 = vmul.f32 %v4866, 0.2
  %v4947 = vmul.f32 %v4867, 0.2
  %v4948 = vmul.f32 %v4868, 0.2
  %v4949 = vmul.f32 %v4869, 0.2
  %v4950 = vmul.f32 %v4870, 0.2
  %v4951 = vsel %vm4871, %v4831, %v4911
  %v4952 = vsel %vm4872, %v4832, %v4912
  %v4953 = vsel %vm4873, %v4833, %v4913
  %v4954 = vsel %vm4874, %v4834, %v4914
  %v4955 = vsel %vm4875, %v4835, %v4915
  %v4956 = vsel %vm4876, %v4836, %v4916
  %v4957 = vsel %vm4877, %v4837, %v4917
  %v4958 = vsel %vm4878, %v4838, %v4918
  %v4959 = vsel %vm4879, %v4839, %v4919
  %v4960 = vsel %vm4880, %v4840, %v4920
  %v4961 = vsel %vm4881, %v4841, %v4921
  %v4962 = vsel %vm4882, %v4842, %v4922
  %v4963 = vsel %vm4883, %v4843, %v4923
  %v4964 = vsel %vm4884, %v4844, %v4924
  %v4965 = vsel %vm4885, %v4845, %v4925
  %v4966 = vsel %vm4886, %v4846, %v4926
  %v4967 = vsel %vm4887, %v4847, %v4927
  %v4968 = vsel %vm4888, %v4848, %v4928
  %v4969 = vsel %vm4889, %v4849, %v4929
  %v4970 = vsel %vm4890, %v4850, %v4930
  %v4971 = vsel %vm4891, %v4851, %v4931
  %v4972 = vsel %vm4892, %v4852, %v4932
  %v4973 = vsel %vm4893, %v4853, %v4933
  %v4974 = vsel %vm4894, %v4854, %v4934
  %v4975 = vsel %vm4895, %v4855, %v4935
  %v4976 = vsel %vm4896, %v4856, %v4936
  %v4977 = vsel %vm4897, %v4857, %v4937
  %v4978 = vsel %vm4898, %v4858, %v4938
  %v4979 = vsel %vm4899, %v4859, %v4939
  %v4980 = vsel %vm4900, %v4860, %v4940
  %v4981 = vsel %vm4901, %v4861, %v4941
  %v4982 = vsel %vm4902, %v4862, %v4942
  %v4983 = vsel %vm4903, %v4863, %v4943
  %v4984 = vsel %vm4904, %v4864, %v4944
  %v4985 = vsel %vm4905, %v4865, %v4945
  %v4986 = vsel %vm4906, %v4866, %v4946
  %v4987 = vsel %vm4907, %v4867, %v4947
  %v4988 = vsel %vm4908, %v4868, %v4948
  %v4989 = vsel %vm4909, %v4869, %v4949
  %v4990 = vsel %vm4910, %v4870, %v4950
  %v4991 = vld [vmem:[%s1] sm:$0xff]
  %v4992 = vld [vmem:[%s1 + $0x8] sm:$0xff]
  %v4993 = vld [vmem:[%s1 + $0x10] sm:$0xff]
  %v4994 = vld [vmem:[%s1 + $0x18] sm:$0xff]
  %v4995 = vld [vmem:[%s1 + $0x20] sm:$0xff]
  %v5001 = vlaneseq
  %v5002 = vshrl.u32 %v5001, 7
  %v5003 = vsub.s32 0, %v5002
  %v5004 = vrot.slane %v4991, %v5003
  %v5005 = vlaneseq
  %v5006 = vshrl.u32 %v5005, 7
  %v5007 = vsub.s32 1, %v5006
  %v5008 = vrot.slane %v4991, %v5007
  %v5009 = vlaneseq
  %v5010 = vshrl.u32 %v5009, 7
  %v5011 = vsub.s32 2, %v5010
  %v5012 = vrot.slane %v4991, %v5011
  %v5013 = vlaneseq
  %v5014 = vshrl.u32 %v5013, 7
  %v5015 = vsub.s32 3, %v5014
  %v5016 = vrot.slane %v4991, %v5015
  %v5017 = vlaneseq
  %v5018 = vshrl.u32 %v5017, 7
  %v5019 = vsub.s32 4, %v5018
  %v5020 = vrot.slane %v4991, %v5019
  %v5021 = vlaneseq
  %v5022 = vshrl.u32 %v5021, 7
  %v5023 = vsub.s32 5, %v5022
  %v5024 = vrot.slane %v4991, %v5023
  %v5025 = vlaneseq
  %v5026 = vshrl.u32 %v5025, 7
  %v5027 = vsub.s32 6, %v5026
  %v5028 = vrot.slane %v4991, %v5027
  %v5029 = vlaneseq
  %v5030 = vshrl.u32 %v5029, 7
  %v5031 = vsub.s32 7, %v5030
  %v5032 = vrot.slane %v4991, %v5031
  %v5033 = vlaneseq
  %v5034 = vshrl.u32 %v5033, 7
  %v5035 = vsub.s32 0, %v5034
  %v5036 = vrot.slane %v4992, %v5035
  %v5037 = vlaneseq
  %v5038 = vshrl.u32 %v5037, 7
  %v5039 = vsub.s32 1, %v5038
  %v5040 = vrot.slane %v4992, %v5039
  %v5041 = vlaneseq
  %v5042 = vshrl.u32 %v5041, 7
  %v5043 = vsub.s32 2, %v5042
  %v5044 = vrot.slane %v4992, %v5043
  %v5045 = vlaneseq
  %v5046 = vshrl.u32 %v5045, 7
  %v5047 = vsub.s32 3, %v5046
  %v5048 = vrot.slane %v4992, %v5047
  %v5049 = vlaneseq
  %v5050 = vshrl.u32 %v5049, 7
  %v5051 = vsub.s32 4, %v5050
  %v5052 = vrot.slane %v4992, %v5051
  %v5053 = vlaneseq
  %v5054 = vshrl.u32 %v5053, 7
  %v5055 = vsub.s32 5, %v5054
  %v5056 = vrot.slane %v4992, %v5055
  %v5057 = vlaneseq
  %v5058 = vshrl.u32 %v5057, 7
  %v5059 = vsub.s32 6, %v5058
  %v5060 = vrot.slane %v4992, %v5059
  %v5061 = vlaneseq
  %v5062 = vshrl.u32 %v5061, 7
  %v5063 = vsub.s32 7, %v5062
  %v5064 = vrot.slane %v4992, %v5063
  %v5065 = vlaneseq
  %v5066 = vshrl.u32 %v5065, 7
  %v5067 = vsub.s32 0, %v5066
  %v5068 = vrot.slane %v4993, %v5067
  %v5069 = vlaneseq
  %v5070 = vshrl.u32 %v5069, 7
  %v5071 = vsub.s32 1, %v5070
  %v5072 = vrot.slane %v4993, %v5071
  %v5073 = vlaneseq
  %v5074 = vshrl.u32 %v5073, 7
  %v5075 = vsub.s32 2, %v5074
  %v5076 = vrot.slane %v4993, %v5075
  %v5077 = vlaneseq
  %v5078 = vshrl.u32 %v5077, 7
  %v5079 = vsub.s32 3, %v5078
  %v5080 = vrot.slane %v4993, %v5079
  %v5081 = vlaneseq
  %v5082 = vshrl.u32 %v5081, 7
  %v5083 = vsub.s32 4, %v5082
  %v5084 = vrot.slane %v4993, %v5083
  %v5085 = vlaneseq
  %v5086 = vshrl.u32 %v5085, 7
  %v5087 = vsub.s32 5, %v5086
  %v5088 = vrot.slane %v4993, %v5087
  %v5089 = vlaneseq
  %v5090 = vshrl.u32 %v5089, 7
  %v5091 = vsub.s32 6, %v5090
  %v5092 = vrot.slane %v4993, %v5091
  %v5093 = vlaneseq
  %v5094 = vshrl.u32 %v5093, 7
  %v5095 = vsub.s32 7, %v5094
  %v5096 = vrot.slane %v4993, %v5095
  %v5097 = vlaneseq
  %v5098 = vshrl.u32 %v5097, 7
  %v5099 = vsub.s32 0, %v5098
  %v5100 = vrot.slane %v4994, %v5099
  %v5101 = vlaneseq
  %v5102 = vshrl.u32 %v5101, 7
  %v5103 = vsub.s32 1, %v5102
  %v5104 = vrot.slane %v4994, %v5103
  %v5105 = vlaneseq
  %v5106 = vshrl.u32 %v5105, 7
  %v5107 = vsub.s32 2, %v5106
  %v5108 = vrot.slane %v4994, %v5107
  %v5109 = vlaneseq
  %v5110 = vshrl.u32 %v5109, 7
  %v5111 = vsub.s32 3, %v5110
  %v5112 = vrot.slane %v4994, %v5111
  %v5113 = vlaneseq
  %v5114 = vshrl.u32 %v5113, 7
  %v5115 = vsub.s32 4, %v5114
  %v5116 = vrot.slane %v4994, %v5115
  %v5117 = vlaneseq
  %v5118 = vshrl.u32 %v5117, 7
  %v5119 = vsub.s32 5, %v5118
  %v5120 = vrot.slane %v4994, %v5119
  %v5121 = vlaneseq
  %v5122 = vshrl.u32 %v5121, 7
  %v5123 = vsub.s32 6, %v5122
  %v5124 = vrot.slane %v4994, %v5123
  %v5125 = vlaneseq
  %v5126 = vshrl.u32 %v5125, 7
  %v5127 = vsub.s32 7, %v5126
  %v5128 = vrot.slane %v4994, %v5127
  %v5129 = vlaneseq
  %v5130 = vshrl.u32 %v5129, 7
  %v5131 = vsub.s32 0, %v5130
  %v5132 = vrot.slane %v4995, %v5131
  %v5133 = vlaneseq
  %v5134 = vshrl.u32 %v5133, 7
  %v5135 = vsub.s32 1, %v5134
  %v5136 = vrot.slane %v4995, %v5135
  %v5137 = vlaneseq
  %v5138 = vshrl.u32 %v5137, 7
  %v5139 = vsub.s32 2, %v5138
  %v5140 = vrot.slane %v4995, %v5139
  %v5141 = vlaneseq
  %v5142 = vshrl.u32 %v5141, 7
  %v5143 = vsub.s32 3, %v5142
  %v5144 = vrot.slane %v4995, %v5143
  %v5145 = vlaneseq
  %v5146 = vshrl.u32 %v5145, 7
  %v5147 = vsub.s32 4, %v5146
  %v5148 = vrot.slane %v4995, %v5147
  %v5149 = vlaneseq
  %v5150 = vshrl.u32 %v5149, 7
  %v5151 = vsub.s32 5, %v5150
  %v5152 = vrot.slane %v4995, %v5151
  %v5153 = vlaneseq
  %v5154 = vshrl.u32 %v5153, 7
  %v5155 = vsub.s32 6, %v5154
  %v5156 = vrot.slane %v4995, %v5155
  %v5157 = vlaneseq
  %v5158 = vshrl.u32 %v5157, 7
  %v5159 = vsub.s32 7, %v5158
  %v5160 = vrot.slane %v4995, %v5159
  %v5201 = vmul.f32 %v4951, %v5004
  %v5202 = vmul.f32 %v4952, %v5008
  %v5203 = vmul.f32 %v4953, %v5012
  %v5204 = vmul.f32 %v4954, %v5016
  %v5205 = vmul.f32 %v4955, %v5020
  %v5206 = vmul.f32 %v4956, %v5024
  %v5207 = vmul.f32 %v4957, %v5028
  %v5208 = vmul.f32 %v4958, %v5032
  %v5209 = vmul.f32 %v4959, %v5036
  %v5210 = vmul.f32 %v4960, %v5040
  %v5211 = vmul.f32 %v4961, %v5044
  %v5212 = vmul.f32 %v4962, %v5048
  %v5213 = vmul.f32 %v4963, %v5052
  %v5214 = vmul.f32 %v4964, %v5056
  %v5215 = vmul.f32 %v4965, %v5060
  %v5216 = vmul.f32 %v4966, %v5064
  %v5217 = vmul.f32 %v4967, %v5068
  %v5218 = vmul.f32 %v4968, %v5072
  %v5219 = vmul.f32 %v4969, %v5076
  %v5220 = vmul.f32 %v4970, %v5080
  %v5221 = vmul.f32 %v4971, %v5084
  %v5222 = vmul.f32 %v4972, %v5088
  %v5223 = vmul.f32 %v4973, %v5092
  %v5224 = vmul.f32 %v4974, %v5096
  %v5225 = vmul.f32 %v4975, %v5100
  %v5226 = vmul.f32 %v4976, %v5104
  %v5227 = vmul.f32 %v4977, %v5108
  %v5228 = vmul.f32 %v4978, %v5112
  %v5229 = vmul.f32 %v4979, %v5116
  %v5230 = vmul.f32 %v4980, %v5120
  %v5231 = vmul.f32 %v4981, %v5124
  %v5232 = vmul.f32 %v4982, %v5128
  %v5233 = vmul.f32 %v4983, %v5132
  %v5234 = vmul.f32 %v4984, %v5136
  %v5235 = vmul.f32 %v4985, %v5140
  %v5236 = vmul.f32 %v4986, %v5144
  %v5237 = vmul.f32 %v4987, %v5148
  %v5238 = vmul.f32 %v4988, %v5152
  %v5239 = vmul.f32 %v4989, %v5156
  %v5240 = vmul.f32 %v4990, %v5160
  %5241 = vst [vmem:[#allocation2] sm:$0xff] %v5201
  %5242 = vst [vmem:[#allocation2 + $0x8] sm:$0xff] %v5202
  %5243 = vst [vmem:[#allocation2 + $0x10] sm:$0xff] %v5203
  %5244 = vst [vmem:[#allocation2 + $0x18] sm:$0xff] %v5204
  %5245 = vst [vmem:[#allocation2 + $0x20] sm:$0xff] %v5205
  %5246 = vst [vmem:[#allocation2 + $0x28] sm:$0xff] %v5206
  %5247 = vst [vmem:[#allocation2 + $0x30] sm:$0xff] %v5207
  %5248 = vst [vmem:[#allocation2 + $0x38] sm:$0xff] %v5208
  %5249 = vst [vmem:[#allocation2 + $0x40] sm:$0xff] %v5209
  %5250 = vst [vmem:[#allocation2 + $0x48] sm:$0xff] %v5210
  %5251 = vst [vmem:[#allocation2 + $0x50] sm:$0xff] %v5211
  %5252 = vst [vmem:[#allocation2 + $0x58] sm:$0xff] %v5212
  %5253 = vst [vmem:[#allocation2 + $0x60] sm:$0xff] %v5213
  %5254 = vst [vmem:[#allocation2 + $0x68] sm:$0xff] %v5214
  %5255 = vst [vmem:[#allocation2 + $0x70] sm:$0xff] %v5215
  %5256 = vst [vmem:[#allocation2 + $0x78] sm:$0xff] %v5216
  %5257 = vst [vmem:[#allocation2 + $0x80] sm:$0xff] %v5217
  %5258 = vst [vmem:[#allocation2 + $0x88] sm:$0xff] %v5218
  %5259 = vst [vmem:[#allocation2 + $0x90] sm:$0xff] %v5219
  %5260 = vst [vmem:[#allocation2 + $0x98] sm:$0xff] %v5220
  %5261 = vst [vmem:[#allocation2 + $0xa0] sm:$0xff] %v5221
  %5262 = vst [vmem:[#allocation2 + $0xa8] sm:$0xff] %v5222
  %5263 = vst [vmem:[#allocation2 + $0xb0] sm:$0xff] %v5223
  %5264 = vst [vmem:[#allocation2 + $0xb8] sm:$0xff] %v5224
  %5265 = vst [vmem:[#allocation2 + $0xc0] sm:$0xff] %v5225
  %5266 = vst [vmem:[#allocation2 + $0xc8] sm:$0xff] %v5226
  %5267 = vst [vmem:[#allocation2 + $0xd0] sm:$0xff] %v5227
  %5268 = vst [vmem:[#allocation2 + $0xd8] sm:$0xff] %v5228
  %5269 = vst [vmem:[#allocation2 + $0xe0] sm:$0xff] %v5229
  %5270 = vst [vmem:[#allocation2 + $0xe8] sm:$0xff] %v5230
  %5271 = vst [vmem:[#allocation2 + $0xf0] sm:$0xff] %v5231
  %5272 = vst [vmem:[#allocation2 + $0xf8] sm:$0xff] %v5232
  %5273 = vst [vmem:[#allocation2 + $0x100] sm:$0xff] %v5233
  %5274 = vst [vmem:[#allocation2 + $0x108] sm:$0xff] %v5234
  %5275 = vst [vmem:[#allocation2 + $0x110] sm:$0xff] %v5235
  %5276 = vst [vmem:[#allocation2 + $0x118] sm:$0xff] %v5236
  %5277 = vst [vmem:[#allocation2 + $0x120] sm:$0xff] %v5237
  %5278 = vst [vmem:[#allocation2 + $0x128] sm:$0xff] %v5238
  %5279 = vst [vmem:[#allocation2 + $0x130] sm:$0xff] %v5239
  %5280 = vst [vmem:[#allocation2 + $0x138] sm:$0xff] %v5240
  %5322 = vrot.lane.b32.xlu0 %v5201, 127
  %v5323 = vpop.permute.xlu0 %5322
  %5324 = vrot.lane.b32.xlu0 %v5202, 127
  %v5325 = vpop.permute.xlu0 %5324
  %5326 = vrot.lane.b32.xlu0 %v5203, 127
  %v5327 = vpop.permute.xlu0 %5326
  %5328 = vrot.lane.b32.xlu0 %v5204, 127
  %v5329 = vpop.permute.xlu0 %5328
  %5330 = vrot.lane.b32.xlu0 %v5205, 127
  %v5331 = vpop.permute.xlu0 %5330
  %5332 = vrot.lane.b32.xlu0 %v5206, 127
  %v5333 = vpop.permute.xlu0 %5332
  %5334 = vrot.lane.b32.xlu0 %v5207, 127
  %v5335 = vpop.permute.xlu0 %5334
  %5336 = vrot.lane.b32.xlu0 %v5208, 127
  %v5337 = vpop.permute.xlu0 %5336
  %5338 = vrot.lane.b32.xlu0 %v5209, 127
  %v5339 = vpop.permute.xlu0 %5338
  %5340 = vrot.lane.b32.xlu0 %v5210, 127
  %v5341 = vpop.permute.xlu0 %5340
  %5342 = vrot.lane.b32.xlu0 %v5211, 127
  %v5343 = vpop.permute.xlu0 %5342
  %5344 = vrot.lane.b32.xlu0 %v5212, 127
  %v5345 = vpop.permute.xlu0 %5344
  %5346 = vrot.lane.b32.xlu0 %v5213, 127
  %v5347 = vpop.permute.xlu0 %5346
  %5348 = vrot.lane.b32.xlu0 %v5214, 127
  %v5349 = vpop.permute.xlu0 %5348
  %5350 = vrot.lane.b32.xlu0 %v5215, 127
  %v5351 = vpop.permute.xlu0 %5350
  %5352 = vrot.lane.b32.xlu0 %v5216, 127
  %v5353 = vpop.permute.xlu0 %5352
  %5354 = vrot.lane.b32.xlu0 %v5217, 127
  %v5355 = vpop.permute.xlu0 %5354
  %5356 = vrot.lane.b32.xlu0 %v5218, 127
  %v5357 = vpop.permute.xlu0 %5356
  %5358 = vrot.lane.b32.xlu0 %v5219, 127
  %v5359 = vpop.permute.xlu0 %5358
  %5360 = vrot.lane.b32.xlu0 %v5220, 127
  %v5361 = vpop.permute.xlu0 %5360
  %5362 = vrot.lane.b32.xlu0 %v5221, 127
  %v5363 = vpop.permute.xlu0 %5362
  %5364 = vrot.lane.b32.xlu0 %v5222, 127
  %v5365 = vpop.permute.xlu0 %5364
  %5366 = vrot.lane.b32.xlu0 %v5223, 127
  %v5367 = vpop.permute.xlu0 %5366
  %5368 = vrot.lane.b32.xlu0 %v5224, 127
  %v5369 = vpop.permute.xlu0 %5368
  %5370 = vrot.lane.b32.xlu0 %v5225, 127
  %v5371 = vpop.permute.xlu0 %5370
  %5372 = vrot.lane.b32.xlu0 %v5226, 127
  %v5373 = vpop.permute.xlu0 %5372
  %5374 = vrot.lane.b32.xlu0 %v5227, 127
  %v5375 = vpop.permute.xlu0 %5374
  %5376 = vrot.lane.b32.xlu0 %v5228, 127
  %v5377 = vpop.permute.xlu0 %5376
  %5378 = vrot.lane.b32.xlu0 %v5229, 127
  %v5379 = vpop.permute.xlu0 %5378
  %5380 = vrot.lane.b32.xlu0 %v5230, 127
  %v5381 = vpop.permute.xlu0 %5380
  %5382 = vrot.lane.b32.xlu0 %v5231, 127
  %v5383 = vpop.permute.xlu0 %5382
  %5384 = vrot.lane.b32.xlu0 %v5232, 127
  %v5385 = vpop.permute.xlu0 %5384
  %5386 = vrot.lane.b32.xlu0 %v5233, 127
  %v5387 = vpop.permute.xlu0 %5386
  %5388 = vrot.lane.b32.xlu0 %v5234, 127
  %v5389 = vpop.permute.xlu0 %5388
  %5390 = vrot.lane.b32.xlu0 %v5235, 127
  %v5391 = vpop.permute.xlu0 %5390
  %5392 = vrot.lane.b32.xlu0 %v5236, 127
  %v5393 = vpop.permute.xlu0 %5392
  %5394 = vrot.lane.b32.xlu0 %v5237, 127
  %v5395 = vpop.permute.xlu0 %5394
  %5396 = vrot.lane.b32.xlu0 %v5238, 127
  %v5397 = vpop.permute.xlu0 %5396
  %5398 = vrot.lane.b32.xlu0 %v5239, 127
  %v5399 = vpop.permute.xlu0 %5398
  %5400 = vrot.lane.b32.xlu0 %v5240, 127
  %v5401 = vpop.permute.xlu0 %5400
  %5402 = vrot.lane.b32.xlu0 0.0, 127
  %v5403 = vpop.permute.xlu0 %5402
  %v5404 = vsel %vm658, %v5323, %v5325
  %v5405 = vsel %vm658, %v5325, %v5327
  %v5406 = vsel %vm658, %v5327, %v5329
  %v5407 = vsel %vm658, %v5329, %v5331
  %v5408 = vsel %vm658, %v5331, %v5333
  %v5409 = vsel %vm658, %v5333, %v5335
  %v5410 = vsel %vm658, %v5335, %v5337
  %v5411 = vsel %vm658, %v5337, %v5339
  %v5412 = vsel %vm658, %v5339, %v5341
  %v5413 = vsel %vm658, %v5341, %v5343
  %v5414 = vsel %vm658, %v5343, %v5345
  %v5415 = vsel %vm658, %v5345, %v5347
  %v5416 = vsel %vm658, %v5347, %v5349
  %v5417 = vsel %vm658, %v5349, %v5351
  %v5418 = vsel %vm658, %v5351, %v5353
  %v5419 = vsel %vm658, %v5353, %v5355
  %v5420 = vsel %vm658, %v5355, %v5357
  %v5421 = vsel %vm658, %v5357, %v5359
  %v5422 = vsel %vm658, %v5359, %v5361
  %v5423 = vsel %vm658, %v5361, %v5363
  %v5424 = vsel %vm658, %v5363, %v5365
  %v5425 = vsel %vm658, %v5365, %v5367
  %v5426 = vsel %vm658, %v5367, %v5369
  %v5427 = vsel %vm658, %v5369, %v5371
  %v5428 = vsel %vm658, %v5371, %v5373
  %v5429 = vsel %vm658, %v5373, %v5375
  %v5430 = vsel %vm658, %v5375, %v5377
  %v5431 = vsel %vm658, %v5377, %v5379
  %v5432 = vsel %vm658, %v5379, %v5381
  %v5433 = vsel %vm658, %v5381, %v5383
  %v5434 = vsel %vm658, %v5383, %v5385
  %v5435 = vsel %vm658, %v5385, %v5387
  %v5436 = vsel %vm658, %v5387, %v5389
  %v5437 = vsel %vm658, %v5389, %v5391
  %v5438 = vsel %vm658, %v5391, %v5393
  %v5439 = vsel %vm658, %v5393, %v5395
  %v5440 = vsel %vm658, %v5395, %v5397
  %v5441 = vsel %vm658, %v5397, %v5399
  %v5442 = vsel %vm658, %v5399, %v5401
  %v5443 = vsel %vm658, %v5401, %v5403
  %5484 = vst [vmem:[#allocation2 + $0x140] sm:$0xff] %v5404
  %5485 = vst [vmem:[#allocation2 + $0x148] sm:$0xff] %v5405
  %5486 = vst [vmem:[#allocation2 + $0x150] sm:$0xff] %v5406
  %5487 = vst [vmem:[#allocation2 + $0x158] sm:$0xff] %v5407
  %5488 = vst [vmem:[#allocation2 + $0x160] sm:$0xff] %v5408
  %5489 = vst [vmem:[#allocation2 + $0x168] sm:$0xff] %v5409
  %5490 = vst [vmem:[#allocation2 + $0x170] sm:$0xff] %v5410
  %5491 = vst [vmem:[#allocation2 + $0x178] sm:$0xff] %v5411
  %5492 = vst [vmem:[#allocation2 + $0x180] sm:$0xff] %v5412
  %5493 = vst [vmem:[#allocation2 + $0x188] sm:$0xff] %v5413
  %5494 = vst [vmem:[#allocation2 + $0x190] sm:$0xff] %v5414
  %5495 = vst [vmem:[#allocation2 + $0x198] sm:$0xff] %v5415
  %5496 = vst [vmem:[#allocation2 + $0x1a0] sm:$0xff] %v5416
  %5497 = vst [vmem:[#allocation2 + $0x1a8] sm:$0xff] %v5417
  %5498 = vst [vmem:[#allocation2 + $0x1b0] sm:$0xff] %v5418
  %5499 = vst [vmem:[#allocation2 + $0x1b8] sm:$0xff] %v5419
  %5500 = vst [vmem:[#allocation2 + $0x1c0] sm:$0xff] %v5420
  %5501 = vst [vmem:[#allocation2 + $0x1c8] sm:$0xff] %v5421
  %5502 = vst [vmem:[#allocation2 + $0x1d0] sm:$0xff] %v5422
  %5503 = vst [vmem:[#allocation2 + $0x1d8] sm:$0xff] %v5423
  %5504 = vst [vmem:[#allocation2 + $0x1e0] sm:$0xff] %v5424
  %5505 = vst [vmem:[#allocation2 + $0x1e8] sm:$0xff] %v5425
  %5506 = vst [vmem:[#allocation2 + $0x1f0] sm:$0xff] %v5426
  %5507 = vst [vmem:[#allocation2 + $0x1f8] sm:$0xff] %v5427
  %5508 = vst [vmem:[#allocation2 + $0x200] sm:$0xff] %v5428
  %5509 = vst [vmem:[#allocation2 + $0x208] sm:$0xff] %v5429
  %5510 = vst [vmem:[#allocation2 + $0x210] sm:$0xff] %v5430
  %5511 = vst [vmem:[#allocation2 + $0x218] sm:$0xff] %v5431
  %5512 = vst [vmem:[#allocation2 + $0x220] sm:$0xff] %v5432
  %5513 = vst [vmem:[#allocation2 + $0x228] sm:$0xff] %v5433
  %5514 = vst [vmem:[#allocation2 + $0x230] sm:$0xff] %v5434
  %5515 = vst [vmem:[#allocation2 + $0x238] sm:$0xff] %v5435
  %5516 = vst [vmem:[#allocation2 + $0x240] sm:$0xff] %v5436
  %5517 = vst [vmem:[#allocation2 + $0x248] sm:$0xff] %v5437
  %5518 = vst [vmem:[#allocation2 + $0x250] sm:$0xff] %v5438
  %5519 = vst [vmem:[#allocation2 + $0x258] sm:$0xff] %v5439
  %5520 = vst [vmem:[#allocation2 + $0x260] sm:$0xff] %v5440
  %5521 = vst [vmem:[#allocation2 + $0x268] sm:$0xff] %v5441
  %5522 = vst [vmem:[#allocation2 + $0x270] sm:$0xff] %v5442
  %5523 = vst [vmem:[#allocation2 + $0x278] sm:$0xff] %v5443
  %5524 = vrot.lane.b32.xlu0 %v5201, 126
  %v5525 = vpop.permute.xlu0 %5524
  %5526 = vrot.lane.b32.xlu0 %v5202, 126
  %v5527 = vpop.permute.xlu0 %5526
  %5528 = vrot.lane.b32.xlu0 %v5203, 126
  %v5529 = vpop.permute.xlu0 %5528
  %5530 = vrot.lane.b32.xlu0 %v5204, 126
  %v5531 = vpop.permute.xlu0 %5530
  %5532 = vrot.lane.b32.xlu0 %v5205, 126
  %v5533 = vpop.permute.xlu0 %5532
  %5534 = vrot.lane.b32.xlu0 %v5206, 126
  %v5535 = vpop.permute.xlu0 %5534
  %5536 = vrot.lane.b32.xlu0 %v5207, 126
  %v5537 = vpop.permute.xlu0 %5536
  %5538 = vrot.lane.b32.xlu0 %v5208, 126
  %v5539 = vpop.permute.xlu0 %5538
  %5540 = vrot.lane.b32.xlu0 %v5209, 126
  %v5541 = vpop.permute.xlu0 %5540
  %5542 = vrot.lane.b32.xlu0 %v5210, 126
  %v5543 = vpop.permute.xlu0 %5542
  %5544 = vrot.lane.b32.xlu0 %v5211, 126
  %v5545 = vpop.permute.xlu0 %5544
  %5546 = vrot.lane.b32.xlu0 %v5212, 126
  %v5547 = vpop.permute.xlu0 %5546
  %5548 = vrot.lane.b32.xlu0 %v5213, 126
  %v5549 = vpop.permute.xlu0 %5548
  %5550 = vrot.lane.b32.xlu0 %v5214, 126
  %v5551 = vpop.permute.xlu0 %5550
  %5552 = vrot.lane.b32.xlu0 %v5215, 126
  %v5553 = vpop.permute.xlu0 %5552
  %5554 = vrot.lane.b32.xlu0 %v5216, 126
  %v5555 = vpop.permute.xlu0 %5554
  %5556 = vrot.lane.b32.xlu0 %v5217, 126
  %v5557 = vpop.permute.xlu0 %5556
  %5558 = vrot.lane.b32.xlu0 %v5218, 126
  %v5559 = vpop.permute.xlu0 %5558
  %5560 = vrot.lane.b32.xlu0 %v5219, 126
  %v5561 = vpop.permute.xlu0 %5560
  %5562 = vrot.lane.b32.xlu0 %v5220, 126
  %v5563 = vpop.permute.xlu0 %5562
  %5564 = vrot.lane.b32.xlu0 %v5221, 126
  %v5565 = vpop.permute.xlu0 %5564
  %5566 = vrot.lane.b32.xlu0 %v5222, 126
  %v5567 = vpop.permute.xlu0 %5566
  %5568 = vrot.lane.b32.xlu0 %v5223, 126
  %v5569 = vpop.permute.xlu0 %5568
  %5570 = vrot.lane.b32.xlu0 %v5224, 126
  %v5571 = vpop.permute.xlu0 %5570
  %5572 = vrot.lane.b32.xlu0 %v5225, 126
  %v5573 = vpop.permute.xlu0 %5572
  %5574 = vrot.lane.b32.xlu0 %v5226, 126
  %v5575 = vpop.permute.xlu0 %5574
  %5576 = vrot.lane.b32.xlu0 %v5227, 126
  %v5577 = vpop.permute.xlu0 %5576
  %5578 = vrot.lane.b32.xlu0 %v5228, 126
  %v5579 = vpop.permute.xlu0 %5578
  %5580 = vrot.lane.b32.xlu0 %v5229, 126
  %v5581 = vpop.permute.xlu0 %5580
  %5582 = vrot.lane.b32.xlu0 %v5230, 126
  %v5583 = vpop.permute.xlu0 %5582
  %5584 = vrot.lane.b32.xlu0 %v5231, 126
  %v5585 = vpop.permute.xlu0 %5584
  %5586 = vrot.lane.b32.xlu0 %v5232, 126
  %v5587 = vpop.permute.xlu0 %5586
  %5588 = vrot.lane.b32.xlu0 %v5233, 126
  %v5589 = vpop.permute.xlu0 %5588
  %5590 = vrot.lane.b32.xlu0 %v5234, 126
  %v5591 = vpop.permute.xlu0 %5590
  %5592 = vrot.lane.b32.xlu0 %v5235, 126
  %v5593 = vpop.permute.xlu0 %5592
  %5594 = vrot.lane.b32.xlu0 %v5236, 126
  %v5595 = vpop.permute.xlu0 %5594
  %5596 = vrot.lane.b32.xlu0 %v5237, 126
  %v5597 = vpop.permute.xlu0 %5596
  %5598 = vrot.lane.b32.xlu0 %v5238, 126
  %v5599 = vpop.permute.xlu0 %5598
  %5600 = vrot.lane.b32.xlu0 %v5239, 126
  %v5601 = vpop.permute.xlu0 %5600
  %5602 = vrot.lane.b32.xlu0 %v5240, 126
  %v5603 = vpop.permute.xlu0 %5602
  %5604 = vrot.lane.b32.xlu0 0.0, 126
  %v5605 = vpop.permute.xlu0 %5604
  %v5606 = vsel %vm947, %v5525, %v5527
  %v5607 = vsel %vm947, %v5527, %v5529
  %v5608 = vsel %vm947, %v5529, %v5531
  %v5609 = vsel %vm947, %v5531, %v5533
  %v5610 = vsel %vm947, %v5533, %v5535
  %v5611 = vsel %vm947, %v5535, %v5537
  %v5612 = vsel %vm947, %v5537, %v5539
  %v5613 = vsel %vm947, %v5539, %v5541
  %v5614 = vsel %vm947, %v5541, %v5543
  %v5615 = vsel %vm947, %v5543, %v5545
  %v5616 = vsel %vm947, %v5545, %v5547
  %v5617 = vsel %vm947, %v5547, %v5549
  %v5618 = vsel %vm947, %v5549, %v5551
  %v5619 = vsel %vm947, %v5551, %v5553
  %v5620 = vsel %vm947, %v5553, %v5555
  %v5621 = vsel %vm947, %v5555, %v5557
  %v5622 = vsel %vm947, %v5557, %v5559
  %v5623 = vsel %vm947, %v5559, %v5561
  %v5624 = vsel %vm947, %v5561, %v5563
  %v5625 = vsel %vm947, %v5563, %v5565
  %v5626 = vsel %vm947, %v5565, %v5567
  %v5627 = vsel %vm947, %v5567, %v5569
  %v5628 = vsel %vm947, %v5569, %v5571
  %v5629 = vsel %vm947, %v5571, %v5573
  %v5630 = vsel %vm947, %v5573, %v5575
  %v5631 = vsel %vm947, %v5575, %v5577
  %v5632 = vsel %vm947, %v5577, %v5579
  %v5633 = vsel %vm947, %v5579, %v5581
  %v5634 = vsel %vm947, %v5581, %v5583
  %v5635 = vsel %vm947, %v5583, %v5585
  %v5636 = vsel %vm947, %v5585, %v5587
  %v5637 = vsel %vm947, %v5587, %v5589
  %v5638 = vsel %vm947, %v5589, %v5591
  %v5639 = vsel %vm947, %v5591, %v5593
  %v5640 = vsel %vm947, %v5593, %v5595
  %v5641 = vsel %vm947, %v5595, %v5597
  %v5642 = vsel %vm947, %v5597, %v5599
  %v5643 = vsel %vm947, %v5599, %v5601
  %v5644 = vsel %vm947, %v5601, %v5603
  %v5645 = vsel %vm947, %v5603, %v5605
  %5686 = vst [vmem:[#allocation2 + $0x280] sm:$0xff] %v5606
  %5687 = vst [vmem:[#allocation2 + $0x288] sm:$0xff] %v5607
  %5688 = vst [vmem:[#allocation2 + $0x290] sm:$0xff] %v5608
  %5689 = vst [vmem:[#allocation2 + $0x298] sm:$0xff] %v5609
  %5690 = vst [vmem:[#allocation2 + $0x2a0] sm:$0xff] %v5610
  %5691 = vst [vmem:[#allocation2 + $0x2a8] sm:$0xff] %v5611
  %5692 = vst [vmem:[#allocation2 + $0x2b0] sm:$0xff] %v5612
  %5693 = vst [vmem:[#allocation2 + $0x2b8] sm:$0xff] %v5613
  %5694 = vst [vmem:[#allocation2 + $0x2c0] sm:$0xff] %v5614
  %5695 = vst [vmem:[#allocation2 + $0x2c8] sm:$0xff] %v5615
  %5696 = vst [vmem:[#allocation2 + $0x2d0] sm:$0xff] %v5616
  %5697 = vst [vmem:[#allocation2 + $0x2d8] sm:$0xff] %v5617
  %5698 = vst [vmem:[#allocation2 + $0x2e0] sm:$0xff] %v5618
  %5699 = vst [vmem:[#allocation2 + $0x2e8] sm:$0xff] %v5619
  %5700 = vst [vmem:[#allocation2 + $0x2f0] sm:$0xff] %v5620
  %5701 = vst [vmem:[#allocation2 + $0x2f8] sm:$0xff] %v5621
  %5702 = vst [vmem:[#allocation2 + $0x300] sm:$0xff] %v5622
  %5703 = vst [vmem:[#allocation2 + $0x308] sm:$0xff] %v5623
  %5704 = vst [vmem:[#allocation2 + $0x310] sm:$0xff] %v5624
  %5705 = vst [vmem:[#allocation2 + $0x318] sm:$0xff] %v5625
  %5706 = vst [vmem:[#allocation2 + $0x320] sm:$0xff] %v5626
  %5707 = vst [vmem:[#allocation2 + $0x328] sm:$0xff] %v5627
  %5708 = vst [vmem:[#allocation2 + $0x330] sm:$0xff] %v5628
  %5709 = vst [vmem:[#allocation2 + $0x338] sm:$0xff] %v5629
  %5710 = vst [vmem:[#allocation2 + $0x340] sm:$0xff] %v5630
  %5711 = vst [vmem:[#allocation2 + $0x348] sm:$0xff] %v5631
  %5712 = vst [vmem:[#allocation2 + $0x350] sm:$0xff] %v5632
  %5713 = vst [vmem:[#allocation2 + $0x358] sm:$0xff] %v5633
  %5714 = vst [vmem:[#allocation2 + $0x360] sm:$0xff] %v5634
  %5715 = vst [vmem:[#allocation2 + $0x368] sm:$0xff] %v5635
  %5716 = vst [vmem:[#allocation2 + $0x370] sm:$0xff] %v5636
  %5717 = vst [vmem:[#allocation2 + $0x378] sm:$0xff] %v5637
  %5718 = vst [vmem:[#allocation2 + $0x380] sm:$0xff] %v5638
  %5719 = vst [vmem:[#allocation2 + $0x388] sm:$0xff] %v5639
  %5720 = vst [vmem:[#allocation2 + $0x390] sm:$0xff] %v5640
  %5721 = vst [vmem:[#allocation2 + $0x398] sm:$0xff] %v5641
  %5722 = vst [vmem:[#allocation2 + $0x3a0] sm:$0xff] %v5642
  %5723 = vst [vmem:[#allocation2 + $0x3a8] sm:$0xff] %v5643
  %5724 = vst [vmem:[#allocation2 + $0x3b0] sm:$0xff] %v5644
  %5725 = vst [vmem:[#allocation2 + $0x3b8] sm:$0xff] %v5645
  %5726 = vrot.lane.b32.xlu0 %v5201, 125
  %v5727 = vpop.permute.xlu0 %5726
  %5728 = vrot.lane.b32.xlu0 %v5202, 125
  %v5729 = vpop.permute.xlu0 %5728
  %5730 = vrot.lane.b32.xlu0 %v5203, 125
  %v5731 = vpop.permute.xlu0 %5730
  %5732 = vrot.lane.b32.xlu0 %v5204, 125
  %v5733 = vpop.permute.xlu0 %5732
  %5734 = vrot.lane.b32.xlu0 %v5205, 125
  %v5735 = vpop.permute.xlu0 %5734
  %5736 = vrot.lane.b32.xlu0 %v5206, 125
  %v5737 = vpop.permute.xlu0 %5736
  %5738 = vrot.lane.b32.xlu0 %v5207, 125
  %v5739 = vpop.permute.xlu0 %5738
  %5740 = vrot.lane.b32.xlu0 %v5208, 125
  %v5741 = vpop.permute.xlu0 %5740
  %5742 = vrot.lane.b32.xlu0 %v5209, 125
  %v5743 = vpop.permute.xlu0 %5742
  %5744 = vrot.lane.b32.xlu0 %v5210, 125
  %v5745 = vpop.permute.xlu0 %5744
  %5746 = vrot.lane.b32.xlu0 %v5211, 125
  %v5747 = vpop.permute.xlu0 %5746
  %5748 = vrot.lane.b32.xlu0 %v5212, 125
  %v5749 = vpop.permute.xlu0 %5748
  %5750 = vrot.lane.b32.xlu0 %v5213, 125
  %v5751 = vpop.permute.xlu0 %5750
  %5752 = vrot.lane.b32.xlu0 %v5214, 125
  %v5753 = vpop.permute.xlu0 %5752
  %5754 = vrot.lane.b32.xlu0 %v5215, 125
  %v5755 = vpop.permute.xlu0 %5754
  %5756 = vrot.lane.b32.xlu0 %v5216, 125
  %v5757 = vpop.permute.xlu0 %5756
  %5758 = vrot.lane.b32.xlu0 %v5217, 125
  %v5759 = vpop.permute.xlu0 %5758
  %5760 = vrot.lane.b32.xlu0 %v5218, 125
  %v5761 = vpop.permute.xlu0 %5760
  %5762 = vrot.lane.b32.xlu0 %v5219, 125
  %v5763 = vpop.permute.xlu0 %5762
  %5764 = vrot.lane.b32.xlu0 %v5220, 125
  %v5765 = vpop.permute.xlu0 %5764
  %5766 = vrot.lane.b32.xlu0 %v5221, 125
  %v5767 = vpop.permute.xlu0 %5766
  %5768 = vrot.lane.b32.xlu0 %v5222, 125
  %v5769 = vpop.permute.xlu0 %5768
  %5770 = vrot.lane.b32.xlu0 %v5223, 125
  %v5771 = vpop.permute.xlu0 %5770
  %5772 = vrot.lane.b32.xlu0 %v5224, 125
  %v5773 = vpop.permute.xlu0 %5772
  %5774 = vrot.lane.b32.xlu0 %v5225, 125
  %v5775 = vpop.permute.xlu0 %5774
  %5776 = vrot.lane.b32.xlu0 %v5226, 125
  %v5777 = vpop.permute.xlu0 %5776
  %5778 = vrot.lane.b32.xlu0 %v5227, 125
  %v5779 = vpop.permute.xlu0 %5778
  %5780 = vrot.lane.b32.xlu0 %v5228, 125
  %v5781 = vpop.permute.xlu0 %5780
  %5782 = vrot.lane.b32.xlu0 %v5229, 125
  %v5783 = vpop.permute.xlu0 %5782
  %5784 = vrot.lane.b32.xlu0 %v5230, 125
  %v5785 = vpop.permute.xlu0 %5784
  %5786 = vrot.lane.b32.xlu0 %v5231, 125
  %v5787 = vpop.permute.xlu0 %5786
  %5788 = vrot.lane.b32.xlu0 %v5232, 125
  %v5789 = vpop.permute.xlu0 %5788
  %5790 = vrot.lane.b32.xlu0 %v5233, 125
  %v5791 = vpop.permute.xlu0 %5790
  %5792 = vrot.lane.b32.xlu0 %v5234, 125
  %v5793 = vpop.permute.xlu0 %5792
  %5794 = vrot.lane.b32.xlu0 %v5235, 125
  %v5795 = vpop.permute.xlu0 %5794
  %5796 = vrot.lane.b32.xlu0 %v5236, 125
  %v5797 = vpop.permute.xlu0 %5796
  %5798 = vrot.lane.b32.xlu0 %v5237, 125
  %v5799 = vpop.permute.xlu0 %5798
  %5800 = vrot.lane.b32.xlu0 %v5238, 125
  %v5801 = vpop.permute.xlu0 %5800
  %5802 = vrot.lane.b32.xlu0 %v5239, 125
  %v5803 = vpop.permute.xlu0 %5802
  %5804 = vrot.lane.b32.xlu0 %v5240, 125
  %v5805 = vpop.permute.xlu0 %5804
  %5806 = vrot.lane.b32.xlu0 0.0, 125
  %v5807 = vpop.permute.xlu0 %5806
  %v5808 = vsel %vm1236, %v5727, %v5729
  %v5809 = vsel %vm1236, %v5729, %v5731
  %v5810 = vsel %vm1236, %v5731, %v5733
  %v5811 = vsel %vm1236, %v5733, %v5735
  %v5812 = vsel %vm1236, %v5735, %v5737
  %v5813 = vsel %vm1236, %v5737, %v5739
  %v5814 = vsel %vm1236, %v5739, %v5741
  %v5815 = vsel %vm1236, %v5741, %v5743
  %v5816 = vsel %vm1236, %v5743, %v5745
  %v5817 = vsel %vm1236, %v5745, %v5747
  %v5818 = vsel %vm1236, %v5747, %v5749
  %v5819 = vsel %vm1236, %v5749, %v5751
  %v5820 = vsel %vm1236, %v5751, %v5753
  %v5821 = vsel %vm1236, %v5753, %v5755
  %v5822 = vsel %vm1236, %v5755, %v5757
  %v5823 = vsel %vm1236, %v5757, %v5759
  %v5824 = vsel %vm1236, %v5759, %v5761
  %v5825 = vsel %vm1236, %v5761, %v5763
  %v5826 = vsel %vm1236, %v5763, %v5765
  %v5827 = vsel %vm1236, %v5765, %v5767
  %v5828 = vsel %vm1236, %v5767, %v5769
  %v5829 = vsel %vm1236, %v5769, %v5771
  %v5830 = vsel %vm1236, %v5771, %v5773
  %v5831 = vsel %vm1236, %v5773, %v5775
  %v5832 = vsel %vm1236, %v5775, %v5777
  %v5833 = vsel %vm1236, %v5777, %v5779
  %v5834 = vsel %vm1236, %v5779, %v5781
  %v5835 = vsel %vm1236, %v5781, %v5783
  %v5836 = vsel %vm1236, %v5783, %v5785
  %v5837 = vsel %vm1236, %v5785, %v5787
  %v5838 = vsel %vm1236, %v5787, %v5789
  %v5839 = vsel %vm1236, %v5789, %v5791
  %v5840 = vsel %vm1236, %v5791, %v5793
  %v5841 = vsel %vm1236, %v5793, %v5795
  %v5842 = vsel %vm1236, %v5795, %v5797
  %v5843 = vsel %vm1236, %v5797, %v5799
  %v5844 = vsel %vm1236, %v5799, %v5801
  %v5845 = vsel %vm1236, %v5801, %v5803
  %v5846 = vsel %vm1236, %v5803, %v5805
  %v5847 = vsel %vm1236, %v5805, %v5807
  %5888 = vst [vmem:[#allocation2 + $0x3c0] sm:$0xff] %v5808
  %5889 = vst [vmem:[#allocation2 + $0x3c8] sm:$0xff] %v5809
  %5890 = vst [vmem:[#allocation2 + $0x3d0] sm:$0xff] %v5810
  %5891 = vst [vmem:[#allocation2 + $0x3d8] sm:$0xff] %v5811
  %5892 = vst [vmem:[#allocation2 + $0x3e0] sm:$0xff] %v5812
  %5893 = vst [vmem:[#allocation2 + $0x3e8] sm:$0xff] %v5813
  %5894 = vst [vmem:[#allocation2 + $0x3f0] sm:$0xff] %v5814
  %5895 = vst [vmem:[#allocation2 + $0x3f8] sm:$0xff] %v5815
  %5896 = vst [vmem:[#allocation2 + $0x400] sm:$0xff] %v5816
  %5897 = vst [vmem:[#allocation2 + $0x408] sm:$0xff] %v5817
  %5898 = vst [vmem:[#allocation2 + $0x410] sm:$0xff] %v5818
  %5899 = vst [vmem:[#allocation2 + $0x418] sm:$0xff] %v5819
  %5900 = vst [vmem:[#allocation2 + $0x420] sm:$0xff] %v5820
  %5901 = vst [vmem:[#allocation2 + $0x428] sm:$0xff] %v5821
  %5902 = vst [vmem:[#allocation2 + $0x430] sm:$0xff] %v5822
  %5903 = vst [vmem:[#allocation2 + $0x438] sm:$0xff] %v5823
  %5904 = vst [vmem:[#allocation2 + $0x440] sm:$0xff] %v5824
  %5905 = vst [vmem:[#allocation2 + $0x448] sm:$0xff] %v5825
  %5906 = vst [vmem:[#allocation2 + $0x450] sm:$0xff] %v5826
  %5907 = vst [vmem:[#allocation2 + $0x458] sm:$0xff] %v5827
  %5908 = vst [vmem:[#allocation2 + $0x460] sm:$0xff] %v5828
  %5909 = vst [vmem:[#allocation2 + $0x468] sm:$0xff] %v5829
  %5910 = vst [vmem:[#allocation2 + $0x470] sm:$0xff] %v5830
  %5911 = vst [vmem:[#allocation2 + $0x478] sm:$0xff] %v5831
  %5912 = vst [vmem:[#allocation2 + $0x480] sm:$0xff] %v5832
  %5913 = vst [vmem:[#allocation2 + $0x488] sm:$0xff] %v5833
  %5914 = vst [vmem:[#allocation2 + $0x490] sm:$0xff] %v5834
  %5915 = vst [vmem:[#allocation2 + $0x498] sm:$0xff] %v5835
  %5916 = vst [vmem:[#allocation2 + $0x4a0] sm:$0xff] %v5836
  %5917 = vst [vmem:[#allocation2 + $0x4a8] sm:$0xff] %v5837
  %5918 = vst [vmem:[#allocation2 + $0x4b0] sm:$0xff] %v5838
  %5919 = vst [vmem:[#allocation2 + $0x4b8] sm:$0xff] %v5839
  %5920 = vst [vmem:[#allocation2 + $0x4c0] sm:$0xff] %v5840
  %5921 = vst [vmem:[#allocation2 + $0x4c8] sm:$0xff] %v5841
  %5922 = vst [vmem:[#allocation2 + $0x4d0] sm:$0xff] %v5842
  %5923 = vst [vmem:[#allocation2 + $0x4d8] sm:$0xff] %v5843
  %5924 = vst [vmem:[#allocation2 + $0x4e0] sm:$0xff] %v5844
  %5925 = vst [vmem:[#allocation2 + $0x4e8] sm:$0xff] %v5845
  %5926 = vst [vmem:[#allocation2 + $0x4f0] sm:$0xff] %v5846
  %5927 = vst [vmem:[#allocation2 + $0x4f8] sm:$0xff] %v5847
  %5928 = vrot.lane.b32.xlu0 %v5201, 96
  %v5929 = vpop.permute.xlu0 %5928
  %5930 = vrot.lane.b32.xlu0 %v5202, 96
  %v5931 = vpop.permute.xlu0 %5930
  %5932 = vrot.lane.b32.xlu0 %v5203, 96
  %v5933 = vpop.permute.xlu0 %5932
  %5934 = vrot.lane.b32.xlu0 %v5204, 96
  %v5935 = vpop.permute.xlu0 %5934
  %5936 = vrot.lane.b32.xlu0 %v5205, 96
  %v5937 = vpop.permute.xlu0 %5936
  %5938 = vrot.lane.b32.xlu0 %v5206, 96
  %v5939 = vpop.permute.xlu0 %5938
  %5940 = vrot.lane.b32.xlu0 %v5207, 96
  %v5941 = vpop.permute.xlu0 %5940
  %5942 = vrot.lane.b32.xlu0 %v5208, 96
  %v5943 = vpop.permute.xlu0 %5942
  %5944 = vrot.lane.b32.xlu0 %v5209, 96
  %v5945 = vpop.permute.xlu0 %5944
  %5946 = vrot.lane.b32.xlu0 %v5210, 96
  %v5947 = vpop.permute.xlu0 %5946
  %5948 = vrot.lane.b32.xlu0 %v5211, 96
  %v5949 = vpop.permute.xlu0 %5948
  %5950 = vrot.lane.b32.xlu0 %v5212, 96
  %v5951 = vpop.permute.xlu0 %5950
  %5952 = vrot.lane.b32.xlu0 %v5213, 96
  %v5953 = vpop.permute.xlu0 %5952
  %5954 = vrot.lane.b32.xlu0 %v5214, 96
  %v5955 = vpop.permute.xlu0 %5954
  %5956 = vrot.lane.b32.xlu0 %v5215, 96
  %v5957 = vpop.permute.xlu0 %5956
  %5958 = vrot.lane.b32.xlu0 %v5216, 96
  %v5959 = vpop.permute.xlu0 %5958
  %5960 = vrot.lane.b32.xlu0 %v5217, 96
  %v5961 = vpop.permute.xlu0 %5960
  %5962 = vrot.lane.b32.xlu0 %v5218, 96
  %v5963 = vpop.permute.xlu0 %5962
  %5964 = vrot.lane.b32.xlu0 %v5219, 96
  %v5965 = vpop.permute.xlu0 %5964
  %5966 = vrot.lane.b32.xlu0 %v5220, 96
  %v5967 = vpop.permute.xlu0 %5966
  %5968 = vrot.lane.b32.xlu0 %v5221, 96
  %v5969 = vpop.permute.xlu0 %5968
  %5970 = vrot.lane.b32.xlu0 %v5222, 96
  %v5971 = vpop.permute.xlu0 %5970
  %5972 = vrot.lane.b32.xlu0 %v5223, 96
  %v5973 = vpop.permute.xlu0 %5972
  %5974 = vrot.lane.b32.xlu0 %v5224, 96
  %v5975 = vpop.permute.xlu0 %5974
  %5976 = vrot.lane.b32.xlu0 %v5225, 96
  %v5977 = vpop.permute.xlu0 %5976
  %5978 = vrot.lane.b32.xlu0 %v5226, 96
  %v5979 = vpop.permute.xlu0 %5978
  %5980 = vrot.lane.b32.xlu0 %v5227, 96
  %v5981 = vpop.permute.xlu0 %5980
  %5982 = vrot.lane.b32.xlu0 %v5228, 96
  %v5983 = vpop.permute.xlu0 %5982
  %5984 = vrot.lane.b32.xlu0 %v5229, 96
  %v5985 = vpop.permute.xlu0 %5984
  %5986 = vrot.lane.b32.xlu0 %v5230, 96
  %v5987 = vpop.permute.xlu0 %5986
  %5988 = vrot.lane.b32.xlu0 %v5231, 96
  %v5989 = vpop.permute.xlu0 %5988
  %5990 = vrot.lane.b32.xlu0 %v5232, 96
  %v5991 = vpop.permute.xlu0 %5990
  %5992 = vrot.lane.b32.xlu0 %v5233, 96
  %v5993 = vpop.permute.xlu0 %5992
  %5994 = vrot.lane.b32.xlu0 %v5234, 96
  %v5995 = vpop.permute.xlu0 %5994
  %5996 = vrot.lane.b32.xlu0 %v5235, 96
  %v5997 = vpop.permute.xlu0 %5996
  %5998 = vrot.lane.b32.xlu0 %v5236, 96
  %v5999 = vpop.permute.xlu0 %5998
  %6000 = vrot.lane.b32.xlu0 %v5237, 96
  %v6001 = vpop.permute.xlu0 %6000
  %6002 = vrot.lane.b32.xlu0 %v5238, 96
  %v6003 = vpop.permute.xlu0 %6002
  %6004 = vrot.lane.b32.xlu0 %v5239, 96
  %v6005 = vpop.permute.xlu0 %6004
  %6006 = vrot.lane.b32.xlu0 %v5240, 96
  %v6007 = vpop.permute.xlu0 %6006
  %6008 = vrot.lane.b32.xlu0 0.0, 96
  %v6009 = vpop.permute.xlu0 %6008
  %v6010 = vsel %vm1525, %v5929, %v5931
  %v6011 = vsel %vm1525, %v5931, %v5933
  %v6012 = vsel %vm1525, %v5933, %v5935
  %v6013 = vsel %vm1525, %v5935, %v5937
  %v6014 = vsel %vm1525, %v5937, %v5939
  %v6015 = vsel %vm1525, %v5939, %v5941
  %v6016 = vsel %vm1525, %v5941, %v5943
  %v6017 = vsel %vm1525, %v5943, %v5945
  %v6018 = vsel %vm1525, %v5945, %v5947
  %v6019 = vsel %vm1525, %v5947, %v5949
  %v6020 = vsel %vm1525, %v5949, %v5951
  %v6021 = vsel %vm1525, %v5951, %v5953
  %v6022 = vsel %vm1525, %v5953, %v5955
  %v6023 = vsel %vm1525, %v5955, %v5957
  %v6024 = vsel %vm1525, %v5957, %v5959
  %v6025 = vsel %vm1525, %v5959, %v5961
  %v6026 = vsel %vm1525, %v5961, %v5963
  %v6027 = vsel %vm1525, %v5963, %v5965
  %v6028 = vsel %vm1525, %v5965, %v5967
  %v6029 = vsel %vm1525, %v5967, %v5969
  %v6030 = vsel %vm1525, %v5969, %v5971
  %v6031 = vsel %vm1525, %v5971, %v5973
  %v6032 = vsel %vm1525, %v5973, %v5975
  %v6033 = vsel %vm1525, %v5975, %v5977
  %v6034 = vsel %vm1525, %v5977, %v5979
  %v6035 = vsel %vm1525, %v5979, %v5981
  %v6036 = vsel %vm1525, %v5981, %v5983
  %v6037 = vsel %vm1525, %v5983, %v5985
  %v6038 = vsel %vm1525, %v5985, %v5987
  %v6039 = vsel %vm1525, %v5987, %v5989
  %v6040 = vsel %vm1525, %v5989, %v5991
  %v6041 = vsel %vm1525, %v5991, %v5993
  %v6042 = vsel %vm1525, %v5993, %v5995
  %v6043 = vsel %vm1525, %v5995, %v5997
  %v6044 = vsel %vm1525, %v5997, %v5999
  %v6045 = vsel %vm1525, %v5999, %v6001
  %v6046 = vsel %vm1525, %v6001, %v6003
  %v6047 = vsel %vm1525, %v6003, %v6005
  %v6048 = vsel %vm1525, %v6005, %v6007
  %v6049 = vsel %vm1525, %v6007, %v6009
  %6090 = vst [vmem:[#allocation2 + $0x500] sm:$0xff] %v6010
  %6091 = vst [vmem:[#allocation2 + $0x508] sm:$0xff] %v6011
  %6092 = vst [vmem:[#allocation2 + $0x510] sm:$0xff] %v6012
  %6093 = vst [vmem:[#allocation2 + $0x518] sm:$0xff] %v6013
  %6094 = vst [vmem:[#allocation2 + $0x520] sm:$0xff] %v6014
  %6095 = vst [vmem:[#allocation2 + $0x528] sm:$0xff] %v6015
  %6096 = vst [vmem:[#allocation2 + $0x530] sm:$0xff] %v6016
  %6097 = vst [vmem:[#allocation2 + $0x538] sm:$0xff] %v6017
  %6098 = vst [vmem:[#allocation2 + $0x540] sm:$0xff] %v6018
  %6099 = vst [vmem:[#allocation2 + $0x548] sm:$0xff] %v6019
  %6100 = vst [vmem:[#allocation2 + $0x550] sm:$0xff] %v6020
  %6101 = vst [vmem:[#allocation2 + $0x558] sm:$0xff] %v6021
  %6102 = vst [vmem:[#allocation2 + $0x560] sm:$0xff] %v6022
  %6103 = vst [vmem:[#allocation2 + $0x568] sm:$0xff] %v6023
  %6104 = vst [vmem:[#allocation2 + $0x570] sm:$0xff] %v6024
  %6105 = vst [vmem:[#allocation2 + $0x578] sm:$0xff] %v6025
  %6106 = vst [vmem:[#allocation2 + $0x580] sm:$0xff] %v6026
  %6107 = vst [vmem:[#allocation2 + $0x588] sm:$0xff] %v6027
  %6108 = vst [vmem:[#allocation2 + $0x590] sm:$0xff] %v6028
  %6109 = vst [vmem:[#allocation2 + $0x598] sm:$0xff] %v6029
  %6110 = vst [vmem:[#allocation2 + $0x5a0] sm:$0xff] %v6030
  %6111 = vst [vmem:[#allocation2 + $0x5a8] sm:$0xff] %v6031
  %6112 = vst [vmem:[#allocation2 + $0x5b0] sm:$0xff] %v6032
  %6113 = vst [vmem:[#allocation2 + $0x5b8] sm:$0xff] %v6033
  %6114 = vst [vmem:[#allocation2 + $0x5c0] sm:$0xff] %v6034
  %6115 = vst [vmem:[#allocation2 + $0x5c8] sm:$0xff] %v6035
  %6116 = vst [vmem:[#allocation2 + $0x5d0] sm:$0xff] %v6036
  %6117 = vst [vmem:[#allocation2 + $0x5d8] sm:$0xff] %v6037
  %6118 = vst [vmem:[#allocation2 + $0x5e0] sm:$0xff] %v6038
  %6119 = vst [vmem:[#allocation2 + $0x5e8] sm:$0xff] %v6039
  %6120 = vst [vmem:[#allocation2 + $0x5f0] sm:$0xff] %v6040
  %6121 = vst [vmem:[#allocation2 + $0x5f8] sm:$0xff] %v6041
  %6122 = vst [vmem:[#allocation2 + $0x600] sm:$0xff] %v6042
  %6123 = vst [vmem:[#allocation2 + $0x608] sm:$0xff] %v6043
  %6124 = vst [vmem:[#allocation2 + $0x610] sm:$0xff] %v6044
  %6125 = vst [vmem:[#allocation2 + $0x618] sm:$0xff] %v6045
  %6126 = vst [vmem:[#allocation2 + $0x620] sm:$0xff] %v6046
  %6127 = vst [vmem:[#allocation2 + $0x628] sm:$0xff] %v6047
  %6128 = vst [vmem:[#allocation2 + $0x630] sm:$0xff] %v6048
  %6129 = vst [vmem:[#allocation2 + $0x638] sm:$0xff] %v6049
  %6130 = vrot.lane.b32.xlu0 %v5201, 95
  %v6131 = vpop.permute.xlu0 %6130
  %6132 = vrot.lane.b32.xlu0 %v5202, 95
  %v6133 = vpop.permute.xlu0 %6132
  %6134 = vrot.lane.b32.xlu0 %v5203, 95
  %v6135 = vpop.permute.xlu0 %6134
  %6136 = vrot.lane.b32.xlu0 %v5204, 95
  %v6137 = vpop.permute.xlu0 %6136
  %6138 = vrot.lane.b32.xlu0 %v5205, 95
  %v6139 = vpop.permute.xlu0 %6138
  %6140 = vrot.lane.b32.xlu0 %v5206, 95
  %v6141 = vpop.permute.xlu0 %6140
  %6142 = vrot.lane.b32.xlu0 %v5207, 95
  %v6143 = vpop.permute.xlu0 %6142
  %6144 = vrot.lane.b32.xlu0 %v5208, 95
  %v6145 = vpop.permute.xlu0 %6144
  %6146 = vrot.lane.b32.xlu0 %v5209, 95
  %v6147 = vpop.permute.xlu0 %6146
  %6148 = vrot.lane.b32.xlu0 %v5210, 95
  %v6149 = vpop.permute.xlu0 %6148
  %6150 = vrot.lane.b32.xlu0 %v5211, 95
  %v6151 = vpop.permute.xlu0 %6150
  %6152 = vrot.lane.b32.xlu0 %v5212, 95
  %v6153 = vpop.permute.xlu0 %6152
  %6154 = vrot.lane.b32.xlu0 %v5213, 95
  %v6155 = vpop.permute.xlu0 %6154
  %6156 = vrot.lane.b32.xlu0 %v5214, 95
  %v6157 = vpop.permute.xlu0 %6156
  %6158 = vrot.lane.b32.xlu0 %v5215, 95
  %v6159 = vpop.permute.xlu0 %6158
  %6160 = vrot.lane.b32.xlu0 %v5216, 95
  %v6161 = vpop.permute.xlu0 %6160
  %6162 = vrot.lane.b32.xlu0 %v5217, 95
  %v6163 = vpop.permute.xlu0 %6162
  %6164 = vrot.lane.b32.xlu0 %v5218, 95
  %v6165 = vpop.permute.xlu0 %6164
  %6166 = vrot.lane.b32.xlu0 %v5219, 95
  %v6167 = vpop.permute.xlu0 %6166
  %6168 = vrot.lane.b32.xlu0 %v5220, 95
  %v6169 = vpop.permute.xlu0 %6168
  %6170 = vrot.lane.b32.xlu0 %v5221, 95
  %v6171 = vpop.permute.xlu0 %6170
  %6172 = vrot.lane.b32.xlu0 %v5222, 95
  %v6173 = vpop.permute.xlu0 %6172
  %6174 = vrot.lane.b32.xlu0 %v5223, 95
  %v6175 = vpop.permute.xlu0 %6174
  %6176 = vrot.lane.b32.xlu0 %v5224, 95
  %v6177 = vpop.permute.xlu0 %6176
  %6178 = vrot.lane.b32.xlu0 %v5225, 95
  %v6179 = vpop.permute.xlu0 %6178
  %6180 = vrot.lane.b32.xlu0 %v5226, 95
  %v6181 = vpop.permute.xlu0 %6180
  %6182 = vrot.lane.b32.xlu0 %v5227, 95
  %v6183 = vpop.permute.xlu0 %6182
  %6184 = vrot.lane.b32.xlu0 %v5228, 95
  %v6185 = vpop.permute.xlu0 %6184
  %6186 = vrot.lane.b32.xlu0 %v5229, 95
  %v6187 = vpop.permute.xlu0 %6186
  %6188 = vrot.lane.b32.xlu0 %v5230, 95
  %v6189 = vpop.permute.xlu0 %6188
  %6190 = vrot.lane.b32.xlu0 %v5231, 95
  %v6191 = vpop.permute.xlu0 %6190
  %6192 = vrot.lane.b32.xlu0 %v5232, 95
  %v6193 = vpop.permute.xlu0 %6192
  %6194 = vrot.lane.b32.xlu0 %v5233, 95
  %v6195 = vpop.permute.xlu0 %6194
  %6196 = vrot.lane.b32.xlu0 %v5234, 95
  %v6197 = vpop.permute.xlu0 %6196
  %6198 = vrot.lane.b32.xlu0 %v5235, 95
  %v6199 = vpop.permute.xlu0 %6198
  %6200 = vrot.lane.b32.xlu0 %v5236, 95
  %v6201 = vpop.permute.xlu0 %6200
  %6202 = vrot.lane.b32.xlu0 %v5237, 95
  %v6203 = vpop.permute.xlu0 %6202
  %6204 = vrot.lane.b32.xlu0 %v5238, 95
  %v6205 = vpop.permute.xlu0 %6204
  %6206 = vrot.lane.b32.xlu0 %v5239, 95
  %v6207 = vpop.permute.xlu0 %6206
  %6208 = vrot.lane.b32.xlu0 %v5240, 95
  %v6209 = vpop.permute.xlu0 %6208
  %6210 = vrot.lane.b32.xlu0 0.0, 95
  %v6211 = vpop.permute.xlu0 %6210
  %v6212 = vsel %vm1814, %v6131, %v6133
  %v6213 = vsel %vm1814, %v6133, %v6135
  %v6214 = vsel %vm1814, %v6135, %v6137
  %v6215 = vsel %vm1814, %v6137, %v6139
  %v6216 = vsel %vm1814, %v6139, %v6141
  %v6217 = vsel %vm1814, %v6141, %v6143
  %v6218 = vsel %vm1814, %v6143, %v6145
  %v6219 = vsel %vm1814, %v6145, %v6147
  %v6220 = vsel %vm1814, %v6147, %v6149
  %v6221 = vsel %vm1814, %v6149, %v6151
  %v6222 = vsel %vm1814, %v6151, %v6153
  %v6223 = vsel %vm1814, %v6153, %v6155
  %v6224 = vsel %vm1814, %v6155, %v6157
  %v6225 = vsel %vm1814, %v6157, %v6159
  %v6226 = vsel %vm1814, %v6159, %v6161
  %v6227 = vsel %vm1814, %v6161, %v6163
  %v6228 = vsel %vm1814, %v6163, %v6165
  %v6229 = vsel %vm1814, %v6165, %v6167
  %v6230 = vsel %vm1814, %v6167, %v6169
  %v6231 = vsel %vm1814, %v6169, %v6171
  %v6232 = vsel %vm1814, %v6171, %v6173
  %v6233 = vsel %vm1814, %v6173, %v6175
  %v6234 = vsel %vm1814, %v6175, %v6177
  %v6235 = vsel %vm1814, %v6177, %v6179
  %v6236 = vsel %vm1814, %v6179, %v6181
  %v6237 = vsel %vm1814, %v6181, %v6183
  %v6238 = vsel %vm1814, %v6183, %v6185
  %v6239 = vsel %vm1814, %v6185, %v6187
  %v6240 = vsel %vm1814, %v6187, %v6189
  %v6241 = vsel %vm1814, %v6189, %v6191
  %v6242 = vsel %vm1814, %v6191, %v6193
  %v6243 = vsel %vm1814, %v6193, %v6195
  %v6244 = vsel %vm1814, %v6195, %v6197
  %v6245 = vsel %vm1814, %v6197, %v6199
  %v6246 = vsel %vm1814, %v6199, %v6201
  %v6247 = vsel %vm1814, %v6201, %v6203
  %v6248 = vsel %vm1814, %v6203, %v6205
  %v6249 = vsel %vm1814, %v6205, %v6207
  %v6250 = vsel %vm1814, %v6207, %v6209
  %v6251 = vsel %vm1814, %v6209, %v6211
  %6292 = vst [vmem:[#allocation2 + $0x640] sm:$0xff] %v6212
  %6293 = vst [vmem:[#allocation2 + $0x648] sm:$0xff] %v6213
  %6294 = vst [vmem:[#allocation2 + $0x650] sm:$0xff] %v6214
  %6295 = vst [vmem:[#allocation2 + $0x658] sm:$0xff] %v6215
  %6296 = vst [vmem:[#allocation2 + $0x660] sm:$0xff] %v6216
  %6297 = vst [vmem:[#allocation2 + $0x668] sm:$0xff] %v6217
  %6298 = vst [vmem:[#allocation2 + $0x670] sm:$0xff] %v6218
  %6299 = vst [vmem:[#allocation2 + $0x678] sm:$0xff] %v6219
  %6300 = vst [vmem:[#allocation2 + $0x680] sm:$0xff] %v6220
  %6301 = vst [vmem:[#allocation2 + $0x688] sm:$0xff] %v6221
  %6302 = vst [vmem:[#allocation2 + $0x690] sm:$0xff] %v6222
  %6303 = vst [vmem:[#allocation2 + $0x698] sm:$0xff] %v6223
  %6304 = vst [vmem:[#allocation2 + $0x6a0] sm:$0xff] %v6224
  %6305 = vst [vmem:[#allocation2 + $0x6a8] sm:$0xff] %v6225
  %6306 = vst [vmem:[#allocation2 + $0x6b0] sm:$0xff] %v6226
  %6307 = vst [vmem:[#allocation2 + $0x6b8] sm:$0xff] %v6227
  %6308 = vst [vmem:[#allocation2 + $0x6c0] sm:$0xff] %v6228
  %6309 = vst [vmem:[#allocation2 + $0x6c8] sm:$0xff] %v6229
  %6310 = vst [vmem:[#allocation2 + $0x6d0] sm:$0xff] %v6230
  %6311 = vst [vmem:[#allocation2 + $0x6d8] sm:$0xff] %v6231
  %6312 = vst [vmem:[#allocation2 + $0x6e0] sm:$0xff] %v6232
  %6313 = vst [vmem:[#allocation2 + $0x6e8] sm:$0xff] %v6233
  %6314 = vst [vmem:[#allocation2 + $0x6f0] sm:$0xff] %v6234
  %6315 = vst [vmem:[#allocation2 + $0x6f8] sm:$0xff] %v6235
  %6316 = vst [vmem:[#allocation2 + $0x700] sm:$0xff] %v6236
  %6317 = vst [vmem:[#allocation2 + $0x708] sm:$0xff] %v6237
  %6318 = vst [vmem:[#allocation2 + $0x710] sm:$0xff] %v6238
  %6319 = vst [vmem:[#allocation2 + $0x718] sm:$0xff] %v6239
  %6320 = vst [vmem:[#allocation2 + $0x720] sm:$0xff] %v6240
  %6321 = vst [vmem:[#allocation2 + $0x728] sm:$0xff] %v6241
  %6322 = vst [vmem:[#allocation2 + $0x730] sm:$0xff] %v6242
  %6323 = vst [vmem:[#allocation2 + $0x738] sm:$0xff] %v6243
  %6324 = vst [vmem:[#allocation2 + $0x740] sm:$0xff] %v6244
  %6325 = vst [vmem:[#allocation2 + $0x748] sm:$0xff] %v6245
  %6326 = vst [vmem:[#allocation2 + $0x750] sm:$0xff] %v6246
  %6327 = vst [vmem:[#allocation2 + $0x758] sm:$0xff] %v6247
  %6328 = vst [vmem:[#allocation2 + $0x760] sm:$0xff] %v6248
  %6329 = vst [vmem:[#allocation2 + $0x768] sm:$0xff] %v6249
  %6330 = vst [vmem:[#allocation2 + $0x770] sm:$0xff] %v6250
  %6331 = vst [vmem:[#allocation2 + $0x778] sm:$0xff] %v6251
  %6332 = vrot.lane.b32.xlu0 %v5201, 94
  %v6333 = vpop.permute.xlu0 %6332
  %6334 = vrot.lane.b32.xlu0 %v5202, 94
  %v6335 = vpop.permute.xlu0 %6334
  %6336 = vrot.lane.b32.xlu0 %v5203, 94
  %v6337 = vpop.permute.xlu0 %6336
  %6338 = vrot.lane.b32.xlu0 %v5204, 94
  %v6339 = vpop.permute.xlu0 %6338
  %6340 = vrot.lane.b32.xlu0 %v5205, 94
  %v6341 = vpop.permute.xlu0 %6340
  %6342 = vrot.lane.b32.xlu0 %v5206, 94
  %v6343 = vpop.permute.xlu0 %6342
  %6344 = vrot.lane.b32.xlu0 %v5207, 94
  %v6345 = vpop.permute.xlu0 %6344
  %6346 = vrot.lane.b32.xlu0 %v5208, 94
  %v6347 = vpop.permute.xlu0 %6346
  %6348 = vrot.lane.b32.xlu0 %v5209, 94
  %v6349 = vpop.permute.xlu0 %6348
  %6350 = vrot.lane.b32.xlu0 %v5210, 94
  %v6351 = vpop.permute.xlu0 %6350
  %6352 = vrot.lane.b32.xlu0 %v5211, 94
  %v6353 = vpop.permute.xlu0 %6352
  %6354 = vrot.lane.b32.xlu0 %v5212, 94
  %v6355 = vpop.permute.xlu0 %6354
  %6356 = vrot.lane.b32.xlu0 %v5213, 94
  %v6357 = vpop.permute.xlu0 %6356
  %6358 = vrot.lane.b32.xlu0 %v5214, 94
  %v6359 = vpop.permute.xlu0 %6358
  %6360 = vrot.lane.b32.xlu0 %v5215, 94
  %v6361 = vpop.permute.xlu0 %6360
  %6362 = vrot.lane.b32.xlu0 %v5216, 94
  %v6363 = vpop.permute.xlu0 %6362
  %6364 = vrot.lane.b32.xlu0 %v5217, 94
  %v6365 = vpop.permute.xlu0 %6364
  %6366 = vrot.lane.b32.xlu0 %v5218, 94
  %v6367 = vpop.permute.xlu0 %6366
  %6368 = vrot.lane.b32.xlu0 %v5219, 94
  %v6369 = vpop.permute.xlu0 %6368
  %6370 = vrot.lane.b32.xlu0 %v5220, 94
  %v6371 = vpop.permute.xlu0 %6370
  %6372 = vrot.lane.b32.xlu0 %v5221, 94
  %v6373 = vpop.permute.xlu0 %6372
  %6374 = vrot.lane.b32.xlu0 %v5222, 94
  %v6375 = vpop.permute.xlu0 %6374
  %6376 = vrot.lane.b32.xlu0 %v5223, 94
  %v6377 = vpop.permute.xlu0 %6376
  %6378 = vrot.lane.b32.xlu0 %v5224, 94
  %v6379 = vpop.permute.xlu0 %6378
  %6380 = vrot.lane.b32.xlu0 %v5225, 94
  %v6381 = vpop.permute.xlu0 %6380
  %6382 = vrot.lane.b32.xlu0 %v5226, 94
  %v6383 = vpop.permute.xlu0 %6382
  %6384 = vrot.lane.b32.xlu0 %v5227, 94
  %v6385 = vpop.permute.xlu0 %6384
  %6386 = vrot.lane.b32.xlu0 %v5228, 94
  %v6387 = vpop.permute.xlu0 %6386
  %6388 = vrot.lane.b32.xlu0 %v5229, 94
  %v6389 = vpop.permute.xlu0 %6388
  %6390 = vrot.lane.b32.xlu0 %v5230, 94
  %v6391 = vpop.permute.xlu0 %6390
  %6392 = vrot.lane.b32.xlu0 %v5231, 94
  %v6393 = vpop.permute.xlu0 %6392
  %6394 = vrot.lane.b32.xlu0 %v5232, 94
  %v6395 = vpop.permute.xlu0 %6394
  %6396 = vrot.lane.b32.xlu0 %v5233, 94
  %v6397 = vpop.permute.xlu0 %6396
  %6398 = vrot.lane.b32.xlu0 %v5234, 94
  %v6399 = vpop.permute.xlu0 %6398
  %6400 = vrot.lane.b32.xlu0 %v5235, 94
  %v6401 = vpop.permute.xlu0 %6400
  %6402 = vrot.lane.b32.xlu0 %v5236, 94
  %v6403 = vpop.permute.xlu0 %6402
  %6404 = vrot.lane.b32.xlu0 %v5237, 94
  %v6405 = vpop.permute.xlu0 %6404
  %6406 = vrot.lane.b32.xlu0 %v5238, 94
  %v6407 = vpop.permute.xlu0 %6406
  %6408 = vrot.lane.b32.xlu0 %v5239, 94
  %v6409 = vpop.permute.xlu0 %6408
  %6410 = vrot.lane.b32.xlu0 %v5240, 94
  %v6411 = vpop.permute.xlu0 %6410
  %6412 = vrot.lane.b32.xlu0 0.0, 94
  %v6413 = vpop.permute.xlu0 %6412
  %v6414 = vsel %vm2103, %v6333, %v6335
  %v6415 = vsel %vm2103, %v6335, %v6337
  %v6416 = vsel %vm2103, %v6337, %v6339
  %v6417 = vsel %vm2103, %v6339, %v6341
  %v6418 = vsel %vm2103, %v6341, %v6343
  %v6419 = vsel %vm2103, %v6343, %v6345
  %v6420 = vsel %vm2103, %v6345, %v6347
  %v6421 = vsel %vm2103, %v6347, %v6349
  %v6422 = vsel %vm2103, %v6349, %v6351
  %v6423 = vsel %vm2103, %v6351, %v6353
  %v6424 = vsel %vm2103, %v6353, %v6355
  %v6425 = vsel %vm2103, %v6355, %v6357
  %v6426 = vsel %vm2103, %v6357, %v6359
  %v6427 = vsel %vm2103, %v6359, %v6361
  %v6428 = vsel %vm2103, %v6361, %v6363
  %v6429 = vsel %vm2103, %v6363, %v6365
  %v6430 = vsel %vm2103, %v6365, %v6367
  %v6431 = vsel %vm2103, %v6367, %v6369
  %v6432 = vsel %vm2103, %v6369, %v6371
  %v6433 = vsel %vm2103, %v6371, %v6373
  %v6434 = vsel %vm2103, %v6373, %v6375
  %v6435 = vsel %vm2103, %v6375, %v6377
  %v6436 = vsel %vm2103, %v6377, %v6379
  %v6437 = vsel %vm2103, %v6379, %v6381
  %v6438 = vsel %vm2103, %v6381, %v6383
  %v6439 = vsel %vm2103, %v6383, %v6385
  %v6440 = vsel %vm2103, %v6385, %v6387
  %v6441 = vsel %vm2103, %v6387, %v6389
  %v6442 = vsel %vm2103, %v6389, %v6391
  %v6443 = vsel %vm2103, %v6391, %v6393
  %v6444 = vsel %vm2103, %v6393, %v6395
  %v6445 = vsel %vm2103, %v6395, %v6397
  %v6446 = vsel %vm2103, %v6397, %v6399
  %v6447 = vsel %vm2103, %v6399, %v6401
  %v6448 = vsel %vm2103, %v6401, %v6403
  %v6449 = vsel %vm2103, %v6403, %v6405
  %v6450 = vsel %vm2103, %v6405, %v6407
  %v6451 = vsel %vm2103, %v6407, %v6409
  %v6452 = vsel %vm2103, %v6409, %v6411
  %v6453 = vsel %vm2103, %v6411, %v6413
  %6494 = vst [vmem:[#allocation2 + $0x780] sm:$0xff] %v6414
  %6495 = vst [vmem:[#allocation2 + $0x788] sm:$0xff] %v6415
  %6496 = vst [vmem:[#allocation2 + $0x790] sm:$0xff] %v6416
  %6497 = vst [vmem:[#allocation2 + $0x798] sm:$0xff] %v6417
  %6498 = vst [vmem:[#allocation2 + $0x7a0] sm:$0xff] %v6418
  %6499 = vst [vmem:[#allocation2 + $0x7a8] sm:$0xff] %v6419
  %6500 = vst [vmem:[#allocation2 + $0x7b0] sm:$0xff] %v6420
  %6501 = vst [vmem:[#allocation2 + $0x7b8] sm:$0xff] %v6421
  %6502 = vst [vmem:[#allocation2 + $0x7c0] sm:$0xff] %v6422
  %6503 = vst [vmem:[#allocation2 + $0x7c8] sm:$0xff] %v6423
  %6504 = vst [vmem:[#allocation2 + $0x7d0] sm:$0xff] %v6424
  %6505 = vst [vmem:[#allocation2 + $0x7d8] sm:$0xff] %v6425
  %6506 = vst [vmem:[#allocation2 + $0x7e0] sm:$0xff] %v6426
  %6507 = vst [vmem:[#allocation2 + $0x7e8] sm:$0xff] %v6427
  %6508 = vst [vmem:[#allocation2 + $0x7f0] sm:$0xff] %v6428
  %6509 = vst [vmem:[#allocation2 + $0x7f8] sm:$0xff] %v6429
  %6510 = vst [vmem:[#allocation2 + $0x800] sm:$0xff] %v6430
  %6511 = vst [vmem:[#allocation2 + $0x808] sm:$0xff] %v6431
  %6512 = vst [vmem:[#allocation2 + $0x810] sm:$0xff] %v6432
  %6513 = vst [vmem:[#allocation2 + $0x818] sm:$0xff] %v6433
  %6514 = vst [vmem:[#allocation2 + $0x820] sm:$0xff] %v6434
  %6515 = vst [vmem:[#allocation2 + $0x828] sm:$0xff] %v6435
  %6516 = vst [vmem:[#allocation2 + $0x830] sm:$0xff] %v6436
  %6517 = vst [vmem:[#allocation2 + $0x838] sm:$0xff] %v6437
  %6518 = vst [vmem:[#allocation2 + $0x840] sm:$0xff] %v6438
  %6519 = vst [vmem:[#allocation2 + $0x848] sm:$0xff] %v6439
  %6520 = vst [vmem:[#allocation2 + $0x850] sm:$0xff] %v6440
  %6521 = vst [vmem:[#allocation2 + $0x858] sm:$0xff] %v6441
  %6522 = vst [vmem:[#allocation2 + $0x860] sm:$0xff] %v6442
  %6523 = vst [vmem:[#allocation2 + $0x868] sm:$0xff] %v6443
  %6524 = vst [vmem:[#allocation2 + $0x870] sm:$0xff] %v6444
  %6525 = vst [vmem:[#allocation2 + $0x878] sm:$0xff] %v6445
  %6526 = vst [vmem:[#allocation2 + $0x880] sm:$0xff] %v6446
  %6527 = vst [vmem:[#allocation2 + $0x888] sm:$0xff] %v6447
  %6528 = vst [vmem:[#allocation2 + $0x890] sm:$0xff] %v6448
  %6529 = vst [vmem:[#allocation2 + $0x898] sm:$0xff] %v6449
  %6530 = vst [vmem:[#allocation2 + $0x8a0] sm:$0xff] %v6450
  %6531 = vst [vmem:[#allocation2 + $0x8a8] sm:$0xff] %v6451
  %6532 = vst [vmem:[#allocation2 + $0x8b0] sm:$0xff] %v6452
  %6533 = vst [vmem:[#allocation2 + $0x8b8] sm:$0xff] %v6453
  %6534 = vrot.lane.b32.xlu0 %v5201, 93
  %v6535 = vpop.permute.xlu0 %6534
  %6536 = vrot.lane.b32.xlu0 %v5202, 93
  %v6537 = vpop.permute.xlu0 %6536
  %6538 = vrot.lane.b32.xlu0 %v5203, 93
  %v6539 = vpop.permute.xlu0 %6538
  %6540 = vrot.lane.b32.xlu0 %v5204, 93
  %v6541 = vpop.permute.xlu0 %6540
  %6542 = vrot.lane.b32.xlu0 %v5205, 93
  %v6543 = vpop.permute.xlu0 %6542
  %6544 = vrot.lane.b32.xlu0 %v5206, 93
  %v6545 = vpop.permute.xlu0 %6544
  %6546 = vrot.lane.b32.xlu0 %v5207, 93
  %v6547 = vpop.permute.xlu0 %6546
  %6548 = vrot.lane.b32.xlu0 %v5208, 93
  %v6549 = vpop.permute.xlu0 %6548
  %6550 = vrot.lane.b32.xlu0 %v5209, 93
  %v6551 = vpop.permute.xlu0 %6550
  %6552 = vrot.lane.b32.xlu0 %v5210, 93
  %v6553 = vpop.permute.xlu0 %6552
  %6554 = vrot.lane.b32.xlu0 %v5211, 93
  %v6555 = vpop.permute.xlu0 %6554
  %6556 = vrot.lane.b32.xlu0 %v5212, 93
  %v6557 = vpop.permute.xlu0 %6556
  %6558 = vrot.lane.b32.xlu0 %v5213, 93
  %v6559 = vpop.permute.xlu0 %6558
  %6560 = vrot.lane.b32.xlu0 %v5214, 93
  %v6561 = vpop.permute.xlu0 %6560
  %6562 = vrot.lane.b32.xlu0 %v5215, 93
  %v6563 = vpop.permute.xlu0 %6562
  %6564 = vrot.lane.b32.xlu0 %v5216, 93
  %v6565 = vpop.permute.xlu0 %6564
  %6566 = vrot.lane.b32.xlu0 %v5217, 93
  %v6567 = vpop.permute.xlu0 %6566
  %6568 = vrot.lane.b32.xlu0 %v5218, 93
  %v6569 = vpop.permute.xlu0 %6568
  %6570 = vrot.lane.b32.xlu0 %v5219, 93
  %v6571 = vpop.permute.xlu0 %6570
  %6572 = vrot.lane.b32.xlu0 %v5220, 93
  %v6573 = vpop.permute.xlu0 %6572
  %6574 = vrot.lane.b32.xlu0 %v5221, 93
  %v6575 = vpop.permute.xlu0 %6574
  %6576 = vrot.lane.b32.xlu0 %v5222, 93
  %v6577 = vpop.permute.xlu0 %6576
  %6578 = vrot.lane.b32.xlu0 %v5223, 93
  %v6579 = vpop.permute.xlu0 %6578
  %6580 = vrot.lane.b32.xlu0 %v5224, 93
  %v6581 = vpop.permute.xlu0 %6580
  %6582 = vrot.lane.b32.xlu0 %v5225, 93
  %v6583 = vpop.permute.xlu0 %6582
  %6584 = vrot.lane.b32.xlu0 %v5226, 93
  %v6585 = vpop.permute.xlu0 %6584
  %6586 = vrot.lane.b32.xlu0 %v5227, 93
  %v6587 = vpop.permute.xlu0 %6586
  %6588 = vrot.lane.b32.xlu0 %v5228, 93
  %v6589 = vpop.permute.xlu0 %6588
  %6590 = vrot.lane.b32.xlu0 %v5229, 93
  %v6591 = vpop.permute.xlu0 %6590
  %6592 = vrot.lane.b32.xlu0 %v5230, 93
  %v6593 = vpop.permute.xlu0 %6592
  %6594 = vrot.lane.b32.xlu0 %v5231, 93
  %v6595 = vpop.permute.xlu0 %6594
  %6596 = vrot.lane.b32.xlu0 %v5232, 93
  %v6597 = vpop.permute.xlu0 %6596
  %6598 = vrot.lane.b32.xlu0 %v5233, 93
  %v6599 = vpop.permute.xlu0 %6598
  %6600 = vrot.lane.b32.xlu0 %v5234, 93
  %v6601 = vpop.permute.xlu0 %6600
  %6602 = vrot.lane.b32.xlu0 %v5235, 93
  %v6603 = vpop.permute.xlu0 %6602
  %6604 = vrot.lane.b32.xlu0 %v5236, 93
  %v6605 = vpop.permute.xlu0 %6604
  %6606 = vrot.lane.b32.xlu0 %v5237, 93
  %v6607 = vpop.permute.xlu0 %6606
  %6608 = vrot.lane.b32.xlu0 %v5238, 93
  %v6609 = vpop.permute.xlu0 %6608
  %6610 = vrot.lane.b32.xlu0 %v5239, 93
  %v6611 = vpop.permute.xlu0 %6610
  %6612 = vrot.lane.b32.xlu0 %v5240, 93
  %v6613 = vpop.permute.xlu0 %6612
  %6614 = vrot.lane.b32.xlu0 0.0, 93
  %v6615 = vpop.permute.xlu0 %6614
  %v6616 = vsel %vm2392, %v6535, %v6537
  %v6617 = vsel %vm2392, %v6537, %v6539
  %v6618 = vsel %vm2392, %v6539, %v6541
  %v6619 = vsel %vm2392, %v6541, %v6543
  %v6620 = vsel %vm2392, %v6543, %v6545
  %v6621 = vsel %vm2392, %v6545, %v6547
  %v6622 = vsel %vm2392, %v6547, %v6549
  %v6623 = vsel %vm2392, %v6549, %v6551
  %v6624 = vsel %vm2392, %v6551, %v6553
  %v6625 = vsel %vm2392, %v6553, %v6555
  %v6626 = vsel %vm2392, %v6555, %v6557
  %v6627 = vsel %vm2392, %v6557, %v6559
  %v6628 = vsel %vm2392, %v6559, %v6561
  %v6629 = vsel %vm2392, %v6561, %v6563
  %v6630 = vsel %vm2392, %v6563, %v6565
  %v6631 = vsel %vm2392, %v6565, %v6567
  %v6632 = vsel %vm2392, %v6567, %v6569
  %v6633 = vsel %vm2392, %v6569, %v6571
  %v6634 = vsel %vm2392, %v6571, %v6573
  %v6635 = vsel %vm2392, %v6573, %v6575
  %v6636 = vsel %vm2392, %v6575, %v6577
  %v6637 = vsel %vm2392, %v6577, %v6579
  %v6638 = vsel %vm2392, %v6579, %v6581
  %v6639 = vsel %vm2392, %v6581, %v6583
  %v6640 = vsel %vm2392, %v6583, %v6585
  %v6641 = vsel %vm2392, %v6585, %v6587
  %v6642 = vsel %vm2392, %v6587, %v6589
  %v6643 = vsel %vm2392, %v6589, %v6591
  %v6644 = vsel %vm2392, %v6591, %v6593
  %v6645 = vsel %vm2392, %v6593, %v6595
  %v6646 = vsel %vm2392, %v6595, %v6597
  %v6647 = vsel %vm2392, %v6597, %v6599
  %v6648 = vsel %vm2392, %v6599, %v6601
  %v6649 = vsel %vm2392, %v6601, %v6603
  %v6650 = vsel %vm2392, %v6603, %v6605
  %v6651 = vsel %vm2392, %v6605, %v6607
  %v6652 = vsel %vm2392, %v6607, %v6609
  %v6653 = vsel %vm2392, %v6609, %v6611
  %v6654 = vsel %vm2392, %v6611, %v6613
  %v6655 = vsel %vm2392, %v6613, %v6615
  %6696 = vst [vmem:[#allocation2 + $0x8c0] sm:$0xff] %v6616
  %6697 = vst [vmem:[#allocation2 + $0x8c8] sm:$0xff] %v6617
  %6698 = vst [vmem:[#allocation2 + $0x8d0] sm:$0xff] %v6618
  %6699 = vst [vmem:[#allocation2 + $0x8d8] sm:$0xff] %v6619
  %6700 = vst [vmem:[#allocation2 + $0x8e0] sm:$0xff] %v6620
  %6701 = vst [vmem:[#allocation2 + $0x8e8] sm:$0xff] %v6621
  %6702 = vst [vmem:[#allocation2 + $0x8f0] sm:$0xff] %v6622
  %6703 = vst [vmem:[#allocation2 + $0x8f8] sm:$0xff] %v6623
  %6704 = vst [vmem:[#allocation2 + $0x900] sm:$0xff] %v6624
  %6705 = vst [vmem:[#allocation2 + $0x908] sm:$0xff] %v6625
  %6706 = vst [vmem:[#allocation2 + $0x910] sm:$0xff] %v6626
  %6707 = vst [vmem:[#allocation2 + $0x918] sm:$0xff] %v6627
  %6708 = vst [vmem:[#allocation2 + $0x920] sm:$0xff] %v6628
  %6709 = vst [vmem:[#allocation2 + $0x928] sm:$0xff] %v6629
  %6710 = vst [vmem:[#allocation2 + $0x930] sm:$0xff] %v6630
  %6711 = vst [vmem:[#allocation2 + $0x938] sm:$0xff] %v6631
  %6712 = vst [vmem:[#allocation2 + $0x940] sm:$0xff] %v6632
  %6713 = vst [vmem:[#allocation2 + $0x948] sm:$0xff] %v6633
  %6714 = vst [vmem:[#allocation2 + $0x950] sm:$0xff] %v6634
  %6715 = vst [vmem:[#allocation2 + $0x958] sm:$0xff] %v6635
  %6716 = vst [vmem:[#allocation2 + $0x960] sm:$0xff] %v6636
  %6717 = vst [vmem:[#allocation2 + $0x968] sm:$0xff] %v6637
  %6718 = vst [vmem:[#allocation2 + $0x970] sm:$0xff] %v6638
  %6719 = vst [vmem:[#allocation2 + $0x978] sm:$0xff] %v6639
  %6720 = vst [vmem:[#allocation2 + $0x980] sm:$0xff] %v6640
  %6721 = vst [vmem:[#allocation2 + $0x988] sm:$0xff] %v6641
  %6722 = vst [vmem:[#allocation2 + $0x990] sm:$0xff] %v6642
  %6723 = vst [vmem:[#allocation2 + $0x998] sm:$0xff] %v6643
  %6724 = vst [vmem:[#allocation2 + $0x9a0] sm:$0xff] %v6644
  %6725 = vst [vmem:[#allocation2 + $0x9a8] sm:$0xff] %v6645
  %6726 = vst [vmem:[#allocation2 + $0x9b0] sm:$0xff] %v6646
  %6727 = vst [vmem:[#allocation2 + $0x9b8] sm:$0xff] %v6647
  %6728 = vst [vmem:[#allocation2 + $0x9c0] sm:$0xff] %v6648
  %6729 = vst [vmem:[#allocation2 + $0x9c8] sm:$0xff] %v6649
  %6730 = vst [vmem:[#allocation2 + $0x9d0] sm:$0xff] %v6650
  %6731 = vst [vmem:[#allocation2 + $0x9d8] sm:$0xff] %v6651
  %6732 = vst [vmem:[#allocation2 + $0x9e0] sm:$0xff] %v6652
  %6733 = vst [vmem:[#allocation2 + $0x9e8] sm:$0xff] %v6653
  %6734 = vst [vmem:[#allocation2 + $0x9f0] sm:$0xff] %v6654
  %6735 = vst [vmem:[#allocation2 + $0x9f8] sm:$0xff] %v6655
  %6736 = vrot.lane.b32.xlu0 %v5201, 64
  %v6737 = vpop.permute.xlu0 %6736
  %6738 = vrot.lane.b32.xlu0 %v5202, 64
  %v6739 = vpop.permute.xlu0 %6738
  %6740 = vrot.lane.b32.xlu0 %v5203, 64
  %v6741 = vpop.permute.xlu0 %6740
  %6742 = vrot.lane.b32.xlu0 %v5204, 64
  %v6743 = vpop.permute.xlu0 %6742
  %6744 = vrot.lane.b32.xlu0 %v5205, 64
  %v6745 = vpop.permute.xlu0 %6744
  %6746 = vrot.lane.b32.xlu0 %v5206, 64
  %v6747 = vpop.permute.xlu0 %6746
  %6748 = vrot.lane.b32.xlu0 %v5207, 64
  %v6749 = vpop.permute.xlu0 %6748
  %6750 = vrot.lane.b32.xlu0 %v5208, 64
  %v6751 = vpop.permute.xlu0 %6750
  %6752 = vrot.lane.b32.xlu0 %v5209, 64
  %v6753 = vpop.permute.xlu0 %6752
  %6754 = vrot.lane.b32.xlu0 %v5210, 64
  %v6755 = vpop.permute.xlu0 %6754
  %6756 = vrot.lane.b32.xlu0 %v5211, 64
  %v6757 = vpop.permute.xlu0 %6756
  %6758 = vrot.lane.b32.xlu0 %v5212, 64
  %v6759 = vpop.permute.xlu0 %6758
  %6760 = vrot.lane.b32.xlu0 %v5213, 64
  %v6761 = vpop.permute.xlu0 %6760
  %6762 = vrot.lane.b32.xlu0 %v5214, 64
  %v6763 = vpop.permute.xlu0 %6762
  %6764 = vrot.lane.b32.xlu0 %v5215, 64
  %v6765 = vpop.permute.xlu0 %6764
  %6766 = vrot.lane.b32.xlu0 %v5216, 64
  %v6767 = vpop.permute.xlu0 %6766
  %6768 = vrot.lane.b32.xlu0 %v5217, 64
  %v6769 = vpop.permute.xlu0 %6768
  %6770 = vrot.lane.b32.xlu0 %v5218, 64
  %v6771 = vpop.permute.xlu0 %6770
  %6772 = vrot.lane.b32.xlu0 %v5219, 64
  %v6773 = vpop.permute.xlu0 %6772
  %6774 = vrot.lane.b32.xlu0 %v5220, 64
  %v6775 = vpop.permute.xlu0 %6774
  %6776 = vrot.lane.b32.xlu0 %v5221, 64
  %v6777 = vpop.permute.xlu0 %6776
  %6778 = vrot.lane.b32.xlu0 %v5222, 64
  %v6779 = vpop.permute.xlu0 %6778
  %6780 = vrot.lane.b32.xlu0 %v5223, 64
  %v6781 = vpop.permute.xlu0 %6780
  %6782 = vrot.lane.b32.xlu0 %v5224, 64
  %v6783 = vpop.permute.xlu0 %6782
  %6784 = vrot.lane.b32.xlu0 %v5225, 64
  %v6785 = vpop.permute.xlu0 %6784
  %6786 = vrot.lane.b32.xlu0 %v5226, 64
  %v6787 = vpop.permute.xlu0 %6786
  %6788 = vrot.lane.b32.xlu0 %v5227, 64
  %v6789 = vpop.permute.xlu0 %6788
  %6790 = vrot.lane.b32.xlu0 %v5228, 64
  %v6791 = vpop.permute.xlu0 %6790
  %6792 = vrot.lane.b32.xlu0 %v5229, 64
  %v6793 = vpop.permute.xlu0 %6792
  %6794 = vrot.lane.b32.xlu0 %v5230, 64
  %v6795 = vpop.permute.xlu0 %6794
  %6796 = vrot.lane.b32.xlu0 %v5231, 64
  %v6797 = vpop.permute.xlu0 %6796
  %6798 = vrot.lane.b32.xlu0 %v5232, 64
  %v6799 = vpop.permute.xlu0 %6798
  %6800 = vrot.lane.b32.xlu0 %v5233, 64
  %v6801 = vpop.permute.xlu0 %6800
  %6802 = vrot.lane.b32.xlu0 %v5234, 64
  %v6803 = vpop.permute.xlu0 %6802
  %6804 = vrot.lane.b32.xlu0 %v5235, 64
  %v6805 = vpop.permute.xlu0 %6804
  %6806 = vrot.lane.b32.xlu0 %v5236, 64
  %v6807 = vpop.permute.xlu0 %6806
  %6808 = vrot.lane.b32.xlu0 %v5237, 64
  %v6809 = vpop.permute.xlu0 %6808
  %6810 = vrot.lane.b32.xlu0 %v5238, 64
  %v6811 = vpop.permute.xlu0 %6810
  %6812 = vrot.lane.b32.xlu0 %v5239, 64
  %v6813 = vpop.permute.xlu0 %6812
  %6814 = vrot.lane.b32.xlu0 %v5240, 64
  %v6815 = vpop.permute.xlu0 %6814
  %6816 = vrot.lane.b32.xlu0 0.0, 64
  %v6817 = vpop.permute.xlu0 %6816
  %v6818 = vsel %vm2681, %v6737, %v6739
  %v6819 = vsel %vm2681, %v6739, %v6741
  %v6820 = vsel %vm2681, %v6741, %v6743
  %v6821 = vsel %vm2681, %v6743, %v6745
  %v6822 = vsel %vm2681, %v6745, %v6747
  %v6823 = vsel %vm2681, %v6747, %v6749
  %v6824 = vsel %vm2681, %v6749, %v6751
  %v6825 = vsel %vm2681, %v6751, %v6753
  %v6826 = vsel %vm2681, %v6753, %v6755
  %v6827 = vsel %vm2681, %v6755, %v6757
  %v6828 = vsel %vm2681, %v6757, %v6759
  %v6829 = vsel %vm2681, %v6759, %v6761
  %v6830 = vsel %vm2681, %v6761, %v6763
  %v6831 = vsel %vm2681, %v6763, %v6765
  %v6832 = vsel %vm2681, %v6765, %v6767
  %v6833 = vsel %vm2681, %v6767, %v6769
  %v6834 = vsel %vm2681, %v6769, %v6771
  %v6835 = vsel %vm2681, %v6771, %v6773
  %v6836 = vsel %vm2681, %v6773, %v6775
  %v6837 = vsel %vm2681, %v6775, %v6777
  %v6838 = vsel %vm2681, %v6777, %v6779
  %v6839 = vsel %vm2681, %v6779, %v6781
  %v6840 = vsel %vm2681, %v6781, %v6783
  %v6841 = vsel %vm2681, %v6783, %v6785
  %v6842 = vsel %vm2681, %v6785, %v6787
  %v6843 = vsel %vm2681, %v6787, %v6789
  %v6844 = vsel %vm2681, %v6789, %v6791
  %v6845 = vsel %vm2681, %v6791, %v6793
  %v6846 = vsel %vm2681, %v6793, %v6795
  %v6847 = vsel %vm2681, %v6795, %v6797
  %v6848 = vsel %vm2681, %v6797, %v6799
  %v6849 = vsel %vm2681, %v6799, %v6801
  %v6850 = vsel %vm2681, %v6801, %v6803
  %v6851 = vsel %vm2681, %v6803, %v6805
  %v6852 = vsel %vm2681, %v6805, %v6807
  %v6853 = vsel %vm2681, %v6807, %v6809
  %v6854 = vsel %vm2681, %v6809, %v6811
  %v6855 = vsel %vm2681, %v6811, %v6813
  %v6856 = vsel %vm2681, %v6813, %v6815
  %v6857 = vsel %vm2681, %v6815, %v6817
  %6898 = vst [vmem:[#allocation2 + $0xa00] sm:$0xff] %v6818
  %6899 = vst [vmem:[#allocation2 + $0xa08] sm:$0xff] %v6819
  %6900 = vst [vmem:[#allocation2 + $0xa10] sm:$0xff] %v6820
  %6901 = vst [vmem:[#allocation2 + $0xa18] sm:$0xff] %v6821
  %6902 = vst [vmem:[#allocation2 + $0xa20] sm:$0xff] %v6822
  %6903 = vst [vmem:[#allocation2 + $0xa28] sm:$0xff] %v6823
  %6904 = vst [vmem:[#allocation2 + $0xa30] sm:$0xff] %v6824
  %6905 = vst [vmem:[#allocation2 + $0xa38] sm:$0xff] %v6825
  %6906 = vst [vmem:[#allocation2 + $0xa40] sm:$0xff] %v6826
  %6907 = vst [vmem:[#allocation2 + $0xa48] sm:$0xff] %v6827
  %6908 = vst [vmem:[#allocation2 + $0xa50] sm:$0xff] %v6828
  %6909 = vst [vmem:[#allocation2 + $0xa58] sm:$0xff] %v6829
  %6910 = vst [vmem:[#allocation2 + $0xa60] sm:$0xff] %v6830
  %6911 = vst [vmem:[#allocation2 + $0xa68] sm:$0xff] %v6831
  %6912 = vst [vmem:[#allocation2 + $0xa70] sm:$0xff] %v6832
  %6913 = vst [vmem:[#allocation2 + $0xa78] sm:$0xff] %v6833
  %6914 = vst [vmem:[#allocation2 + $0xa80] sm:$0xff] %v6834
  %6915 = vst [vmem:[#allocation2 + $0xa88] sm:$0xff] %v6835
  %6916 = vst [vmem:[#allocation2 + $0xa90] sm:$0xff] %v6836
  %6917 = vst [vmem:[#allocation2 + $0xa98] sm:$0xff] %v6837
  %6918 = vst [vmem:[#allocation2 + $0xaa0] sm:$0xff] %v6838
  %6919 = vst [vmem:[#allocation2 + $0xaa8] sm:$0xff] %v6839
  %6920 = vst [vmem:[#allocation2 + $0xab0] sm:$0xff] %v6840
  %6921 = vst [vmem:[#allocation2 + $0xab8] sm:$0xff] %v6841
  %6922 = vst [vmem:[#allocation2 + $0xac0] sm:$0xff] %v6842
  %6923 = vst [vmem:[#allocation2 + $0xac8] sm:$0xff] %v6843
  %6924 = vst [vmem:[#allocation2 + $0xad0] sm:$0xff] %v6844
  %6925 = vst [vmem:[#allocation2 + $0xad8] sm:$0xff] %v6845
  %6926 = vst [vmem:[#allocation2 + $0xae0] sm:$0xff] %v6846
  %6927 = vst [vmem:[#allocation2 + $0xae8] sm:$0xff] %v6847
  %6928 = vst [vmem:[#allocation2 + $0xaf0] sm:$0xff] %v6848
  %6929 = vst [vmem:[#allocation2 + $0xaf8] sm:$0xff] %v6849
  %6930 = vst [vmem:[#allocation2 + $0xb00] sm:$0xff] %v6850
  %6931 = vst [vmem:[#allocation2 + $0xb08] sm:$0xff] %v6851
  %6932 = vst [vmem:[#allocation2 + $0xb10] sm:$0xff] %v6852
  %6933 = vst [vmem:[#allocation2 + $0xb18] sm:$0xff] %v6853
  %6934 = vst [vmem:[#allocation2 + $0xb20] sm:$0xff] %v6854
  %6935 = vst [vmem:[#allocation2 + $0xb28] sm:$0xff] %v6855
  %6936 = vst [vmem:[#allocation2 + $0xb30] sm:$0xff] %v6856
  %6937 = vst [vmem:[#allocation2 + $0xb38] sm:$0xff] %v6857
  %6938 = vrot.lane.b32.xlu0 %v5201, 63
  %v6939 = vpop.permute.xlu0 %6938
  %6940 = vrot.lane.b32.xlu0 %v5202, 63
  %v6941 = vpop.permute.xlu0 %6940
  %6942 = vrot.lane.b32.xlu0 %v5203, 63
  %v6943 = vpop.permute.xlu0 %6942
  %6944 = vrot.lane.b32.xlu0 %v5204, 63
  %v6945 = vpop.permute.xlu0 %6944
  %6946 = vrot.lane.b32.xlu0 %v5205, 63
  %v6947 = vpop.permute.xlu0 %6946
  %6948 = vrot.lane.b32.xlu0 %v5206, 63
  %v6949 = vpop.permute.xlu0 %6948
  %6950 = vrot.lane.b32.xlu0 %v5207, 63
  %v6951 = vpop.permute.xlu0 %6950
  %6952 = vrot.lane.b32.xlu0 %v5208, 63
  %v6953 = vpop.permute.xlu0 %6952
  %6954 = vrot.lane.b32.xlu0 %v5209, 63
  %v6955 = vpop.permute.xlu0 %6954
  %6956 = vrot.lane.b32.xlu0 %v5210, 63
  %v6957 = vpop.permute.xlu0 %6956
  %6958 = vrot.lane.b32.xlu0 %v5211, 63
  %v6959 = vpop.permute.xlu0 %6958
  %6960 = vrot.lane.b32.xlu0 %v5212, 63
  %v6961 = vpop.permute.xlu0 %6960
  %6962 = vrot.lane.b32.xlu0 %v5213, 63
  %v6963 = vpop.permute.xlu0 %6962
  %6964 = vrot.lane.b32.xlu0 %v5214, 63
  %v6965 = vpop.permute.xlu0 %6964
  %6966 = vrot.lane.b32.xlu0 %v5215, 63
  %v6967 = vpop.permute.xlu0 %6966
  %6968 = vrot.lane.b32.xlu0 %v5216, 63
  %v6969 = vpop.permute.xlu0 %6968
  %6970 = vrot.lane.b32.xlu0 %v5217, 63
  %v6971 = vpop.permute.xlu0 %6970
  %6972 = vrot.lane.b32.xlu0 %v5218, 63
  %v6973 = vpop.permute.xlu0 %6972
  %6974 = vrot.lane.b32.xlu0 %v5219, 63
  %v6975 = vpop.permute.xlu0 %6974
  %6976 = vrot.lane.b32.xlu0 %v5220, 63
  %v6977 = vpop.permute.xlu0 %6976
  %6978 = vrot.lane.b32.xlu0 %v5221, 63
  %v6979 = vpop.permute.xlu0 %6978
  %6980 = vrot.lane.b32.xlu0 %v5222, 63
  %v6981 = vpop.permute.xlu0 %6980
  %6982 = vrot.lane.b32.xlu0 %v5223, 63
  %v6983 = vpop.permute.xlu0 %6982
  %6984 = vrot.lane.b32.xlu0 %v5224, 63
  %v6985 = vpop.permute.xlu0 %6984
  %6986 = vrot.lane.b32.xlu0 %v5225, 63
  %v6987 = vpop.permute.xlu0 %6986
  %6988 = vrot.lane.b32.xlu0 %v5226, 63
  %v6989 = vpop.permute.xlu0 %6988
  %6990 = vrot.lane.b32.xlu0 %v5227, 63
  %v6991 = vpop.permute.xlu0 %6990
  %6992 = vrot.lane.b32.xlu0 %v5228, 63
  %v6993 = vpop.permute.xlu0 %6992
  %6994 = vrot.lane.b32.xlu0 %v5229, 63
  %v6995 = vpop.permute.xlu0 %6994
  %6996 = vrot.lane.b32.xlu0 %v5230, 63
  %v6997 = vpop.permute.xlu0 %6996
  %6998 = vrot.lane.b32.xlu0 %v5231, 63
  %v6999 = vpop.permute.xlu0 %6998
  %7000 = vrot.lane.b32.xlu0 %v5232, 63
  %v7001 = vpop.permute.xlu0 %7000
  %7002 = vrot.lane.b32.xlu0 %v5233, 63
  %v7003 = vpop.permute.xlu0 %7002
  %7004 = vrot.lane.b32.xlu0 %v5234, 63
  %v7005 = vpop.permute.xlu0 %7004
  %7006 = vrot.lane.b32.xlu0 %v5235, 63
  %v7007 = vpop.permute.xlu0 %7006
  %7008 = vrot.lane.b32.xlu0 %v5236, 63
  %v7009 = vpop.permute.xlu0 %7008
  %7010 = vrot.lane.b32.xlu0 %v5237, 63
  %v7011 = vpop.permute.xlu0 %7010
  %7012 = vrot.lane.b32.xlu0 %v5238, 63
  %v7013 = vpop.permute.xlu0 %7012
  %7014 = vrot.lane.b32.xlu0 %v5239, 63
  %v7015 = vpop.permute.xlu0 %7014
  %7016 = vrot.lane.b32.xlu0 %v5240, 63
  %v7017 = vpop.permute.xlu0 %7016
  %7018 = vrot.lane.b32.xlu0 0.0, 63
  %v7019 = vpop.permute.xlu0 %7018
  %v7020 = vsel %vm2970, %v6939, %v6941
  %v7021 = vsel %vm2970, %v6941, %v6943
  %v7022 = vsel %vm2970, %v6943, %v6945
  %v7023 = vsel %vm2970, %v6945, %v6947
  %v7024 = vsel %vm2970, %v6947, %v6949
  %v7025 = vsel %vm2970, %v6949, %v6951
  %v7026 = vsel %vm2970, %v6951, %v6953
  %v7027 = vsel %vm2970, %v6953, %v6955
  %v7028 = vsel %vm2970, %v6955, %v6957
  %v7029 = vsel %vm2970, %v6957, %v6959
  %v7030 = vsel %vm2970, %v6959, %v6961
  %v7031 = vsel %vm2970, %v6961, %v6963
  %v7032 = vsel %vm2970, %v6963, %v6965
  %v7033 = vsel %vm2970, %v6965, %v6967
  %v7034 = vsel %vm2970, %v6967, %v6969
  %v7035 = vsel %vm2970, %v6969, %v6971
  %v7036 = vsel %vm2970, %v6971, %v6973
  %v7037 = vsel %vm2970, %v6973, %v6975
  %v7038 = vsel %vm2970, %v6975, %v6977
  %v7039 = vsel %vm2970, %v6977, %v6979
  %v7040 = vsel %vm2970, %v6979, %v6981
  %v7041 = vsel %vm2970, %v6981, %v6983
  %v7042 = vsel %vm2970, %v6983, %v6985
  %v7043 = vsel %vm2970, %v6985, %v6987
  %v7044 = vsel %vm2970, %v6987, %v6989
  %v7045 = vsel %vm2970, %v6989, %v6991
  %v7046 = vsel %vm2970, %v6991, %v6993
  %v7047 = vsel %vm2970, %v6993, %v6995
  %v7048 = vsel %vm2970, %v6995, %v6997
  %v7049 = vsel %vm2970, %v6997, %v6999
  %v7050 = vsel %vm2970, %v6999, %v7001
  %v7051 = vsel %vm2970, %v7001, %v7003
  %v7052 = vsel %vm2970, %v7003, %v7005
  %v7053 = vsel %vm2970, %v7005, %v7007
  %v7054 = vsel %vm2970, %v7007, %v7009
  %v7055 = vsel %vm2970, %v7009, %v7011
  %v7056 = vsel %vm2970, %v7011, %v7013
  %v7057 = vsel %vm2970, %v7013, %v7015
  %v7058 = vsel %vm2970, %v7015, %v7017
  %v7059 = vsel %vm2970, %v7017, %v7019
  %7100 = vst [vmem:[#allocation2 + $0xb40] sm:$0xff] %v7020
  %7101 = vst [vmem:[#allocation2 + $0xb48] sm:$0xff] %v7021
  %7102 = vst [vmem:[#allocation2 + $0xb50] sm:$0xff] %v7022
  %7103 = vst [vmem:[#allocation2 + $0xb58] sm:$0xff] %v7023
  %7104 = vst [vmem:[#allocation2 + $0xb60] sm:$0xff] %v7024
  %7105 = vst [vmem:[#allocation2 + $0xb68] sm:$0xff] %v7025
  %7106 = vst [vmem:[#allocation2 + $0xb70] sm:$0xff] %v7026
  %7107 = vst [vmem:[#allocation2 + $0xb78] sm:$0xff] %v7027
  %7108 = vst [vmem:[#allocation2 + $0xb80] sm:$0xff] %v7028
  %7109 = vst [vmem:[#allocation2 + $0xb88] sm:$0xff] %v7029
  %7110 = vst [vmem:[#allocation2 + $0xb90] sm:$0xff] %v7030
  %7111 = vst [vmem:[#allocation2 + $0xb98] sm:$0xff] %v7031
  %7112 = vst [vmem:[#allocation2 + $0xba0] sm:$0xff] %v7032
  %7113 = vst [vmem:[#allocation2 + $0xba8] sm:$0xff] %v7033
  %7114 = vst [vmem:[#allocation2 + $0xbb0] sm:$0xff] %v7034
  %7115 = vst [vmem:[#allocation2 + $0xbb8] sm:$0xff] %v7035
  %7116 = vst [vmem:[#allocation2 + $0xbc0] sm:$0xff] %v7036
  %7117 = vst [vmem:[#allocation2 + $0xbc8] sm:$0xff] %v7037
  %7118 = vst [vmem:[#allocation2 + $0xbd0] sm:$0xff] %v7038
  %7119 = vst [vmem:[#allocation2 + $0xbd8] sm:$0xff] %v7039
  %7120 = vst [vmem:[#allocation2 + $0xbe0] sm:$0xff] %v7040
  %7121 = vst [vmem:[#allocation2 + $0xbe8] sm:$0xff] %v7041
  %7122 = vst [vmem:[#allocation2 + $0xbf0] sm:$0xff] %v7042
  %7123 = vst [vmem:[#allocation2 + $0xbf8] sm:$0xff] %v7043
  %7124 = vst [vmem:[#allocation2 + $0xc00] sm:$0xff] %v7044
  %7125 = vst [vmem:[#allocation2 + $0xc08] sm:$0xff] %v7045
  %7126 = vst [vmem:[#allocation2 + $0xc10] sm:$0xff] %v7046
  %7127 = vst [vmem:[#allocation2 + $0xc18] sm:$0xff] %v7047
  %7128 = vst [vmem:[#allocation2 + $0xc20] sm:$0xff] %v7048
  %7129 = vst [vmem:[#allocation2 + $0xc28] sm:$0xff] %v7049
  %7130 = vst [vmem:[#allocation2 + $0xc30] sm:$0xff] %v7050
  %7131 = vst [vmem:[#allocation2 + $0xc38] sm:$0xff] %v7051
  %7132 = vst [vmem:[#allocation2 + $0xc40] sm:$0xff] %v7052
  %7133 = vst [vmem:[#allocation2 + $0xc48] sm:$0xff] %v7053
  %7134 = vst [vmem:[#allocation2 + $0xc50] sm:$0xff] %v7054
  %7135 = vst [vmem:[#allocation2 + $0xc58] sm:$0xff] %v7055
  %7136 = vst [vmem:[#allocation2 + $0xc60] sm:$0xff] %v7056
  %7137 = vst [vmem:[#allocation2 + $0xc68] sm:$0xff] %v7057
  %7138 = vst [vmem:[#allocation2 + $0xc70] sm:$0xff] %v7058
  %7139 = vst [vmem:[#allocation2 + $0xc78] sm:$0xff] %v7059
  %7140 = vrot.lane.b32.xlu0 %v5201, 62
  %v7141 = vpop.permute.xlu0 %7140
  %7142 = vrot.lane.b32.xlu0 %v5202, 62
  %v7143 = vpop.permute.xlu0 %7142
  %7144 = vrot.lane.b32.xlu0 %v5203, 62
  %v7145 = vpop.permute.xlu0 %7144
  %7146 = vrot.lane.b32.xlu0 %v5204, 62
  %v7147 = vpop.permute.xlu0 %7146
  %7148 = vrot.lane.b32.xlu0 %v5205, 62
  %v7149 = vpop.permute.xlu0 %7148
  %7150 = vrot.lane.b32.xlu0 %v5206, 62
  %v7151 = vpop.permute.xlu0 %7150
  %7152 = vrot.lane.b32.xlu0 %v5207, 62
  %v7153 = vpop.permute.xlu0 %7152
  %7154 = vrot.lane.b32.xlu0 %v5208, 62
  %v7155 = vpop.permute.xlu0 %7154
  %7156 = vrot.lane.b32.xlu0 %v5209, 62
  %v7157 = vpop.permute.xlu0 %7156
  %7158 = vrot.lane.b32.xlu0 %v5210, 62
  %v7159 = vpop.permute.xlu0 %7158
  %7160 = vrot.lane.b32.xlu0 %v5211, 62
  %v7161 = vpop.permute.xlu0 %7160
  %7162 = vrot.lane.b32.xlu0 %v5212, 62
  %v7163 = vpop.permute.xlu0 %7162
  %7164 = vrot.lane.b32.xlu0 %v5213, 62
  %v7165 = vpop.permute.xlu0 %7164
  %7166 = vrot.lane.b32.xlu0 %v5214, 62
  %v7167 = vpop.permute.xlu0 %7166
  %7168 = vrot.lane.b32.xlu0 %v5215, 62
  %v7169 = vpop.permute.xlu0 %7168
  %7170 = vrot.lane.b32.xlu0 %v5216, 62
  %v7171 = vpop.permute.xlu0 %7170
  %7172 = vrot.lane.b32.xlu0 %v5217, 62
  %v7173 = vpop.permute.xlu0 %7172
  %7174 = vrot.lane.b32.xlu0 %v5218, 62
  %v7175 = vpop.permute.xlu0 %7174
  %7176 = vrot.lane.b32.xlu0 %v5219, 62
  %v7177 = vpop.permute.xlu0 %7176
  %7178 = vrot.lane.b32.xlu0 %v5220, 62
  %v7179 = vpop.permute.xlu0 %7178
  %7180 = vrot.lane.b32.xlu0 %v5221, 62
  %v7181 = vpop.permute.xlu0 %7180
  %7182 = vrot.lane.b32.xlu0 %v5222, 62
  %v7183 = vpop.permute.xlu0 %7182
  %7184 = vrot.lane.b32.xlu0 %v5223, 62
  %v7185 = vpop.permute.xlu0 %7184
  %7186 = vrot.lane.b32.xlu0 %v5224, 62
  %v7187 = vpop.permute.xlu0 %7186
  %7188 = vrot.lane.b32.xlu0 %v5225, 62
  %v7189 = vpop.permute.xlu0 %7188
  %7190 = vrot.lane.b32.xlu0 %v5226, 62
  %v7191 = vpop.permute.xlu0 %7190
  %7192 = vrot.lane.b32.xlu0 %v5227, 62
  %v7193 = vpop.permute.xlu0 %7192
  %7194 = vrot.lane.b32.xlu0 %v5228, 62
  %v7195 = vpop.permute.xlu0 %7194
  %7196 = vrot.lane.b32.xlu0 %v5229, 62
  %v7197 = vpop.permute.xlu0 %7196
  %7198 = vrot.lane.b32.xlu0 %v5230, 62
  %v7199 = vpop.permute.xlu0 %7198
  %7200 = vrot.lane.b32.xlu0 %v5231, 62
  %v7201 = vpop.permute.xlu0 %7200
  %7202 = vrot.lane.b32.xlu0 %v5232, 62
  %v7203 = vpop.permute.xlu0 %7202
  %7204 = vrot.lane.b32.xlu0 %v5233, 62
  %v7205 = vpop.permute.xlu0 %7204
  %7206 = vrot.lane.b32.xlu0 %v5234, 62
  %v7207 = vpop.permute.xlu0 %7206
  %7208 = vrot.lane.b32.xlu0 %v5235, 62
  %v7209 = vpop.permute.xlu0 %7208
  %7210 = vrot.lane.b32.xlu0 %v5236, 62
  %v7211 = vpop.permute.xlu0 %7210
  %7212 = vrot.lane.b32.xlu0 %v5237, 62
  %v7213 = vpop.permute.xlu0 %7212
  %7214 = vrot.lane.b32.xlu0 %v5238, 62
  %v7215 = vpop.permute.xlu0 %7214
  %7216 = vrot.lane.b32.xlu0 %v5239, 62
  %v7217 = vpop.permute.xlu0 %7216
  %7218 = vrot.lane.b32.xlu0 %v5240, 62
  %v7219 = vpop.permute.xlu0 %7218
  %7220 = vrot.lane.b32.xlu0 0.0, 62
  %v7221 = vpop.permute.xlu0 %7220
  %v7222 = vsel %vm3259, %v7141, %v7143
  %v7223 = vsel %vm3259, %v7143, %v7145
  %v7224 = vsel %vm3259, %v7145, %v7147
  %v7225 = vsel %vm3259, %v7147, %v7149
  %v7226 = vsel %vm3259, %v7149, %v7151
  %v7227 = vsel %vm3259, %v7151, %v7153
  %v7228 = vsel %vm3259, %v7153, %v7155
  %v7229 = vsel %vm3259, %v7155, %v7157
  %v7230 = vsel %vm3259, %v7157, %v7159
  %v7231 = vsel %vm3259, %v7159, %v7161
  %v7232 = vsel %vm3259, %v7161, %v7163
  %v7233 = vsel %vm3259, %v7163, %v7165
  %v7234 = vsel %vm3259, %v7165, %v7167
  %v7235 = vsel %vm3259, %v7167, %v7169
  %v7236 = vsel %vm3259, %v7169, %v7171
  %v7237 = vsel %vm3259, %v7171, %v7173
  %v7238 = vsel %vm3259, %v7173, %v7175
  %v7239 = vsel %vm3259, %v7175, %v7177
  %v7240 = vsel %vm3259, %v7177, %v7179
  %v7241 = vsel %vm3259, %v7179, %v7181
  %v7242 = vsel %vm3259, %v7181, %v7183
  %v7243 = vsel %vm3259, %v7183, %v7185
  %v7244 = vsel %vm3259, %v7185, %v7187
  %v7245 = vsel %vm3259, %v7187, %v7189
  %v7246 = vsel %vm3259, %v7189, %v7191
  %v7247 = vsel %vm3259, %v7191, %v7193
  %v7248 = vsel %vm3259, %v7193, %v7195
  %v7249 = vsel %vm3259, %v7195, %v7197
  %v7250 = vsel %vm3259, %v7197, %v7199
  %v7251 = vsel %vm3259, %v7199, %v7201
  %v7252 = vsel %vm3259, %v7201, %v7203
  %v7253 = vsel %vm3259, %v7203, %v7205
  %v7254 = vsel %vm3259, %v7205, %v7207
  %v7255 = vsel %vm3259, %v7207, %v7209
  %v7256 = vsel %vm3259, %v7209, %v7211
  %v7257 = vsel %vm3259, %v7211, %v7213
  %v7258 = vsel %vm3259, %v7213, %v7215
  %v7259 = vsel %vm3259, %v7215, %v7217
  %v7260 = vsel %vm3259, %v7217, %v7219
  %v7261 = vsel %vm3259, %v7219, %v7221
  %7302 = vst [vmem:[#allocation2 + $0xc80] sm:$0xff] %v7222
  %7303 = vst [vmem:[#allocation2 + $0xc88] sm:$0xff] %v7223
  %7304 = vst [vmem:[#allocation2 + $0xc90] sm:$0xff] %v7224
  %7305 = vst [vmem:[#allocation2 + $0xc98] sm:$0xff] %v7225
  %7306 = vst [vmem:[#allocation2 + $0xca0] sm:$0xff] %v7226
  %7307 = vst [vmem:[#allocation2 + $0xca8] sm:$0xff] %v7227
  %7308 = vst [vmem:[#allocation2 + $0xcb0] sm:$0xff] %v7228
  %7309 = vst [vmem:[#allocation2 + $0xcb8] sm:$0xff] %v7229
  %7310 = vst [vmem:[#allocation2 + $0xcc0] sm:$0xff] %v7230
  %7311 = vst [vmem:[#allocation2 + $0xcc8] sm:$0xff] %v7231
  %7312 = vst [vmem:[#allocation2 + $0xcd0] sm:$0xff] %v7232
  %7313 = vst [vmem:[#allocation2 + $0xcd8] sm:$0xff] %v7233
  %7314 = vst [vmem:[#allocation2 + $0xce0] sm:$0xff] %v7234
  %7315 = vst [vmem:[#allocation2 + $0xce8] sm:$0xff] %v7235
  %7316 = vst [vmem:[#allocation2 + $0xcf0] sm:$0xff] %v7236
  %7317 = vst [vmem:[#allocation2 + $0xcf8] sm:$0xff] %v7237
  %7318 = vst [vmem:[#allocation2 + $0xd00] sm:$0xff] %v7238
  %7319 = vst [vmem:[#allocation2 + $0xd08] sm:$0xff] %v7239
  %7320 = vst [vmem:[#allocation2 + $0xd10] sm:$0xff] %v7240
  %7321 = vst [vmem:[#allocation2 + $0xd18] sm:$0xff] %v7241
  %7322 = vst [vmem:[#allocation2 + $0xd20] sm:$0xff] %v7242
  %7323 = vst [vmem:[#allocation2 + $0xd28] sm:$0xff] %v7243
  %7324 = vst [vmem:[#allocation2 + $0xd30] sm:$0xff] %v7244
  %7325 = vst [vmem:[#allocation2 + $0xd38] sm:$0xff] %v7245
  %7326 = vst [vmem:[#allocation2 + $0xd40] sm:$0xff] %v7246
  %7327 = vst [vmem:[#allocation2 + $0xd48] sm:$0xff] %v7247
  %7328 = vst [vmem:[#allocation2 + $0xd50] sm:$0xff] %v7248
  %7329 = vst [vmem:[#allocation2 + $0xd58] sm:$0xff] %v7249
  %7330 = vst [vmem:[#allocation2 + $0xd60] sm:$0xff] %v7250
  %7331 = vst [vmem:[#allocation2 + $0xd68] sm:$0xff] %v7251
  %7332 = vst [vmem:[#allocation2 + $0xd70] sm:$0xff] %v7252
  %7333 = vst [vmem:[#allocation2 + $0xd78] sm:$0xff] %v7253
  %7334 = vst [vmem:[#allocation2 + $0xd80] sm:$0xff] %v7254
  %7335 = vst [vmem:[#allocation2 + $0xd88] sm:$0xff] %v7255
  %7336 = vst [vmem:[#allocation2 + $0xd90] sm:$0xff] %v7256
  %7337 = vst [vmem:[#allocation2 + $0xd98] sm:$0xff] %v7257
  %7338 = vst [vmem:[#allocation2 + $0xda0] sm:$0xff] %v7258
  %7339 = vst [vmem:[#allocation2 + $0xda8] sm:$0xff] %v7259
  %7340 = vst [vmem:[#allocation2 + $0xdb0] sm:$0xff] %v7260
  %7341 = vst [vmem:[#allocation2 + $0xdb8] sm:$0xff] %v7261
  %7342 = vrot.lane.b32.xlu0 %v5201, 61
  %v7343 = vpop.permute.xlu0 %7342
  %7344 = vrot.lane.b32.xlu0 %v5202, 61
  %v7345 = vpop.permute.xlu0 %7344
  %7346 = vrot.lane.b32.xlu0 %v5203, 61
  %v7347 = vpop.permute.xlu0 %7346
  %7348 = vrot.lane.b32.xlu0 %v5204, 61
  %v7349 = vpop.permute.xlu0 %7348
  %7350 = vrot.lane.b32.xlu0 %v5205, 61
  %v7351 = vpop.permute.xlu0 %7350
  %7352 = vrot.lane.b32.xlu0 %v5206, 61
  %v7353 = vpop.permute.xlu0 %7352
  %7354 = vrot.lane.b32.xlu0 %v5207, 61
  %v7355 = vpop.permute.xlu0 %7354
  %7356 = vrot.lane.b32.xlu0 %v5208, 61
  %v7357 = vpop.permute.xlu0 %7356
  %7358 = vrot.lane.b32.xlu0 %v5209, 61
  %v7359 = vpop.permute.xlu0 %7358
  %7360 = vrot.lane.b32.xlu0 %v5210, 61
  %v7361 = vpop.permute.xlu0 %7360
  %7362 = vrot.lane.b32.xlu0 %v5211, 61
  %v7363 = vpop.permute.xlu0 %7362
  %7364 = vrot.lane.b32.xlu0 %v5212, 61
  %v7365 = vpop.permute.xlu0 %7364
  %7366 = vrot.lane.b32.xlu0 %v5213, 61
  %v7367 = vpop.permute.xlu0 %7366
  %7368 = vrot.lane.b32.xlu0 %v5214, 61
  %v7369 = vpop.permute.xlu0 %7368
  %7370 = vrot.lane.b32.xlu0 %v5215, 61
  %v7371 = vpop.permute.xlu0 %7370
  %7372 = vrot.lane.b32.xlu0 %v5216, 61
  %v7373 = vpop.permute.xlu0 %7372
  %7374 = vrot.lane.b32.xlu0 %v5217, 61
  %v7375 = vpop.permute.xlu0 %7374
  %7376 = vrot.lane.b32.xlu0 %v5218, 61
  %v7377 = vpop.permute.xlu0 %7376
  %7378 = vrot.lane.b32.xlu0 %v5219, 61
  %v7379 = vpop.permute.xlu0 %7378
  %7380 = vrot.lane.b32.xlu0 %v5220, 61
  %v7381 = vpop.permute.xlu0 %7380
  %7382 = vrot.lane.b32.xlu0 %v5221, 61
  %v7383 = vpop.permute.xlu0 %7382
  %7384 = vrot.lane.b32.xlu0 %v5222, 61
  %v7385 = vpop.permute.xlu0 %7384
  %7386 = vrot.lane.b32.xlu0 %v5223, 61
  %v7387 = vpop.permute.xlu0 %7386
  %7388 = vrot.lane.b32.xlu0 %v5224, 61
  %v7389 = vpop.permute.xlu0 %7388
  %7390 = vrot.lane.b32.xlu0 %v5225, 61
  %v7391 = vpop.permute.xlu0 %7390
  %7392 = vrot.lane.b32.xlu0 %v5226, 61
  %v7393 = vpop.permute.xlu0 %7392
  %7394 = vrot.lane.b32.xlu0 %v5227, 61
  %v7395 = vpop.permute.xlu0 %7394
  %7396 = vrot.lane.b32.xlu0 %v5228, 61
  %v7397 = vpop.permute.xlu0 %7396
  %7398 = vrot.lane.b32.xlu0 %v5229, 61
  %v7399 = vpop.permute.xlu0 %7398
  %7400 = vrot.lane.b32.xlu0 %v5230, 61
  %v7401 = vpop.permute.xlu0 %7400
  %7402 = vrot.lane.b32.xlu0 %v5231, 61
  %v7403 = vpop.permute.xlu0 %7402
  %7404 = vrot.lane.b32.xlu0 %v5232, 61
  %v7405 = vpop.permute.xlu0 %7404
  %7406 = vrot.lane.b32.xlu0 %v5233, 61
  %v7407 = vpop.permute.xlu0 %7406
  %7408 = vrot.lane.b32.xlu0 %v5234, 61
  %v7409 = vpop.permute.xlu0 %7408
  %7410 = vrot.lane.b32.xlu0 %v5235, 61
  %v7411 = vpop.permute.xlu0 %7410
  %7412 = vrot.lane.b32.xlu0 %v5236, 61
  %v7413 = vpop.permute.xlu0 %7412
  %7414 = vrot.lane.b32.xlu0 %v5237, 61
  %v7415 = vpop.permute.xlu0 %7414
  %7416 = vrot.lane.b32.xlu0 %v5238, 61
  %v7417 = vpop.permute.xlu0 %7416
  %7418 = vrot.lane.b32.xlu0 %v5239, 61
  %v7419 = vpop.permute.xlu0 %7418
  %7420 = vrot.lane.b32.xlu0 %v5240, 61
  %v7421 = vpop.permute.xlu0 %7420
  %7422 = vrot.lane.b32.xlu0 0.0, 61
  %v7423 = vpop.permute.xlu0 %7422
  %v7424 = vsel %vm3548, %v7343, %v7345
  %v7425 = vsel %vm3548, %v7345, %v7347
  %v7426 = vsel %vm3548, %v7347, %v7349
  %v7427 = vsel %vm3548, %v7349, %v7351
  %v7428 = vsel %vm3548, %v7351, %v7353
  %v7429 = vsel %vm3548, %v7353, %v7355
  %v7430 = vsel %vm3548, %v7355, %v7357
  %v7431 = vsel %vm3548, %v7357, %v7359
  %v7432 = vsel %vm3548, %v7359, %v7361
  %v7433 = vsel %vm3548, %v7361, %v7363
  %v7434 = vsel %vm3548, %v7363, %v7365
  %v7435 = vsel %vm3548, %v7365, %v7367
  %v7436 = vsel %vm3548, %v7367, %v7369
  %v7437 = vsel %vm3548, %v7369, %v7371
  %v7438 = vsel %vm3548, %v7371, %v7373
  %v7439 = vsel %vm3548, %v7373, %v7375
  %v7440 = vsel %vm3548, %v7375, %v7377
  %v7441 = vsel %vm3548, %v7377, %v7379
  %v7442 = vsel %vm3548, %v7379, %v7381
  %v7443 = vsel %vm3548, %v7381, %v7383
  %v7444 = vsel %vm3548, %v7383, %v7385
  %v7445 = vsel %vm3548, %v7385, %v7387
  %v7446 = vsel %vm3548, %v7387, %v7389
  %v7447 = vsel %vm3548, %v7389, %v7391
  %v7448 = vsel %vm3548, %v7391, %v7393
  %v7449 = vsel %vm3548, %v7393, %v7395
  %v7450 = vsel %vm3548, %v7395, %v7397
  %v7451 = vsel %vm3548, %v7397, %v7399
  %v7452 = vsel %vm3548, %v7399, %v7401
  %v7453 = vsel %vm3548, %v7401, %v7403
  %v7454 = vsel %vm3548, %v7403, %v7405
  %v7455 = vsel %vm3548, %v7405, %v7407
  %v7456 = vsel %vm3548, %v7407, %v7409
  %v7457 = vsel %vm3548, %v7409, %v7411
  %v7458 = vsel %vm3548, %v7411, %v7413
  %v7459 = vsel %vm3548, %v7413, %v7415
  %v7460 = vsel %vm3548, %v7415, %v7417
  %v7461 = vsel %vm3548, %v7417, %v7419
  %v7462 = vsel %vm3548, %v7419, %v7421
  %v7463 = vsel %vm3548, %v7421, %v7423
  %7504 = vst [vmem:[#allocation2 + $0xdc0] sm:$0xff] %v7424
  %7505 = vst [vmem:[#allocation2 + $0xdc8] sm:$0xff] %v7425
  %7506 = vst [vmem:[#allocation2 + $0xdd0] sm:$0xff] %v7426
  %7507 = vst [vmem:[#allocation2 + $0xdd8] sm:$0xff] %v7427
  %7508 = vst [vmem:[#allocation2 + $0xde0] sm:$0xff] %v7428
  %7509 = vst [vmem:[#allocation2 + $0xde8] sm:$0xff] %v7429
  %7510 = vst [vmem:[#allocation2 + $0xdf0] sm:$0xff] %v7430
  %7511 = vst [vmem:[#allocation2 + $0xdf8] sm:$0xff] %v7431
  %7512 = vst [vmem:[#allocation2 + $0xe00] sm:$0xff] %v7432
  %7513 = vst [vmem:[#allocation2 + $0xe08] sm:$0xff] %v7433
  %7514 = vst [vmem:[#allocation2 + $0xe10] sm:$0xff] %v7434
  %7515 = vst [vmem:[#allocation2 + $0xe18] sm:$0xff] %v7435
  %7516 = vst [vmem:[#allocation2 + $0xe20] sm:$0xff] %v7436
  %7517 = vst [vmem:[#allocation2 + $0xe28] sm:$0xff] %v7437
  %7518 = vst [vmem:[#allocation2 + $0xe30] sm:$0xff] %v7438
  %7519 = vst [vmem:[#allocation2 + $0xe38] sm:$0xff] %v7439
  %7520 = vst [vmem:[#allocation2 + $0xe40] sm:$0xff] %v7440
  %7521 = vst [vmem:[#allocation2 + $0xe48] sm:$0xff] %v7441
  %7522 = vst [vmem:[#allocation2 + $0xe50] sm:$0xff] %v7442
  %7523 = vst [vmem:[#allocation2 + $0xe58] sm:$0xff] %v7443
  %7524 = vst [vmem:[#allocation2 + $0xe60] sm:$0xff] %v7444
  %7525 = vst [vmem:[#allocation2 + $0xe68] sm:$0xff] %v7445
  %7526 = vst [vmem:[#allocation2 + $0xe70] sm:$0xff] %v7446
  %7527 = vst [vmem:[#allocation2 + $0xe78] sm:$0xff] %v7447
  %7528 = vst [vmem:[#allocation2 + $0xe80] sm:$0xff] %v7448
  %7529 = vst [vmem:[#allocation2 + $0xe88] sm:$0xff] %v7449
  %7530 = vst [vmem:[#allocation2 + $0xe90] sm:$0xff] %v7450
  %7531 = vst [vmem:[#allocation2 + $0xe98] sm:$0xff] %v7451
  %7532 = vst [vmem:[#allocation2 + $0xea0] sm:$0xff] %v7452
  %7533 = vst [vmem:[#allocation2 + $0xea8] sm:$0xff] %v7453
  %7534 = vst [vmem:[#allocation2 + $0xeb0] sm:$0xff] %v7454
  %7535 = vst [vmem:[#allocation2 + $0xeb8] sm:$0xff] %v7455
  %7536 = vst [vmem:[#allocation2 + $0xec0] sm:$0xff] %v7456
  %7537 = vst [vmem:[#allocation2 + $0xec8] sm:$0xff] %v7457
  %7538 = vst [vmem:[#allocation2 + $0xed0] sm:$0xff] %v7458
  %7539 = vst [vmem:[#allocation2 + $0xed8] sm:$0xff] %v7459
  %7540 = vst [vmem:[#allocation2 + $0xee0] sm:$0xff] %v7460
  %7541 = vst [vmem:[#allocation2 + $0xee8] sm:$0xff] %v7461
  %7542 = vst [vmem:[#allocation2 + $0xef0] sm:$0xff] %v7462
  %7543 = vst [vmem:[#allocation2 + $0xef8] sm:$0xff] %v7463
  %7544 = vrot.lane.b32.xlu0 %v5201, 32
  %v7545 = vpop.permute.xlu0 %7544
  %7546 = vrot.lane.b32.xlu0 %v5202, 32
  %v7547 = vpop.permute.xlu0 %7546
  %7548 = vrot.lane.b32.xlu0 %v5203, 32
  %v7549 = vpop.permute.xlu0 %7548
  %7550 = vrot.lane.b32.xlu0 %v5204, 32
  %v7551 = vpop.permute.xlu0 %7550
  %7552 = vrot.lane.b32.xlu0 %v5205, 32
  %v7553 = vpop.permute.xlu0 %7552
  %7554 = vrot.lane.b32.xlu0 %v5206, 32
  %v7555 = vpop.permute.xlu0 %7554
  %7556 = vrot.lane.b32.xlu0 %v5207, 32
  %v7557 = vpop.permute.xlu0 %7556
  %7558 = vrot.lane.b32.xlu0 %v5208, 32
  %v7559 = vpop.permute.xlu0 %7558
  %7560 = vrot.lane.b32.xlu0 %v5209, 32
  %v7561 = vpop.permute.xlu0 %7560
  %7562 = vrot.lane.b32.xlu0 %v5210, 32
  %v7563 = vpop.permute.xlu0 %7562
  %7564 = vrot.lane.b32.xlu0 %v5211, 32
  %v7565 = vpop.permute.xlu0 %7564
  %7566 = vrot.lane.b32.xlu0 %v5212, 32
  %v7567 = vpop.permute.xlu0 %7566
  %7568 = vrot.lane.b32.xlu0 %v5213, 32
  %v7569 = vpop.permute.xlu0 %7568
  %7570 = vrot.lane.b32.xlu0 %v5214, 32
  %v7571 = vpop.permute.xlu0 %7570
  %7572 = vrot.lane.b32.xlu0 %v5215, 32
  %v7573 = vpop.permute.xlu0 %7572
  %7574 = vrot.lane.b32.xlu0 %v5216, 32
  %v7575 = vpop.permute.xlu0 %7574
  %7576 = vrot.lane.b32.xlu0 %v5217, 32
  %v7577 = vpop.permute.xlu0 %7576
  %7578 = vrot.lane.b32.xlu0 %v5218, 32
  %v7579 = vpop.permute.xlu0 %7578
  %7580 = vrot.lane.b32.xlu0 %v5219, 32
  %v7581 = vpop.permute.xlu0 %7580
  %7582 = vrot.lane.b32.xlu0 %v5220, 32
  %v7583 = vpop.permute.xlu0 %7582
  %7584 = vrot.lane.b32.xlu0 %v5221, 32
  %v7585 = vpop.permute.xlu0 %7584
  %7586 = vrot.lane.b32.xlu0 %v5222, 32
  %v7587 = vpop.permute.xlu0 %7586
  %7588 = vrot.lane.b32.xlu0 %v5223, 32
  %v7589 = vpop.permute.xlu0 %7588
  %7590 = vrot.lane.b32.xlu0 %v5224, 32
  %v7591 = vpop.permute.xlu0 %7590
  %7592 = vrot.lane.b32.xlu0 %v5225, 32
  %v7593 = vpop.permute.xlu0 %7592
  %7594 = vrot.lane.b32.xlu0 %v5226, 32
  %v7595 = vpop.permute.xlu0 %7594
  %7596 = vrot.lane.b32.xlu0 %v5227, 32
  %v7597 = vpop.permute.xlu0 %7596
  %7598 = vrot.lane.b32.xlu0 %v5228, 32
  %v7599 = vpop.permute.xlu0 %7598
  %7600 = vrot.lane.b32.xlu0 %v5229, 32
  %v7601 = vpop.permute.xlu0 %7600
  %7602 = vrot.lane.b32.xlu0 %v5230, 32
  %v7603 = vpop.permute.xlu0 %7602
  %7604 = vrot.lane.b32.xlu0 %v5231, 32
  %v7605 = vpop.permute.xlu0 %7604
  %7606 = vrot.lane.b32.xlu0 %v5232, 32
  %v7607 = vpop.permute.xlu0 %7606
  %7608 = vrot.lane.b32.xlu0 %v5233, 32
  %v7609 = vpop.permute.xlu0 %7608
  %7610 = vrot.lane.b32.xlu0 %v5234, 32
  %v7611 = vpop.permute.xlu0 %7610
  %7612 = vrot.lane.b32.xlu0 %v5235, 32
  %v7613 = vpop.permute.xlu0 %7612
  %7614 = vrot.lane.b32.xlu0 %v5236, 32
  %v7615 = vpop.permute.xlu0 %7614
  %7616 = vrot.lane.b32.xlu0 %v5237, 32
  %v7617 = vpop.permute.xlu0 %7616
  %7618 = vrot.lane.b32.xlu0 %v5238, 32
  %v7619 = vpop.permute.xlu0 %7618
  %7620 = vrot.lane.b32.xlu0 %v5239, 32
  %v7621 = vpop.permute.xlu0 %7620
  %7622 = vrot.lane.b32.xlu0 %v5240, 32
  %v7623 = vpop.permute.xlu0 %7622
  %7624 = vrot.lane.b32.xlu0 0.0, 32
  %v7625 = vpop.permute.xlu0 %7624
  %v7626 = vsel %vm3837, %v7545, %v7547
  %v7627 = vsel %vm3837, %v7547, %v7549
  %v7628 = vsel %vm3837, %v7549, %v7551
  %v7629 = vsel %vm3837, %v7551, %v7553
  %v7630 = vsel %vm3837, %v7553, %v7555
  %v7631 = vsel %vm3837, %v7555, %v7557
  %v7632 = vsel %vm3837, %v7557, %v7559
  %v7633 = vsel %vm3837, %v7559, %v7561
  %v7634 = vsel %vm3837, %v7561, %v7563
  %v7635 = vsel %vm3837, %v7563, %v7565
  %v7636 = vsel %vm3837, %v7565, %v7567
  %v7637 = vsel %vm3837, %v7567, %v7569
  %v7638 = vsel %vm3837, %v7569, %v7571
  %v7639 = vsel %vm3837, %v7571, %v7573
  %v7640 = vsel %vm3837, %v7573, %v7575
  %v7641 = vsel %vm3837, %v7575, %v7577
  %v7642 = vsel %vm3837, %v7577, %v7579
  %v7643 = vsel %vm3837, %v7579, %v7581
  %v7644 = vsel %vm3837, %v7581, %v7583
  %v7645 = vsel %vm3837, %v7583, %v7585
  %v7646 = vsel %vm3837, %v7585, %v7587
  %v7647 = vsel %vm3837, %v7587, %v7589
  %v7648 = vsel %vm3837, %v7589, %v7591
  %v7649 = vsel %vm3837, %v7591, %v7593
  %v7650 = vsel %vm3837, %v7593, %v7595
  %v7651 = vsel %vm3837, %v7595, %v7597
  %v7652 = vsel %vm3837, %v7597, %v7599
  %v7653 = vsel %vm3837, %v7599, %v7601
  %v7654 = vsel %vm3837, %v7601, %v7603
  %v7655 = vsel %vm3837, %v7603, %v7605
  %v7656 = vsel %vm3837, %v7605, %v7607
  %v7657 = vsel %vm3837, %v7607, %v7609
  %v7658 = vsel %vm3837, %v7609, %v7611
  %v7659 = vsel %vm3837, %v7611, %v7613
  %v7660 = vsel %vm3837, %v7613, %v7615
  %v7661 = vsel %vm3837, %v7615, %v7617
  %v7662 = vsel %vm3837, %v7617, %v7619
  %v7663 = vsel %vm3837, %v7619, %v7621
  %v7664 = vsel %vm3837, %v7621, %v7623
  %v7665 = vsel %vm3837, %v7623, %v7625
  %7706 = vst [vmem:[#allocation2 + $0xf00] sm:$0xff] %v7626
  %7707 = vst [vmem:[#allocation2 + $0xf08] sm:$0xff] %v7627
  %7708 = vst [vmem:[#allocation2 + $0xf10] sm:$0xff] %v7628
  %7709 = vst [vmem:[#allocation2 + $0xf18] sm:$0xff] %v7629
  %7710 = vst [vmem:[#allocation2 + $0xf20] sm:$0xff] %v7630
  %7711 = vst [vmem:[#allocation2 + $0xf28] sm:$0xff] %v7631
  %7712 = vst [vmem:[#allocation2 + $0xf30] sm:$0xff] %v7632
  %7713 = vst [vmem:[#allocation2 + $0xf38] sm:$0xff] %v7633
  %7714 = vst [vmem:[#allocation2 + $0xf40] sm:$0xff] %v7634
  %7715 = vst [vmem:[#allocation2 + $0xf48] sm:$0xff] %v7635
  %7716 = vst [vmem:[#allocation2 + $0xf50] sm:$0xff] %v7636
  %7717 = vst [vmem:[#allocation2 + $0xf58] sm:$0xff] %v7637
  %7718 = vst [vmem:[#allocation2 + $0xf60] sm:$0xff] %v7638
  %7719 = vst [vmem:[#allocation2 + $0xf68] sm:$0xff] %v7639
  %7720 = vst [vmem:[#allocation2 + $0xf70] sm:$0xff] %v7640
  %7721 = vst [vmem:[#allocation2 + $0xf78] sm:$0xff] %v7641
  %7722 = vst [vmem:[#allocation2 + $0xf80] sm:$0xff] %v7642
  %7723 = vst [vmem:[#allocation2 + $0xf88] sm:$0xff] %v7643
  %7724 = vst [vmem:[#allocation2 + $0xf90] sm:$0xff] %v7644
  %7725 = vst [vmem:[#allocation2 + $0xf98] sm:$0xff] %v7645
  %7726 = vst [vmem:[#allocation2 + $0xfa0] sm:$0xff] %v7646
  %7727 = vst [vmem:[#allocation2 + $0xfa8] sm:$0xff] %v7647
  %7728 = vst [vmem:[#allocation2 + $0xfb0] sm:$0xff] %v7648
  %7729 = vst [vmem:[#allocation2 + $0xfb8] sm:$0xff] %v7649
  %7730 = vst [vmem:[#allocation2 + $0xfc0] sm:$0xff] %v7650
  %7731 = vst [vmem:[#allocation2 + $0xfc8] sm:$0xff] %v7651
  %7732 = vst [vmem:[#allocation2 + $0xfd0] sm:$0xff] %v7652
  %7733 = vst [vmem:[#allocation2 + $0xfd8] sm:$0xff] %v7653
  %7734 = vst [vmem:[#allocation2 + $0xfe0] sm:$0xff] %v7654
  %7735 = vst [vmem:[#allocation2 + $0xfe8] sm:$0xff] %v7655
  %7736 = vst [vmem:[#allocation2 + $0xff0] sm:$0xff] %v7656
  %7737 = vst [vmem:[#allocation2 + $0xff8] sm:$0xff] %v7657
  %7738 = vst [vmem:[#allocation2 + $0x1000] sm:$0xff] %v7658
  %7739 = vst [vmem:[#allocation2 + $0x1008] sm:$0xff] %v7659
  %7740 = vst [vmem:[#allocation2 + $0x1010] sm:$0xff] %v7660
  %7741 = vst [vmem:[#allocation2 + $0x1018] sm:$0xff] %v7661
  %7742 = vst [vmem:[#allocation2 + $0x1020] sm:$0xff] %v7662
  %7743 = vst [vmem:[#allocation2 + $0x1028] sm:$0xff] %v7663
  %7744 = vst [vmem:[#allocation2 + $0x1030] sm:$0xff] %v7664
  %7745 = vst [vmem:[#allocation2 + $0x1038] sm:$0xff] %v7665
  %7746 = vrot.lane.b32.xlu0 %v5201, 31
  %v7747 = vpop.permute.xlu0 %7746
  %7748 = vrot.lane.b32.xlu0 %v5202, 31
  %v7749 = vpop.permute.xlu0 %7748
  %7750 = vrot.lane.b32.xlu0 %v5203, 31
  %v7751 = vpop.permute.xlu0 %7750
  %7752 = vrot.lane.b32.xlu0 %v5204, 31
  %v7753 = vpop.permute.xlu0 %7752
  %7754 = vrot.lane.b32.xlu0 %v5205, 31
  %v7755 = vpop.permute.xlu0 %7754
  %7756 = vrot.lane.b32.xlu0 %v5206, 31
  %v7757 = vpop.permute.xlu0 %7756
  %7758 = vrot.lane.b32.xlu0 %v5207, 31
  %v7759 = vpop.permute.xlu0 %7758
  %7760 = vrot.lane.b32.xlu0 %v5208, 31
  %v7761 = vpop.permute.xlu0 %7760
  %7762 = vrot.lane.b32.xlu0 %v5209, 31
  %v7763 = vpop.permute.xlu0 %7762
  %7764 = vrot.lane.b32.xlu0 %v5210, 31
  %v7765 = vpop.permute.xlu0 %7764
  %7766 = vrot.lane.b32.xlu0 %v5211, 31
  %v7767 = vpop.permute.xlu0 %7766
  %7768 = vrot.lane.b32.xlu0 %v5212, 31
  %v7769 = vpop.permute.xlu0 %7768
  %7770 = vrot.lane.b32.xlu0 %v5213, 31
  %v7771 = vpop.permute.xlu0 %7770
  %7772 = vrot.lane.b32.xlu0 %v5214, 31
  %v7773 = vpop.permute.xlu0 %7772
  %7774 = vrot.lane.b32.xlu0 %v5215, 31
  %v7775 = vpop.permute.xlu0 %7774
  %7776 = vrot.lane.b32.xlu0 %v5216, 31
  %v7777 = vpop.permute.xlu0 %7776
  %7778 = vrot.lane.b32.xlu0 %v5217, 31
  %v7779 = vpop.permute.xlu0 %7778
  %7780 = vrot.lane.b32.xlu0 %v5218, 31
  %v7781 = vpop.permute.xlu0 %7780
  %7782 = vrot.lane.b32.xlu0 %v5219, 31
  %v7783 = vpop.permute.xlu0 %7782
  %7784 = vrot.lane.b32.xlu0 %v5220, 31
  %v7785 = vpop.permute.xlu0 %7784
  %7786 = vrot.lane.b32.xlu0 %v5221, 31
  %v7787 = vpop.permute.xlu0 %7786
  %7788 = vrot.lane.b32.xlu0 %v5222, 31
  %v7789 = vpop.permute.xlu0 %7788
  %7790 = vrot.lane.b32.xlu0 %v5223, 31
  %v7791 = vpop.permute.xlu0 %7790
  %7792 = vrot.lane.b32.xlu0 %v5224, 31
  %v7793 = vpop.permute.xlu0 %7792
  %7794 = vrot.lane.b32.xlu0 %v5225, 31
  %v7795 = vpop.permute.xlu0 %7794
  %7796 = vrot.lane.b32.xlu0 %v5226, 31
  %v7797 = vpop.permute.xlu0 %7796
  %7798 = vrot.lane.b32.xlu0 %v5227, 31
  %v7799 = vpop.permute.xlu0 %7798
  %7800 = vrot.lane.b32.xlu0 %v5228, 31
  %v7801 = vpop.permute.xlu0 %7800
  %7802 = vrot.lane.b32.xlu0 %v5229, 31
  %v7803 = vpop.permute.xlu0 %7802
  %7804 = vrot.lane.b32.xlu0 %v5230, 31
  %v7805 = vpop.permute.xlu0 %7804
  %7806 = vrot.lane.b32.xlu0 %v5231, 31
  %v7807 = vpop.permute.xlu0 %7806
  %7808 = vrot.lane.b32.xlu0 %v5232, 31
  %v7809 = vpop.permute.xlu0 %7808
  %7810 = vrot.lane.b32.xlu0 %v5233, 31
  %v7811 = vpop.permute.xlu0 %7810
  %7812 = vrot.lane.b32.xlu0 %v5234, 31
  %v7813 = vpop.permute.xlu0 %7812
  %7814 = vrot.lane.b32.xlu0 %v5235, 31
  %v7815 = vpop.permute.xlu0 %7814
  %7816 = vrot.lane.b32.xlu0 %v5236, 31
  %v7817 = vpop.permute.xlu0 %7816
  %7818 = vrot.lane.b32.xlu0 %v5237, 31
  %v7819 = vpop.permute.xlu0 %7818
  %7820 = vrot.lane.b32.xlu0 %v5238, 31
  %v7821 = vpop.permute.xlu0 %7820
  %7822 = vrot.lane.b32.xlu0 %v5239, 31
  %v7823 = vpop.permute.xlu0 %7822
  %7824 = vrot.lane.b32.xlu0 %v5240, 31
  %v7825 = vpop.permute.xlu0 %7824
  %7826 = vrot.lane.b32.xlu0 0.0, 31
  %v7827 = vpop.permute.xlu0 %7826
  %v7828 = vsel %vm4126, %v7747, %v7749
  %v7829 = vsel %vm4126, %v7749, %v7751
  %v7830 = vsel %vm4126, %v7751, %v7753
  %v7831 = vsel %vm4126, %v7753, %v7755
  %v7832 = vsel %vm4126, %v7755, %v7757
  %v7833 = vsel %vm4126, %v7757, %v7759
  %v7834 = vsel %vm4126, %v7759, %v7761
  %v7835 = vsel %vm4126, %v7761, %v7763
  %v7836 = vsel %vm4126, %v7763, %v7765
  %v7837 = vsel %vm4126, %v7765, %v7767
  %v7838 = vsel %vm4126, %v7767, %v7769
  %v7839 = vsel %vm4126, %v7769, %v7771
  %v7840 = vsel %vm4126, %v7771, %v7773
  %v7841 = vsel %vm4126, %v7773, %v7775
  %v7842 = vsel %vm4126, %v7775, %v7777
  %v7843 = vsel %vm4126, %v7777, %v7779
  %v7844 = vsel %vm4126, %v7779, %v7781
  %v7845 = vsel %vm4126, %v7781, %v7783
  %v7846 = vsel %vm4126, %v7783, %v7785
  %v7847 = vsel %vm4126, %v7785, %v7787
  %v7848 = vsel %vm4126, %v7787, %v7789
  %v7849 = vsel %vm4126, %v7789, %v7791
  %v7850 = vsel %vm4126, %v7791, %v7793
  %v7851 = vsel %vm4126, %v7793, %v7795
  %v7852 = vsel %vm4126, %v7795, %v7797
  %v7853 = vsel %vm4126, %v7797, %v7799
  %v7854 = vsel %vm4126, %v7799, %v7801
  %v7855 = vsel %vm4126, %v7801, %v7803
  %v7856 = vsel %vm4126, %v7803, %v7805
  %v7857 = vsel %vm4126, %v7805, %v7807
  %v7858 = vsel %vm4126, %v7807, %v7809
  %v7859 = vsel %vm4126, %v7809, %v7811
  %v7860 = vsel %vm4126, %v7811, %v7813
  %v7861 = vsel %vm4126, %v7813, %v7815
  %v7862 = vsel %vm4126, %v7815, %v7817
  %v7863 = vsel %vm4126, %v7817, %v7819
  %v7864 = vsel %vm4126, %v7819, %v7821
  %v7865 = vsel %vm4126, %v7821, %v7823
  %v7866 = vsel %vm4126, %v7823, %v7825
  %v7867 = vsel %vm4126, %v7825, %v7827
  %7908 = vst [vmem:[#allocation2 + $0x1040] sm:$0xff] %v7828
  %7909 = vst [vmem:[#allocation2 + $0x1048] sm:$0xff] %v7829
  %7910 = vst [vmem:[#allocation2 + $0x1050] sm:$0xff] %v7830
  %7911 = vst [vmem:[#allocation2 + $0x1058] sm:$0xff] %v7831
  %7912 = vst [vmem:[#allocation2 + $0x1060] sm:$0xff] %v7832
  %7913 = vst [vmem:[#allocation2 + $0x1068] sm:$0xff] %v7833
  %7914 = vst [vmem:[#allocation2 + $0x1070] sm:$0xff] %v7834
  %7915 = vst [vmem:[#allocation2 + $0x1078] sm:$0xff] %v7835
  %7916 = vst [vmem:[#allocation2 + $0x1080] sm:$0xff] %v7836
  %7917 = vst [vmem:[#allocation2 + $0x1088] sm:$0xff] %v7837
  %7918 = vst [vmem:[#allocation2 + $0x1090] sm:$0xff] %v7838
  %7919 = vst [vmem:[#allocation2 + $0x1098] sm:$0xff] %v7839
  %7920 = vst [vmem:[#allocation2 + $0x10a0] sm:$0xff] %v7840
  %7921 = vst [vmem:[#allocation2 + $0x10a8] sm:$0xff] %v7841
  %7922 = vst [vmem:[#allocation2 + $0x10b0] sm:$0xff] %v7842
  %7923 = vst [vmem:[#allocation2 + $0x10b8] sm:$0xff] %v7843
  %7924 = vst [vmem:[#allocation2 + $0x10c0] sm:$0xff] %v7844
  %7925 = vst [vmem:[#allocation2 + $0x10c8] sm:$0xff] %v7845
  %7926 = vst [vmem:[#allocation2 + $0x10d0] sm:$0xff] %v7846
  %7927 = vst [vmem:[#allocation2 + $0x10d8] sm:$0xff] %v7847
  %7928 = vst [vmem:[#allocation2 + $0x10e0] sm:$0xff] %v7848
  %7929 = vst [vmem:[#allocation2 + $0x10e8] sm:$0xff] %v7849
  %7930 = vst [vmem:[#allocation2 + $0x10f0] sm:$0xff] %v7850
  %7931 = vst [vmem:[#allocation2 + $0x10f8] sm:$0xff] %v7851
  %7932 = vst [vmem:[#allocation2 + $0x1100] sm:$0xff] %v7852
  %7933 = vst [vmem:[#allocation2 + $0x1108] sm:$0xff] %v7853
  %7934 = vst [vmem:[#allocation2 + $0x1110] sm:$0xff] %v7854
  %7935 = vst [vmem:[#allocation2 + $0x1118] sm:$0xff] %v7855
  %7936 = vst [vmem:[#allocation2 + $0x1120] sm:$0xff] %v7856
  %7937 = vst [vmem:[#allocation2 + $0x1128] sm:$0xff] %v7857
  %7938 = vst [vmem:[#allocation2 + $0x1130] sm:$0xff] %v7858
  %7939 = vst [vmem:[#allocation2 + $0x1138] sm:$0xff] %v7859
  %7940 = vst [vmem:[#allocation2 + $0x1140] sm:$0xff] %v7860
  %7941 = vst [vmem:[#allocation2 + $0x1148] sm:$0xff] %v7861
  %7942 = vst [vmem:[#allocation2 + $0x1150] sm:$0xff] %v7862
  %7943 = vst [vmem:[#allocation2 + $0x1158] sm:$0xff] %v7863
  %7944 = vst [vmem:[#allocation2 + $0x1160] sm:$0xff] %v7864
  %7945 = vst [vmem:[#allocation2 + $0x1168] sm:$0xff] %v7865
  %7946 = vst [vmem:[#allocation2 + $0x1170] sm:$0xff] %v7866
  %7947 = vst [vmem:[#allocation2 + $0x1178] sm:$0xff] %v7867
  %7948 = vrot.lane.b32.xlu0 %v5201, 30
  %v7949 = vpop.permute.xlu0 %7948
  %7950 = vrot.lane.b32.xlu0 %v5202, 30
  %v7951 = vpop.permute.xlu0 %7950
  %7952 = vrot.lane.b32.xlu0 %v5203, 30
  %v7953 = vpop.permute.xlu0 %7952
  %7954 = vrot.lane.b32.xlu0 %v5204, 30
  %v7955 = vpop.permute.xlu0 %7954
  %7956 = vrot.lane.b32.xlu0 %v5205, 30
  %v7957 = vpop.permute.xlu0 %7956
  %7958 = vrot.lane.b32.xlu0 %v5206, 30
  %v7959 = vpop.permute.xlu0 %7958
  %7960 = vrot.lane.b32.xlu0 %v5207, 30
  %v7961 = vpop.permute.xlu0 %7960
  %7962 = vrot.lane.b32.xlu0 %v5208, 30
  %v7963 = vpop.permute.xlu0 %7962
  %7964 = vrot.lane.b32.xlu0 %v5209, 30
  %v7965 = vpop.permute.xlu0 %7964
  %7966 = vrot.lane.b32.xlu0 %v5210, 30
  %v7967 = vpop.permute.xlu0 %7966
  %7968 = vrot.lane.b32.xlu0 %v5211, 30
  %v7969 = vpop.permute.xlu0 %7968
  %7970 = vrot.lane.b32.xlu0 %v5212, 30
  %v7971 = vpop.permute.xlu0 %7970
  %7972 = vrot.lane.b32.xlu0 %v5213, 30
  %v7973 = vpop.permute.xlu0 %7972
  %7974 = vrot.lane.b32.xlu0 %v5214, 30
  %v7975 = vpop.permute.xlu0 %7974
  %7976 = vrot.lane.b32.xlu0 %v5215, 30
  %v7977 = vpop.permute.xlu0 %7976
  %7978 = vrot.lane.b32.xlu0 %v5216, 30
  %v7979 = vpop.permute.xlu0 %7978
  %7980 = vrot.lane.b32.xlu0 %v5217, 30
  %v7981 = vpop.permute.xlu0 %7980
  %7982 = vrot.lane.b32.xlu0 %v5218, 30
  %v7983 = vpop.permute.xlu0 %7982
  %7984 = vrot.lane.b32.xlu0 %v5219, 30
  %v7985 = vpop.permute.xlu0 %7984
  %7986 = vrot.lane.b32.xlu0 %v5220, 30
  %v7987 = vpop.permute.xlu0 %7986
  %7988 = vrot.lane.b32.xlu0 %v5221, 30
  %v7989 = vpop.permute.xlu0 %7988
  %7990 = vrot.lane.b32.xlu0 %v5222, 30
  %v7991 = vpop.permute.xlu0 %7990
  %7992 = vrot.lane.b32.xlu0 %v5223, 30
  %v7993 = vpop.permute.xlu0 %7992
  %7994 = vrot.lane.b32.xlu0 %v5224, 30
  %v7995 = vpop.permute.xlu0 %7994
  %7996 = vrot.lane.b32.xlu0 %v5225, 30
  %v7997 = vpop.permute.xlu0 %7996
  %7998 = vrot.lane.b32.xlu0 %v5226, 30
  %v7999 = vpop.permute.xlu0 %7998
  %8000 = vrot.lane.b32.xlu0 %v5227, 30
  %v8001 = vpop.permute.xlu0 %8000
  %8002 = vrot.lane.b32.xlu0 %v5228, 30
  %v8003 = vpop.permute.xlu0 %8002
  %8004 = vrot.lane.b32.xlu0 %v5229, 30
  %v8005 = vpop.permute.xlu0 %8004
  %8006 = vrot.lane.b32.xlu0 %v5230, 30
  %v8007 = vpop.permute.xlu0 %8006
  %8008 = vrot.lane.b32.xlu0 %v5231, 30
  %v8009 = vpop.permute.xlu0 %8008
  %8010 = vrot.lane.b32.xlu0 %v5232, 30
  %v8011 = vpop.permute.xlu0 %8010
  %8012 = vrot.lane.b32.xlu0 %v5233, 30
  %v8013 = vpop.permute.xlu0 %8012
  %8014 = vrot.lane.b32.xlu0 %v5234, 30
  %v8015 = vpop.permute.xlu0 %8014
  %8016 = vrot.lane.b32.xlu0 %v5235, 30
  %v8017 = vpop.permute.xlu0 %8016
  %8018 = vrot.lane.b32.xlu0 %v5236, 30
  %v8019 = vpop.permute.xlu0 %8018
  %8020 = vrot.lane.b32.xlu0 %v5237, 30
  %v8021 = vpop.permute.xlu0 %8020
  %8022 = vrot.lane.b32.xlu0 %v5238, 30
  %v8023 = vpop.permute.xlu0 %8022
  %8024 = vrot.lane.b32.xlu0 %v5239, 30
  %v8025 = vpop.permute.xlu0 %8024
  %8026 = vrot.lane.b32.xlu0 %v5240, 30
  %v8027 = vpop.permute.xlu0 %8026
  %8028 = vrot.lane.b32.xlu0 0.0, 30
  %v8029 = vpop.permute.xlu0 %8028
  %v8030 = vsel %vm4415, %v7949, %v7951
  %v8031 = vsel %vm4415, %v7951, %v7953
  %v8032 = vsel %vm4415, %v7953, %v7955
  %v8033 = vsel %vm4415, %v7955, %v7957
  %v8034 = vsel %vm4415, %v7957, %v7959
  %v8035 = vsel %vm4415, %v7959, %v7961
  %v8036 = vsel %vm4415, %v7961, %v7963
  %v8037 = vsel %vm4415, %v7963, %v7965
  %v8038 = vsel %vm4415, %v7965, %v7967
  %v8039 = vsel %vm4415, %v7967, %v7969
  %v8040 = vsel %vm4415, %v7969, %v7971
  %v8041 = vsel %vm4415, %v7971, %v7973
  %v8042 = vsel %vm4415, %v7973, %v7975
  %v8043 = vsel %vm4415, %v7975, %v7977
  %v8044 = vsel %vm4415, %v7977, %v7979
  %v8045 = vsel %vm4415, %v7979, %v7981
  %v8046 = vsel %vm4415, %v7981, %v7983
  %v8047 = vsel %vm4415, %v7983, %v7985
  %v8048 = vsel %vm4415, %v7985, %v7987
  %v8049 = vsel %vm4415, %v7987, %v7989
  %v8050 = vsel %vm4415, %v7989, %v7991
  %v8051 = vsel %vm4415, %v7991, %v7993
  %v8052 = vsel %vm4415, %v7993, %v7995
  %v8053 = vsel %vm4415, %v7995, %v7997
  %v8054 = vsel %vm4415, %v7997, %v7999
  %v8055 = vsel %vm4415, %v7999, %v8001
  %v8056 = vsel %vm4415, %v8001, %v8003
  %v8057 = vsel %vm4415, %v8003, %v8005
  %v8058 = vsel %vm4415, %v8005, %v8007
  %v8059 = vsel %vm4415, %v8007, %v8009
  %v8060 = vsel %vm4415, %v8009, %v8011
  %v8061 = vsel %vm4415, %v8011, %v8013
  %v8062 = vsel %vm4415, %v8013, %v8015
  %v8063 = vsel %vm4415, %v8015, %v8017
  %v8064 = vsel %vm4415, %v8017, %v8019
  %v8065 = vsel %vm4415, %v8019, %v8021
  %v8066 = vsel %vm4415, %v8021, %v8023
  %v8067 = vsel %vm4415, %v8023, %v8025
  %v8068 = vsel %vm4415, %v8025, %v8027
  %v8069 = vsel %vm4415, %v8027, %v8029
  %8110 = vst [vmem:[#allocation2 + $0x1180] sm:$0xff] %v8030
  %8111 = vst [vmem:[#allocation2 + $0x1188] sm:$0xff] %v8031
  %8112 = vst [vmem:[#allocation2 + $0x1190] sm:$0xff] %v8032
  %8113 = vst [vmem:[#allocation2 + $0x1198] sm:$0xff] %v8033
  %8114 = vst [vmem:[#allocation2 + $0x11a0] sm:$0xff] %v8034
  %8115 = vst [vmem:[#allocation2 + $0x11a8] sm:$0xff] %v8035
  %8116 = vst [vmem:[#allocation2 + $0x11b0] sm:$0xff] %v8036
  %8117 = vst [vmem:[#allocation2 + $0x11b8] sm:$0xff] %v8037
  %8118 = vst [vmem:[#allocation2 + $0x11c0] sm:$0xff] %v8038
  %8119 = vst [vmem:[#allocation2 + $0x11c8] sm:$0xff] %v8039
  %8120 = vst [vmem:[#allocation2 + $0x11d0] sm:$0xff] %v8040
  %8121 = vst [vmem:[#allocation2 + $0x11d8] sm:$0xff] %v8041
  %8122 = vst [vmem:[#allocation2 + $0x11e0] sm:$0xff] %v8042
  %8123 = vst [vmem:[#allocation2 + $0x11e8] sm:$0xff] %v8043
  %8124 = vst [vmem:[#allocation2 + $0x11f0] sm:$0xff] %v8044
  %8125 = vst [vmem:[#allocation2 + $0x11f8] sm:$0xff] %v8045
  %8126 = vst [vmem:[#allocation2 + $0x1200] sm:$0xff] %v8046
  %8127 = vst [vmem:[#allocation2 + $0x1208] sm:$0xff] %v8047
  %8128 = vst [vmem:[#allocation2 + $0x1210] sm:$0xff] %v8048
  %8129 = vst [vmem:[#allocation2 + $0x1218] sm:$0xff] %v8049
  %8130 = vst [vmem:[#allocation2 + $0x1220] sm:$0xff] %v8050
  %8131 = vst [vmem:[#allocation2 + $0x1228] sm:$0xff] %v8051
  %8132 = vst [vmem:[#allocation2 + $0x1230] sm:$0xff] %v8052
  %8133 = vst [vmem:[#allocation2 + $0x1238] sm:$0xff] %v8053
  %8134 = vst [vmem:[#allocation2 + $0x1240] sm:$0xff] %v8054
  %8135 = vst [vmem:[#allocation2 + $0x1248] sm:$0xff] %v8055
  %8136 = vst [vmem:[#allocation2 + $0x1250] sm:$0xff] %v8056
  %8137 = vst [vmem:[#allocation2 + $0x1258] sm:$0xff] %v8057
  %8138 = vst [vmem:[#allocation2 + $0x1260] sm:$0xff] %v8058
  %8139 = vst [vmem:[#allocation2 + $0x1268] sm:$0xff] %v8059
  %8140 = vst [vmem:[#allocation2 + $0x1270] sm:$0xff] %v8060
  %8141 = vst [vmem:[#allocation2 + $0x1278] sm:$0xff] %v8061
  %8142 = vst [vmem:[#allocation2 + $0x1280] sm:$0xff] %v8062
  %8143 = vst [vmem:[#allocation2 + $0x1288] sm:$0xff] %v8063
  %8144 = vst [vmem:[#allocation2 + $0x1290] sm:$0xff] %v8064
  %8145 = vst [vmem:[#allocation2 + $0x1298] sm:$0xff] %v8065
  %8146 = vst [vmem:[#allocation2 + $0x12a0] sm:$0xff] %v8066
  %8147 = vst [vmem:[#allocation2 + $0x12a8] sm:$0xff] %v8067
  %8148 = vst [vmem:[#allocation2 + $0x12b0] sm:$0xff] %v8068
  %8149 = vst [vmem:[#allocation2 + $0x12b8] sm:$0xff] %v8069
  %8150 = vrot.lane.b32.xlu0 %v5201, 29
  %v8151 = vpop.permute.xlu0 %8150
  %8152 = vrot.lane.b32.xlu0 %v5202, 29
  %v8153 = vpop.permute.xlu0 %8152
  %8154 = vrot.lane.b32.xlu0 %v5203, 29
  %v8155 = vpop.permute.xlu0 %8154
  %8156 = vrot.lane.b32.xlu0 %v5204, 29
  %v8157 = vpop.permute.xlu0 %8156
  %8158 = vrot.lane.b32.xlu0 %v5205, 29
  %v8159 = vpop.permute.xlu0 %8158
  %8160 = vrot.lane.b32.xlu0 %v5206, 29
  %v8161 = vpop.permute.xlu0 %8160
  %8162 = vrot.lane.b32.xlu0 %v5207, 29
  %v8163 = vpop.permute.xlu0 %8162
  %8164 = vrot.lane.b32.xlu0 %v5208, 29
  %v8165 = vpop.permute.xlu0 %8164
  %8166 = vrot.lane.b32.xlu0 %v5209, 29
  %v8167 = vpop.permute.xlu0 %8166
  %8168 = vrot.lane.b32.xlu0 %v5210, 29
  %v8169 = vpop.permute.xlu0 %8168
  %8170 = vrot.lane.b32.xlu0 %v5211, 29
  %v8171 = vpop.permute.xlu0 %8170
  %8172 = vrot.lane.b32.xlu0 %v5212, 29
  %v8173 = vpop.permute.xlu0 %8172
  %8174 = vrot.lane.b32.xlu0 %v5213, 29
  %v8175 = vpop.permute.xlu0 %8174
  %8176 = vrot.lane.b32.xlu0 %v5214, 29
  %v8177 = vpop.permute.xlu0 %8176
  %8178 = vrot.lane.b32.xlu0 %v5215, 29
  %v8179 = vpop.permute.xlu0 %8178
  %8180 = vrot.lane.b32.xlu0 %v5216, 29
  %v8181 = vpop.permute.xlu0 %8180
  %8182 = vrot.lane.b32.xlu0 %v5217, 29
  %v8183 = vpop.permute.xlu0 %8182
  %8184 = vrot.lane.b32.xlu0 %v5218, 29
  %v8185 = vpop.permute.xlu0 %8184
  %8186 = vrot.lane.b32.xlu0 %v5219, 29
  %v8187 = vpop.permute.xlu0 %8186
  %8188 = vrot.lane.b32.xlu0 %v5220, 29
  %v8189 = vpop.permute.xlu0 %8188
  %8190 = vrot.lane.b32.xlu0 %v5221, 29
  %v8191 = vpop.permute.xlu0 %8190
  %8192 = vrot.lane.b32.xlu0 %v5222, 29
  %v8193 = vpop.permute.xlu0 %8192
  %8194 = vrot.lane.b32.xlu0 %v5223, 29
  %v8195 = vpop.permute.xlu0 %8194
  %8196 = vrot.lane.b32.xlu0 %v5224, 29
  %v8197 = vpop.permute.xlu0 %8196
  %8198 = vrot.lane.b32.xlu0 %v5225, 29
  %v8199 = vpop.permute.xlu0 %8198
  %8200 = vrot.lane.b32.xlu0 %v5226, 29
  %v8201 = vpop.permute.xlu0 %8200
  %8202 = vrot.lane.b32.xlu0 %v5227, 29
  %v8203 = vpop.permute.xlu0 %8202
  %8204 = vrot.lane.b32.xlu0 %v5228, 29
  %v8205 = vpop.permute.xlu0 %8204
  %8206 = vrot.lane.b32.xlu0 %v5229, 29
  %v8207 = vpop.permute.xlu0 %8206
  %8208 = vrot.lane.b32.xlu0 %v5230, 29
  %v8209 = vpop.permute.xlu0 %8208
  %8210 = vrot.lane.b32.xlu0 %v5231, 29
  %v8211 = vpop.permute.xlu0 %8210
  %8212 = vrot.lane.b32.xlu0 %v5232, 29
  %v8213 = vpop.permute.xlu0 %8212
  %8214 = vrot.lane.b32.xlu0 %v5233, 29
  %v8215 = vpop.permute.xlu0 %8214
  %8216 = vrot.lane.b32.xlu0 %v5234, 29
  %v8217 = vpop.permute.xlu0 %8216
  %8218 = vrot.lane.b32.xlu0 %v5235, 29
  %v8219 = vpop.permute.xlu0 %8218
  %8220 = vrot.lane.b32.xlu0 %v5236, 29
  %v8221 = vpop.permute.xlu0 %8220
  %8222 = vrot.lane.b32.xlu0 %v5237, 29
  %v8223 = vpop.permute.xlu0 %8222
  %8224 = vrot.lane.b32.xlu0 %v5238, 29
  %v8225 = vpop.permute.xlu0 %8224
  %8226 = vrot.lane.b32.xlu0 %v5239, 29
  %v8227 = vpop.permute.xlu0 %8226
  %8228 = vrot.lane.b32.xlu0 %v5240, 29
  %v8229 = vpop.permute.xlu0 %8228
  %8230 = vrot.lane.b32.xlu0 0.0, 29
  %v8231 = vpop.permute.xlu0 %8230
  %v8232 = vsel %vm4704, %v8151, %v8153
  %v8233 = vsel %vm4704, %v8153, %v8155
  %v8234 = vsel %vm4704, %v8155, %v8157
  %v8235 = vsel %vm4704, %v8157, %v8159
  %v8236 = vsel %vm4704, %v8159, %v8161
  %v8237 = vsel %vm4704, %v8161, %v8163
  %v8238 = vsel %vm4704, %v8163, %v8165
  %v8239 = vsel %vm4704, %v8165, %v8167
  %v8240 = vsel %vm4704, %v8167, %v8169
  %v8241 = vsel %vm4704, %v8169, %v8171
  %v8242 = vsel %vm4704, %v8171, %v8173
  %v8243 = vsel %vm4704, %v8173, %v8175
  %v8244 = vsel %vm4704, %v8175, %v8177
  %v8245 = vsel %vm4704, %v8177, %v8179
  %v8246 = vsel %vm4704, %v8179, %v8181
  %v8247 = vsel %vm4704, %v8181, %v8183
  %v8248 = vsel %vm4704, %v8183, %v8185
  %v8249 = vsel %vm4704, %v8185, %v8187
  %v8250 = vsel %vm4704, %v8187, %v8189
  %v8251 = vsel %vm4704, %v8189, %v8191
  %v8252 = vsel %vm4704, %v8191, %v8193
  %v8253 = vsel %vm4704, %v8193, %v8195
  %v8254 = vsel %vm4704, %v8195, %v8197
  %v8255 = vsel %vm4704, %v8197, %v8199
  %v8256 = vsel %vm4704, %v8199, %v8201
  %v8257 = vsel %vm4704, %v8201, %v8203
  %v8258 = vsel %vm4704, %v8203, %v8205
  %v8259 = vsel %vm4704, %v8205, %v8207
  %v8260 = vsel %vm4704, %v8207, %v8209
  %v8261 = vsel %vm4704, %v8209, %v8211
  %v8262 = vsel %vm4704, %v8211, %v8213
  %v8263 = vsel %vm4704, %v8213, %v8215
  %v8264 = vsel %vm4704, %v8215, %v8217
  %v8265 = vsel %vm4704, %v8217, %v8219
  %v8266 = vsel %vm4704, %v8219, %v8221
  %v8267 = vsel %vm4704, %v8221, %v8223
  %v8268 = vsel %vm4704, %v8223, %v8225
  %v8269 = vsel %vm4704, %v8225, %v8227
  %v8270 = vsel %vm4704, %v8227, %v8229
  %v8271 = vsel %vm4704, %v8229, %v8231
  %8312 = vst [vmem:[#allocation2 + $0x12c0] sm:$0xff] %v8232
  %8313 = vst [vmem:[#allocation2 + $0x12c8] sm:$0xff] %v8233
  %8314 = vst [vmem:[#allocation2 + $0x12d0] sm:$0xff] %v8234
  %8315 = vst [vmem:[#allocation2 + $0x12d8] sm:$0xff] %v8235
  %8316 = vst [vmem:[#allocation2 + $0x12e0] sm:$0xff] %v8236
  %8317 = vst [vmem:[#allocation2 + $0x12e8] sm:$0xff] %v8237
  %8318 = vst [vmem:[#allocation2 + $0x12f0] sm:$0xff] %v8238
  %8319 = vst [vmem:[#allocation2 + $0x12f8] sm:$0xff] %v8239
  %8320 = vst [vmem:[#allocation2 + $0x1300] sm:$0xff] %v8240
  %8321 = vst [vmem:[#allocation2 + $0x1308] sm:$0xff] %v8241
  %8322 = vst [vmem:[#allocation2 + $0x1310] sm:$0xff] %v8242
  %8323 = vst [vmem:[#allocation2 + $0x1318] sm:$0xff] %v8243
  %8324 = vst [vmem:[#allocation2 + $0x1320] sm:$0xff] %v8244
  %8325 = vst [vmem:[#allocation2 + $0x1328] sm:$0xff] %v8245
  %8326 = vst [vmem:[#allocation2 + $0x1330] sm:$0xff] %v8246
  %8327 = vst [vmem:[#allocation2 + $0x1338] sm:$0xff] %v8247
  %8328 = vst [vmem:[#allocation2 + $0x1340] sm:$0xff] %v8248
  %8329 = vst [vmem:[#allocation2 + $0x1348] sm:$0xff] %v8249
  %8330 = vst [vmem:[#allocation2 + $0x1350] sm:$0xff] %v8250
  %8331 = vst [vmem:[#allocation2 + $0x1358] sm:$0xff] %v8251
  %8332 = vst [vmem:[#allocation2 + $0x1360] sm:$0xff] %v8252
  %8333 = vst [vmem:[#allocation2 + $0x1368] sm:$0xff] %v8253
  %8334 = vst [vmem:[#allocation2 + $0x1370] sm:$0xff] %v8254
  %8335 = vst [vmem:[#allocation2 + $0x1378] sm:$0xff] %v8255
  %8336 = vst [vmem:[#allocation2 + $0x1380] sm:$0xff] %v8256
  %8337 = vst [vmem:[#allocation2 + $0x1388] sm:$0xff] %v8257
  %8338 = vst [vmem:[#allocation2 + $0x1390] sm:$0xff] %v8258
  %8339 = vst [vmem:[#allocation2 + $0x1398] sm:$0xff] %v8259
  %8340 = vst [vmem:[#allocation2 + $0x13a0] sm:$0xff] %v8260
  %8341 = vst [vmem:[#allocation2 + $0x13a8] sm:$0xff] %v8261
  %8342 = vst [vmem:[#allocation2 + $0x13b0] sm:$0xff] %v8262
  %8343 = vst [vmem:[#allocation2 + $0x13b8] sm:$0xff] %v8263
  %8344 = vst [vmem:[#allocation2 + $0x13c0] sm:$0xff] %v8264
  %8345 = vst [vmem:[#allocation2 + $0x13c8] sm:$0xff] %v8265
  %8346 = vst [vmem:[#allocation2 + $0x13d0] sm:$0xff] %v8266
  %8347 = vst [vmem:[#allocation2 + $0x13d8] sm:$0xff] %v8267
  %8348 = vst [vmem:[#allocation2 + $0x13e0] sm:$0xff] %v8268
  %8349 = vst [vmem:[#allocation2 + $0x13e8] sm:$0xff] %v8269
  %8350 = vst [vmem:[#allocation2 + $0x13f0] sm:$0xff] %v8270
  %8351 = vst [vmem:[#allocation2 + $0x13f8] sm:$0xff] %v8271
  %v8352 = vld [vmem:[%s4] sm:$0xff]
  %v8353 = vld [vmem:[%s4 + $0x8] sm:$0xff]
  %v8354 = vld [vmem:[#allocation2] sm:$0xff]
  %v8355 = vld [vmem:[#allocation2 + $0x8] sm:$0xff]
  %v8356 = vld [vmem:[#allocation2 + $0x10] sm:$0xff]
  %v8357 = vld [vmem:[#allocation2 + $0x18] sm:$0xff]
  %v8358 = vld [vmem:[#allocation2 + $0x20] sm:$0xff]
  %v8359 = vld [vmem:[#allocation2 + $0x28] sm:$0xff]
  %v8360 = vld [vmem:[#allocation2 + $0x30] sm:$0xff]
  %v8361 = vld [vmem:[#allocation2 + $0x38] sm:$0xff]
  %v8362 = vld [vmem:[#allocation2 + $0x40] sm:$0xff]
  %v8363 = vld [vmem:[#allocation2 + $0x48] sm:$0xff]
  %v8364 = vld [vmem:[#allocation2 + $0x50] sm:$0xff]
  %v8365 = vld [vmem:[#allocation2 + $0x58] sm:$0xff]
  %v8366 = vld [vmem:[#allocation2 + $0x60] sm:$0xff]
  %v8367 = vld [vmem:[#allocation2 + $0x68] sm:$0xff]
  %v8368 = vld [vmem:[#allocation2 + $0x70] sm:$0xff]
  %v8369 = vld [vmem:[#allocation2 + $0x78] sm:$0xff]
  %v8370 = vld [vmem:[#allocation2 + $0x80] sm:$0xff]
  %v8371 = vld [vmem:[#allocation2 + $0x88] sm:$0xff]
  %v8372 = vld [vmem:[#allocation2 + $0x90] sm:$0xff]
  %v8373 = vld [vmem:[#allocation2 + $0x98] sm:$0xff]
  %v8374 = vld [vmem:[#allocation2 + $0xa0] sm:$0xff]
  %v8375 = vld [vmem:[#allocation2 + $0xa8] sm:$0xff]
  %v8376 = vld [vmem:[#allocation2 + $0xb0] sm:$0xff]
  %v8377 = vld [vmem:[#allocation2 + $0xb8] sm:$0xff]
  %v8378 = vld [vmem:[#allocation2 + $0xc0] sm:$0xff]
  %v8379 = vld [vmem:[#allocation2 + $0xc8] sm:$0xff]
  %v8380 = vld [vmem:[#allocation2 + $0xd0] sm:$0xff]
  %v8381 = vld [vmem:[#allocation2 + $0xd8] sm:$0xff]
  %v8382 = vld [vmem:[#allocation2 + $0xe0] sm:$0xff]
  %v8383 = vld [vmem:[#allocation2 + $0xe8] sm:$0xff]
  %v8384 = vld [vmem:[#allocation2 + $0xf0] sm:$0xff]
  %v8385 = vld [vmem:[#allocation2 + $0xf8] sm:$0xff]
  %v8386 = vld [vmem:[#allocation2 + $0x100] sm:$0xff]
  %v8387 = vld [vmem:[#allocation2 + $0x108] sm:$0xff]
  %v8388 = vld [vmem:[#allocation2 + $0x110] sm:$0xff]
  %v8389 = vld [vmem:[#allocation2 + $0x118] sm:$0xff]
  %v8390 = vld [vmem:[#allocation2 + $0x120] sm:$0xff]
  %v8391 = vld [vmem:[#allocation2 + $0x128] sm:$0xff]
  %v8392 = vld [vmem:[#allocation2 + $0x130] sm:$0xff]
  %v8393 = vld [vmem:[#allocation2 + $0x138] sm:$0xff]
  %v8394 = vld [vmem:[#allocation2 + $0x140] sm:$0xff]
  %v8395 = vld [vmem:[#allocation2 + $0x148] sm:$0xff]
  %v8396 = vld [vmem:[#allocation2 + $0x150] sm:$0xff]
  %v8397 = vld [vmem:[#allocation2 + $0x158] sm:$0xff]
  %v8398 = vld [vmem:[#allocation2 + $0x160] sm:$0xff]
  %v8399 = vld [vmem:[#allocation2 + $0x168] sm:$0xff]
  %v8400 = vld [vmem:[#allocation2 + $0x170] sm:$0xff]
  %v8401 = vld [vmem:[#allocation2 + $0x178] sm:$0xff]
  %v8402 = vld [vmem:[#allocation2 + $0x180] sm:$0xff]
  %v8403 = vld [vmem:[#allocation2 + $0x188] sm:$0xff]
  %v8404 = vld [vmem:[#allocation2 + $0x190] sm:$0xff]
  %v8405 = vld [vmem:[#allocation2 + $0x198] sm:$0xff]
  %v8406 = vld [vmem:[#allocation2 + $0x1a0] sm:$0xff]
  %v8407 = vld [vmem:[#allocation2 + $0x1a8] sm:$0xff]
  %v8408 = vld [vmem:[#allocation2 + $0x1b0] sm:$0xff]
  %v8409 = vld [vmem:[#allocation2 + $0x1b8] sm:$0xff]
  %v8410 = vld [vmem:[#allocation2 + $0x1c0] sm:$0xff]
  %v8411 = vld [vmem:[#allocation2 + $0x1c8] sm:$0xff]
  %v8412 = vld [vmem:[#allocation2 + $0x1d0] sm:$0xff]
  %v8413 = vld [vmem:[#allocation2 + $0x1d8] sm:$0xff]
  %v8414 = vld [vmem:[#allocation2 + $0x1e0] sm:$0xff]
  %v8415 = vld [vmem:[#allocation2 + $0x1e8] sm:$0xff]
  %v8416 = vld [vmem:[#allocation2 + $0x1f0] sm:$0xff]
  %v8417 = vld [vmem:[#allocation2 + $0x1f8] sm:$0xff]
  %v8418 = vld [vmem:[#allocation2 + $0x200] sm:$0xff]
  %v8419 = vld [vmem:[#allocation2 + $0x208] sm:$0xff]
  %v8420 = vld [vmem:[#allocation2 + $0x210] sm:$0xff]
  %v8421 = vld [vmem:[#allocation2 + $0x218] sm:$0xff]
  %v8422 = vld [vmem:[#allocation2 + $0x220] sm:$0xff]
  %v8423 = vld [vmem:[#allocation2 + $0x228] sm:$0xff]
  %v8424 = vld [vmem:[#allocation2 + $0x230] sm:$0xff]
  %v8425 = vld [vmem:[#allocation2 + $0x238] sm:$0xff]
  %v8426 = vld [vmem:[#allocation2 + $0x240] sm:$0xff]
  %v8427 = vld [vmem:[#allocation2 + $0x248] sm:$0xff]
  %v8428 = vld [vmem:[#allocation2 + $0x250] sm:$0xff]
  %v8429 = vld [vmem:[#allocation2 + $0x258] sm:$0xff]
  %v8430 = vld [vmem:[#allocation2 + $0x260] sm:$0xff]
  %v8431 = vld [vmem:[#allocation2 + $0x268] sm:$0xff]
  %v8432 = vld [vmem:[#allocation2 + $0x270] sm:$0xff]
  %v8433 = vld [vmem:[#allocation2 + $0x278] sm:$0xff]
  %v8434 = vld [vmem:[#allocation2 + $0x280] sm:$0xff]
  %v8435 = vld [vmem:[#allocation2 + $0x288] sm:$0xff]
  %v8436 = vld [vmem:[#allocation2 + $0x290] sm:$0xff]
  %v8437 = vld [vmem:[#allocation2 + $0x298] sm:$0xff]
  %v8438 = vld [vmem:[#allocation2 + $0x2a0] sm:$0xff]
  %v8439 = vld [vmem:[#allocation2 + $0x2a8] sm:$0xff]
  %v8440 = vld [vmem:[#allocation2 + $0x2b0] sm:$0xff]
  %v8441 = vld [vmem:[#allocation2 + $0x2b8] sm:$0xff]
  %v8442 = vld [vmem:[#allocation2 + $0x2c0] sm:$0xff]
  %v8443 = vld [vmem:[#allocation2 + $0x2c8] sm:$0xff]
  %v8444 = vld [vmem:[#allocation2 + $0x2d0] sm:$0xff]
  %v8445 = vld [vmem:[#allocation2 + $0x2d8] sm:$0xff]
  %v8446 = vld [vmem:[#allocation2 + $0x2e0] sm:$0xff]
  %v8447 = vld [vmem:[#allocation2 + $0x2e8] sm:$0xff]
  %v8448 = vld [vmem:[#allocation2 + $0x2f0] sm:$0xff]
  %v8449 = vld [vmem:[#allocation2 + $0x2f8] sm:$0xff]
  %v8450 = vld [vmem:[#allocation2 + $0x300] sm:$0xff]
  %v8451 = vld [vmem:[#allocation2 + $0x308] sm:$0xff]
  %v8452 = vld [vmem:[#allocation2 + $0x310] sm:$0xff]
  %v8453 = vld [vmem:[#allocation2 + $0x318] sm:$0xff]
  %v8454 = vld [vmem:[#allocation2 + $0x320] sm:$0xff]
  %v8455 = vld [vmem:[#allocation2 + $0x328] sm:$0xff]
  %v8456 = vld [vmem:[#allocation2 + $0x330] sm:$0xff]
  %v8457 = vld [vmem:[#allocation2 + $0x338] sm:$0xff]
  %v8458 = vld [vmem:[#allocation2 + $0x340] sm:$0xff]
  %v8459 = vld [vmem:[#allocation2 + $0x348] sm:$0xff]
  %v8460 = vld [vmem:[#allocation2 + $0x350] sm:$0xff]
  %v8461 = vld [vmem:[#allocation2 + $0x358] sm:$0xff]
  %v8462 = vld [vmem:[#allocation2 + $0x360] sm:$0xff]
  %v8463 = vld [vmem:[#allocation2 + $0x368] sm:$0xff]
  %v8464 = vld [vmem:[#allocation2 + $0x370] sm:$0xff]
  %v8465 = vld [vmem:[#allocation2 + $0x378] sm:$0xff]
  %v8466 = vld [vmem:[#allocation2 + $0x380] sm:$0xff]
  %v8467 = vld [vmem:[#allocation2 + $0x388] sm:$0xff]
  %v8468 = vld [vmem:[#allocation2 + $0x390] sm:$0xff]
  %v8469 = vld [vmem:[#allocation2 + $0x398] sm:$0xff]
  %v8470 = vld [vmem:[#allocation2 + $0x3a0] sm:$0xff]
  %v8471 = vld [vmem:[#allocation2 + $0x3a8] sm:$0xff]
  %v8472 = vld [vmem:[#allocation2 + $0x3b0] sm:$0xff]
  %v8473 = vld [vmem:[#allocation2 + $0x3b8] sm:$0xff]
  %v8474 = vld [vmem:[#allocation2 + $0x3c0] sm:$0xff]
  %v8475 = vld [vmem:[#allocation2 + $0x3c8] sm:$0xff]
  %v8476 = vld [vmem:[#allocation2 + $0x3d0] sm:$0xff]
  %v8477 = vld [vmem:[#allocation2 + $0x3d8] sm:$0xff]
  %v8478 = vld [vmem:[#allocation2 + $0x3e0] sm:$0xff]
  %v8479 = vld [vmem:[#allocation2 + $0x3e8] sm:$0xff]
  %v8480 = vld [vmem:[#allocation2 + $0x3f0] sm:$0xff]
  %v8481 = vld [vmem:[#allocation2 + $0x3f8] sm:$0xff]
  %v8482 = vld [vmem:[#allocation2 + $0x400] sm:$0xff]
  %v8483 = vld [vmem:[#allocation2 + $0x408] sm:$0xff]
  %v8484 = vld [vmem:[#allocation2 + $0x410] sm:$0xff]
  %v8485 = vld [vmem:[#allocation2 + $0x418] sm:$0xff]
  %v8486 = vld [vmem:[#allocation2 + $0x420] sm:$0xff]
  %v8487 = vld [vmem:[#allocation2 + $0x428] sm:$0xff]
  %v8488 = vld [vmem:[#allocation2 + $0x430] sm:$0xff]
  %v8489 = vld [vmem:[#allocation2 + $0x438] sm:$0xff]
  %v8490 = vld [vmem:[#allocation2 + $0x440] sm:$0xff]
  %v8491 = vld [vmem:[#allocation2 + $0x448] sm:$0xff]
  %v8492 = vld [vmem:[#allocation2 + $0x450] sm:$0xff]
  %v8493 = vld [vmem:[#allocation2 + $0x458] sm:$0xff]
  %v8494 = vld [vmem:[#allocation2 + $0x460] sm:$0xff]
  %v8495 = vld [vmem:[#allocation2 + $0x468] sm:$0xff]
  %v8496 = vld [vmem:[#allocation2 + $0x470] sm:$0xff]
  %v8497 = vld [vmem:[#allocation2 + $0x478] sm:$0xff]
  %v8498 = vld [vmem:[#allocation2 + $0x480] sm:$0xff]
  %v8499 = vld [vmem:[#allocation2 + $0x488] sm:$0xff]
  %v8500 = vld [vmem:[#allocation2 + $0x490] sm:$0xff]
  %v8501 = vld [vmem:[#allocation2 + $0x498] sm:$0xff]
  %v8502 = vld [vmem:[#allocation2 + $0x4a0] sm:$0xff]
  %v8503 = vld [vmem:[#allocation2 + $0x4a8] sm:$0xff]
  %v8504 = vld [vmem:[#allocation2 + $0x4b0] sm:$0xff]
  %v8505 = vld [vmem:[#allocation2 + $0x4b8] sm:$0xff]
  %v8506 = vld [vmem:[#allocation2 + $0x4c0] sm:$0xff]
  %v8507 = vld [vmem:[#allocation2 + $0x4c8] sm:$0xff]
  %v8508 = vld [vmem:[#allocation2 + $0x4d0] sm:$0xff]
  %v8509 = vld [vmem:[#allocation2 + $0x4d8] sm:$0xff]
  %v8510 = vld [vmem:[#allocation2 + $0x4e0] sm:$0xff]
  %v8511 = vld [vmem:[#allocation2 + $0x4e8] sm:$0xff]
  %v8512 = vld [vmem:[#allocation2 + $0x4f0] sm:$0xff]
  %v8513 = vld [vmem:[#allocation2 + $0x4f8] sm:$0xff]
  %v8514 = vld [vmem:[#allocation2 + $0x500] sm:$0xff]
  %v8515 = vld [vmem:[#allocation2 + $0x508] sm:$0xff]
  %v8516 = vld [vmem:[#allocation2 + $0x510] sm:$0xff]
  %v8517 = vld [vmem:[#allocation2 + $0x518] sm:$0xff]
  %v8518 = vld [vmem:[#allocation2 + $0x520] sm:$0xff]
  %v8519 = vld [vmem:[#allocation2 + $0x528] sm:$0xff]
  %v8520 = vld [vmem:[#allocation2 + $0x530] sm:$0xff]
  %v8521 = vld [vmem:[#allocation2 + $0x538] sm:$0xff]
  %v8522 = vld [vmem:[#allocation2 + $0x540] sm:$0xff]
  %v8523 = vld [vmem:[#allocation2 + $0x548] sm:$0xff]
  %v8524 = vld [vmem:[#allocation2 + $0x550] sm:$0xff]
  %v8525 = vld [vmem:[#allocation2 + $0x558] sm:$0xff]
  %v8526 = vld [vmem:[#allocation2 + $0x560] sm:$0xff]
  %v8527 = vld [vmem:[#allocation2 + $0x568] sm:$0xff]
  %v8528 = vld [vmem:[#allocation2 + $0x570] sm:$0xff]
  %v8529 = vld [vmem:[#allocation2 + $0x578] sm:$0xff]
  %v8530 = vld [vmem:[#allocation2 + $0x580] sm:$0xff]
  %v8531 = vld [vmem:[#allocation2 + $0x588] sm:$0xff]
  %v8532 = vld [vmem:[#allocation2 + $0x590] sm:$0xff]
  %v8533 = vld [vmem:[#allocation2 + $0x598] sm:$0xff]
  %v8534 = vld [vmem:[#allocation2 + $0x5a0] sm:$0xff]
  %v8535 = vld [vmem:[#allocation2 + $0x5a8] sm:$0xff]
  %v8536 = vld [vmem:[#allocation2 + $0x5b0] sm:$0xff]
  %v8537 = vld [vmem:[#allocation2 + $0x5b8] sm:$0xff]
  %v8538 = vld [vmem:[#allocation2 + $0x5c0] sm:$0xff]
  %v8539 = vld [vmem:[#allocation2 + $0x5c8] sm:$0xff]
  %v8540 = vld [vmem:[#allocation2 + $0x5d0] sm:$0xff]
  %v8541 = vld [vmem:[#allocation2 + $0x5d8] sm:$0xff]
  %v8542 = vld [vmem:[#allocation2 + $0x5e0] sm:$0xff]
  %v8543 = vld [vmem:[#allocation2 + $0x5e8] sm:$0xff]
  %v8544 = vld [vmem:[#allocation2 + $0x5f0] sm:$0xff]
  %v8545 = vld [vmem:[#allocation2 + $0x5f8] sm:$0xff]
  %v8546 = vld [vmem:[#allocation2 + $0x600] sm:$0xff]
  %v8547 = vld [vmem:[#allocation2 + $0x608] sm:$0xff]
  %v8548 = vld [vmem:[#allocation2 + $0x610] sm:$0xff]
  %v8549 = vld [vmem:[#allocation2 + $0x618] sm:$0xff]
  %v8550 = vld [vmem:[#allocation2 + $0x620] sm:$0xff]
  %v8551 = vld [vmem:[#allocation2 + $0x628] sm:$0xff]
  %v8552 = vld [vmem:[#allocation2 + $0x630] sm:$0xff]
  %v8553 = vld [vmem:[#allocation2 + $0x638] sm:$0xff]
  %v8554 = vld [vmem:[#allocation2 + $0x640] sm:$0xff]
  %v8555 = vld [vmem:[#allocation2 + $0x648] sm:$0xff]
  %v8556 = vld [vmem:[#allocation2 + $0x650] sm:$0xff]
  %v8557 = vld [vmem:[#allocation2 + $0x658] sm:$0xff]
  %v8558 = vld [vmem:[#allocation2 + $0x660] sm:$0xff]
  %v8559 = vld [vmem:[#allocation2 + $0x668] sm:$0xff]
  %v8560 = vld [vmem:[#allocation2 + $0x670] sm:$0xff]
  %v8561 = vld [vmem:[#allocation2 + $0x678] sm:$0xff]
  %v8562 = vld [vmem:[#allocation2 + $0x680] sm:$0xff]
  %v8563 = vld [vmem:[#allocation2 + $0x688] sm:$0xff]
  %v8564 = vld [vmem:[#allocation2 + $0x690] sm:$0xff]
  %v8565 = vld [vmem:[#allocation2 + $0x698] sm:$0xff]
  %v8566 = vld [vmem:[#allocation2 + $0x6a0] sm:$0xff]
  %v8567 = vld [vmem:[#allocation2 + $0x6a8] sm:$0xff]
  %v8568 = vld [vmem:[#allocation2 + $0x6b0] sm:$0xff]
  %v8569 = vld [vmem:[#allocation2 + $0x6b8] sm:$0xff]
  %v8570 = vld [vmem:[#allocation2 + $0x6c0] sm:$0xff]
  %v8571 = vld [vmem:[#allocation2 + $0x6c8] sm:$0xff]
  %v8572 = vld [vmem:[#allocation2 + $0x6d0] sm:$0xff]
  %v8573 = vld [vmem:[#allocation2 + $0x6d8] sm:$0xff]
  %v8574 = vld [vmem:[#allocation2 + $0x6e0] sm:$0xff]
  %v8575 = vld [vmem:[#allocation2 + $0x6e8] sm:$0xff]
  %v8576 = vld [vmem:[#allocation2 + $0x6f0] sm:$0xff]
  %v8577 = vld [vmem:[#allocation2 + $0x6f8] sm:$0xff]
  %v8578 = vld [vmem:[#allocation2 + $0x700] sm:$0xff]
  %v8579 = vld [vmem:[#allocation2 + $0x708] sm:$0xff]
  %v8580 = vld [vmem:[#allocation2 + $0x710] sm:$0xff]
  %v8581 = vld [vmem:[#allocation2 + $0x718] sm:$0xff]
  %v8582 = vld [vmem:[#allocation2 + $0x720] sm:$0xff]
  %v8583 = vld [vmem:[#allocation2 + $0x728] sm:$0xff]
  %v8584 = vld [vmem:[#allocation2 + $0x730] sm:$0xff]
  %v8585 = vld [vmem:[#allocation2 + $0x738] sm:$0xff]
  %v8586 = vld [vmem:[#allocation2 + $0x740] sm:$0xff]
  %v8587 = vld [vmem:[#allocation2 + $0x748] sm:$0xff]
  %v8588 = vld [vmem:[#allocation2 + $0x750] sm:$0xff]
  %v8589 = vld [vmem:[#allocation2 + $0x758] sm:$0xff]
  %v8590 = vld [vmem:[#allocation2 + $0x760] sm:$0xff]
  %v8591 = vld [vmem:[#allocation2 + $0x768] sm:$0xff]
  %v8592 = vld [vmem:[#allocation2 + $0x770] sm:$0xff]
  %v8593 = vld [vmem:[#allocation2 + $0x778] sm:$0xff]
  %v8594 = vld [vmem:[#allocation2 + $0x780] sm:$0xff]
  %v8595 = vld [vmem:[#allocation2 + $0x788] sm:$0xff]
  %v8596 = vld [vmem:[#allocation2 + $0x790] sm:$0xff]
  %v8597 = vld [vmem:[#allocation2 + $0x798] sm:$0xff]
  %v8598 = vld [vmem:[#allocation2 + $0x7a0] sm:$0xff]
  %v8599 = vld [vmem:[#allocation2 + $0x7a8] sm:$0xff]
  %v8600 = vld [vmem:[#allocation2 + $0x7b0] sm:$0xff]
  %v8601 = vld [vmem:[#allocation2 + $0x7b8] sm:$0xff]
  %v8602 = vld [vmem:[#allocation2 + $0x7c0] sm:$0xff]
  %v8603 = vld [vmem:[#allocation2 + $0x7c8] sm:$0xff]
  %v8604 = vld [vmem:[#allocation2 + $0x7d0] sm:$0xff]
  %v8605 = vld [vmem:[#allocation2 + $0x7d8] sm:$0xff]
  %v8606 = vld [vmem:[#allocation2 + $0x7e0] sm:$0xff]
  %v8607 = vld [vmem:[#allocation2 + $0x7e8] sm:$0xff]
  %v8608 = vld [vmem:[#allocation2 + $0x7f0] sm:$0xff]
  %v8609 = vld [vmem:[#allocation2 + $0x7f8] sm:$0xff]
  %v8610 = vld [vmem:[#allocation2 + $0x800] sm:$0xff]
  %v8611 = vld [vmem:[#allocation2 + $0x808] sm:$0xff]
  %v8612 = vld [vmem:[#allocation2 + $0x810] sm:$0xff]
  %v8613 = vld [vmem:[#allocation2 + $0x818] sm:$0xff]
  %v8614 = vld [vmem:[#allocation2 + $0x820] sm:$0xff]
  %v8615 = vld [vmem:[#allocation2 + $0x828] sm:$0xff]
  %v8616 = vld [vmem:[#allocation2 + $0x830] sm:$0xff]
  %v8617 = vld [vmem:[#allocation2 + $0x838] sm:$0xff]
  %v8618 = vld [vmem:[#allocation2 + $0x840] sm:$0xff]
  %v8619 = vld [vmem:[#allocation2 + $0x848] sm:$0xff]
  %v8620 = vld [vmem:[#allocation2 + $0x850] sm:$0xff]
  %v8621 = vld [vmem:[#allocation2 + $0x858] sm:$0xff]
  %v8622 = vld [vmem:[#allocation2 + $0x860] sm:$0xff]
  %v8623 = vld [vmem:[#allocation2 + $0x868] sm:$0xff]
  %v8624 = vld [vmem:[#allocation2 + $0x870] sm:$0xff]
  %v8625 = vld [vmem:[#allocation2 + $0x878] sm:$0xff]
  %v8626 = vld [vmem:[#allocation2 + $0x880] sm:$0xff]
  %v8627 = vld [vmem:[#allocation2 + $0x888] sm:$0xff]
  %v8628 = vld [vmem:[#allocation2 + $0x890] sm:$0xff]
  %v8629 = vld [vmem:[#allocation2 + $0x898] sm:$0xff]
  %v8630 = vld [vmem:[#allocation2 + $0x8a0] sm:$0xff]
  %v8631 = vld [vmem:[#allocation2 + $0x8a8] sm:$0xff]
  %v8632 = vld [vmem:[#allocation2 + $0x8b0] sm:$0xff]
  %v8633 = vld [vmem:[#allocation2 + $0x8b8] sm:$0xff]
  %v8634 = vld [vmem:[#allocation2 + $0x8c0] sm:$0xff]
  %v8635 = vld [vmem:[#allocation2 + $0x8c8] sm:$0xff]
  %v8636 = vld [vmem:[#allocation2 + $0x8d0] sm:$0xff]
  %v8637 = vld [vmem:[#allocation2 + $0x8d8] sm:$0xff]
  %v8638 = vld [vmem:[#allocation2 + $0x8e0] sm:$0xff]
  %v8639 = vld [vmem:[#allocation2 + $0x8e8] sm:$0xff]
  %v8640 = vld [vmem:[#allocation2 + $0x8f0] sm:$0xff]
  %v8641 = vld [vmem:[#allocation2 + $0x8f8] sm:$0xff]
  %v8642 = vld [vmem:[#allocation2 + $0x900] sm:$0xff]
  %v8643 = vld [vmem:[#allocation2 + $0x908] sm:$0xff]
  %v8644 = vld [vmem:[#allocation2 + $0x910] sm:$0xff]
  %v8645 = vld [vmem:[#allocation2 + $0x918] sm:$0xff]
  %v8646 = vld [vmem:[#allocation2 + $0x920] sm:$0xff]
  %v8647 = vld [vmem:[#allocation2 + $0x928] sm:$0xff]
  %v8648 = vld [vmem:[#allocation2 + $0x930] sm:$0xff]
  %v8649 = vld [vmem:[#allocation2 + $0x938] sm:$0xff]
  %v8650 = vld [vmem:[#allocation2 + $0x940] sm:$0xff]
  %v8651 = vld [vmem:[#allocation2 + $0x948] sm:$0xff]
  %v8652 = vld [vmem:[#allocation2 + $0x950] sm:$0xff]
  %v8653 = vld [vmem:[#allocation2 + $0x958] sm:$0xff]
  %v8654 = vld [vmem:[#allocation2 + $0x960] sm:$0xff]
  %v8655 = vld [vmem:[#allocation2 + $0x968] sm:$0xff]
  %v8656 = vld [vmem:[#allocation2 + $0x970] sm:$0xff]
  %v8657 = vld [vmem:[#allocation2 + $0x978] sm:$0xff]
  %v8658 = vld [vmem:[#allocation2 + $0x980] sm:$0xff]
  %v8659 = vld [vmem:[#allocation2 + $0x988] sm:$0xff]
  %v8660 = vld [vmem:[#allocation2 + $0x990] sm:$0xff]
  %v8661 = vld [vmem:[#allocation2 + $0x998] sm:$0xff]
  %v8662 = vld [vmem:[#allocation2 + $0x9a0] sm:$0xff]
  %v8663 = vld [vmem:[#allocation2 + $0x9a8] sm:$0xff]
  %v8664 = vld [vmem:[#allocation2 + $0x9b0] sm:$0xff]
  %v8665 = vld [vmem:[#allocation2 + $0x9b8] sm:$0xff]
  %v8666 = vld [vmem:[#allocation2 + $0x9c0] sm:$0xff]
  %v8667 = vld [vmem:[#allocation2 + $0x9c8] sm:$0xff]
  %v8668 = vld [vmem:[#allocation2 + $0x9d0] sm:$0xff]
  %v8669 = vld [vmem:[#allocation2 + $0x9d8] sm:$0xff]
  %v8670 = vld [vmem:[#allocation2 + $0x9e0] sm:$0xff]
  %v8671 = vld [vmem:[#allocation2 + $0x9e8] sm:$0xff]
  %v8672 = vld [vmem:[#allocation2 + $0x9f0] sm:$0xff]
  %v8673 = vld [vmem:[#allocation2 + $0x9f8] sm:$0xff]
  %v8674 = vld [vmem:[#allocation2 + $0xa00] sm:$0xff]
  %v8675 = vld [vmem:[#allocation2 + $0xa08] sm:$0xff]
  %v8676 = vld [vmem:[#allocation2 + $0xa10] sm:$0xff]
  %v8677 = vld [vmem:[#allocation2 + $0xa18] sm:$0xff]
  %v8678 = vld [vmem:[#allocation2 + $0xa20] sm:$0xff]
  %v8679 = vld [vmem:[#allocation2 + $0xa28] sm:$0xff]
  %v8680 = vld [vmem:[#allocation2 + $0xa30] sm:$0xff]
  %v8681 = vld [vmem:[#allocation2 + $0xa38] sm:$0xff]
  %v8682 = vld [vmem:[#allocation2 + $0xa40] sm:$0xff]
  %v8683 = vld [vmem:[#allocation2 + $0xa48] sm:$0xff]
  %v8684 = vld [vmem:[#allocation2 + $0xa50] sm:$0xff]
  %v8685 = vld [vmem:[#allocation2 + $0xa58] sm:$0xff]
  %v8686 = vld [vmem:[#allocation2 + $0xa60] sm:$0xff]
  %v8687 = vld [vmem:[#allocation2 + $0xa68] sm:$0xff]
  %v8688 = vld [vmem:[#allocation2 + $0xa70] sm:$0xff]
  %v8689 = vld [vmem:[#allocation2 + $0xa78] sm:$0xff]
  %v8690 = vld [vmem:[#allocation2 + $0xa80] sm:$0xff]
  %v8691 = vld [vmem:[#allocation2 + $0xa88] sm:$0xff]
  %v8692 = vld [vmem:[#allocation2 + $0xa90] sm:$0xff]
  %v8693 = vld [vmem:[#allocation2 + $0xa98] sm:$0xff]
  %v8694 = vld [vmem:[#allocation2 + $0xaa0] sm:$0xff]
  %v8695 = vld [vmem:[#allocation2 + $0xaa8] sm:$0xff]
  %v8696 = vld [vmem:[#allocation2 + $0xab0] sm:$0xff]
  %v8697 = vld [vmem:[#allocation2 + $0xab8] sm:$0xff]
  %v8698 = vld [vmem:[#allocation2 + $0xac0] sm:$0xff]
  %v8699 = vld [vmem:[#allocation2 + $0xac8] sm:$0xff]
  %v8700 = vld [vmem:[#allocation2 + $0xad0] sm:$0xff]
  %v8701 = vld [vmem:[#allocation2 + $0xad8] sm:$0xff]
  %v8702 = vld [vmem:[#allocation2 + $0xae0] sm:$0xff]
  %v8703 = vld [vmem:[#allocation2 + $0xae8] sm:$0xff]
  %v8704 = vld [vmem:[#allocation2 + $0xaf0] sm:$0xff]
  %v8705 = vld [vmem:[#allocation2 + $0xaf8] sm:$0xff]
  %v8706 = vld [vmem:[#allocation2 + $0xb00] sm:$0xff]
  %v8707 = vld [vmem:[#allocation2 + $0xb08] sm:$0xff]
  %v8708 = vld [vmem:[#allocation2 + $0xb10] sm:$0xff]
  %v8709 = vld [vmem:[#allocation2 + $0xb18] sm:$0xff]
  %v8710 = vld [vmem:[#allocation2 + $0xb20] sm:$0xff]
  %v8711 = vld [vmem:[#allocation2 + $0xb28] sm:$0xff]
  %v8712 = vld [vmem:[#allocation2 + $0xb30] sm:$0xff]
  %v8713 = vld [vmem:[#allocation2 + $0xb38] sm:$0xff]
  %v8714 = vld [vmem:[#allocation2 + $0xb40] sm:$0xff]
  %v8715 = vld [vmem:[#allocation2 + $0xb48] sm:$0xff]
  %v8716 = vld [vmem:[#allocation2 + $0xb50] sm:$0xff]
  %v8717 = vld [vmem:[#allocation2 + $0xb58] sm:$0xff]
  %v8718 = vld [vmem:[#allocation2 + $0xb60] sm:$0xff]
  %v8719 = vld [vmem:[#allocation2 + $0xb68] sm:$0xff]
  %v8720 = vld [vmem:[#allocation2 + $0xb70] sm:$0xff]
  %v8721 = vld [vmem:[#allocation2 + $0xb78] sm:$0xff]
  %v8722 = vld [vmem:[#allocation2 + $0xb80] sm:$0xff]
  %v8723 = vld [vmem:[#allocation2 + $0xb88] sm:$0xff]
  %v8724 = vld [vmem:[#allocation2 + $0xb90] sm:$0xff]
  %v8725 = vld [vmem:[#allocation2 + $0xb98] sm:$0xff]
  %v8726 = vld [vmem:[#allocation2 + $0xba0] sm:$0xff]
  %v8727 = vld [vmem:[#allocation2 + $0xba8] sm:$0xff]
  %v8728 = vld [vmem:[#allocation2 + $0xbb0] sm:$0xff]
  %v8729 = vld [vmem:[#allocation2 + $0xbb8] sm:$0xff]
  %v8730 = vld [vmem:[#allocation2 + $0xbc0] sm:$0xff]
  %v8731 = vld [vmem:[#allocation2 + $0xbc8] sm:$0xff]
  %v8732 = vld [vmem:[#allocation2 + $0xbd0] sm:$0xff]
  %v8733 = vld [vmem:[#allocation2 + $0xbd8] sm:$0xff]
  %v8734 = vld [vmem:[#allocation2 + $0xbe0] sm:$0xff]
  %v8735 = vld [vmem:[#allocation2 + $0xbe8] sm:$0xff]
  %v8736 = vld [vmem:[#allocation2 + $0xbf0] sm:$0xff]
  %v8737 = vld [vmem:[#allocation2 + $0xbf8] sm:$0xff]
  %v8738 = vld [vmem:[#allocation2 + $0xc00] sm:$0xff]
  %v8739 = vld [vmem:[#allocation2 + $0xc08] sm:$0xff]
  %v8740 = vld [vmem:[#allocation2 + $0xc10] sm:$0xff]
  %v8741 = vld [vmem:[#allocation2 + $0xc18] sm:$0xff]
  %v8742 = vld [vmem:[#allocation2 + $0xc20] sm:$0xff]
  %v8743 = vld [vmem:[#allocation2 + $0xc28] sm:$0xff]
  %v8744 = vld [vmem:[#allocation2 + $0xc30] sm:$0xff]
  %v8745 = vld [vmem:[#allocation2 + $0xc38] sm:$0xff]
  %v8746 = vld [vmem:[#allocation2 + $0xc40] sm:$0xff]
  %v8747 = vld [vmem:[#allocation2 + $0xc48] sm:$0xff]
  %v8748 = vld [vmem:[#allocation2 + $0xc50] sm:$0xff]
  %v8749 = vld [vmem:[#allocation2 + $0xc58] sm:$0xff]
  %v8750 = vld [vmem:[#allocation2 + $0xc60] sm:$0xff]
  %v8751 = vld [vmem:[#allocation2 + $0xc68] sm:$0xff]
  %v8752 = vld [vmem:[#allocation2 + $0xc70] sm:$0xff]
  %v8753 = vld [vmem:[#allocation2 + $0xc78] sm:$0xff]
  %v8754 = vld [vmem:[#allocation2 + $0xc80] sm:$0xff]
  %v8755 = vld [vmem:[#allocation2 + $0xc88] sm:$0xff]
  %v8756 = vld [vmem:[#allocation2 + $0xc90] sm:$0xff]
  %v8757 = vld [vmem:[#allocation2 + $0xc98] sm:$0xff]
  %v8758 = vld [vmem:[#allocation2 + $0xca0] sm:$0xff]
  %v8759 = vld [vmem:[#allocation2 + $0xca8] sm:$0xff]
  %v8760 = vld [vmem:[#allocation2 + $0xcb0] sm:$0xff]
  %v8761 = vld [vmem:[#allocation2 + $0xcb8] sm:$0xff]
  %v8762 = vld [vmem:[#allocation2 + $0xcc0] sm:$0xff]
  %v8763 = vld [vmem:[#allocation2 + $0xcc8] sm:$0xff]
  %v8764 = vld [vmem:[#allocation2 + $0xcd0] sm:$0xff]
  %v8765 = vld [vmem:[#allocation2 + $0xcd8] sm:$0xff]
  %v8766 = vld [vmem:[#allocation2 + $0xce0] sm:$0xff]
  %v8767 = vld [vmem:[#allocation2 + $0xce8] sm:$0xff]
  %v8768 = vld [vmem:[#allocation2 + $0xcf0] sm:$0xff]
  %v8769 = vld [vmem:[#allocation2 + $0xcf8] sm:$0xff]
  %v8770 = vld [vmem:[#allocation2 + $0xd00] sm:$0xff]
  %v8771 = vld [vmem:[#allocation2 + $0xd08] sm:$0xff]
  %v8772 = vld [vmem:[#allocation2 + $0xd10] sm:$0xff]
  %v8773 = vld [vmem:[#allocation2 + $0xd18] sm:$0xff]
  %v8774 = vld [vmem:[#allocation2 + $0xd20] sm:$0xff]
  %v8775 = vld [vmem:[#allocation2 + $0xd28] sm:$0xff]
  %v8776 = vld [vmem:[#allocation2 + $0xd30] sm:$0xff]
  %v8777 = vld [vmem:[#allocation2 + $0xd38] sm:$0xff]
  %v8778 = vld [vmem:[#allocation2 + $0xd40] sm:$0xff]
  %v8779 = vld [vmem:[#allocation2 + $0xd48] sm:$0xff]
  %v8780 = vld [vmem:[#allocation2 + $0xd50] sm:$0xff]
  %v8781 = vld [vmem:[#allocation2 + $0xd58] sm:$0xff]
  %v8782 = vld [vmem:[#allocation2 + $0xd60] sm:$0xff]
  %v8783 = vld [vmem:[#allocation2 + $0xd68] sm:$0xff]
  %v8784 = vld [vmem:[#allocation2 + $0xd70] sm:$0xff]
  %v8785 = vld [vmem:[#allocation2 + $0xd78] sm:$0xff]
  %v8786 = vld [vmem:[#allocation2 + $0xd80] sm:$0xff]
  %v8787 = vld [vmem:[#allocation2 + $0xd88] sm:$0xff]
  %v8788 = vld [vmem:[#allocation2 + $0xd90] sm:$0xff]
  %v8789 = vld [vmem:[#allocation2 + $0xd98] sm:$0xff]
  %v8790 = vld [vmem:[#allocation2 + $0xda0] sm:$0xff]
  %v8791 = vld [vmem:[#allocation2 + $0xda8] sm:$0xff]
  %v8792 = vld [vmem:[#allocation2 + $0xdb0] sm:$0xff]
  %v8793 = vld [vmem:[#allocation2 + $0xdb8] sm:$0xff]
  %v8794 = vld [vmem:[#allocation2 + $0xdc0] sm:$0xff]
  %v8795 = vld [vmem:[#allocation2 + $0xdc8] sm:$0xff]
  %v8796 = vld [vmem:[#allocation2 + $0xdd0] sm:$0xff]
  %v8797 = vld [vmem:[#allocation2 + $0xdd8] sm:$0xff]
  %v8798 = vld [vmem:[#allocation2 + $0xde0] sm:$0xff]
  %v8799 = vld [vmem:[#allocation2 + $0xde8] sm:$0xff]
  %v8800 = vld [vmem:[#allocation2 + $0xdf0] sm:$0xff]
  %v8801 = vld [vmem:[#allocation2 + $0xdf8] sm:$0xff]
  %v8802 = vld [vmem:[#allocation2 + $0xe00] sm:$0xff]
  %v8803 = vld [vmem:[#allocation2 + $0xe08] sm:$0xff]
  %v8804 = vld [vmem:[#allocation2 + $0xe10] sm:$0xff]
  %v8805 = vld [vmem:[#allocation2 + $0xe18] sm:$0xff]
  %v8806 = vld [vmem:[#allocation2 + $0xe20] sm:$0xff]
  %v8807 = vld [vmem:[#allocation2 + $0xe28] sm:$0xff]
  %v8808 = vld [vmem:[#allocation2 + $0xe30] sm:$0xff]
  %v8809 = vld [vmem:[#allocation2 + $0xe38] sm:$0xff]
  %v8810 = vld [vmem:[#allocation2 + $0xe40] sm:$0xff]
  %v8811 = vld [vmem:[#allocation2 + $0xe48] sm:$0xff]
  %v8812 = vld [vmem:[#allocation2 + $0xe50] sm:$0xff]
  %v8813 = vld [vmem:[#allocation2 + $0xe58] sm:$0xff]
  %v8814 = vld [vmem:[#allocation2 + $0xe60] sm:$0xff]
  %v8815 = vld [vmem:[#allocation2 + $0xe68] sm:$0xff]
  %v8816 = vld [vmem:[#allocation2 + $0xe70] sm:$0xff]
  %v8817 = vld [vmem:[#allocation2 + $0xe78] sm:$0xff]
  %v8818 = vld [vmem:[#allocation2 + $0xe80] sm:$0xff]
  %v8819 = vld [vmem:[#allocation2 + $0xe88] sm:$0xff]
  %v8820 = vld [vmem:[#allocation2 + $0xe90] sm:$0xff]
  %v8821 = vld [vmem:[#allocation2 + $0xe98] sm:$0xff]
  %v8822 = vld [vmem:[#allocation2 + $0xea0] sm:$0xff]
  %v8823 = vld [vmem:[#allocation2 + $0xea8] sm:$0xff]
  %v8824 = vld [vmem:[#allocation2 + $0xeb0] sm:$0xff]
  %v8825 = vld [vmem:[#allocation2 + $0xeb8] sm:$0xff]
  %v8826 = vld [vmem:[#allocation2 + $0xec0] sm:$0xff]
  %v8827 = vld [vmem:[#allocation2 + $0xec8] sm:$0xff]
  %v8828 = vld [vmem:[#allocation2 + $0xed0] sm:$0xff]
  %v8829 = vld [vmem:[#allocation2 + $0xed8] sm:$0xff]
  %v8830 = vld [vmem:[#allocation2 + $0xee0] sm:$0xff]
  %v8831 = vld [vmem:[#allocation2 + $0xee8] sm:$0xff]
  %v8832 = vld [vmem:[#allocation2 + $0xef0] sm:$0xff]
  %v8833 = vld [vmem:[#allocation2 + $0xef8] sm:$0xff]
  %v8834 = vld [vmem:[#allocation2 + $0xf00] sm:$0xff]
  %v8835 = vld [vmem:[#allocation2 + $0xf08] sm:$0xff]
  %v8836 = vld [vmem:[#allocation2 + $0xf10] sm:$0xff]
  %v8837 = vld [vmem:[#allocation2 + $0xf18] sm:$0xff]
  %v8838 = vld [vmem:[#allocation2 + $0xf20] sm:$0xff]
  %v8839 = vld [vmem:[#allocation2 + $0xf28] sm:$0xff]
  %v8840 = vld [vmem:[#allocation2 + $0xf30] sm:$0xff]
  %v8841 = vld [vmem:[#allocation2 + $0xf38] sm:$0xff]
  %v8842 = vld [vmem:[#allocation2 + $0xf40] sm:$0xff]
  %v8843 = vld [vmem:[#allocation2 + $0xf48] sm:$0xff]
  %v8844 = vld [vmem:[#allocation2 + $0xf50] sm:$0xff]
  %v8845 = vld [vmem:[#allocation2 + $0xf58] sm:$0xff]
  %v8846 = vld [vmem:[#allocation2 + $0xf60] sm:$0xff]
  %v8847 = vld [vmem:[#allocation2 + $0xf68] sm:$0xff]
  %v8848 = vld [vmem:[#allocation2 + $0xf70] sm:$0xff]
  %v8849 = vld [vmem:[#allocation2 + $0xf78] sm:$0xff]
  %v8850 = vld [vmem:[#allocation2 + $0xf80] sm:$0xff]
  %v8851 = vld [vmem:[#allocation2 + $0xf88] sm:$0xff]
  %v8852 = vld [vmem:[#allocation2 + $0xf90] sm:$0xff]
  %v8853 = vld [vmem:[#allocation2 + $0xf98] sm:$0xff]
  %v8854 = vld [vmem:[#allocation2 + $0xfa0] sm:$0xff]
  %v8855 = vld [vmem:[#allocation2 + $0xfa8] sm:$0xff]
  %v8856 = vld [vmem:[#allocation2 + $0xfb0] sm:$0xff]
  %v8857 = vld [vmem:[#allocation2 + $0xfb8] sm:$0xff]
  %v8858 = vld [vmem:[#allocation2 + $0xfc0] sm:$0xff]
  %v8859 = vld [vmem:[#allocation2 + $0xfc8] sm:$0xff]
  %v8860 = vld [vmem:[#allocation2 + $0xfd0] sm:$0xff]
  %v8861 = vld [vmem:[#allocation2 + $0xfd8] sm:$0xff]
  %v8862 = vld [vmem:[#allocation2 + $0xfe0] sm:$0xff]
  %v8863 = vld [vmem:[#allocation2 + $0xfe8] sm:$0xff]
  %v8864 = vld [vmem:[#allocation2 + $0xff0] sm:$0xff]
  %v8865 = vld [vmem:[#allocation2 + $0xff8] sm:$0xff]
  %v8866 = vld [vmem:[#allocation2 + $0x1000] sm:$0xff]
  %v8867 = vld [vmem:[#allocation2 + $0x1008] sm:$0xff]
  %v8868 = vld [vmem:[#allocation2 + $0x1010] sm:$0xff]
  %v8869 = vld [vmem:[#allocation2 + $0x1018] sm:$0xff]
  %v8870 = vld [vmem:[#allocation2 + $0x1020] sm:$0xff]
  %v8871 = vld [vmem:[#allocation2 + $0x1028] sm:$0xff]
  %v8872 = vld [vmem:[#allocation2 + $0x1030] sm:$0xff]
  %v8873 = vld [vmem:[#allocation2 + $0x1038] sm:$0xff]
  %v8874 = vld [vmem:[#allocation2 + $0x1040] sm:$0xff]
  %v8875 = vld [vmem:[#allocation2 + $0x1048] sm:$0xff]
  %v8876 = vld [vmem:[#allocation2 + $0x1050] sm:$0xff]
  %v8877 = vld [vmem:[#allocation2 + $0x1058] sm:$0xff]
  %v8878 = vld [vmem:[#allocation2 + $0x1060] sm:$0xff]
  %v8879 = vld [vmem:[#allocation2 + $0x1068] sm:$0xff]
  %v8880 = vld [vmem:[#allocation2 + $0x1070] sm:$0xff]
  %v8881 = vld [vmem:[#allocation2 + $0x1078] sm:$0xff]
  %v8882 = vld [vmem:[#allocation2 + $0x1080] sm:$0xff]
  %v8883 = vld [vmem:[#allocation2 + $0x1088] sm:$0xff]
  %v8884 = vld [vmem:[#allocation2 + $0x1090] sm:$0xff]
  %v8885 = vld [vmem:[#allocation2 + $0x1098] sm:$0xff]
  %v8886 = vld [vmem:[#allocation2 + $0x10a0] sm:$0xff]
  %v8887 = vld [vmem:[#allocation2 + $0x10a8] sm:$0xff]
  %v8888 = vld [vmem:[#allocation2 + $0x10b0] sm:$0xff]
  %v8889 = vld [vmem:[#allocation2 + $0x10b8] sm:$0xff]
  %v8890 = vld [vmem:[#allocation2 + $0x10c0] sm:$0xff]
  %v8891 = vld [vmem:[#allocation2 + $0x10c8] sm:$0xff]
  %v8892 = vld [vmem:[#allocation2 + $0x10d0] sm:$0xff]
  %v8893 = vld [vmem:[#allocation2 + $0x10d8] sm:$0xff]
  %v8894 = vld [vmem:[#allocation2 + $0x10e0] sm:$0xff]
  %v8895 = vld [vmem:[#allocation2 + $0x10e8] sm:$0xff]
  %v8896 = vld [vmem:[#allocation2 + $0x10f0] sm:$0xff]
  %v8897 = vld [vmem:[#allocation2 + $0x10f8] sm:$0xff]
  %v8898 = vld [vmem:[#allocation2 + $0x1100] sm:$0xff]
  %v8899 = vld [vmem:[#allocation2 + $0x1108] sm:$0xff]
  %v8900 = vld [vmem:[#allocation2 + $0x1110] sm:$0xff]
  %v8901 = vld [vmem:[#allocation2 + $0x1118] sm:$0xff]
  %v8902 = vld [vmem:[#allocation2 + $0x1120] sm:$0xff]
  %v8903 = vld [vmem:[#allocation2 + $0x1128] sm:$0xff]
  %v8904 = vld [vmem:[#allocation2 + $0x1130] sm:$0xff]
  %v8905 = vld [vmem:[#allocation2 + $0x1138] sm:$0xff]
  %v8906 = vld [vmem:[#allocation2 + $0x1140] sm:$0xff]
  %v8907 = vld [vmem:[#allocation2 + $0x1148] sm:$0xff]
  %v8908 = vld [vmem:[#allocation2 + $0x1150] sm:$0xff]
  %v8909 = vld [vmem:[#allocation2 + $0x1158] sm:$0xff]
  %v8910 = vld [vmem:[#allocation2 + $0x1160] sm:$0xff]
  %v8911 = vld [vmem:[#allocation2 + $0x1168] sm:$0xff]
  %v8912 = vld [vmem:[#allocation2 + $0x1170] sm:$0xff]
  %v8913 = vld [vmem:[#allocation2 + $0x1178] sm:$0xff]
  %v8914 = vld [vmem:[#allocation2 + $0x1180] sm:$0xff]
  %v8915 = vld [vmem:[#allocation2 + $0x1188] sm:$0xff]
  %v8916 = vld [vmem:[#allocation2 + $0x1190] sm:$0xff]
  %v8917 = vld [vmem:[#allocation2 + $0x1198] sm:$0xff]
  %v8918 = vld [vmem:[#allocation2 + $0x11a0] sm:$0xff]
  %v8919 = vld [vmem:[#allocation2 + $0x11a8] sm:$0xff]
  %v8920 = vld [vmem:[#allocation2 + $0x11b0] sm:$0xff]
  %v8921 = vld [vmem:[#allocation2 + $0x11b8] sm:$0xff]
  %v8922 = vld [vmem:[#allocation2 + $0x11c0] sm:$0xff]
  %v8923 = vld [vmem:[#allocation2 + $0x11c8] sm:$0xff]
  %v8924 = vld [vmem:[#allocation2 + $0x11d0] sm:$0xff]
  %v8925 = vld [vmem:[#allocation2 + $0x11d8] sm:$0xff]
  %v8926 = vld [vmem:[#allocation2 + $0x11e0] sm:$0xff]
  %v8927 = vld [vmem:[#allocation2 + $0x11e8] sm:$0xff]
  %v8928 = vld [vmem:[#allocation2 + $0x11f0] sm:$0xff]
  %v8929 = vld [vmem:[#allocation2 + $0x11f8] sm:$0xff]
  %v8930 = vld [vmem:[#allocation2 + $0x1200] sm:$0xff]
  %v8931 = vld [vmem:[#allocation2 + $0x1208] sm:$0xff]
  %v8932 = vld [vmem:[#allocation2 + $0x1210] sm:$0xff]
  %v8933 = vld [vmem:[#allocation2 + $0x1218] sm:$0xff]
  %v8934 = vld [vmem:[#allocation2 + $0x1220] sm:$0xff]
  %v8935 = vld [vmem:[#allocation2 + $0x1228] sm:$0xff]
  %v8936 = vld [vmem:[#allocation2 + $0x1230] sm:$0xff]
  %v8937 = vld [vmem:[#allocation2 + $0x1238] sm:$0xff]
  %v8938 = vld [vmem:[#allocation2 + $0x1240] sm:$0xff]
  %v8939 = vld [vmem:[#allocation2 + $0x1248] sm:$0xff]
  %v8940 = vld [vmem:[#allocation2 + $0x1250] sm:$0xff]
  %v8941 = vld [vmem:[#allocation2 + $0x1258] sm:$0xff]
  %v8942 = vld [vmem:[#allocation2 + $0x1260] sm:$0xff]
  %v8943 = vld [vmem:[#allocation2 + $0x1268] sm:$0xff]
  %v8944 = vld [vmem:[#allocation2 + $0x1270] sm:$0xff]
  %v8945 = vld [vmem:[#allocation2 + $0x1278] sm:$0xff]
  %v8946 = vld [vmem:[#allocation2 + $0x1280] sm:$0xff]
  %v8947 = vld [vmem:[#allocation2 + $0x1288] sm:$0xff]
  %v8948 = vld [vmem:[#allocation2 + $0x1290] sm:$0xff]
  %v8949 = vld [vmem:[#allocation2 + $0x1298] sm:$0xff]
  %v8950 = vld [vmem:[#allocation2 + $0x12a0] sm:$0xff]
  %v8951 = vld [vmem:[#allocation2 + $0x12a8] sm:$0xff]
  %v8952 = vld [vmem:[#allocation2 + $0x12b0] sm:$0xff]
  %v8953 = vld [vmem:[#allocation2 + $0x12b8] sm:$0xff]
  %v8954 = vld [vmem:[#allocation2 + $0x12c0] sm:$0xff]
  %v8955 = vld [vmem:[#allocation2 + $0x12c8] sm:$0xff]
  %v8956 = vld [vmem:[#allocation2 + $0x12d0] sm:$0xff]
  %v8957 = vld [vmem:[#allocation2 + $0x12d8] sm:$0xff]
  %v8958 = vld [vmem:[#allocation2 + $0x12e0] sm:$0xff]
  %v8959 = vld [vmem:[#allocation2 + $0x12e8] sm:$0xff]
  %v8960 = vld [vmem:[#allocation2 + $0x12f0] sm:$0xff]
  %v8961 = vld [vmem:[#allocation2 + $0x12f8] sm:$0xff]
  %v8962 = vld [vmem:[#allocation2 + $0x1300] sm:$0xff]
  %v8963 = vld [vmem:[#allocation2 + $0x1308] sm:$0xff]
  %v8964 = vld [vmem:[#allocation2 + $0x1310] sm:$0xff]
  %v8965 = vld [vmem:[#allocation2 + $0x1318] sm:$0xff]
  %v8966 = vld [vmem:[#allocation2 + $0x1320] sm:$0xff]
  %v8967 = vld [vmem:[#allocation2 + $0x1328] sm:$0xff]
  %v8968 = vld [vmem:[#allocation2 + $0x1330] sm:$0xff]
  %v8969 = vld [vmem:[#allocation2 + $0x1338] sm:$0xff]
  %v8970 = vld [vmem:[#allocation2 + $0x1340] sm:$0xff]
  %v8971 = vld [vmem:[#allocation2 + $0x1348] sm:$0xff]
  %v8972 = vld [vmem:[#allocation2 + $0x1350] sm:$0xff]
  %v8973 = vld [vmem:[#allocation2 + $0x1358] sm:$0xff]
  %v8974 = vld [vmem:[#allocation2 + $0x1360] sm:$0xff]
  %v8975 = vld [vmem:[#allocation2 + $0x1368] sm:$0xff]
  %v8976 = vld [vmem:[#allocation2 + $0x1370] sm:$0xff]
  %v8977 = vld [vmem:[#allocation2 + $0x1378] sm:$0xff]
  %v8978 = vld [vmem:[#allocation2 + $0x1380] sm:$0xff]
  %v8979 = vld [vmem:[#allocation2 + $0x1388] sm:$0xff]
  %v8980 = vld [vmem:[#allocation2 + $0x1390] sm:$0xff]
  %v8981 = vld [vmem:[#allocation2 + $0x1398] sm:$0xff]
  %v8982 = vld [vmem:[#allocation2 + $0x13a0] sm:$0xff]
  %v8983 = vld [vmem:[#allocation2 + $0x13a8] sm:$0xff]
  %v8984 = vld [vmem:[#allocation2 + $0x13b0] sm:$0xff]
  %v8985 = vld [vmem:[#allocation2 + $0x13b8] sm:$0xff]
  %v8986 = vld [vmem:[#allocation2 + $0x13c0] sm:$0xff]
  %v8987 = vld [vmem:[#allocation2 + $0x13c8] sm:$0xff]
  %v8988 = vld [vmem:[#allocation2 + $0x13d0] sm:$0xff]
  %v8989 = vld [vmem:[#allocation2 + $0x13d8] sm:$0xff]
  %v8990 = vld [vmem:[#allocation2 + $0x13e0] sm:$0xff]
  %v8991 = vld [vmem:[#allocation2 + $0x13e8] sm:$0xff]
  %v8992 = vld [vmem:[#allocation2 + $0x13f0] sm:$0xff]
  %v8993 = vld [vmem:[#allocation2 + $0x13f8] sm:$0xff]
  %v8994 = vld [vmem:[%s5] sm:$0xff]
  %v8995 = vld [vmem:[%s5 + $0x8] sm:$0xff]
  %8997 = vset.pattern.permute.xlu0 0
  %8998 = vperm.xlu0 %8997, %v8994
  %v8999 = vpop.permute.xlu0 %8998
  %9002 = vset.pattern.permute.xlu0 0
  %9003 = vperm.xlu0 %9002, %v8995
  %v9004 = vpop.permute.xlu0 %9003
  %9006 = vmatprep.subr.mxu0 %v8955
  %9007 = vmatpush1.msra.mxu0 %v8954
  %9008 = vmatprep.subr.mxu0 %v8915
  %9009 = vmatpush1.msra.mxu0 %v8914
  %9010 = vmatprep.subr.mxu0 %v8875
  %9011 = vmatpush1.msra.mxu0 %v8874
  %9012 = vmatprep.subr.mxu0 %v8835
  %9013 = vmatpush1.msra.mxu0 %v8834
  %9014 = vmatprep.subr.mxu0 %v8795
  %9015 = vmatpush1.msra.mxu0 %v8794
  %9016 = vmatprep.subr.mxu0 %v8755
  %9017 = vmatpush1.msra.mxu0 %v8754
  %9018 = vmatprep.subr.mxu0 %v8715
  %9019 = vmatpush1.msra.mxu0 %v8714
  %9020 = vmatprep.subr.mxu0 %v8675
  %9021 = vmatpush1.msra.mxu0 %v8674
  %9022 = vmatprep.subr.mxu0 %v8635
  %9023 = vmatpush1.msra.mxu0 %v8634
  %9024 = vmatprep.subr.mxu0 %v8595
  %9025 = vmatpush1.msra.mxu0 %v8594
  %9026 = vmatprep.subr.mxu0 %v8555
  %9027 = vmatpush1.msra.mxu0 %v8554
  %9028 = vmatprep.subr.mxu0 %v8515
  %9029 = vmatpush1.msra.mxu0 %v8514
  %9030 = vmatprep.subr.mxu0 %v8475
  %9031 = vmatpush1.msra.mxu0 %v8474
  %9032 = vmatprep.subr.mxu0 %v8435
  %9033 = vmatpush1.msra.mxu0 %v8434
  %9034 = vmatprep.subr.mxu0 %v8395
  %9035 = vmatpush1.msra.mxu0 %v8394
  %9036 = vmatprep.subr.mxu0 %v8355
  %9037 = vmatpush1.msra.mxu0 %v8354
  %9038 = vmatprep.subr.mxu0 0.0
  %9039 = vmatpush2.msra.mxu0 0.0
  %9040 = vmatprep.subr.mxu0 0.0
  %9041 = vmatpush2.msra.mxu0 0.0
  %9042 = vmatprep.subr.mxu0 0.0
  %9043 = vmatpush2.msra.mxu0 0.0
  %9044 = vmatprep.subr.mxu0 0.0
  %9045 = vmatpush2.msra.mxu0 0.0
  %9046 = vmatprep.subr.mxu0 0.0
  %9047 = vmatpush2.msra.mxu0 0.0
  %9048 = vmatprep.subr.mxu0 0.0
  %9049 = vmatpush2.msra.mxu0 0.0
  %9050 = vmatprep.subr.mxu0 0.0
  %9051 = vmatpush2.msra.mxu0 0.0
  %9052 = vmatprep.subr.mxu0 0.0
  %9053 = vmatpush2.msra.mxu0 0.0
  %9054 = vmatprep.subr.mxu0 0.0
  %9055 = vmatpush2.msra.mxu0 0.0
  %9056 = vmatprep.subr.mxu0 0.0
  %9057 = vmatpush2.msra.mxu0 0.0
  %9058 = vmatprep.subr.mxu0 0.0
  %9059 = vmatpush2.msra.mxu0 0.0
  %9060 = vmatprep.subr.mxu0 0.0
  %9061 = vmatpush2.msra.mxu0 0.0
  %9062 = vmatprep.subr.mxu0 0.0
  %9063 = vmatpush2.msra.mxu0 0.0
  %9064 = vmatprep.subr.mxu0 0.0
  %9065 = vmatpush2.msra.mxu0 0.0
  %9066 = vmatprep.subr.mxu0 0.0
  %9067 = vmatpush2.msra.mxu0 0.0
  %9068 = vmatprep.subr.mxu0 0.0
  %9069 = vmatpush2.msra.mxu0 0.0
  %9070 = vmatprep.mubr.f32.mxu0 0.0
  %9071 = vmatmul.mubr.f32.gmra.mxu0 %v8352
  %v9072 = vpop.f32.mrf.mxu0
  %v9073 = vadd.f32 %v8999, %v9072
  %v9074 = vpop.f32.mrf.mxu0
  %v9075 = vadd.f32 %v8999, %v9074
  %9076 = vmatprep.mubr.f32.mxu0 0.0
  %9077 = vmatmul.mubr.f32.gmra.mxu0 %v8353
  %v9078 = vpop.f32.mrf.mxu0
  %v9079 = vadd.f32 %v9004, %v9078
  %v9080 = vpop.f32.mrf.mxu0
  %v9081 = vadd.f32 %v9004, %v9080
  %9082 = vdwg.mxu0
  %9083 = vmatprep.subr.mxu0 %v8957
  %9084 = vmatpush1.msra.mxu0 %v8956
  %9085 = vmatprep.subr.mxu0 %v8917
  %9086 = vmatpush1.msra.mxu0 %v8916
  %9087 = vmatprep.subr.mxu0 %v8877
  %9088 = vmatpush1.msra.mxu0 %v8876
  %9089 = vmatprep.subr.mxu0 %v8837
  %9090 = vmatpush1.msra.mxu0 %v8836
  %9091 = vmatprep.subr.mxu0 %v8797
  %9092 = vmatpush1.msra.mxu0 %v8796
  %9093 = vmatprep.subr.mxu0 %v8757
  %9094 = vmatpush1.msra.mxu0 %v8756
  %9095 = vmatprep.subr.mxu0 %v8717
  %9096 = vmatpush1.msra.mxu0 %v8716
  %9097 = vmatprep.subr.mxu0 %v8677
  %9098 = vmatpush1.msra.mxu0 %v8676
  %9099 = vmatprep.subr.mxu0 %v8637
  %9100 = vmatpush1.msra.mxu0 %v8636
  %9101 = vmatprep.subr.mxu0 %v8597
  %9102 = vmatpush1.msra.mxu0 %v8596
  %9103 = vmatprep.subr.mxu0 %v8557
  %9104 = vmatpush1.msra.mxu0 %v8556
  %9105 = vmatprep.subr.mxu0 %v8517
  %9106 = vmatpush1.msra.mxu0 %v8516
  %9107 = vmatprep.subr.mxu0 %v8477
  %9108 = vmatpush1.msra.mxu0 %v8476
  %9109 = vmatprep.subr.mxu0 %v8437
  %9110 = vmatpush1.msra.mxu0 %v8436
  %9111 = vmatprep.subr.mxu0 %v8397
  %9112 = vmatpush1.msra.mxu0 %v8396
  %9113 = vmatprep.subr.mxu0 %v8357
  %9114 = vmatpush1.msra.mxu0 %v8356
  %9115 = vmatprep.subr.mxu0 0.0
  %9116 = vmatpush2.msra.mxu0 0.0
  %9117 = vmatprep.subr.mxu0 0.0
  %9118 = vmatpush2.msra.mxu0 0.0
  %9119 = vmatprep.subr.mxu0 0.0
  %9120 = vmatpush2.msra.mxu0 0.0
  %9121 = vmatprep.subr.mxu0 0.0
  %9122 = vmatpush2.msra.mxu0 0.0
  %9123 = vmatprep.subr.mxu0 0.0
  %9124 = vmatpush2.msra.mxu0 0.0
  %9125 = vmatprep.subr.mxu0 0.0
  %9126 = vmatpush2.msra.mxu0 0.0
  %9127 = vmatprep.subr.mxu0 0.0
  %9128 = vmatpush2.msra.mxu0 0.0
  %9129 = vmatprep.subr.mxu0 0.0
  %9130 = vmatpush2.msra.mxu0 0.0
  %9131 = vmatprep.subr.mxu0 0.0
  %9132 = vmatpush2.msra.mxu0 0.0
  %9133 = vmatprep.subr.mxu0 0.0
  %9134 = vmatpush2.msra.mxu0 0.0
  %9135 = vmatprep.subr.mxu0 0.0
  %9136 = vmatpush2.msra.mxu0 0.0
  %9137 = vmatprep.subr.mxu0 0.0
  %9138 = vmatpush2.msra.mxu0 0.0
  %9139 = vmatprep.subr.mxu0 0.0
  %9140 = vmatpush2.msra.mxu0 0.0
  %9141 = vmatprep.subr.mxu0 0.0
  %9142 = vmatpush2.msra.mxu0 0.0
  %9143 = vmatprep.subr.mxu0 0.0
  %9144 = vmatpush2.msra.mxu0 0.0
  %9145 = vmatprep.subr.mxu0 0.0
  %9146 = vmatpush2.msra.mxu0 0.0
  %9147 = vmatprep.mubr.f32.mxu0 0.0
  %9148 = vmatmul.mubr.f32.gmra.mxu0 %v8352
  %v9149 = vpop.f32.mrf.mxu0
  %v9150 = vadd.f32 %v8999, %v9149
  %v9151 = vpop.f32.mrf.mxu0
  %v9152 = vadd.f32 %v8999, %v9151
  %9153 = vmatprep.mubr.f32.mxu0 0.0
  %9154 = vmatmul.mubr.f32.gmra.mxu0 %v8353
  %v9155 = vpop.f32.mrf.mxu0
  %v9156 = vadd.f32 %v9004, %v9155
  %v9157 = vpop.f32.mrf.mxu0
  %v9158 = vadd.f32 %v9004, %v9157
  %9159 = vdwg.mxu0
  %9160 = vmatprep.subr.mxu0 %v8959
  %9161 = vmatpush1.msra.mxu0 %v8958
  %9162 = vmatprep.subr.mxu0 %v8919
  %9163 = vmatpush1.msra.mxu0 %v8918
  %9164 = vmatprep.subr.mxu0 %v8879
  %9165 = vmatpush1.msra.mxu0 %v8878
  %9166 = vmatprep.subr.mxu0 %v8839
  %9167 = vmatpush1.msra.mxu0 %v8838
  %9168 = vmatprep.subr.mxu0 %v8799
  %9169 = vmatpush1.msra.mxu0 %v8798
  %9170 = vmatprep.subr.mxu0 %v8759
  %9171 = vmatpush1.msra.mxu0 %v8758
  %9172 = vmatprep.subr.mxu0 %v8719
  %9173 = vmatpush1.msra.mxu0 %v8718
  %9174 = vmatprep.subr.mxu0 %v8679
  %9175 = vmatpush1.msra.mxu0 %v8678
  %9176 = vmatprep.subr.mxu0 %v8639
  %9177 = vmatpush1.msra.mxu0 %v8638
  %9178 = vmatprep.subr.mxu0 %v8599
  %9179 = vmatpush1.msra.mxu0 %v8598
  %9180 = vmatprep.subr.mxu0 %v8559
  %9181 = vmatpush1.msra.mxu0 %v8558
  %9182 = vmatprep.subr.mxu0 %v8519
  %9183 = vmatpush1.msra.mxu0 %v8518
  %9184 = vmatprep.subr.mxu0 %v8479
  %9185 = vmatpush1.msra.mxu0 %v8478
  %9186 = vmatprep.subr.mxu0 %v8439
  %9187 = vmatpush1.msra.mxu0 %v8438
  %9188 = vmatprep.subr.mxu0 %v8399
  %9189 = vmatpush1.msra.mxu0 %v8398
  %9190 = vmatprep.subr.mxu0 %v8359
  %9191 = vmatpush1.msra.mxu0 %v8358
  %9192 = vmatprep.subr.mxu0 0.0
  %9193 = vmatpush2.msra.mxu0 0.0
  %9194 = vmatprep.subr.mxu0 0.0
  %9195 = vmatpush2.msra.mxu0 0.0
  %9196 = vmatprep.subr.mxu0 0.0
  %9197 = vmatpush2.msra.mxu0 0.0
  %9198 = vmatprep.subr.mxu0 0.0
  %9199 = vmatpush2.msra.mxu0 0.0
  %9200 = vmatprep.subr.mxu0 0.0
  %9201 = vmatpush2.msra.mxu0 0.0
  %9202 = vmatprep.subr.mxu0 0.0
  %9203 = vmatpush2.msra.mxu0 0.0
  %9204 = vmatprep.subr.mxu0 0.0
  %9205 = vmatpush2.msra.mxu0 0.0
  %9206 = vmatprep.subr.mxu0 0.0
  %9207 = vmatpush2.msra.mxu0 0.0
  %9208 = vmatprep.subr.mxu0 0.0
  %9209 = vmatpush2.msra.mxu0 0.0
  %9210 = vmatprep.subr.mxu0 0.0
  %9211 = vmatpush2.msra.mxu0 0.0
  %9212 = vmatprep.subr.mxu0 0.0
  %9213 = vmatpush2.msra.mxu0 0.0
  %9214 = vmatprep.subr.mxu0 0.0
  %9215 = vmatpush2.msra.mxu0 0.0
  %9216 = vmatprep.subr.mxu0 0.0
  %9217 = vmatpush2.msra.mxu0 0.0
  %9218 = vmatprep.subr.mxu0 0.0
  %9219 = vmatpush2.msra.mxu0 0.0
  %9220 = vmatprep.subr.mxu0 0.0
  %9221 = vmatpush2.msra.mxu0 0.0
  %9222 = vmatprep.subr.mxu0 0.0
  %9223 = vmatpush2.msra.mxu0 0.0
  %9224 = vmatprep.mubr.f32.mxu0 0.0
  %9225 = vmatmul.mubr.f32.gmra.mxu0 %v8352
  %v9226 = vpop.f32.mrf.mxu0
  %v9227 = vadd.f32 %v8999, %v9226
  %v9228 = vpop.f32.mrf.mxu0
  %v9229 = vadd.f32 %v8999, %v9228
  %9230 = vmatprep.mubr.f32.mxu0 0.0
  %9231 = vmatmul.mubr.f32.gmra.mxu0 %v8353
  %v9232 = vpop.f32.mrf.mxu0
  %v9233 = vadd.f32 %v9004, %v9232
  %v9234 = vpop.f32.mrf.mxu0
  %v9235 = vadd.f32 %v9004, %v9234
  %9236 = vdwg.mxu0
  %9237 = vmatprep.subr.mxu0 %v8961
  %9238 = vmatpush1.msra.mxu0 %v8960
  %9239 = vmatprep.subr.mxu0 %v8921
  %9240 = vmatpush1.msra.mxu0 %v8920
  %9241 = vmatprep.subr.mxu0 %v8881
  %9242 = vmatpush1.msra.mxu0 %v8880
  %9243 = vmatprep.subr.mxu0 %v8841
  %9244 = vmatpush1.msra.mxu0 %v8840
  %9245 = vmatprep.subr.mxu0 %v8801
  %9246 = vmatpush1.msra.mxu0 %v8800
  %9247 = vmatprep.subr.mxu0 %v8761
  %9248 = vmatpush1.msra.mxu0 %v8760
  %9249 = vmatprep.subr.mxu0 %v8721
  %9250 = vmatpush1.msra.mxu0 %v8720
  %9251 = vmatprep.subr.mxu0 %v8681
  %9252 = vmatpush1.msra.mxu0 %v8680
  %9253 = vmatprep.subr.mxu0 %v8641
  %9254 = vmatpush1.msra.mxu0 %v8640
  %9255 = vmatprep.subr.mxu0 %v8601
  %9256 = vmatpush1.msra.mxu0 %v8600
  %9257 = vmatprep.subr.mxu0 %v8561
  %9258 = vmatpush1.msra.mxu0 %v8560
  %9259 = vmatprep.subr.mxu0 %v8521
  %9260 = vmatpush1.msra.mxu0 %v8520
  %9261 = vmatprep.subr.mxu0 %v8481
  %9262 = vmatpush1.msra.mxu0 %v8480
  %9263 = vmatprep.subr.mxu0 %v8441
  %9264 = vmatpush1.msra.mxu0 %v8440
  %9265 = vmatprep.subr.mxu0 %v8401
  %9266 = vmatpush1.msra.mxu0 %v8400
  %9267 = vmatprep.subr.mxu0 %v8361
  %9268 = vmatpush1.msra.mxu0 %v8360
  %9269 = vmatprep.subr.mxu0 0.0
  %9270 = vmatpush2.msra.mxu0 0.0
  %9271 = vmatprep.subr.mxu0 0.0
  %9272 = vmatpush2.msra.mxu0 0.0
  %9273 = vmatprep.subr.mxu0 0.0
  %9274 = vmatpush2.msra.mxu0 0.0
  %9275 = vmatprep.subr.mxu0 0.0
  %9276 = vmatpush2.msra.mxu0 0.0
  %9277 = vmatprep.subr.mxu0 0.0
  %9278 = vmatpush2.msra.mxu0 0.0
  %9279 = vmatprep.subr.mxu0 0.0
  %9280 = vmatpush2.msra.mxu0 0.0
  %9281 = vmatprep.subr.mxu0 0.0
  %9282 = vmatpush2.msra.mxu0 0.0
  %9283 = vmatprep.subr.mxu0 0.0
  %9284 = vmatpush2.msra.mxu0 0.0
  %9285 = vmatprep.subr.mxu0 0.0
  %9286 = vmatpush2.msra.mxu0 0.0
  %9287 = vmatprep.subr.mxu0 0.0
  %9288 = vmatpush2.msra.mxu0 0.0
  %9289 = vmatprep.subr.mxu0 0.0
  %9290 = vmatpush2.msra.mxu0 0.0
  %9291 = vmatprep.subr.mxu0 0.0
  %9292 = vmatpush2.msra.mxu0 0.0
  %9293 = vmatprep.subr.mxu0 0.0
  %9294 = vmatpush2.msra.mxu0 0.0
  %9295 = vmatprep.subr.mxu0 0.0
  %9296 = vmatpush2.msra.mxu0 0.0
  %9297 = vmatprep.subr.mxu0 0.0
  %9298 = vmatpush2.msra.mxu0 0.0
  %9299 = vmatprep.subr.mxu0 0.0
  %9300 = vmatpush2.msra.mxu0 0.0
  %9301 = vmatprep.mubr.f32.mxu0 0.0
  %9302 = vmatmul.mubr.f32.gmra.mxu0 %v8352
  %v9303 = vpop.f32.mrf.mxu0
  %v9304 = vadd.f32 %v8999, %v9303
  %v9305 = vpop.f32.mrf.mxu0
  %v9306 = vadd.f32 %v8999, %v9305
  %9307 = vmatprep.mubr.f32.mxu0 0.0
  %9308 = vmatmul.mubr.f32.gmra.mxu0 %v8353
  %v9309 = vpop.f32.mrf.mxu0
  %v9310 = vadd.f32 %v9004, %v9309
  %v9311 = vpop.f32.mrf.mxu0
  %v9312 = vadd.f32 %v9004, %v9311
  %9313 = vdwg.mxu0
  %9314 = vmatprep.subr.mxu0 %v8963
  %9315 = vmatpush1.msra.mxu0 %v8962
  %9316 = vmatprep.subr.mxu0 %v8923
  %9317 = vmatpush1.msra.mxu0 %v8922
  %9318 = vmatprep.subr.mxu0 %v8883
  %9319 = vmatpush1.msra.mxu0 %v8882
  %9320 = vmatprep.subr.mxu0 %v8843
  %9321 = vmatpush1.msra.mxu0 %v8842
  %9322 = vmatprep.subr.mxu0 %v8803
  %9323 = vmatpush1.msra.mxu0 %v8802
  %9324 = vmatprep.subr.mxu0 %v8763
  %9325 = vmatpush1.msra.mxu0 %v8762
  %9326 = vmatprep.subr.mxu0 %v8723
  %9327 = vmatpush1.msra.mxu0 %v8722
  %9328 = vmatprep.subr.mxu0 %v8683
  %9329 = vmatpush1.msra.mxu0 %v8682
  %9330 = vmatprep.subr.mxu0 %v8643
  %9331 = vmatpush1.msra.mxu0 %v8642
  %9332 = vmatprep.subr.mxu0 %v8603
  %9333 = vmatpush1.msra.mxu0 %v8602
  %9334 = vmatprep.subr.mxu0 %v8563
  %9335 = vmatpush1.msra.mxu0 %v8562
  %9336 = vmatprep.subr.mxu0 %v8523
  %9337 = vmatpush1.msra.mxu0 %v8522
  %9338 = vmatprep.subr.mxu0 %v8483
  %9339 = vmatpush1.msra.mxu0 %v8482
  %9340 = vmatprep.subr.mxu0 %v8443
  %9341 = vmatpush1.msra.mxu0 %v8442
  %9342 = vmatprep.subr.mxu0 %v8403
  %9343 = vmatpush1.msra.mxu0 %v8402
  %9344 = vmatprep.subr.mxu0 %v8363
  %9345 = vmatpush1.msra.mxu0 %v8362
  %9346 = vmatprep.subr.mxu0 0.0
  %9347 = vmatpush2.msra.mxu0 0.0
  %9348 = vmatprep.subr.mxu0 0.0
  %9349 = vmatpush2.msra.mxu0 0.0
  %9350 = vmatprep.subr.mxu0 0.0
  %9351 = vmatpush2.msra.mxu0 0.0
  %9352 = vmatprep.subr.mxu0 0.0
  %9353 = vmatpush2.msra.mxu0 0.0
  %9354 = vmatprep.subr.mxu0 0.0
  %9355 = vmatpush2.msra.mxu0 0.0
  %9356 = vmatprep.subr.mxu0 0.0
  %9357 = vmatpush2.msra.mxu0 0.0
  %9358 = vmatprep.subr.mxu0 0.0
  %9359 = vmatpush2.msra.mxu0 0.0
  %9360 = vmatprep.subr.mxu0 0.0
  %9361 = vmatpush2.msra.mxu0 0.0
  %9362 = vmatprep.subr.mxu0 0.0
  %9363 = vmatpush2.msra.mxu0 0.0
  %9364 = vmatprep.subr.mxu0 0.0
  %9365 = vmatpush2.msra.mxu0 0.0
  %9366 = vmatprep.subr.mxu0 0.0
  %9367 = vmatpush2.msra.mxu0 0.0
  %9368 = vmatprep.subr.mxu0 0.0
  %9369 = vmatpush2.msra.mxu0 0.0
  %9370 = vmatprep.subr.mxu0 0.0
  %9371 = vmatpush2.msra.mxu0 0.0
  %9372 = vmatprep.subr.mxu0 0.0
  %9373 = vmatpush2.msra.mxu0 0.0
  %9374 = vmatprep.subr.mxu0 0.0
  %9375 = vmatpush2.msra.mxu0 0.0
  %9376 = vmatprep.subr.mxu0 0.0
  %9377 = vmatpush2.msra.mxu0 0.0
  %9378 = vmatprep.mubr.f32.mxu0 0.0
  %9379 = vmatmul.mubr.f32.gmra.mxu0 %v8352
  %v9380 = vpop.f32.mrf.mxu0
  %v9381 = vadd.f32 %v8999, %v9380
  %v9382 = vpop.f32.mrf.mxu0
  %v9383 = vadd.f32 %v8999, %v9382
  %9384 = vmatprep.mubr.f32.mxu0 0.0
  %9385 = vmatmul.mubr.f32.gmra.mxu0 %v8353
  %v9386 = vpop.f32.mrf.mxu0
  %v9387 = vadd.f32 %v9004, %v9386
  %v9388 = vpop.f32.mrf.mxu0
  %v9389 = vadd.f32 %v9004, %v9388
  %9390 = vdwg.mxu0
  %9391 = vmatprep.subr.mxu0 %v8965
  %9392 = vmatpush1.msra.mxu0 %v8964
  %9393 = vmatprep.subr.mxu0 %v8925
  %9394 = vmatpush1.msra.mxu0 %v8924
  %9395 = vmatprep.subr.mxu0 %v8885
  %9396 = vmatpush1.msra.mxu0 %v8884
  %9397 = vmatprep.subr.mxu0 %v8845
  %9398 = vmatpush1.msra.mxu0 %v8844
  %9399 = vmatprep.subr.mxu0 %v8805
  %9400 = vmatpush1.msra.mxu0 %v8804
  %9401 = vmatprep.subr.mxu0 %v8765
  %9402 = vmatpush1.msra.mxu0 %v8764
  %9403 = vmatprep.subr.mxu0 %v8725
  %9404 = vmatpush1.msra.mxu0 %v8724
  %9405 = vmatprep.subr.mxu0 %v8685
  %9406 = vmatpush1.msra.mxu0 %v8684
  %9407 = vmatprep.subr.mxu0 %v8645
  %9408 = vmatpush1.msra.mxu0 %v8644
  %9409 = vmatprep.subr.mxu0 %v8605
  %9410 = vmatpush1.msra.mxu0 %v8604
  %9411 = vmatprep.subr.mxu0 %v8565
  %9412 = vmatpush1.msra.mxu0 %v8564
  %9413 = vmatprep.subr.mxu0 %v8525
  %9414 = vmatpush1.msra.mxu0 %v8524
  %9415 = vmatprep.subr.mxu0 %v8485
  %9416 = vmatpush1.msra.mxu0 %v8484
  %9417 = vmatprep.subr.mxu0 %v8445
  %9418 = vmatpush1.msra.mxu0 %v8444
  %9419 = vmatprep.subr.mxu0 %v8405
  %9420 = vmatpush1.msra.mxu0 %v8404
  %9421 = vmatprep.subr.mxu0 %v8365
  %9422 = vmatpush1.msra.mxu0 %v8364
  %9423 = vmatprep.subr.mxu0 0.0
  %9424 = vmatpush2.msra.mxu0 0.0
  %9425 = vmatprep.subr.mxu0 0.0
  %9426 = vmatpush2.msra.mxu0 0.0
  %9427 = vmatprep.subr.mxu0 0.0
  %9428 = vmatpush2.msra.mxu0 0.0
  %9429 = vmatprep.subr.mxu0 0.0
  %9430 = vmatpush2.msra.mxu0 0.0
  %9431 = vmatprep.subr.mxu0 0.0
  %9432 = vmatpush2.msra.mxu0 0.0
  %9433 = vmatprep.subr.mxu0 0.0
  %9434 = vmatpush2.msra.mxu0 0.0
  %9435 = vmatprep.subr.mxu0 0.0
  %9436 = vmatpush2.msra.mxu0 0.0
  %9437 = vmatprep.subr.mxu0 0.0
  %9438 = vmatpush2.msra.mxu0 0.0
  %9439 = vmatprep.subr.mxu0 0.0
  %9440 = vmatpush2.msra.mxu0 0.0
  %9441 = vmatprep.subr.mxu0 0.0
  %9442 = vmatpush2.msra.mxu0 0.0
  %9443 = vmatprep.subr.mxu0 0.0
  %9444 = vmatpush2.msra.mxu0 0.0
  %9445 = vmatprep.subr.mxu0 0.0
  %9446 = vmatpush2.msra.mxu0 0.0
  %9447 = vmatprep.subr.mxu0 0.0
  %9448 = vmatpush2.msra.mxu0 0.0
  %9449 = vmatprep.subr.mxu0 0.0
  %9450 = vmatpush2.msra.mxu0 0.0
  %9451 = vmatprep.subr.mxu0 0.0
  %9452 = vmatpush2.msra.mxu0 0.0
  %9453 = vmatprep.subr.mxu0 0.0
  %9454 = vmatpush2.msra.mxu0 0.0
  %9455 = vmatprep.mubr.f32.mxu0 0.0
  %9456 = vmatmul.mubr.f32.gmra.mxu0 %v8352
  %v9457 = vpop.f32.mrf.mxu0
  %v9458 = vadd.f32 %v8999, %v9457
  %v9459 = vpop.f32.mrf.mxu0
  %v9460 = vadd.f32 %v8999, %v9459
  %9461 = vmatprep.mubr.f32.mxu0 0.0
  %9462 = vmatmul.mubr.f32.gmra.mxu0 %v8353
  %v9463 = vpop.f32.mrf.mxu0
  %v9464 = vadd.f32 %v9004, %v9463
  %v9465 = vpop.f32.mrf.mxu0
  %v9466 = vadd.f32 %v9004, %v9465
  %9467 = vdwg.mxu0
  %9468 = vmatprep.subr.mxu0 %v8967
  %9469 = vmatpush1.msra.mxu0 %v8966
  %9470 = vmatprep.subr.mxu0 %v8927
  %9471 = vmatpush1.msra.mxu0 %v8926
  %9472 = vmatprep.subr.mxu0 %v8887
  %9473 = vmatpush1.msra.mxu0 %v8886
  %9474 = vmatprep.subr.mxu0 %v8847
  %9475 = vmatpush1.msra.mxu0 %v8846
  %9476 = vmatprep.subr.mxu0 %v8807
  %9477 = vmatpush1.msra.mxu0 %v8806
  %9478 = vmatprep.subr.mxu0 %v8767
  %9479 = vmatpush1.msra.mxu0 %v8766
  %9480 = vmatprep.subr.mxu0 %v8727
  %9481 = vmatpush1.msra.mxu0 %v8726
  %9482 = vmatprep.subr.mxu0 %v8687
  %9483 = vmatpush1.msra.mxu0 %v8686
  %9484 = vmatprep.subr.mxu0 %v8647
  %9485 = vmatpush1.msra.mxu0 %v8646
  %9486 = vmatprep.subr.mxu0 %v8607
  %9487 = vmatpush1.msra.mxu0 %v8606
  %9488 = vmatprep.subr.mxu0 %v8567
  %9489 = vmatpush1.msra.mxu0 %v8566
  %9490 = vmatprep.subr.mxu0 %v8527
  %9491 = vmatpush1.msra.mxu0 %v8526
  %9492 = vmatprep.subr.mxu0 %v8487
  %9493 = vmatpush1.msra.mxu0 %v8486
  %9494 = vmatprep.subr.mxu0 %v8447
  %9495 = vmatpush1.msra.mxu0 %v8446
  %9496 = vmatprep.subr.mxu0 %v8407
  %9497 = vmatpush1.msra.mxu0 %v8406
  %9498 = vmatprep.subr.mxu0 %v8367
  %9499 = vmatpush1.msra.mxu0 %v8366
  %9500 = vmatprep.subr.mxu0 0.0
  %9501 = vmatpush2.msra.mxu0 0.0
  %9502 = vmatprep.subr.mxu0 0.0
  %9503 = vmatpush2.msra.mxu0 0.0
  %9504 = vmatprep.subr.mxu0 0.0
  %9505 = vmatpush2.msra.mxu0 0.0
  %9506 = vmatprep.subr.mxu0 0.0
  %9507 = vmatpush2.msra.mxu0 0.0
  %9508 = vmatprep.subr.mxu0 0.0
  %9509 = vmatpush2.msra.mxu0 0.0
  %9510 = vmatprep.subr.mxu0 0.0
  %9511 = vmatpush2.msra.mxu0 0.0
  %9512 = vmatprep.subr.mxu0 0.0
  %9513 = vmatpush2.msra.mxu0 0.0
  %9514 = vmatprep.subr.mxu0 0.0
  %9515 = vmatpush2.msra.mxu0 0.0
  %9516 = vmatprep.subr.mxu0 0.0
  %9517 = vmatpush2.msra.mxu0 0.0
  %9518 = vmatprep.subr.mxu0 0.0
  %9519 = vmatpush2.msra.mxu0 0.0
  %9520 = vmatprep.subr.mxu0 0.0
  %9521 = vmatpush2.msra.mxu0 0.0
  %9522 = vmatprep.subr.mxu0 0.0
  %9523 = vmatpush2.msra.mxu0 0.0
  %9524 = vmatprep.subr.mxu0 0.0
  %9525 = vmatpush2.msra.mxu0 0.0
  %9526 = vmatprep.subr.mxu0 0.0
  %9527 = vmatpush2.msra.mxu0 0.0
  %9528 = vmatprep.subr.mxu0 0.0
  %9529 = vmatpush2.msra.mxu0 0.0
  %9530 = vmatprep.subr.mxu0 0.0
  %9531 = vmatpush2.msra.mxu0 0.0
  %9532 = vmatprep.mubr.f32.mxu0 0.0
  %9533 = vmatmul.mubr.f32.gmra.mxu0 %v8352
  %v9534 = vpop.f32.mrf.mxu0
  %v9535 = vadd.f32 %v8999, %v9534
  %v9536 = vpop.f32.mrf.mxu0
  %v9537 = vadd.f32 %v8999, %v9536
  %9538 = vmatprep.mubr.f32.mxu0 0.0
  %9539 = vmatmul.mubr.f32.gmra.mxu0 %v8353
  %v9540 = vpop.f32.mrf.mxu0
  %v9541 = vadd.f32 %v9004, %v9540
  %v9542 = vpop.f32.mrf.mxu0
  %v9543 = vadd.f32 %v9004, %v9542
  %9544 = vdwg.mxu0
  %9545 = vmatprep.subr.mxu0 %v8969
  %9546 = vmatpush1.msra.mxu0 %v8968
  %9547 = vmatprep.subr.mxu0 %v8929
  %9548 = vmatpush1.msra.mxu0 %v8928
  %9549 = vmatprep.subr.mxu0 %v8889
  %9550 = vmatpush1.msra.mxu0 %v8888
  %9551 = vmatprep.subr.mxu0 %v8849
  %9552 = vmatpush1.msra.mxu0 %v8848
  %9553 = vmatprep.subr.mxu0 %v8809
  %9554 = vmatpush1.msra.mxu0 %v8808
  %9555 = vmatprep.subr.mxu0 %v8769
  %9556 = vmatpush1.msra.mxu0 %v8768
  %9557 = vmatprep.subr.mxu0 %v8729
  %9558 = vmatpush1.msra.mxu0 %v8728
  %9559 = vmatprep.subr.mxu0 %v8689
  %9560 = vmatpush1.msra.mxu0 %v8688
  %9561 = vmatprep.subr.mxu0 %v8649
  %9562 = vmatpush1.msra.mxu0 %v8648
  %9563 = vmatprep.subr.mxu0 %v8609
  %9564 = vmatpush1.msra.mxu0 %v8608
  %9565 = vmatprep.subr.mxu0 %v8569
  %9566 = vmatpush1.msra.mxu0 %v8568
  %9567 = vmatprep.subr.mxu0 %v8529
  %9568 = vmatpush1.msra.mxu0 %v8528
  %9569 = vmatprep.subr.mxu0 %v8489
  %9570 = vmatpush1.msra.mxu0 %v8488
  %9571 = vmatprep.subr.mxu0 %v8449
  %9572 = vmatpush1.msra.mxu0 %v8448
  %9573 = vmatprep.subr.mxu0 %v8409
  %9574 = vmatpush1.msra.mxu0 %v8408
  %9575 = vmatprep.subr.mxu0 %v8369
  %9576 = vmatpush1.msra.mxu0 %v8368
  %9577 = vmatprep.subr.mxu0 0.0
  %9578 = vmatpush2.msra.mxu0 0.0
  %9579 = vmatprep.subr.mxu0 0.0
  %9580 = vmatpush2.msra.mxu0 0.0
  %9581 = vmatprep.subr.mxu0 0.0
  %9582 = vmatpush2.msra.mxu0 0.0
  %9583 = vmatprep.subr.mxu0 0.0
  %9584 = vmatpush2.msra.mxu0 0.0
  %9585 = vmatprep.subr.mxu0 0.0
  %9586 = vmatpush2.msra.mxu0 0.0
  %9587 = vmatprep.subr.mxu0 0.0
  %9588 = vmatpush2.msra.mxu0 0.0
  %9589 = vmatprep.subr.mxu0 0.0
  %9590 = vmatpush2.msra.mxu0 0.0
  %9591 = vmatprep.subr.mxu0 0.0
  %9592 = vmatpush2.msra.mxu0 0.0
  %9593 = vmatprep.subr.mxu0 0.0
  %9594 = vmatpush2.msra.mxu0 0.0
  %9595 = vmatprep.subr.mxu0 0.0
  %9596 = vmatpush2.msra.mxu0 0.0
  %9597 = vmatprep.subr.mxu0 0.0
  %9598 = vmatpush2.msra.mxu0 0.0
  %9599 = vmatprep.subr.mxu0 0.0
  %9600 = vmatpush2.msra.mxu0 0.0
  %9601 = vmatprep.subr.mxu0 0.0
  %9602 = vmatpush2.msra.mxu0 0.0
  %9603 = vmatprep.subr.mxu0 0.0
  %9604 = vmatpush2.msra.mxu0 0.0
  %9605 = vmatprep.subr.mxu0 0.0
  %9606 = vmatpush2.msra.mxu0 0.0
  %9607 = vmatprep.subr.mxu0 0.0
  %9608 = vmatpush2.msra.mxu0 0.0
  %9609 = vmatprep.mubr.f32.mxu0 0.0
  %9610 = vmatmul.mubr.f32.gmra.mxu0 %v8352
  %v9611 = vpop.f32.mrf.mxu0
  %v9612 = vadd.f32 %v8999, %v9611
  %v9613 = vpop.f32.mrf.mxu0
  %v9614 = vadd.f32 %v8999, %v9613
  %9615 = vmatprep.mubr.f32.mxu0 0.0
  %9616 = vmatmul.mubr.f32.gmra.mxu0 %v8353
  %v9617 = vpop.f32.mrf.mxu0
  %v9618 = vadd.f32 %v9004, %v9617
  %v9619 = vpop.f32.mrf.mxu0
  %v9620 = vadd.f32 %v9004, %v9619
  %9621 = vdwg.mxu0
  %9622 = vmatprep.subr.mxu0 %v8971
  %9623 = vmatpush1.msra.mxu0 %v8970
  %9624 = vmatprep.subr.mxu0 %v8931
  %9625 = vmatpush1.msra.mxu0 %v8930
  %9626 = vmatprep.subr.mxu0 %v8891
  %9627 = vmatpush1.msra.mxu0 %v8890
  %9628 = vmatprep.subr.mxu0 %v8851
  %9629 = vmatpush1.msra.mxu0 %v8850
  %9630 = vmatprep.subr.mxu0 %v8811
  %9631 = vmatpush1.msra.mxu0 %v8810
  %9632 = vmatprep.subr.mxu0 %v8771
  %9633 = vmatpush1.msra.mxu0 %v8770
  %9634 = vmatprep.subr.mxu0 %v8731
  %9635 = vmatpush1.msra.mxu0 %v8730
  %9636 = vmatprep.subr.mxu0 %v8691
  %9637 = vmatpush1.msra.mxu0 %v8690
  %9638 = vmatprep.subr.mxu0 %v8651
  %9639 = vmatpush1.msra.mxu0 %v8650
  %9640 = vmatprep.subr.mxu0 %v8611
  %9641 = vmatpush1.msra.mxu0 %v8610
  %9642 = vmatprep.subr.mxu0 %v8571
  %9643 = vmatpush1.msra.mxu0 %v8570
  %9644 = vmatprep.subr.mxu0 %v8531
  %9645 = vmatpush1.msra.mxu0 %v8530
  %9646 = vmatprep.subr.mxu0 %v8491
  %9647 = vmatpush1.msra.mxu0 %v8490
  %9648 = vmatprep.subr.mxu0 %v8451
  %9649 = vmatpush1.msra.mxu0 %v8450
  %9650 = vmatprep.subr.mxu0 %v8411
  %9651 = vmatpush1.msra.mxu0 %v8410
  %9652 = vmatprep.subr.mxu0 %v8371
  %9653 = vmatpush1.msra.mxu0 %v8370
  %9654 = vmatprep.subr.mxu0 0.0
  %9655 = vmatpush2.msra.mxu0 0.0
  %9656 = vmatprep.subr.mxu0 0.0
  %9657 = vmatpush2.msra.mxu0 0.0
  %9658 = vmatprep.subr.mxu0 0.0
  %9659 = vmatpush2.msra.mxu0 0.0
  %9660 = vmatprep.subr.mxu0 0.0
  %9661 = vmatpush2.msra.mxu0 0.0
  %9662 = vmatprep.subr.mxu0 0.0
  %9663 = vmatpush2.msra.mxu0 0.0
  %9664 = vmatprep.subr.mxu0 0.0
  %9665 = vmatpush2.msra.mxu0 0.0
  %9666 = vmatprep.subr.mxu0 0.0
  %9667 = vmatpush2.msra.mxu0 0.0
  %9668 = vmatprep.subr.mxu0 0.0
  %9669 = vmatpush2.msra.mxu0 0.0
  %9670 = vmatprep.subr.mxu0 0.0
  %9671 = vmatpush2.msra.mxu0 0.0
  %9672 = vmatprep.subr.mxu0 0.0
  %9673 = vmatpush2.msra.mxu0 0.0
  %9674 = vmatprep.subr.mxu0 0.0
  %9675 = vmatpush2.msra.mxu0 0.0
  %9676 = vmatprep.subr.mxu0 0.0
  %9677 = vmatpush2.msra.mxu0 0.0
  %9678 = vmatprep.subr.mxu0 0.0
  %9679 = vmatpush2.msra.mxu0 0.0
  %9680 = vmatprep.subr.mxu0 0.0
  %9681 = vmatpush2.msra.mxu0 0.0
  %9682 = vmatprep.subr.mxu0 0.0
  %9683 = vmatpush2.msra.mxu0 0.0
  %9684 = vmatprep.subr.mxu0 0.0
  %9685 = vmatpush2.msra.mxu0 0.0
  %9686 = vmatprep.mubr.f32.mxu0 0.0
  %9687 = vmatmul.mubr.f32.gmra.mxu0 %v8352
  %v9688 = vpop.f32.mrf.mxu0
  %v9689 = vadd.f32 %v8999, %v9688
  %v9690 = vpop.f32.mrf.mxu0
  %v9691 = vadd.f32 %v8999, %v9690
  %9692 = vmatprep.mubr.f32.mxu0 0.0
  %9693 = vmatmul.mubr.f32.gmra.mxu0 %v8353
  %v9694 = vpop.f32.mrf.mxu0
  %v9695 = vadd.f32 %v9004, %v9694
  %v9696 = vpop.f32.mrf.mxu0
  %v9697 = vadd.f32 %v9004, %v9696
  %9698 = vdwg.mxu0
  %9699 = vmatprep.subr.mxu0 %v8973
  %9700 = vmatpush1.msra.mxu0 %v8972
  %9701 = vmatprep.subr.mxu0 %v8933
  %9702 = vmatpush1.msra.mxu0 %v8932
  %9703 = vmatprep.subr.mxu0 %v8893
  %9704 = vmatpush1.msra.mxu0 %v8892
  %9705 = vmatprep.subr.mxu0 %v8853
  %9706 = vmatpush1.msra.mxu0 %v8852
  %9707 = vmatprep.subr.mxu0 %v8813
  %9708 = vmatpush1.msra.mxu0 %v8812
  %9709 = vmatprep.subr.mxu0 %v8773
  %9710 = vmatpush1.msra.mxu0 %v8772
  %9711 = vmatprep.subr.mxu0 %v8733
  %9712 = vmatpush1.msra.mxu0 %v8732
  %9713 = vmatprep.subr.mxu0 %v8693
  %9714 = vmatpush1.msra.mxu0 %v8692
  %9715 = vmatprep.subr.mxu0 %v8653
  %9716 = vmatpush1.msra.mxu0 %v8652
  %9717 = vmatprep.subr.mxu0 %v8613
  %9718 = vmatpush1.msra.mxu0 %v8612
  %9719 = vmatprep.subr.mxu0 %v8573
  %9720 = vmatpush1.msra.mxu0 %v8572
  %9721 = vmatprep.subr.mxu0 %v8533
  %9722 = vmatpush1.msra.mxu0 %v8532
  %9723 = vmatprep.subr.mxu0 %v8493
  %9724 = vmatpush1.msra.mxu0 %v8492
  %9725 = vmatprep.subr.mxu0 %v8453
  %9726 = vmatpush1.msra.mxu0 %v8452
  %9727 = vmatprep.subr.mxu0 %v8413
  %9728 = vmatpush1.msra.mxu0 %v8412
  %9729 = vmatprep.subr.mxu0 %v8373
  %9730 = vmatpush1.msra.mxu0 %v8372
  %9731 = vmatprep.subr.mxu0 0.0
  %9732 = vmatpush2.msra.mxu0 0.0
  %9733 = vmatprep.subr.mxu0 0.0
  %9734 = vmatpush2.msra.mxu0 0.0
  %9735 = vmatprep.subr.mxu0 0.0
  %9736 = vmatpush2.msra.mxu0 0.0
  %9737 = vmatprep.subr.mxu0 0.0
  %9738 = vmatpush2.msra.mxu0 0.0
  %9739 = vmatprep.subr.mxu0 0.0
  %9740 = vmatpush2.msra.mxu0 0.0
  %9741 = vmatprep.subr.mxu0 0.0
  %9742 = vmatpush2.msra.mxu0 0.0
  %9743 = vmatprep.subr.mxu0 0.0
  %9744 = vmatpush2.msra.mxu0 0.0
  %9745 = vmatprep.subr.mxu0 0.0
  %9746 = vmatpush2.msra.mxu0 0.0
  %9747 = vmatprep.subr.mxu0 0.0
  %9748 = vmatpush2.msra.mxu0 0.0
  %9749 = vmatprep.subr.mxu0 0.0
  %9750 = vmatpush2.msra.mxu0 0.0
  %9751 = vmatprep.subr.mxu0 0.0
  %9752 = vmatpush2.msra.mxu0 0.0
  %9753 = vmatprep.subr.mxu0 0.0
  %9754 = vmatpush2.msra.mxu0 0.0
  %9755 = vmatprep.subr.mxu0 0.0
  %9756 = vmatpush2.msra.mxu0 0.0
  %9757 = vmatprep.subr.mxu0 0.0
  %9758 = vmatpush2.msra.mxu0 0.0
  %9759 = vmatprep.subr.mxu0 0.0
  %9760 = vmatpush2.msra.mxu0 0.0
  %9761 = vmatprep.subr.mxu0 0.0
  %9762 = vmatpush2.msra.mxu0 0.0
  %9763 = vmatprep.mubr.f32.mxu0 0.0
  %9764 = vmatmul.mubr.f32.gmra.mxu0 %v8352
  %v9765 = vpop.f32.mrf.mxu0
  %v9766 = vadd.f32 %v8999, %v9765
  %v9767 = vpop.f32.mrf.mxu0
  %v9768 = vadd.f32 %v8999, %v9767
  %9769 = vmatprep.mubr.f32.mxu0 0.0
  %9770 = vmatmul.mubr.f32.gmra.mxu0 %v8353
  %v9771 = vpop.f32.mrf.mxu0
  %v9772 = vadd.f32 %v9004, %v9771
  %v9773 = vpop.f32.mrf.mxu0
  %v9774 = vadd.f32 %v9004, %v9773
  %9775 = vdwg.mxu0
  %9776 = vmatprep.subr.mxu0 %v8975
  %9777 = vmatpush1.msra.mxu0 %v8974
  %9778 = vmatprep.subr.mxu0 %v8935
  %9779 = vmatpush1.msra.mxu0 %v8934
  %9780 = vmatprep.subr.mxu0 %v8895
  %9781 = vmatpush1.msra.mxu0 %v8894
  %9782 = vmatprep.subr.mxu0 %v8855
  %9783 = vmatpush1.msra.mxu0 %v8854
  %9784 = vmatprep.subr.mxu0 %v8815
  %9785 = vmatpush1.msra.mxu0 %v8814
  %9786 = vmatprep.subr.mxu0 %v8775
  %9787 = vmatpush1.msra.mxu0 %v8774
  %9788 = vmatprep.subr.mxu0 %v8735
  %9789 = vmatpush1.msra.mxu0 %v8734
  %9790 = vmatprep.subr.mxu0 %v8695
  %9791 = vmatpush1.msra.mxu0 %v8694
  %9792 = vmatprep.subr.mxu0 %v8655
  %9793 = vmatpush1.msra.mxu0 %v8654
  %9794 = vmatprep.subr.mxu0 %v8615
  %9795 = vmatpush1.msra.mxu0 %v8614
  %9796 = vmatprep.subr.mxu0 %v8575
  %9797 = vmatpush1.msra.mxu0 %v8574
  %9798 = vmatprep.subr.mxu0 %v8535
  %9799 = vmatpush1.msra.mxu0 %v8534
  %9800 = vmatprep.subr.mxu0 %v8495
  %9801 = vmatpush1.msra.mxu0 %v8494
  %9802 = vmatprep.subr.mxu0 %v8455
  %9803 = vmatpush1.msra.mxu0 %v8454
  %9804 = vmatprep.subr.mxu0 %v8415
  %9805 = vmatpush1.msra.mxu0 %v8414
  %9806 = vmatprep.subr.mxu0 %v8375
  %9807 = vmatpush1.msra.mxu0 %v8374
  %9808 = vmatprep.subr.mxu0 0.0
  %9809 = vmatpush2.msra.mxu0 0.0
  %9810 = vmatprep.subr.mxu0 0.0
  %9811 = vmatpush2.msra.mxu0 0.0
  %9812 = vmatprep.subr.mxu0 0.0
  %9813 = vmatpush2.msra.mxu0 0.0
  %9814 = vmatprep.subr.mxu0 0.0
  %9815 = vmatpush2.msra.mxu0 0.0
  %9816 = vmatprep.subr.mxu0 0.0
  %9817 = vmatpush2.msra.mxu0 0.0
  %9818 = vmatprep.subr.mxu0 0.0
  %9819 = vmatpush2.msra.mxu0 0.0
  %9820 = vmatprep.subr.mxu0 0.0
  %9821 = vmatpush2.msra.mxu0 0.0
  %9822 = vmatprep.subr.mxu0 0.0
  %9823 = vmatpush2.msra.mxu0 0.0
  %9824 = vmatprep.subr.mxu0 0.0
  %9825 = vmatpush2.msra.mxu0 0.0
  %9826 = vmatprep.subr.mxu0 0.0
  %9827 = vmatpush2.msra.mxu0 0.0
  %9828 = vmatprep.subr.mxu0 0.0
  %9829 = vmatpush2.msra.mxu0 0.0
  %9830 = vmatprep.subr.mxu0 0.0
  %9831 = vmatpush2.msra.mxu0 0.0
  %9832 = vmatprep.subr.mxu0 0.0
  %9833 = vmatpush2.msra.mxu0 0.0
  %9834 = vmatprep.subr.mxu0 0.0
  %9835 = vmatpush2.msra.mxu0 0.0
  %9836 = vmatprep.subr.mxu0 0.0
  %9837 = vmatpush2.msra.mxu0 0.0
  %9838 = vmatprep.subr.mxu0 0.0
  %9839 = vmatpush2.msra.mxu0 0.0
  %9840 = vmatprep.mubr.f32.mxu0 0.0
  %9841 = vmatmul.mubr.f32.gmra.mxu0 %v8352
  %v9842 = vpop.f32.mrf.mxu0
  %v9843 = vadd.f32 %v8999, %v9842
  %v9844 = vpop.f32.mrf.mxu0
  %v9845 = vadd.f32 %v8999, %v9844
  %9846 = vmatprep.mubr.f32.mxu0 0.0
  %9847 = vmatmul.mubr.f32.gmra.mxu0 %v8353
  %v9848 = vpop.f32.mrf.mxu0
  %v9849 = vadd.f32 %v9004, %v9848
  %v9850 = vpop.f32.mrf.mxu0
  %v9851 = vadd.f32 %v9004, %v9850
  %9852 = vdwg.mxu0
  %9853 = vmatprep.subr.mxu0 %v8977
  %9854 = vmatpush1.msra.mxu0 %v8976
  %9855 = vmatprep.subr.mxu0 %v8937
  %9856 = vmatpush1.msra.mxu0 %v8936
  %9857 = vmatprep.subr.mxu0 %v8897
  %9858 = vmatpush1.msra.mxu0 %v8896
  %9859 = vmatprep.subr.mxu0 %v8857
  %9860 = vmatpush1.msra.mxu0 %v8856
  %9861 = vmatprep.subr.mxu0 %v8817
  %9862 = vmatpush1.msra.mxu0 %v8816
  %9863 = vmatprep.subr.mxu0 %v8777
  %9864 = vmatpush1.msra.mxu0 %v8776
  %9865 = vmatprep.subr.mxu0 %v8737
  %9866 = vmatpush1.msra.mxu0 %v8736
  %9867 = vmatprep.subr.mxu0 %v8697
  %9868 = vmatpush1.msra.mxu0 %v8696
  %9869 = vmatprep.subr.mxu0 %v8657
  %9870 = vmatpush1.msra.mxu0 %v8656
  %9871 = vmatprep.subr.mxu0 %v8617
  %9872 = vmatpush1.msra.mxu0 %v8616
  %9873 = vmatprep.subr.mxu0 %v8577
  %9874 = vmatpush1.msra.mxu0 %v8576
  %9875 = vmatprep.subr.mxu0 %v8537
  %9876 = vmatpush1.msra.mxu0 %v8536
  %9877 = vmatprep.subr.mxu0 %v8497
  %9878 = vmatpush1.msra.mxu0 %v8496
  %9879 = vmatprep.subr.mxu0 %v8457
  %9880 = vmatpush1.msra.mxu0 %v8456
  %9881 = vmatprep.subr.mxu0 %v8417
  %9882 = vmatpush1.msra.mxu0 %v8416
  %9883 = vmatprep.subr.mxu0 %v8377
  %9884 = vmatpush1.msra.mxu0 %v8376
  %9885 = vmatprep.subr.mxu0 0.0
  %9886 = vmatpush2.msra.mxu0 0.0
  %9887 = vmatprep.subr.mxu0 0.0
  %9888 = vmatpush2.msra.mxu0 0.0
  %9889 = vmatprep.subr.mxu0 0.0
  %9890 = vmatpush2.msra.mxu0 0.0
  %9891 = vmatprep.subr.mxu0 0.0
  %9892 = vmatpush2.msra.mxu0 0.0
  %9893 = vmatprep.subr.mxu0 0.0
  %9894 = vmatpush2.msra.mxu0 0.0
  %9895 = vmatprep.subr.mxu0 0.0
  %9896 = vmatpush2.msra.mxu0 0.0
  %9897 = vmatprep.subr.mxu0 0.0
  %9898 = vmatpush2.msra.mxu0 0.0
  %9899 = vmatprep.subr.mxu0 0.0
  %9900 = vmatpush2.msra.mxu0 0.0
  %9901 = vmatprep.subr.mxu0 0.0
  %9902 = vmatpush2.msra.mxu0 0.0
  %9903 = vmatprep.subr.mxu0 0.0
  %9904 = vmatpush2.msra.mxu0 0.0
  %9905 = vmatprep.subr.mxu0 0.0
  %9906 = vmatpush2.msra.mxu0 0.0
  %9907 = vmatprep.subr.mxu0 0.0
  %9908 = vmatpush2.msra.mxu0 0.0
  %9909 = vmatprep.subr.mxu0 0.0
  %9910 = vmatpush2.msra.mxu0 0.0
  %9911 = vmatprep.subr.mxu0 0.0
  %9912 = vmatpush2.msra.mxu0 0.0
  %9913 = vmatprep.subr.mxu0 0.0
  %9914 = vmatpush2.msra.mxu0 0.0
  %9915 = vmatprep.subr.mxu0 0.0
  %9916 = vmatpush2.msra.mxu0 0.0
  %9917 = vmatprep.mubr.f32.mxu0 0.0
  %9918 = vmatmul.mubr.f32.gmra.mxu0 %v8352
  %v9919 = vpop.f32.mrf.mxu0
  %v9920 = vadd.f32 %v8999, %v9919
  %v9921 = vpop.f32.mrf.mxu0
  %v9922 = vadd.f32 %v8999, %v9921
  %9923 = vmatprep.mubr.f32.mxu0 0.0
  %9924 = vmatmul.mubr.f32.gmra.mxu0 %v8353
  %v9925 = vpop.f32.mrf.mxu0
  %v9926 = vadd.f32 %v9004, %v9925
  %v9927 = vpop.f32.mrf.mxu0
  %v9928 = vadd.f32 %v9004, %v9927
  %9929 = vdwg.mxu0
  %9930 = vmatprep.subr.mxu0 %v8979
  %9931 = vmatpush1.msra.mxu0 %v8978
  %9932 = vmatprep.subr.mxu0 %v8939
  %9933 = vmatpush1.msra.mxu0 %v8938
  %9934 = vmatprep.subr.mxu0 %v8899
  %9935 = vmatpush1.msra.mxu0 %v8898
  %9936 = vmatprep.subr.mxu0 %v8859
  %9937 = vmatpush1.msra.mxu0 %v8858
  %9938 = vmatprep.subr.mxu0 %v8819
  %9939 = vmatpush1.msra.mxu0 %v8818
  %9940 = vmatprep.subr.mxu0 %v8779
  %9941 = vmatpush1.msra.mxu0 %v8778
  %9942 = vmatprep.subr.mxu0 %v8739
  %9943 = vmatpush1.msra.mxu0 %v8738
  %9944 = vmatprep.subr.mxu0 %v8699
  %9945 = vmatpush1.msra.mxu0 %v8698
  %9946 = vmatprep.subr.mxu0 %v8659
  %9947 = vmatpush1.msra.mxu0 %v8658
  %9948 = vmatprep.subr.mxu0 %v8619
  %9949 = vmatpush1.msra.mxu0 %v8618
  %9950 = vmatprep.subr.mxu0 %v8579
  %9951 = vmatpush1.msra.mxu0 %v8578
  %9952 = vmatprep.subr.mxu0 %v8539
  %9953 = vmatpush1.msra.mxu0 %v8538
  %9954 = vmatprep.subr.mxu0 %v8499
  %9955 = vmatpush1.msra.mxu0 %v8498
  %9956 = vmatprep.subr.mxu0 %v8459
  %9957 = vmatpush1.msra.mxu0 %v8458
  %9958 = vmatprep.subr.mxu0 %v8419
  %9959 = vmatpush1.msra.mxu0 %v8418
  %9960 = vmatprep.subr.mxu0 %v8379
  %9961 = vmatpush1.msra.mxu0 %v8378
  %9962 = vmatprep.subr.mxu0 0.0
  %9963 = vmatpush2.msra.mxu0 0.0
  %9964 = vmatprep.subr.mxu0 0.0
  %9965 = vmatpush2.msra.mxu0 0.0
  %9966 = vmatprep.subr.mxu0 0.0
  %9967 = vmatpush2.msra.mxu0 0.0
  %9968 = vmatprep.subr.mxu0 0.0
  %9969 = vmatpush2.msra.mxu0 0.0
  %9970 = vmatprep.subr.mxu0 0.0
  %9971 = vmatpush2.msra.mxu0 0.0
  %9972 = vmatprep.subr.mxu0 0.0
  %9973 = vmatpush2.msra.mxu0 0.0
  %9974 = vmatprep.subr.mxu0 0.0
  %9975 = vmatpush2.msra.mxu0 0.0
  %9976 = vmatprep.subr.mxu0 0.0
  %9977 = vmatpush2.msra.mxu0 0.0
  %9978 = vmatprep.subr.mxu0 0.0
  %9979 = vmatpush2.msra.mxu0 0.0
  %9980 = vmatprep.subr.mxu0 0.0
  %9981 = vmatpush2.msra.mxu0 0.0
  %9982 = vmatprep.subr.mxu0 0.0
  %9983 = vmatpush2.msra.mxu0 0.0
  %9984 = vmatprep.subr.mxu0 0.0
  %9985 = vmatpush2.msra.mxu0 0.0
  %9986 = vmatprep.subr.mxu0 0.0
  %9987 = vmatpush2.msra.mxu0 0.0
  %9988 = vmatprep.subr.mxu0 0.0
  %9989 = vmatpush2.msra.mxu0 0.0
  %9990 = vmatprep.subr.mxu0 0.0
  %9991 = vmatpush2.msra.mxu0 0.0
  %9992 = vmatprep.subr.mxu0 0.0
  %9993 = vmatpush2.msra.mxu0 0.0
  %9994 = vmatprep.mubr.f32.mxu0 0.0
  %9995 = vmatmul.mubr.f32.gmra.mxu0 %v8352
  %v9996 = vpop.f32.mrf.mxu0
  %v9997 = vadd.f32 %v8999, %v9996
  %v9998 = vpop.f32.mrf.mxu0
  %v9999 = vadd.f32 %v8999, %v9998
  %10000 = vmatprep.mubr.f32.mxu0 0.0
  %10001 = vmatmul.mubr.f32.gmra.mxu0 %v8353
  %v10002 = vpop.f32.mrf.mxu0
  %v10003 = vadd.f32 %v9004, %v10002
  %v10004 = vpop.f32.mrf.mxu0
  %v10005 = vadd.f32 %v9004, %v10004
  %10006 = vdwg.mxu0
  %10007 = vmatprep.subr.mxu0 %v8981
  %10008 = vmatpush1.msra.mxu0 %v8980
  %10009 = vmatprep.subr.mxu0 %v8941
  %10010 = vmatpush1.msra.mxu0 %v8940
  %10011 = vmatprep.subr.mxu0 %v8901
  %10012 = vmatpush1.msra.mxu0 %v8900
  %10013 = vmatprep.subr.mxu0 %v8861
  %10014 = vmatpush1.msra.mxu0 %v8860
  %10015 = vmatprep.subr.mxu0 %v8821
  %10016 = vmatpush1.msra.mxu0 %v8820
  %10017 = vmatprep.subr.mxu0 %v8781
  %10018 = vmatpush1.msra.mxu0 %v8780
  %10019 = vmatprep.subr.mxu0 %v8741
  %10020 = vmatpush1.msra.mxu0 %v8740
  %10021 = vmatprep.subr.mxu0 %v8701
  %10022 = vmatpush1.msra.mxu0 %v8700
  %10023 = vmatprep.subr.mxu0 %v8661
  %10024 = vmatpush1.msra.mxu0 %v8660
  %10025 = vmatprep.subr.mxu0 %v8621
  %10026 = vmatpush1.msra.mxu0 %v8620
  %10027 = vmatprep.subr.mxu0 %v8581
  %10028 = vmatpush1.msra.mxu0 %v8580
  %10029 = vmatprep.subr.mxu0 %v8541
  %10030 = vmatpush1.msra.mxu0 %v8540
  %10031 = vmatprep.subr.mxu0 %v8501
  %10032 = vmatpush1.msra.mxu0 %v8500
  %10033 = vmatprep.subr.mxu0 %v8461
  %10034 = vmatpush1.msra.mxu0 %v8460
  %10035 = vmatprep.subr.mxu0 %v8421
  %10036 = vmatpush1.msra.mxu0 %v8420
  %10037 = vmatprep.subr.mxu0 %v8381
  %10038 = vmatpush1.msra.mxu0 %v8380
  %10039 = vmatprep.subr.mxu0 0.0
  %10040 = vmatpush2.msra.mxu0 0.0
  %10041 = vmatprep.subr.mxu0 0.0
  %10042 = vmatpush2.msra.mxu0 0.0
  %10043 = vmatprep.subr.mxu0 0.0
  %10044 = vmatpush2.msra.mxu0 0.0
  %10045 = vmatprep.subr.mxu0 0.0
  %10046 = vmatpush2.msra.mxu0 0.0
  %10047 = vmatprep.subr.mxu0 0.0
  %10048 = vmatpush2.msra.mxu0 0.0
  %10049 = vmatprep.subr.mxu0 0.0
  %10050 = vmatpush2.msra.mxu0 0.0
  %10051 = vmatprep.subr.mxu0 0.0
  %10052 = vmatpush2.msra.mxu0 0.0
  %10053 = vmatprep.subr.mxu0 0.0
  %10054 = vmatpush2.msra.mxu0 0.0
  %10055 = vmatprep.subr.mxu0 0.0
  %10056 = vmatpush2.msra.mxu0 0.0
  %10057 = vmatprep.subr.mxu0 0.0
  %10058 = vmatpush2.msra.mxu0 0.0
  %10059 = vmatprep.subr.mxu0 0.0
  %10060 = vmatpush2.msra.mxu0 0.0
  %10061 = vmatprep.subr.mxu0 0.0
  %10062 = vmatpush2.msra.mxu0 0.0
  %10063 = vmatprep.subr.mxu0 0.0
  %10064 = vmatpush2.msra.mxu0 0.0
  %10065 = vmatprep.subr.mxu0 0.0
  %10066 = vmatpush2.msra.mxu0 0.0
  %10067 = vmatprep.subr.mxu0 0.0
  %10068 = vmatpush2.msra.mxu0 0.0
  %10069 = vmatprep.subr.mxu0 0.0
  %10070 = vmatpush2.msra.mxu0 0.0
  %10071 = vmatprep.mubr.f32.mxu0 0.0
  %10072 = vmatmul.mubr.f32.gmra.mxu0 %v8352
  %v10073 = vpop.f32.mrf.mxu0
  %v10074 = vadd.f32 %v8999, %v10073
  %v10075 = vpop.f32.mrf.mxu0
  %v10076 = vadd.f32 %v8999, %v10075
  %10077 = vmatprep.mubr.f32.mxu0 0.0
  %10078 = vmatmul.mubr.f32.gmra.mxu0 %v8353
  %v10079 = vpop.f32.mrf.mxu0
  %v10080 = vadd.f32 %v9004, %v10079
  %v10081 = vpop.f32.mrf.mxu0
  %v10082 = vadd.f32 %v9004, %v10081
  %10083 = vdwg.mxu0
  %10084 = vmatprep.subr.mxu0 %v8983
  %10085 = vmatpush1.msra.mxu0 %v8982
  %10086 = vmatprep.subr.mxu0 %v8943
  %10087 = vmatpush1.msra.mxu0 %v8942
  %10088 = vmatprep.subr.mxu0 %v8903
  %10089 = vmatpush1.msra.mxu0 %v8902
  %10090 = vmatprep.subr.mxu0 %v8863
  %10091 = vmatpush1.msra.mxu0 %v8862
  %10092 = vmatprep.subr.mxu0 %v8823
  %10093 = vmatpush1.msra.mxu0 %v8822
  %10094 = vmatprep.subr.mxu0 %v8783
  %10095 = vmatpush1.msra.mxu0 %v8782
  %10096 = vmatprep.subr.mxu0 %v8743
  %10097 = vmatpush1.msra.mxu0 %v8742
  %10098 = vmatprep.subr.mxu0 %v8703
  %10099 = vmatpush1.msra.mxu0 %v8702
  %10100 = vmatprep.subr.mxu0 %v8663
  %10101 = vmatpush1.msra.mxu0 %v8662
  %10102 = vmatprep.subr.mxu0 %v8623
  %10103 = vmatpush1.msra.mxu0 %v8622
  %10104 = vmatprep.subr.mxu0 %v8583
  %10105 = vmatpush1.msra.mxu0 %v8582
  %10106 = vmatprep.subr.mxu0 %v8543
  %10107 = vmatpush1.msra.mxu0 %v8542
  %10108 = vmatprep.subr.mxu0 %v8503
  %10109 = vmatpush1.msra.mxu0 %v8502
  %10110 = vmatprep.subr.mxu0 %v8463
  %10111 = vmatpush1.msra.mxu0 %v8462
  %10112 = vmatprep.subr.mxu0 %v8423
  %10113 = vmatpush1.msra.mxu0 %v8422
  %10114 = vmatprep.subr.mxu0 %v8383
  %10115 = vmatpush1.msra.mxu0 %v8382
  %10116 = vmatprep.subr.mxu0 0.0
  %10117 = vmatpush2.msra.mxu0 0.0
  %10118 = vmatprep.subr.mxu0 0.0
  %10119 = vmatpush2.msra.mxu0 0.0
  %10120 = vmatprep.subr.mxu0 0.0
  %10121 = vmatpush2.msra.mxu0 0.0
  %10122 = vmatprep.subr.mxu0 0.0
  %10123 = vmatpush2.msra.mxu0 0.0
  %10124 = vmatprep.subr.mxu0 0.0
  %10125 = vmatpush2.msra.mxu0 0.0
  %10126 = vmatprep.subr.mxu0 0.0
  %10127 = vmatpush2.msra.mxu0 0.0
  %10128 = vmatprep.subr.mxu0 0.0
  %10129 = vmatpush2.msra.mxu0 0.0
  %10130 = vmatprep.subr.mxu0 0.0
  %10131 = vmatpush2.msra.mxu0 0.0
  %10132 = vmatprep.subr.mxu0 0.0
  %10133 = vmatpush2.msra.mxu0 0.0
  %10134 = vmatprep.subr.mxu0 0.0
  %10135 = vmatpush2.msra.mxu0 0.0
  %10136 = vmatprep.subr.mxu0 0.0
  %10137 = vmatpush2.msra.mxu0 0.0
  %10138 = vmatprep.subr.mxu0 0.0
  %10139 = vmatpush2.msra.mxu0 0.0
  %10140 = vmatprep.subr.mxu0 0.0
  %10141 = vmatpush2.msra.mxu0 0.0
  %10142 = vmatprep.subr.mxu0 0.0
  %10143 = vmatpush2.msra.mxu0 0.0
  %10144 = vmatprep.subr.mxu0 0.0
  %10145 = vmatpush2.msra.mxu0 0.0
  %10146 = vmatprep.subr.mxu0 0.0
  %10147 = vmatpush2.msra.mxu0 0.0
  %10148 = vmatprep.mubr.f32.mxu0 0.0
  %10149 = vmatmul.mubr.f32.gmra.mxu0 %v8352
  %v10150 = vpop.f32.mrf.mxu0
  %v10151 = vadd.f32 %v8999, %v10150
  %v10152 = vpop.f32.mrf.mxu0
  %v10153 = vadd.f32 %v8999, %v10152
  %10154 = vmatprep.mubr.f32.mxu0 0.0
  %10155 = vmatmul.mubr.f32.gmra.mxu0 %v8353
  %v10156 = vpop.f32.mrf.mxu0
  %v10157 = vadd.f32 %v9004, %v10156
  %v10158 = vpop.f32.mrf.mxu0
  %v10159 = vadd.f32 %v9004, %v10158
  %10160 = vdwg.mxu0
  %10161 = vmatprep.subr.mxu0 %v8985
  %10162 = vmatpush1.msra.mxu0 %v8984
  %10163 = vmatprep.subr.mxu0 %v8945
  %10164 = vmatpush1.msra.mxu0 %v8944
  %10165 = vmatprep.subr.mxu0 %v8905
  %10166 = vmatpush1.msra.mxu0 %v8904
  %10167 = vmatprep.subr.mxu0 %v8865
  %10168 = vmatpush1.msra.mxu0 %v8864
  %10169 = vmatprep.subr.mxu0 %v8825
  %10170 = vmatpush1.msra.mxu0 %v8824
  %10171 = vmatprep.subr.mxu0 %v8785
  %10172 = vmatpush1.msra.mxu0 %v8784
  %10173 = vmatprep.subr.mxu0 %v8745
  %10174 = vmatpush1.msra.mxu0 %v8744
  %10175 = vmatprep.subr.mxu0 %v8705
  %10176 = vmatpush1.msra.mxu0 %v8704
  %10177 = vmatprep.subr.mxu0 %v8665
  %10178 = vmatpush1.msra.mxu0 %v8664
  %10179 = vmatprep.subr.mxu0 %v8625
  %10180 = vmatpush1.msra.mxu0 %v8624
  %10181 = vmatprep.subr.mxu0 %v8585
  %10182 = vmatpush1.msra.mxu0 %v8584
  %10183 = vmatprep.subr.mxu0 %v8545
  %10184 = vmatpush1.msra.mxu0 %v8544
  %10185 = vmatprep.subr.mxu0 %v8505
  %10186 = vmatpush1.msra.mxu0 %v8504
  %10187 = vmatprep.subr.mxu0 %v8465
  %10188 = vmatpush1.msra.mxu0 %v8464
  %10189 = vmatprep.subr.mxu0 %v8425
  %10190 = vmatpush1.msra.mxu0 %v8424
  %10191 = vmatprep.subr.mxu0 %v8385
  %10192 = vmatpush1.msra.mxu0 %v8384
  %10193 = vmatprep.subr.mxu0 0.0
  %10194 = vmatpush2.msra.mxu0 0.0
  %10195 = vmatprep.subr.mxu0 0.0
  %10196 = vmatpush2.msra.mxu0 0.0
  %10197 = vmatprep.subr.mxu0 0.0
  %10198 = vmatpush2.msra.mxu0 0.0
  %10199 = vmatprep.subr.mxu0 0.0
  %10200 = vmatpush2.msra.mxu0 0.0
  %10201 = vmatprep.subr.mxu0 0.0
  %10202 = vmatpush2.msra.mxu0 0.0
  %10203 = vmatprep.subr.mxu0 0.0
  %10204 = vmatpush2.msra.mxu0 0.0
  %10205 = vmatprep.subr.mxu0 0.0
  %10206 = vmatpush2.msra.mxu0 0.0
  %10207 = vmatprep.subr.mxu0 0.0
  %10208 = vmatpush2.msra.mxu0 0.0
  %10209 = vmatprep.subr.mxu0 0.0
  %10210 = vmatpush2.msra.mxu0 0.0
  %10211 = vmatprep.subr.mxu0 0.0
  %10212 = vmatpush2.msra.mxu0 0.0
  %10213 = vmatprep.subr.mxu0 0.0
  %10214 = vmatpush2.msra.mxu0 0.0
  %10215 = vmatprep.subr.mxu0 0.0
  %10216 = vmatpush2.msra.mxu0 0.0
  %10217 = vmatprep.subr.mxu0 0.0
  %10218 = vmatpush2.msra.mxu0 0.0
  %10219 = vmatprep.subr.mxu0 0.0
  %10220 = vmatpush2.msra.mxu0 0.0
  %10221 = vmatprep.subr.mxu0 0.0
  %10222 = vmatpush2.msra.mxu0 0.0
  %10223 = vmatprep.subr.mxu0 0.0
  %10224 = vmatpush2.msra.mxu0 0.0
  %10225 = vmatprep.mubr.f32.mxu0 0.0
  %10226 = vmatmul.mubr.f32.gmra.mxu0 %v8352
  %v10227 = vpop.f32.mrf.mxu0
  %v10228 = vadd.f32 %v8999, %v10227
  %v10229 = vpop.f32.mrf.mxu0
  %v10230 = vadd.f32 %v8999, %v10229
  %10231 = vmatprep.mubr.f32.mxu0 0.0
  %10232 = vmatmul.mubr.f32.gmra.mxu0 %v8353
  %v10233 = vpop.f32.mrf.mxu0
  %v10234 = vadd.f32 %v9004, %v10233
  %v10235 = vpop.f32.mrf.mxu0
  %v10236 = vadd.f32 %v9004, %v10235
  %10237 = vdwg.mxu0
  %10238 = vmatprep.subr.mxu0 %v8987
  %10239 = vmatpush1.msra.mxu0 %v8986
  %10240 = vmatprep.subr.mxu0 %v8947
  %10241 = vmatpush1.msra.mxu0 %v8946
  %10242 = vmatprep.subr.mxu0 %v8907
  %10243 = vmatpush1.msra.mxu0 %v8906
  %10244 = vmatprep.subr.mxu0 %v8867
  %10245 = vmatpush1.msra.mxu0 %v8866
  %10246 = vmatprep.subr.mxu0 %v8827
  %10247 = vmatpush1.msra.mxu0 %v8826
  %10248 = vmatprep.subr.mxu0 %v8787
  %10249 = vmatpush1.msra.mxu0 %v8786
  %10250 = vmatprep.subr.mxu0 %v8747
  %10251 = vmatpush1.msra.mxu0 %v8746
  %10252 = vmatprep.subr.mxu0 %v8707
  %10253 = vmatpush1.msra.mxu0 %v8706
  %10254 = vmatprep.subr.mxu0 %v8667
  %10255 = vmatpush1.msra.mxu0 %v8666
  %10256 = vmatprep.subr.mxu0 %v8627
  %10257 = vmatpush1.msra.mxu0 %v8626
  %10258 = vmatprep.subr.mxu0 %v8587
  %10259 = vmatpush1.msra.mxu0 %v8586
  %10260 = vmatprep.subr.mxu0 %v8547
  %10261 = vmatpush1.msra.mxu0 %v8546
  %10262 = vmatprep.subr.mxu0 %v8507
  %10263 = vmatpush1.msra.mxu0 %v8506
  %10264 = vmatprep.subr.mxu0 %v8467
  %10265 = vmatpush1.msra.mxu0 %v8466
  %10266 = vmatprep.subr.mxu0 %v8427
  %10267 = vmatpush1.msra.mxu0 %v8426
  %10268 = vmatprep.subr.mxu0 %v8387
  %10269 = vmatpush1.msra.mxu0 %v8386
  %10270 = vmatprep.subr.mxu0 0.0
  %10271 = vmatpush2.msra.mxu0 0.0
  %10272 = vmatprep.subr.mxu0 0.0
  %10273 = vmatpush2.msra.mxu0 0.0
  %10274 = vmatprep.subr.mxu0 0.0
  %10275 = vmatpush2.msra.mxu0 0.0
  %10276 = vmatprep.subr.mxu0 0.0
  %10277 = vmatpush2.msra.mxu0 0.0
  %10278 = vmatprep.subr.mxu0 0.0
  %10279 = vmatpush2.msra.mxu0 0.0
  %10280 = vmatprep.subr.mxu0 0.0
  %10281 = vmatpush2.msra.mxu0 0.0
  %10282 = vmatprep.subr.mxu0 0.0
  %10283 = vmatpush2.msra.mxu0 0.0
  %10284 = vmatprep.subr.mxu0 0.0
  %10285 = vmatpush2.msra.mxu0 0.0
  %10286 = vmatprep.subr.mxu0 0.0
  %10287 = vmatpush2.msra.mxu0 0.0
  %10288 = vmatprep.subr.mxu0 0.0
  %10289 = vmatpush2.msra.mxu0 0.0
  %10290 = vmatprep.subr.mxu0 0.0
  %10291 = vmatpush2.msra.mxu0 0.0
  %10292 = vmatprep.subr.mxu0 0.0
  %10293 = vmatpush2.msra.mxu0 0.0
  %10294 = vmatprep.subr.mxu0 0.0
  %10295 = vmatpush2.msra.mxu0 0.0
  %10296 = vmatprep.subr.mxu0 0.0
  %10297 = vmatpush2.msra.mxu0 0.0
  %10298 = vmatprep.subr.mxu0 0.0
  %10299 = vmatpush2.msra.mxu0 0.0
  %10300 = vmatprep.subr.mxu0 0.0
  %10301 = vmatpush2.msra.mxu0 0.0
  %10302 = vmatprep.mubr.f32.mxu0 0.0
  %10303 = vmatmul.mubr.f32.gmra.mxu0 %v8352
  %v10304 = vpop.f32.mrf.mxu0
  %v10305 = vadd.f32 %v8999, %v10304
  %v10306 = vpop.f32.mrf.mxu0
  %v10307 = vadd.f32 %v8999, %v10306
  %10308 = vmatprep.mubr.f32.mxu0 0.0
  %10309 = vmatmul.mubr.f32.gmra.mxu0 %v8353
  %v10310 = vpop.f32.mrf.mxu0
  %v10311 = vadd.f32 %v9004, %v10310
  %v10312 = vpop.f32.mrf.mxu0
  %v10313 = vadd.f32 %v9004, %v10312
  %10314 = vdwg.mxu0
  %10315 = vmatprep.subr.mxu0 %v8989
  %10316 = vmatpush1.msra.mxu0 %v8988
  %10317 = vmatprep.subr.mxu0 %v8949
  %10318 = vmatpush1.msra.mxu0 %v8948
  %10319 = vmatprep.subr.mxu0 %v8909
  %10320 = vmatpush1.msra.mxu0 %v8908
  %10321 = vmatprep.subr.mxu0 %v8869
  %10322 = vmatpush1.msra.mxu0 %v8868
  %10323 = vmatprep.subr.mxu0 %v8829
  %10324 = vmatpush1.msra.mxu0 %v8828
  %10325 = vmatprep.subr.mxu0 %v8789
  %10326 = vmatpush1.msra.mxu0 %v8788
  %10327 = vmatprep.subr.mxu0 %v8749
  %10328 = vmatpush1.msra.mxu0 %v8748
  %10329 = vmatprep.subr.mxu0 %v8709
  %10330 = vmatpush1.msra.mxu0 %v8708
  %10331 = vmatprep.subr.mxu0 %v8669
  %10332 = vmatpush1.msra.mxu0 %v8668
  %10333 = vmatprep.subr.mxu0 %v8629
  %10334 = vmatpush1.msra.mxu0 %v8628
  %10335 = vmatprep.subr.mxu0 %v8589
  %10336 = vmatpush1.msra.mxu0 %v8588
  %10337 = vmatprep.subr.mxu0 %v8549
  %10338 = vmatpush1.msra.mxu0 %v8548
  %10339 = vmatprep.subr.mxu0 %v8509
  %10340 = vmatpush1.msra.mxu0 %v8508
  %10341 = vmatprep.subr.mxu0 %v8469
  %10342 = vmatpush1.msra.mxu0 %v8468
  %10343 = vmatprep.subr.mxu0 %v8429
  %10344 = vmatpush1.msra.mxu0 %v8428
  %10345 = vmatprep.subr.mxu0 %v8389
  %10346 = vmatpush1.msra.mxu0 %v8388
  %10347 = vmatprep.subr.mxu0 0.0
  %10348 = vmatpush2.msra.mxu0 0.0
  %10349 = vmatprep.subr.mxu0 0.0
  %10350 = vmatpush2.msra.mxu0 0.0
  %10351 = vmatprep.subr.mxu0 0.0
  %10352 = vmatpush2.msra.mxu0 0.0
  %10353 = vmatprep.subr.mxu0 0.0
  %10354 = vmatpush2.msra.mxu0 0.0
  %10355 = vmatprep.subr.mxu0 0.0
  %10356 = vmatpush2.msra.mxu0 0.0
  %10357 = vmatprep.subr.mxu0 0.0
  %10358 = vmatpush2.msra.mxu0 0.0
  %10359 = vmatprep.subr.mxu0 0.0
  %10360 = vmatpush2.msra.mxu0 0.0
  %10361 = vmatprep.subr.mxu0 0.0
  %10362 = vmatpush2.msra.mxu0 0.0
  %10363 = vmatprep.subr.mxu0 0.0
  %10364 = vmatpush2.msra.mxu0 0.0
  %10365 = vmatprep.subr.mxu0 0.0
  %10366 = vmatpush2.msra.mxu0 0.0
  %10367 = vmatprep.subr.mxu0 0.0
  %10368 = vmatpush2.msra.mxu0 0.0
  %10369 = vmatprep.subr.mxu0 0.0
  %10370 = vmatpush2.msra.mxu0 0.0
  %10371 = vmatprep.subr.mxu0 0.0
  %10372 = vmatpush2.msra.mxu0 0.0
  %10373 = vmatprep.subr.mxu0 0.0
  %10374 = vmatpush2.msra.mxu0 0.0
  %10375 = vmatprep.subr.mxu0 0.0
  %10376 = vmatpush2.msra.mxu0 0.0
  %10377 = vmatprep.subr.mxu0 0.0
  %10378 = vmatpush2.msra.mxu0 0.0
  %10379 = vmatprep.mubr.f32.mxu0 0.0
  %10380 = vmatmul.mubr.f32.gmra.mxu0 %v8352
  %v10381 = vpop.f32.mrf.mxu0
  %v10382 = vadd.f32 %v8999, %v10381
  %v10383 = vpop.f32.mrf.mxu0
  %v10384 = vadd.f32 %v8999, %v10383
  %10385 = vmatprep.mubr.f32.mxu0 0.0
  %10386 = vmatmul.mubr.f32.gmra.mxu0 %v8353
  %v10387 = vpop.f32.mrf.mxu0
  %v10388 = vadd.f32 %v9004, %v10387
  %v10389 = vpop.f32.mrf.mxu0
  %v10390 = vadd.f32 %v9004, %v10389
  %10391 = vdwg.mxu0
  %10392 = vmatprep.subr.mxu0 %v8991
  %10393 = vmatpush1.msra.mxu0 %v8990
  %10394 = vmatprep.subr.mxu0 %v8951
  %10395 = vmatpush1.msra.mxu0 %v8950
  %10396 = vmatprep.subr.mxu0 %v8911
  %10397 = vmatpush1.msra.mxu0 %v8910
  %10398 = vmatprep.subr.mxu0 %v8871
  %10399 = vmatpush1.msra.mxu0 %v8870
  %10400 = vmatprep.subr.mxu0 %v8831
  %10401 = vmatpush1.msra.mxu0 %v8830
  %10402 = vmatprep.subr.mxu0 %v8791
  %10403 = vmatpush1.msra.mxu0 %v8790
  %10404 = vmatprep.subr.mxu0 %v8751
  %10405 = vmatpush1.msra.mxu0 %v8750
  %10406 = vmatprep.subr.mxu0 %v8711
  %10407 = vmatpush1.msra.mxu0 %v8710
  %10408 = vmatprep.subr.mxu0 %v8671
  %10409 = vmatpush1.msra.mxu0 %v8670
  %10410 = vmatprep.subr.mxu0 %v8631
  %10411 = vmatpush1.msra.mxu0 %v8630
  %10412 = vmatprep.subr.mxu0 %v8591
  %10413 = vmatpush1.msra.mxu0 %v8590
  %10414 = vmatprep.subr.mxu0 %v8551
  %10415 = vmatpush1.msra.mxu0 %v8550
  %10416 = vmatprep.subr.mxu0 %v8511
  %10417 = vmatpush1.msra.mxu0 %v8510
  %10418 = vmatprep.subr.mxu0 %v8471
  %10419 = vmatpush1.msra.mxu0 %v8470
  %10420 = vmatprep.subr.mxu0 %v8431
  %10421 = vmatpush1.msra.mxu0 %v8430
  %10422 = vmatprep.subr.mxu0 %v8391
  %10423 = vmatpush1.msra.mxu0 %v8390
  %10424 = vmatprep.subr.mxu0 0.0
  %10425 = vmatpush2.msra.mxu0 0.0
  %10426 = vmatprep.subr.mxu0 0.0
  %10427 = vmatpush2.msra.mxu0 0.0
  %10428 = vmatprep.subr.mxu0 0.0
  %10429 = vmatpush2.msra.mxu0 0.0
  %10430 = vmatprep.subr.mxu0 0.0
  %10431 = vmatpush2.msra.mxu0 0.0
  %10432 = vmatprep.subr.mxu0 0.0
  %10433 = vmatpush2.msra.mxu0 0.0
  %10434 = vmatprep.subr.mxu0 0.0
  %10435 = vmatpush2.msra.mxu0 0.0
  %10436 = vmatprep.subr.mxu0 0.0
  %10437 = vmatpush2.msra.mxu0 0.0
  %10438 = vmatprep.subr.mxu0 0.0
  %10439 = vmatpush2.msra.mxu0 0.0
  %10440 = vmatprep.subr.mxu0 0.0
  %10441 = vmatpush2.msra.mxu0 0.0
  %10442 = vmatprep.subr.mxu0 0.0
  %10443 = vmatpush2.msra.mxu0 0.0
  %10444 = vmatprep.subr.mxu0 0.0
  %10445 = vmatpush2.msra.mxu0 0.0
  %10446 = vmatprep.subr.mxu0 0.0
  %10447 = vmatpush2.msra.mxu0 0.0
  %10448 = vmatprep.subr.mxu0 0.0
  %10449 = vmatpush2.msra.mxu0 0.0
  %10450 = vmatprep.subr.mxu0 0.0
  %10451 = vmatpush2.msra.mxu0 0.0
  %10452 = vmatprep.subr.mxu0 0.0
  %10453 = vmatpush2.msra.mxu0 0.0
  %10454 = vmatprep.subr.mxu0 0.0
  %10455 = vmatpush2.msra.mxu0 0.0
  %10456 = vmatprep.mubr.f32.mxu0 0.0
  %10457 = vmatmul.mubr.f32.gmra.mxu0 %v8352
  %v10458 = vpop.f32.mrf.mxu0
  %v10459 = vadd.f32 %v8999, %v10458
  %v10460 = vpop.f32.mrf.mxu0
  %v10461 = vadd.f32 %v8999, %v10460
  %10462 = vmatprep.mubr.f32.mxu0 0.0
  %10463 = vmatmul.mubr.f32.gmra.mxu0 %v8353
  %v10464 = vpop.f32.mrf.mxu0
  %v10465 = vadd.f32 %v9004, %v10464
  %v10466 = vpop.f32.mrf.mxu0
  %v10467 = vadd.f32 %v9004, %v10466
  %10468 = vdwg.mxu0
  %10469 = vmatprep.subr.mxu0 %v8993
  %10470 = vmatpush1.msra.mxu0 %v8992
  %10471 = vmatprep.subr.mxu0 %v8953
  %10472 = vmatpush1.msra.mxu0 %v8952
  %10473 = vmatprep.subr.mxu0 %v8913
  %10474 = vmatpush1.msra.mxu0 %v8912
  %10475 = vmatprep.subr.mxu0 %v8873
  %10476 = vmatpush1.msra.mxu0 %v8872
  %10477 = vmatprep.subr.mxu0 %v8833
  %10478 = vmatpush1.msra.mxu0 %v8832
  %10479 = vmatprep.subr.mxu0 %v8793
  %10480 = vmatpush1.msra.mxu0 %v8792
  %10481 = vmatprep.subr.mxu0 %v8753
  %10482 = vmatpush1.msra.mxu0 %v8752
  %10483 = vmatprep.subr.mxu0 %v8713
  %10484 = vmatpush1.msra.mxu0 %v8712
  %10485 = vmatprep.subr.mxu0 %v8673
  %10486 = vmatpush1.msra.mxu0 %v8672
  %10487 = vmatprep.subr.mxu0 %v8633
  %10488 = vmatpush1.msra.mxu0 %v8632
  %10489 = vmatprep.subr.mxu0 %v8593
  %10490 = vmatpush1.msra.mxu0 %v8592
  %10491 = vmatprep.subr.mxu0 %v8553
  %10492 = vmatpush1.msra.mxu0 %v8552
  %10493 = vmatprep.subr.mxu0 %v8513
  %10494 = vmatpush1.msra.mxu0 %v8512
  %10495 = vmatprep.subr.mxu0 %v8473
  %10496 = vmatpush1.msra.mxu0 %v8472
  %10497 = vmatprep.subr.mxu0 %v8433
  %10498 = vmatpush1.msra.mxu0 %v8432
  %10499 = vmatprep.subr.mxu0 %v8393
  %10500 = vmatpush1.msra.mxu0 %v8392
  %10501 = vmatprep.subr.mxu0 0.0
  %10502 = vmatpush2.msra.mxu0 0.0
  %10503 = vmatprep.subr.mxu0 0.0
  %10504 = vmatpush2.msra.mxu0 0.0
  %10505 = vmatprep.subr.mxu0 0.0
  %10506 = vmatpush2.msra.mxu0 0.0
  %10507 = vmatprep.subr.mxu0 0.0
  %10508 = vmatpush2.msra.mxu0 0.0
  %10509 = vmatprep.subr.mxu0 0.0
  %10510 = vmatpush2.msra.mxu0 0.0
  %10511 = vmatprep.subr.mxu0 0.0
  %10512 = vmatpush2.msra.mxu0 0.0
  %10513 = vmatprep.subr.mxu0 0.0
  %10514 = vmatpush2.msra.mxu0 0.0
  %10515 = vmatprep.subr.mxu0 0.0
  %10516 = vmatpush2.msra.mxu0 0.0
  %10517 = vmatprep.subr.mxu0 0.0
  %10518 = vmatpush2.msra.mxu0 0.0
  %10519 = vmatprep.subr.mxu0 0.0
  %10520 = vmatpush2.msra.mxu0 0.0
  %10521 = vmatprep.subr.mxu0 0.0
  %10522 = vmatpush2.msra.mxu0 0.0
  %10523 = vmatprep.subr.mxu0 0.0
  %10524 = vmatpush2.msra.mxu0 0.0
  %10525 = vmatprep.subr.mxu0 0.0
  %10526 = vmatpush2.msra.mxu0 0.0
  %10527 = vmatprep.subr.mxu0 0.0
  %10528 = vmatpush2.msra.mxu0 0.0
  %10529 = vmatprep.subr.mxu0 0.0
  %10530 = vmatpush2.msra.mxu0 0.0
  %10531 = vmatprep.subr.mxu0 0.0
  %10532 = vmatpush2.msra.mxu0 0.0
  %10533 = vmatprep.mubr.f32.mxu0 0.0
  %10534 = vmatmul.mubr.f32.gmra.mxu0 %v8352
  %v10535 = vpop.f32.mrf.mxu0
  %v10536 = vadd.f32 %v8999, %v10535
  %v10537 = vpop.f32.mrf.mxu0
  %v10538 = vadd.f32 %v8999, %v10537
  %10539 = vmatprep.mubr.f32.mxu0 0.0
  %10540 = vmatmul.mubr.f32.gmra.mxu0 %v8353
  %v10541 = vpop.f32.mrf.mxu0
  %v10542 = vadd.f32 %v9004, %v10541
  %v10543 = vpop.f32.mrf.mxu0
  %v10544 = vadd.f32 %v9004, %v10543
  %10545 = vdwg.mxu0
  %vm10546 = vcmp.ge.f32.partialorder %v9073, 0.0
  %vm10547 = vcmp.ge.f32.partialorder %v9075, 0.0
  %vm10548 = vcmp.ge.f32.partialorder %v9150, 0.0
  %vm10549 = vcmp.ge.f32.partialorder %v9152, 0.0
  %vm10550 = vcmp.ge.f32.partialorder %v9227, 0.0
  %vm10551 = vcmp.ge.f32.partialorder %v9229, 0.0
  %vm10552 = vcmp.ge.f32.partialorder %v9304, 0.0
  %vm10553 = vcmp.ge.f32.partialorder %v9306, 0.0
  %vm10554 = vcmp.ge.f32.partialorder %v9381, 0.0
  %vm10555 = vcmp.ge.f32.partialorder %v9383, 0.0
  %vm10556 = vcmp.ge.f32.partialorder %v9458, 0.0
  %vm10557 = vcmp.ge.f32.partialorder %v9460, 0.0
  %vm10558 = vcmp.ge.f32.partialorder %v9535, 0.0
  %vm10559 = vcmp.ge.f32.partialorder %v9537, 0.0
  %vm10560 = vcmp.ge.f32.partialorder %v9612, 0.0
  %vm10561 = vcmp.ge.f32.partialorder %v9614, 0.0
  %vm10562 = vcmp.ge.f32.partialorder %v9689, 0.0
  %vm10563 = vcmp.ge.f32.partialorder %v9691, 0.0
  %vm10564 = vcmp.ge.f32.partialorder %v9766, 0.0
  %vm10565 = vcmp.ge.f32.partialorder %v9768, 0.0
  %vm10566 = vcmp.ge.f32.partialorder %v9843, 0.0
  %vm10567 = vcmp.ge.f32.partialorder %v9845, 0.0
  %vm10568 = vcmp.ge.f32.partialorder %v9920, 0.0
  %vm10569 = vcmp.ge.f32.partialorder %v9922, 0.0
  %vm10570 = vcmp.ge.f32.partialorder %v9997, 0.0
  %vm10571 = vcmp.ge.f32.partialorder %v9999, 0.0
  %vm10572 = vcmp.ge.f32.partialorder %v10074, 0.0
  %vm10573 = vcmp.ge.f32.partialorder %v10076, 0.0
  %vm10574 = vcmp.ge.f32.partialorder %v10151, 0.0
  %vm10575 = vcmp.ge.f32.partialorder %v10153, 0.0
  %vm10576 = vcmp.ge.f32.partialorder %v10228, 0.0
  %vm10577 = vcmp.ge.f32.partialorder %v10230, 0.0
  %vm10578 = vcmp.ge.f32.partialorder %v10305, 0.0
  %vm10579 = vcmp.ge.f32.partialorder %v10307, 0.0
  %vm10580 = vcmp.ge.f32.partialorder %v10382, 0.0
  %vm10581 = vcmp.ge.f32.partialorder %v10384, 0.0
  %vm10582 = vcmp.ge.f32.partialorder %v10459, 0.0
  %vm10583 = vcmp.ge.f32.partialorder %v10461, 0.0
  %vm10584 = vcmp.ge.f32.partialorder %v10536, 0.0
  %vm10585 = vcmp.ge.f32.partialorder %v10538, 0.0
  %vm10586 = vcmp.ge.f32.partialorder %v9079, 0.0
  %vm10587 = vcmp.ge.f32.partialorder %v9081, 0.0
  %vm10588 = vcmp.ge.f32.partialorder %v9156, 0.0
  %vm10589 = vcmp.ge.f32.partialorder %v9158, 0.0
  %vm10590 = vcmp.ge.f32.partialorder %v9233, 0.0
  %vm10591 = vcmp.ge.f32.partialorder %v9235, 0.0
  %vm10592 = vcmp.ge.f32.partialorder %v9310, 0.0
  %vm10593 = vcmp.ge.f32.partialorder %v9312, 0.0
  %vm10594 = vcmp.ge.f32.partialorder %v9387, 0.0
  %vm10595 = vcmp.ge.f32.partialorder %v9389, 0.0
  %vm10596 = vcmp.ge.f32.partialorder %v9464, 0.0
  %vm10597 = vcmp.ge.f32.partialorder %v9466, 0.0
  %vm10598 = vcmp.ge.f32.partialorder %v9541, 0.0
  %vm10599 = vcmp.ge.f32.partialorder %v9543, 0.0
  %vm10600 = vcmp.ge.f32.partialorder %v9618, 0.0
  %vm10601 = vcmp.ge.f32.partialorder %v9620, 0.0
  %vm10602 = vcmp.ge.f32.partialorder %v9695, 0.0
  %vm10603 = vcmp.ge.f32.partialorder %v9697, 0.0
  %vm10604 = vcmp.ge.f32.partialorder %v9772, 0.0
  %vm10605 = vcmp.ge.f32.partialorder %v9774, 0.0
  %vm10606 = vcmp.ge.f32.partialorder %v9849, 0.0
  %vm10607 = vcmp.ge.f32.partialorder %v9851, 0.0
  %vm10608 = vcmp.ge.f32.partialorder %v9926, 0.0
  %vm10609 = vcmp.ge.f32.partialorder %v9928, 0.0
  %vm10610 = vcmp.ge.f32.partialorder %v10003, 0.0
  %vm10611 = vcmp.ge.f32.partialorder %v10005, 0.0
  %vm10612 = vcmp.ge.f32.partialorder %v10080, 0.0
  %vm10613 = vcmp.ge.f32.partialorder %v10082, 0.0
  %vm10614 = vcmp.ge.f32.partialorder %v10157, 0.0
  %vm10615 = vcmp.ge.f32.partialorder %v10159, 0.0
  %vm10616 = vcmp.ge.f32.partialorder %v10234, 0.0
  %vm10617 = vcmp.ge.f32.partialorder %v10236, 0.0
  %vm10618 = vcmp.ge.f32.partialorder %v10311, 0.0
  %vm10619 = vcmp.ge.f32.partialorder %v10313, 0.0
  %vm10620 = vcmp.ge.f32.partialorder %v10388, 0.0
  %vm10621 = vcmp.ge.f32.partialorder %v10390, 0.0
  %vm10622 = vcmp.ge.f32.partialorder %v10465, 0.0
  %vm10623 = vcmp.ge.f32.partialorder %v10467, 0.0
  %vm10624 = vcmp.ge.f32.partialorder %v10542, 0.0
  %vm10625 = vcmp.ge.f32.partialorder %v10544, 0.0
  %v10626 = vmul.f32 %v9073, 0.2
  %v10627 = vmul.f32 %v9075, 0.2
  %v10628 = vmul.f32 %v9150, 0.2
  %v10629 = vmul.f32 %v9152, 0.2
  %v10630 = vmul.f32 %v9227, 0.2
  %v10631 = vmul.f32 %v9229, 0.2
  %v10632 = vmul.f32 %v9304, 0.2
  %v10633 = vmul.f32 %v9306, 0.2
  %v10634 = vmul.f32 %v9381, 0.2
  %v10635 = vmul.f32 %v9383, 0.2
  %v10636 = vmul.f32 %v9458, 0.2
  %v10637 = vmul.f32 %v9460, 0.2
  %v10638 = vmul.f32 %v9535, 0.2
  %v10639 = vmul.f32 %v9537, 0.2
  %v10640 = vmul.f32 %v9612, 0.2
  %v10641 = vmul.f32 %v9614, 0.2
  %v10642 = vmul.f32 %v9689, 0.2
  %v10643 = vmul.f32 %v9691, 0.2
  %v10644 = vmul.f32 %v9766, 0.2
  %v10645 = vmul.f32 %v9768, 0.2
  %v10646 = vmul.f32 %v9843, 0.2
  %v10647 = vmul.f32 %v9845, 0.2
  %v10648 = vmul.f32 %v9920, 0.2
  %v10649 = vmul.f32 %v9922, 0.2
  %v10650 = vmul.f32 %v9997, 0.2
  %v10651 = vmul.f32 %v9999, 0.2
  %v10652 = vmul.f32 %v10074, 0.2
  %v10653 = vmul.f32 %v10076, 0.2
  %v10654 = vmul.f32 %v10151, 0.2
  %v10655 = vmul.f32 %v10153, 0.2
  %v10656 = vmul.f32 %v10228, 0.2
  %v10657 = vmul.f32 %v10230, 0.2
  %v10658 = vmul.f32 %v10305, 0.2
  %v10659 = vmul.f32 %v10307, 0.2
  %v10660 = vmul.f32 %v10382, 0.2
  %v10661 = vmul.f32 %v10384, 0.2
  %v10662 = vmul.f32 %v10459, 0.2
  %v10663 = vmul.f32 %v10461, 0.2
  %v10664 = vmul.f32 %v10536, 0.2
  %v10665 = vmul.f32 %v10538, 0.2
  %v10666 = vmul.f32 %v9079, 0.2
  %v10667 = vmul.f32 %v9081, 0.2
  %v10668 = vmul.f32 %v9156, 0.2
  %v10669 = vmul.f32 %v9158, 0.2
  %v10670 = vmul.f32 %v9233, 0.2
  %v10671 = vmul.f32 %v9235, 0.2
  %v10672 = vmul.f32 %v9310, 0.2
  %v10673 = vmul.f32 %v9312, 0.2
  %v10674 = vmul.f32 %v9387, 0.2
  %v10675 = vmul.f32 %v9389, 0.2
  %v10676 = vmul.f32 %v9464, 0.2
  %v10677 = vmul.f32 %v9466, 0.2
  %v10678 = vmul.f32 %v9541, 0.2
  %v10679 = vmul.f32 %v9543, 0.2
  %v10680 = vmul.f32 %v9618, 0.2
  %v10681 = vmul.f32 %v9620, 0.2
  %v10682 = vmul.f32 %v9695, 0.2
  %v10683 = vmul.f32 %v9697, 0.2
  %v10684 = vmul.f32 %v9772, 0.2
  %v10685 = vmul.f32 %v9774, 0.2
  %v10686 = vmul.f32 %v9849, 0.2
  %v10687 = vmul.f32 %v9851, 0.2
  %v10688 = vmul.f32 %v9926, 0.2
  %v10689 = vmul.f32 %v9928, 0.2
  %v10690 = vmul.f32 %v10003, 0.2
  %v10691 = vmul.f32 %v10005, 0.2
  %v10692 = vmul.f32 %v10080, 0.2
  %v10693 = vmul.f32 %v10082, 0.2
  %v10694 = vmul.f32 %v10157, 0.2
  %v10695 = vmul.f32 %v10159, 0.2
  %v10696 = vmul.f32 %v10234, 0.2
  %v10697 = vmul.f32 %v10236, 0.2
  %v10698 = vmul.f32 %v10311, 0.2
  %v10699 = vmul.f32 %v10313, 0.2
  %v10700 = vmul.f32 %v10388, 0.2
  %v10701 = vmul.f32 %v10390, 0.2
  %v10702 = vmul.f32 %v10465, 0.2
  %v10703 = vmul.f32 %v10467, 0.2
  %v10704 = vmul.f32 %v10542, 0.2
  %v10705 = vmul.f32 %v10544, 0.2
  %v10706 = vsel %vm10546, %v9073, %v10626
  %v10707 = vsel %vm10547, %v9075, %v10627
  %v10708 = vsel %vm10548, %v9150, %v10628
  %v10709 = vsel %vm10549, %v9152, %v10629
  %v10710 = vsel %vm10550, %v9227, %v10630
  %v10711 = vsel %vm10551, %v9229, %v10631
  %v10712 = vsel %vm10552, %v9304, %v10632
  %v10713 = vsel %vm10553, %v9306, %v10633
  %v10714 = vsel %vm10554, %v9381, %v10634
  %v10715 = vsel %vm10555, %v9383, %v10635
  %v10716 = vsel %vm10556, %v9458, %v10636
  %v10717 = vsel %vm10557, %v9460, %v10637
  %v10718 = vsel %vm10558, %v9535, %v10638
  %v10719 = vsel %vm10559, %v9537, %v10639
  %v10720 = vsel %vm10560, %v9612, %v10640
  %v10721 = vsel %vm10561, %v9614, %v10641
  %v10722 = vsel %vm10562, %v9689, %v10642
  %v10723 = vsel %vm10563, %v9691, %v10643
  %v10724 = vsel %vm10564, %v9766, %v10644
  %v10725 = vsel %vm10565, %v9768, %v10645
  %v10726 = vsel %vm10566, %v9843, %v10646
  %v10727 = vsel %vm10567, %v9845, %v10647
  %v10728 = vsel %vm10568, %v9920, %v10648
  %v10729 = vsel %vm10569, %v9922, %v10649
  %v10730 = vsel %vm10570, %v9997, %v10650
  %v10731 = vsel %vm10571, %v9999, %v10651
  %v10732 = vsel %vm10572, %v10074, %v10652
  %v10733 = vsel %vm10573, %v10076, %v10653
  %v10734 = vsel %vm10574, %v10151, %v10654
  %v10735 = vsel %vm10575, %v10153, %v10655
  %v10736 = vsel %vm10576, %v10228, %v10656
  %v10737 = vsel %vm10577, %v10230, %v10657
  %v10738 = vsel %vm10578, %v10305, %v10658
  %v10739 = vsel %vm10579, %v10307, %v10659
  %v10740 = vsel %vm10580, %v10382, %v10660
  %v10741 = vsel %vm10581, %v10384, %v10661
  %v10742 = vsel %vm10582, %v10459, %v10662
  %v10743 = vsel %vm10583, %v10461, %v10663
  %v10744 = vsel %vm10584, %v10536, %v10664
  %v10745 = vsel %vm10585, %v10538, %v10665
  %v10746 = vsel %vm10586, %v9079, %v10666
  %v10747 = vsel %vm10587, %v9081, %v10667
  %v10748 = vsel %vm10588, %v9156, %v10668
  %v10749 = vsel %vm10589, %v9158, %v10669
  %v10750 = vsel %vm10590, %v9233, %v10670
  %v10751 = vsel %vm10591, %v9235, %v10671
  %v10752 = vsel %vm10592, %v9310, %v10672
  %v10753 = vsel %vm10593, %v9312, %v10673
  %v10754 = vsel %vm10594, %v9387, %v10674
  %v10755 = vsel %vm10595, %v9389, %v10675
  %v10756 = vsel %vm10596, %v9464, %v10676
  %v10757 = vsel %vm10597, %v9466, %v10677
  %v10758 = vsel %vm10598, %v9541, %v10678
  %v10759 = vsel %vm10599, %v9543, %v10679
  %v10760 = vsel %vm10600, %v9618, %v10680
  %v10761 = vsel %vm10601, %v9620, %v10681
  %v10762 = vsel %vm10602, %v9695, %v10682
  %v10763 = vsel %vm10603, %v9697, %v10683
  %v10764 = vsel %vm10604, %v9772, %v10684
  %v10765 = vsel %vm10605, %v9774, %v10685
  %v10766 = vsel %vm10606, %v9849, %v10686
  %v10767 = vsel %vm10607, %v9851, %v10687
  %v10768 = vsel %vm10608, %v9926, %v10688
  %v10769 = vsel %vm10609, %v9928, %v10689
  %v10770 = vsel %vm10610, %v10003, %v10690
  %v10771 = vsel %vm10611, %v10005, %v10691
  %v10772 = vsel %vm10612, %v10080, %v10692
  %v10773 = vsel %vm10613, %v10082, %v10693
  %v10774 = vsel %vm10614, %v10157, %v10694
  %v10775 = vsel %vm10615, %v10159, %v10695
  %v10776 = vsel %vm10616, %v10234, %v10696
  %v10777 = vsel %vm10617, %v10236, %v10697
  %v10778 = vsel %vm10618, %v10311, %v10698
  %v10779 = vsel %vm10619, %v10313, %v10699
  %v10780 = vsel %vm10620, %v10388, %v10700
  %v10781 = vsel %vm10621, %v10390, %v10701
  %v10782 = vsel %vm10622, %v10465, %v10702
  %v10783 = vsel %vm10623, %v10467, %v10703
  %v10784 = vsel %vm10624, %v10542, %v10704
  %v10785 = vsel %vm10625, %v10544, %v10705
  %v10786 = vld [vmem:[%s6] sm:$0xff]
  %v10787 = vld [vmem:[%s6 + $0x8] sm:$0xff]
  %v10788 = vld [vmem:[%s6 + $0x10] sm:$0xff]
  %v10789 = vld [vmem:[%s6 + $0x18] sm:$0xff]
  %v10790 = vld [vmem:[%s6 + $0x20] sm:$0xff]
  %v10791 = vld [vmem:[%s6 + $0x28] sm:$0xff]
  %v10792 = vld [vmem:[%s6 + $0x30] sm:$0xff]
  %v10793 = vld [vmem:[%s6 + $0x38] sm:$0xff]
  %v10794 = vld [vmem:[%s6 + $0x40] sm:$0xff]
  %v10795 = vld [vmem:[%s6 + $0x48] sm:$0xff]
  %v10796 = vmul.f32 %v10706, %v10786
  %v10797 = vmul.f32 %v10707, %v10787
  %v10798 = vmul.f32 %v10708, %v10788
  %v10799 = vmul.f32 %v10709, %v10789
  %v10800 = vmul.f32 %v10710, %v10790
  %v10801 = vmul.f32 %v10746, %v10791
  %v10802 = vmul.f32 %v10747, %v10792
  %v10803 = vmul.f32 %v10748, %v10793
  %v10804 = vmul.f32 %v10749, %v10794
  %v10805 = vmul.f32 %v10750, %v10795
  %v10806 = vadd.f32 %v10796, %v10797
  %v10807 = vadd.f32 %v10806, %v10798
  %v10808 = vadd.f32 %v10807, %v10799
  %v10809 = vadd.f32 %v10808, %v10800
  %10810 = vadd.xlane.f32.xlu0 %v10809
  %v10811 = vpop.xlane.xlu0 %10810
  %v10812 = vadd.f32 %v10801, %v10802
  %v10813 = vadd.f32 %v10812, %v10803
  %v10814 = vadd.f32 %v10813, %v10804
  %v10815 = vadd.f32 %v10814, %v10805
  %10816 = vadd.xlane.f32.xlu0 %v10815
  %v10817 = vpop.xlane.xlu0 %10816
  %v10818 = vadd.f32 %v10811, %v10817
  %v10819 = vrot.slane %v10818, 4
  %v10820 = vadd.f32 %v10818, %v10819
  %v10821 = vrot.slane %v10820, 2
  %v10822 = vadd.f32 %v10820, %v10821
  %v10823 = vrot.slane %v10822, 1
  %v10824 = vadd.f32 %v10822, %v10823
  %v10825 = vmul.f32 %v10711, %v10786
  %v10826 = vmul.f32 %v10712, %v10787
  %v10827 = vmul.f32 %v10713, %v10788
  %v10828 = vmul.f32 %v10714, %v10789
  %v10829 = vmul.f32 %v10715, %v10790
  %v10830 = vmul.f32 %v10751, %v10791
  %v10831 = vmul.f32 %v10752, %v10792
  %v10832 = vmul.f32 %v10753, %v10793
  %v10833 = vmul.f32 %v10754, %v10794
  %v10834 = vmul.f32 %v10755, %v10795
  %v10835 = vadd.f32 %v10825, %v10826
  %v10836 = vadd.f32 %v10835, %v10827
  %v10837 = vadd.f32 %v10836, %v10828
  %v10838 = vadd.f32 %v10837, %v10829
  %10839 = vadd.xlane.f32.xlu0 %v10838
  %v10840 = vpop.xlane.xlu0 %10839
  %v10841 = vadd.f32 %v10830, %v10831
  %v10842 = vadd.f32 %v10841, %v10832
  %v10843 = vadd.f32 %v10842, %v10833
  %v10844 = vadd.f32 %v10843, %v10834
  %10845 = vadd.xlane.f32.xlu0 %v10844
  %v10846 = vpop.xlane.xlu0 %10845
  %v10847 = vadd.f32 %v10840, %v10846
  %v10848 = vrot.slane %v10847, 4
  %v10849 = vadd.f32 %v10847, %v10848
  %v10850 = vrot.slane %v10849, 2
  %v10851 = vadd.f32 %v10849, %v10850
  %v10852 = vrot.slane %v10851, 1
  %v10853 = vadd.f32 %v10851, %v10852
  %v10854 = vmul.f32 %v10716, %v10786
  %v10855 = vmul.f32 %v10717, %v10787
  %v10856 = vmul.f32 %v10718, %v10788
  %v10857 = vmul.f32 %v10719, %v10789
  %v10858 = vmul.f32 %v10720, %v10790
  %v10859 = vmul.f32 %v10756, %v10791
  %v10860 = vmul.f32 %v10757, %v10792
  %v10861 = vmul.f32 %v10758, %v10793
  %v10862 = vmul.f32 %v10759, %v10794
  %v10863 = vmul.f32 %v10760, %v10795
  %v10864 = vadd.f32 %v10854, %v10855
  %v10865 = vadd.f32 %v10864, %v10856
  %v10866 = vadd.f32 %v10865, %v10857
  %v10867 = vadd.f32 %v10866, %v10858
  %10868 = vadd.xlane.f32.xlu0 %v10867
  %v10869 = vpop.xlane.xlu0 %10868
  %v10870 = vadd.f32 %v10859, %v10860
  %v10871 = vadd.f32 %v10870, %v10861
  %v10872 = vadd.f32 %v10871, %v10862
  %v10873 = vadd.f32 %v10872, %v10863
  %10874 = vadd.xlane.f32.xlu0 %v10873
  %v10875 = vpop.xlane.xlu0 %10874
  %v10876 = vadd.f32 %v10869, %v10875
  %v10877 = vrot.slane %v10876, 4
  %v10878 = vadd.f32 %v10876, %v10877
  %v10879 = vrot.slane %v10878, 2
  %v10880 = vadd.f32 %v10878, %v10879
  %v10881 = vrot.slane %v10880, 1
  %v10882 = vadd.f32 %v10880, %v10881
  %v10883 = vmul.f32 %v10721, %v10786
  %v10884 = vmul.f32 %v10722, %v10787
  %v10885 = vmul.f32 %v10723, %v10788
  %v10886 = vmul.f32 %v10724, %v10789
  %v10887 = vmul.f32 %v10725, %v10790
  %v10888 = vmul.f32 %v10761, %v10791
  %v10889 = vmul.f32 %v10762, %v10792
  %v10890 = vmul.f32 %v10763, %v10793
  %v10891 = vmul.f32 %v10764, %v10794
  %v10892 = vmul.f32 %v10765, %v10795
  %v10893 = vadd.f32 %v10883, %v10884
  %v10894 = vadd.f32 %v10893, %v10885
  %v10895 = vadd.f32 %v10894, %v10886
  %v10896 = vadd.f32 %v10895, %v10887
  %10897 = vadd.xlane.f32.xlu0 %v10896
  %v10898 = vpop.xlane.xlu0 %10897
  %v10899 = vadd.f32 %v10888, %v10889
  %v10900 = vadd.f32 %v10899, %v10890
  %v10901 = vadd.f32 %v10900, %v10891
  %v10902 = vadd.f32 %v10901, %v10892
  %10903 = vadd.xlane.f32.xlu0 %v10902
  %v10904 = vpop.xlane.xlu0 %10903
  %v10905 = vadd.f32 %v10898, %v10904
  %v10906 = vrot.slane %v10905, 4
  %v10907 = vadd.f32 %v10905, %v10906
  %v10908 = vrot.slane %v10907, 2
  %v10909 = vadd.f32 %v10907, %v10908
  %v10910 = vrot.slane %v10909, 1
  %v10911 = vadd.f32 %v10909, %v10910
  %v10912 = vmul.f32 %v10726, %v10786
  %v10913 = vmul.f32 %v10727, %v10787
  %v10914 = vmul.f32 %v10728, %v10788
  %v10915 = vmul.f32 %v10729, %v10789
  %v10916 = vmul.f32 %v10730, %v10790
  %v10917 = vmul.f32 %v10766, %v10791
  %v10918 = vmul.f32 %v10767, %v10792
  %v10919 = vmul.f32 %v10768, %v10793
  %v10920 = vmul.f32 %v10769, %v10794
  %v10921 = vmul.f32 %v10770, %v10795
  %v10922 = vadd.f32 %v10912, %v10913
  %v10923 = vadd.f32 %v10922, %v10914
  %v10924 = vadd.f32 %v10923, %v10915
  %v10925 = vadd.f32 %v10924, %v10916
  %10926 = vadd.xlane.f32.xlu0 %v10925
  %v10927 = vpop.xlane.xlu0 %10926
  %v10928 = vadd.f32 %v10917, %v10918
  %v10929 = vadd.f32 %v10928, %v10919
  %v10930 = vadd.f32 %v10929, %v10920
  %v10931 = vadd.f32 %v10930, %v10921
  %10932 = vadd.xlane.f32.xlu0 %v10931
  %v10933 = vpop.xlane.xlu0 %10932
  %v10934 = vadd.f32 %v10927, %v10933
  %v10935 = vrot.slane %v10934, 4
  %v10936 = vadd.f32 %v10934, %v10935
  %v10937 = vrot.slane %v10936, 2
  %v10938 = vadd.f32 %v10936, %v10937
  %v10939 = vrot.slane %v10938, 1
  %v10940 = vadd.f32 %v10938, %v10939
  %v10941 = vmul.f32 %v10731, %v10786
  %v10942 = vmul.f32 %v10732, %v10787
  %v10943 = vmul.f32 %v10733, %v10788
  %v10944 = vmul.f32 %v10734, %v10789
  %v10945 = vmul.f32 %v10735, %v10790
  %v10946 = vmul.f32 %v10771, %v10791
  %v10947 = vmul.f32 %v10772, %v10792
  %v10948 = vmul.f32 %v10773, %v10793
  %v10949 = vmul.f32 %v10774, %v10794
  %v10950 = vmul.f32 %v10775, %v10795
  %v10951 = vadd.f32 %v10941, %v10942
  %v10952 = vadd.f32 %v10951, %v10943
  %v10953 = vadd.f32 %v10952, %v10944
  %v10954 = vadd.f32 %v10953, %v10945
  %10955 = vadd.xlane.f32.xlu0 %v10954
  %v10956 = vpop.xlane.xlu0 %10955
  %v10957 = vadd.f32 %v10946, %v10947
  %v10958 = vadd.f32 %v10957, %v10948
  %v10959 = vadd.f32 %v10958, %v10949
  %v10960 = vadd.f32 %v10959, %v10950
  %10961 = vadd.xlane.f32.xlu0 %v10960
  %v10962 = vpop.xlane.xlu0 %10961
  %v10963 = vadd.f32 %v10956, %v10962
  %v10964 = vrot.slane %v10963, 4
  %v10965 = vadd.f32 %v10963, %v10964
  %v10966 = vrot.slane %v10965, 2
  %v10967 = vadd.f32 %v10965, %v10966
  %v10968 = vrot.slane %v10967, 1
  %v10969 = vadd.f32 %v10967, %v10968
  %v10970 = vmul.f32 %v10736, %v10786
  %v10971 = vmul.f32 %v10737, %v10787
  %v10972 = vmul.f32 %v10738, %v10788
  %v10973 = vmul.f32 %v10739, %v10789
  %v10974 = vmul.f32 %v10740, %v10790
  %v10975 = vmul.f32 %v10776, %v10791
  %v10976 = vmul.f32 %v10777, %v10792
  %v10977 = vmul.f32 %v10778, %v10793
  %v10978 = vmul.f32 %v10779, %v10794
  %v10979 = vmul.f32 %v10780, %v10795
  %v10980 = vadd.f32 %v10970, %v10971
  %v10981 = vadd.f32 %v10980, %v10972
  %v10982 = vadd.f32 %v10981, %v10973
  %v10983 = vadd.f32 %v10982, %v10974
  %10984 = vadd.xlane.f32.xlu0 %v10983
  %v10985 = vpop.xlane.xlu0 %10984
  %v10986 = vadd.f32 %v10975, %v10976
  %v10987 = vadd.f32 %v10986, %v10977
  %v10988 = vadd.f32 %v10987, %v10978
  %v10989 = vadd.f32 %v10988, %v10979
  %10990 = vadd.xlane.f32.xlu0 %v10989
  %v10991 = vpop.xlane.xlu0 %10990
  %v10992 = vadd.f32 %v10985, %v10991
  %v10993 = vrot.slane %v10992, 4
  %v10994 = vadd.f32 %v10992, %v10993
  %v10995 = vrot.slane %v10994, 2
  %v10996 = vadd.f32 %v10994, %v10995
  %v10997 = vrot.slane %v10996, 1
  %v10998 = vadd.f32 %v10996, %v10997
  %v10999 = vmul.f32 %v10741, %v10786
  %v11000 = vmul.f32 %v10742, %v10787
  %v11001 = vmul.f32 %v10743, %v10788
  %v11002 = vmul.f32 %v10744, %v10789
  %v11003 = vmul.f32 %v10745, %v10790
  %v11004 = vmul.f32 %v10781, %v10791
  %v11005 = vmul.f32 %v10782, %v10792
  %v11006 = vmul.f32 %v10783, %v10793
  %v11007 = vmul.f32 %v10784, %v10794
  %v11008 = vmul.f32 %v10785, %v10795
  %v11009 = vadd.f32 %v10999, %v11000
  %v11010 = vadd.f32 %v11009, %v11001
  %v11011 = vadd.f32 %v11010, %v11002
  %v11012 = vadd.f32 %v11011, %v11003
  %11013 = vadd.xlane.f32.xlu0 %v11012
  %v11014 = vpop.xlane.xlu0 %11013
  %v11015 = vadd.f32 %v11004, %v11005
  %v11016 = vadd.f32 %v11015, %v11006
  %v11017 = vadd.f32 %v11016, %v11007
  %v11018 = vadd.f32 %v11017, %v11008
  %11019 = vadd.xlane.f32.xlu0 %v11018
  %v11020 = vpop.xlane.xlu0 %11019
  %v11021 = vadd.f32 %v11014, %v11020
  %v11022 = vrot.slane %v11021, 4
  %v11023 = vadd.f32 %v11021, %v11022
  %v11024 = vrot.slane %v11023, 2
  %v11025 = vadd.f32 %v11023, %v11024
  %v11026 = vrot.slane %v11025, 1
  %v11027 = vadd.f32 %v11025, %v11026
  %vm11028 = vcmask 1040384
  %v11029 = vsel %vm11028, %v10824, %v10853
  %vm11030 = vcmask 1041408
  %v11031 = vsel %vm11030, %v11029, %v10882
  %vm11032 = vcmask 1042432
  %v11033 = vsel %vm11032, %v11031, %v10911
  %vm11034 = vcmask 1043456
  %v11035 = vsel %vm11034, %v11033, %v10940
  %vm11036 = vcmask 1044480
  %v11037 = vsel %vm11036, %v11035, %v10969
  %vm11038 = vcmask 1045504
  %v11039 = vsel %vm11038, %v11037, %v10998
  %vm11040 = vcmask 1046528
  %v11041 = vsel %vm11040, %v11039, %v11027
  %v11042 = vld [vmem:[#allocation3] sm:$0x1]
  %v11044 = vlaneseq
  %v11045 = vshrl.u32 %v11044, 7
  %v11046 = vsub.s32 0, %v11045
  %v11047 = vrot.slane %v11042, %v11046
  %v11049 = vadd.f32 %v11041, %v11047
  %v11050 = vsub.f32 0.0, %v11049
  %v11051 = vmul.f32 %v11050, 1.442695
  %v11052 = vpow.pop %v11051
  %v11053 = vadd.f32 %v11052, 1.0
  %v11054 = vrcp.pop %v11053
  %v11055 = vmul.f32 1.0, %v11054
  %vm11056 = vcmask 7168
  %11057 = vst.msk [vmem:[%s8] sm:$0xff] %vm11056, %v11055
  // Predicated region
  $region34: #{cnn_discriminator_forward.1} parent=0 // pred_check
    _
  $region35: #{cnn_discriminator_forward.1} parent=0 // pred_check_branch
    %11059 = sbr.rel (0) target = $region37
  $region36: #{cnn_discriminator_forward.1} parent=0 // pred_region
    _
  $region37: #{cnn_discriminator_forward.1} parent=0 // pred_fallthru
    _
  // Predicated region
  $region38: #{cnn_discriminator_forward.1} parent=0 // pred_check
    _
  $region39: #{cnn_discriminator_forward.1} parent=0 // pred_check_branch
    %11061 = sbr.rel (0) target = $region41
  $region40: #{cnn_discriminator_forward.1} parent=0 // pred_region
    _
  $region41: #{cnn_discriminator_forward.1} parent=0 // pred_fallthru
    _

</llo_original>
